<compile_context>
chip_gen: v5e
topology: v5e:2x2
jax: 0.10.0
libtpu: 0.0.40
codegen_flags: <defaults>
</compile_context>

<pallas_src>
import math

import jax
import jax.numpy as jnp
from jax.experimental import pallas as pl
from jax.experimental.pallas import tpu as pltpu

# ----------------------------- config (small, deterministic) -----------------
NUM_CLASS = 3
INPUT_CHANNELS = 4
GRID_SIZE = (16, 16)
FEATURE_MAP_STRIDE = 1
VOXEL_SIZE = (0.2, 0.2)
POINT_CLOUD_RANGE = (-1.6, -1.6, -3.0, 1.6, 1.6, 1.0)
SHARED_CONV_CH = 64          # hard-coded in CenterHead.__init__
SHARED_OUT_CH = 128          # hard-coded in CenterHead.__init__
BN_EPS = 1e-5

H = GRID_SIZE[0] // FEATURE_MAP_STRIDE
W = GRID_SIZE[1] // FEATURE_MAP_STRIDE
HW = H * W
assert H == W and (W & (W - 1)) == 0, "in-kernel grid coords assume square power-of-2 map"
LOG2W = W.bit_length() - 1

# COMMON_HEADS (standard CenterPoint config) + 'hm' appended last, as in __init__
HEAD_ORDER = ("center", "center_z", "dim", "rot", "iou", "hm")
HEAD_OUT = {"center": 2, "center_z": 1, "dim": 3, "rot": 2, "iou": 1, "hm": NUM_CLASS}
N_HEADS = len(HEAD_ORDER)
OC_PAD = 16                  # per-head conv2 output channels padded to 16 rows
N_OUT_ROWS = NUM_CLASS + 7   # 3 cls + [x, y, z, dim(3), rot]

BF16 = jnp.bfloat16
F32 = jnp.float32


# ----------------------------- the fused kernel -------------------------------
def _center_head_kernel(x_ref, w1_ref, b1_ref, w2_ref, b2_ref,
                        wh1_ref, bh1_ref, wh2_ref, bh2_ref,
                        out_ref, s2p_ref, hs_ref):
    i = pl.program_id(0)

    # ---- 9 conv-tap lane masks (pixels on lanes; boundary zeros of padding=1) ----
    kx = jax.lax.broadcasted_iota(jnp.int32, (1, HW), 1)
    hh = kx >> LOG2W                      # ys grid (row)
    ww = kx & (W - 1)                     # xs grid (col)
    taps = []                             # (lane shift, mask | None) per (dy, dx)
    for dy in (-1, 0, 1):
        for dx in (-1, 0, 1):
            if dy == 0 and dx == 0:
                taps.append((0, None))
            else:
                m = ((hh + dy >= 0) & (hh + dy < H) &
                     (ww + dx >= 0) & (ww + dx < W)).astype(F32)
                taps.append((dy * W + dx, m))

    def tap_shift(v, s, m):
        # v: (C, HW) f32.  result[c, k] = valid * v[c, k + s]  (zero outside the map)
        u = v if s == 0 else jnp.roll(v, -s, axis=1)
        return u if m is None else u * m

    def conv3x3(v, w_ref_, b_ref_):
        # im2col-by-lane-shift: (Cout, 9*Cin) @ (9*Cin, HW) on the MXU (bf16, f32 acc)
        patch = jnp.concatenate([tap_shift(v, s, m) for s, m in taps], axis=0)
        acc = jnp.dot(w_ref_[...], patch.astype(BF16), preferred_element_type=F32)
        return jnp.maximum(acc + b_ref_[...], 0.0)   # folded conv-bias + BN, then ReLU

    # ---- shared_conv (2 x conv3x3+BN+ReLU) and the cached head-conv1 patch, once ----
    @pl.when(i == 0)
    def _():
        s1 = conv3x3(x_ref[...], w1_ref, b1_ref)                     # (64, 256)
        s2 = conv3x3(s1, w2_ref, b2_ref)                             # (128, 256)
        s2p_ref[...] = jnp.concatenate(
            [tap_shift(s2, s, m) for s, m in taps], axis=0).astype(BF16)   # (1152, 256)

    # ---- SeparateHead branch i (grid-streamed weights) ---------------------------
    # conv1: (128, 1152) @ (1152, 256) + folded BN bias, ReLU
    h1 = jnp.maximum(
        jnp.dot(wh1_ref[0], s2p_ref[...], preferred_element_type=F32) + bh1_ref[0],
        0.0)                                                          # (128, 256) f32
    # conv2 as matmul-then-shift: one dot, then 9 {roll, mask, add} on 16-row slabs
    t = jnp.dot(wh2_ref[0], h1.astype(BF16), preferred_element_type=F32)   # (144, 256)
    acc = None
    for tidx, (s, m) in enumerate(taps):
        part = tap_shift(t[tidx * OC_PAD:(tidx + 1) * OC_PAD, :], s, m)
        acc = part if acc is None else acc + part
    hs_ref[i] = acc + bh2_ref[0]                                      # (16, 256) f32

    # ---- predict_tensorrt decode, lane-dense, last iteration only ----------------
    @pl.when(i == pl.num_programs(0) - 1)
    def _():
        reg = hs_ref[0]                               # center:   rows 0 (x), 1 (y)
        hei = hs_ref[1][0:1, :]                       # center_z
        dims = jnp.exp(hs_ref[2][0:3, :])             # dim
        rot = hs_ref[3]                               # rot:      rows 0 (sin), 1 (cos)
        iou = jnp.clip(hs_ref[4][0:1, :], 0.0, 1.0)   # iou
        hm = 1.0 / (1.0 + jnp.exp(-hs_ref[5][0:3, :]))
        cls = hm * iou

        xs = (ww.astype(F32) + reg[0:1, :]) * (FEATURE_MAP_STRIDE * VOXEL_SIZE[0]) \
            + POINT_CLOUD_RANGE[0]
        ys = (hh.astype(F32) + reg[1:2, :]) * (FEATURE_MAP_STRIDE * VOXEL_SIZE[1]) \
            + POINT_CLOUD_RANGE[1]

        # reference atan2: atan(y/x), then +pi where x < 0 (y != 0).
        # TODO(synk): lax.atan has no guaranteed Mosaic lowering, so atan is a
        # Cephes-style f32 range-reduced polynomial (error ~1e-7) on the VPU.
        rots = rot[0:1, :]
        rotc = rot[1:2, :]
        r = rots / rotc
        az = jnp.abs(r)
        big = az > 2.414213562373095          # tan(3*pi/8)
        mid = az > 0.4142135623730951         # tan(pi/8)
        xr = jnp.where(big, -1.0 / jnp.where(big, az, 1.0),
                       jnp.where(mid, (az - 1.0) / (az + 1.0), az))
        y0 = jnp.where(big, 0.5 * math.pi, jnp.where(mid, 0.25 * math.pi, 0.0))
        z2 = xr * xr
        poly = ((8.05374449538e-2 * z2 - 1.38776856032e-1) * z2
                + 1.99777106478e-1) * z2 - 3.33329491539e-1
        ang = y0 + xr + xr * z2 * poly
        ang = jnp.where(r < 0, -ang, ang)
        quad = ((rots > 0) & (rotc < 0)) | ((rots < 0) & (rotc < 0))
        ang = jnp.where(quad, ang + math.pi, ang)

        # rows: 0-2 cls (sigmoid(hm)*iou), 3 x, 4 y, 5 z, 6-8 dim, 9 rot  -> one
        # unmasked 256-lane store.
        out_ref[...] = jnp.concatenate([cls, xs, ys, hei, dims, ang], axis=0)


# ----------------------------- forward wrapper --------------------------------
def center_head_forward(x_nchw, fp):
    # PyTorch input is NCHW with batch=1 (predict_tensorrt's reshape assumes it);
    # NCHW is already channel-major, so (C, H*W) is a plain reshape.
    x_cm = x_nchw[0].reshape(INPUT_CHANNELS, HW).astype(jnp.float32)

    args = (x_cm, fp["w1"], fp["b1"], fp["w2"], fp["b2"],
            fp["wh1"], fp["bh1"], fp["wh2"], fp["bh2"])

    def full_spec(a):
        blk = a.shape
        return pl.BlockSpec(blk, lambda i, _n=len(blk): (0,) * _n)

    def per_head_spec(a):
        blk = (1,) + a.shape[1:]
        return pl.BlockSpec(blk, lambda i, _n=len(blk): (i,) + (0,) * (_n - 1))

    in_specs = [full_spec(x_cm), full_spec(fp["w1"]), full_spec(fp["b1"]),
                full_spec(fp["w2"]), full_spec(fp["b2"]),
                per_head_spec(fp["wh1"]), per_head_spec(fp["bh1"]),
                per_head_spec(fp["wh2"]), per_head_spec(fp["bh2"])]

    out = pl.pallas_call(
        _center_head_kernel,
        out_shape=jax.ShapeDtypeStruct((N_OUT_ROWS, HW), jnp.float32),
        grid=(N_HEADS,),
        in_specs=in_specs,
        out_specs=pl.BlockSpec((N_OUT_ROWS, HW), lambda i: (0, 0)),
        scratch_shapes=[
            pltpu.VMEM((9 * SHARED_OUT_CH, HW), jnp.bfloat16),   # cached conv1 patch
            pltpu.VMEM((N_HEADS, OC_PAD, HW), jnp.float32),      # per-head raw outputs
        ],
        compiler_params=pltpu.CompilerParams(
            dimension_semantics=("arbitrary",),
            vmem_limit_bytes=32 * 1024 * 1024,
        ),
    )(*args)

    out_t = out.T                                    # (H*W, 10)
    cls_preds = out_t[:, 0:NUM_CLASS]
    box_preds = out_t[:, NUM_CLASS:NUM_CLASS + 7]
    return cls_preds, box_preds


# ----------------------------- parameter init / folding -----------------------
def init_params(key):
    keys = jax.random.split(key, 40)
    ki = iter(keys)

    def conv(cin, cout, bias_fill=0.0):
        std = math.sqrt(2.0 / (9 * cin))                 # kaiming-normal-like
        w = jax.random.normal(next(ki), (3, 3, cin, cout), jnp.float32) * std
        b = jnp.full((cout,), bias_fill, jnp.float32)
        return w, b

    def bn(c):
        gamma = jnp.ones((c,), jnp.float32)
        beta = jnp.zeros((c,), jnp.float32)
        mean = jnp.zeros((c,), jnp.float32)
        var = jnp.ones((c,), jnp.float32)
        scale = gamma / jnp.sqrt(var + BN_EPS)
        shift = beta - mean * scale
        return scale, shift

    p = {}
    w, b = conv(INPUT_CHANNELS, SHARED_CONV_CH)
    sc, sh = bn(SHARED_CONV_CH)
    p["shared1"] = dict(w=w, b=b, scale=sc, shift=sh)
    w, b = conv(SHARED_CONV_CH, SHARED_OUT_CH)
    sc, sh = bn(SHARED_OUT_CH)
    p["shared2"] = dict(w=w, b=b, scale=sc, shift=sh)

    heads = {}
    for name in HEAD_ORDER:
        out_ch = HEAD_OUT[name]
        w1, b1 = conv(SHARED_OUT_CH, SHARED_OUT_CH)
        sc1, sh1 = bn(SHARED_OUT_CH)
        bias_fill = -2.19 if "hm" in name else 0.0       # init_bias for the hm head
        w2, b2 = conv(SHARED_OUT_CH, out_ch, bias_fill=bias_fill)
        heads[name] = dict(w1=w1, b1=b1, scale1=sc1, shift1=sh1, w2=w2, b2=b2)
    p["heads"] = heads
    return p


def fold_params(p):
    """Fold conv bias + BatchNorm into channel-major, matmul-ready bf16 weights."""
    def fold_cm(w, b, scale, shift):
        # BN(conv(x, w) + b) == conv(x, w * scale) + (scale * b + shift)
        cin, cout = w.shape[2], w.shape[3]
        ws = w * scale[None, None, None, :]
        w_cm = jnp.transpose(ws, (3, 0, 1, 2)).reshape(cout, 9 * cin)     # (Cout, 9*Cin)
        b_cm = (scale * b + shift).reshape(cout, 1)                       # (Cout, 1)
        return w_cm.astype(jnp.bfloat16), b_cm.astype(jnp.float32)

    fp = {}
    fp["w1"], fp["b1"] = fold_cm(p["shared1"]["w"], p["shared1"]["b"],
                                 p["shared1"]["scale"], p["shared1"]["shift"])
    fp["w2"], fp["b2"] = fold_cm(p["shared2"]["w"], p["shared2"]["b"],
                                 p["shared2"]["scale"], p["shared2"]["shift"])

    wh1, bh1, wh2, bh2 = [], [], [], []
    for name in HEAD_ORDER:
        hp = p["heads"][name]
        # head conv1 (conv + BN + ReLU): same folding / layout as the shared convs
        w_cm, b_cm = fold_cm(hp["w1"], hp["b1"], hp["scale1"], hp["shift1"])
        wh1.append(w_cm)                                   # (128, 1152) bf16
        bh1.append(b_cm)                                   # (128, 1)

        # head conv2 (bias only, no BN/ReLU), packed for matmul-then-shift:
        # row (tap*16 + o) holds w2[dy, dx, :, o] so one (144,128)@(128,256) dot
        # produces all 9 taps' outputs; taps are combined with lane shifts + masks.
        oc = HEAD_OUT[name]
        w2p = jnp.zeros((9 * OC_PAD, SHARED_OUT_CH), jnp.float32)
        for dyk in range(3):
            for dxk in range(3):
                tap = dyk * 3 + dxk
                w2p = w2p.at[tap * OC_PAD:tap * OC_PAD + oc, :].set(
                    jnp.transpose(hp["w2"][dyk, dxk]))      # (oc, 128)
        b2p = jnp.zeros((OC_PAD, 1), jnp.float32).at[:oc, 0].set(hp["b2"])
        wh2.append(w2p.astype(jnp.bfloat16))               # (144, 128) bf16
        bh2.append(b2p)                                    # (16, 1)

    fp["wh1"] = jnp.stack(wh1)     # (6, 128, 1152) bf16 -- streamed per grid step
    fp["bh1"] = jnp.stack(bh1)     # (6, 128, 1)    f32
    fp["wh2"] = jnp.stack(wh2)     # (6, 144, 128)  bf16
    fp["bh2"] = jnp.stack(bh2)     # (6, 16, 1)     f32
    return fp


# ----------------------------- main -------------------------------------------
if __name__ == "__main__":
    key = jax.random.PRNGKey(0)
    k_param, k_x = jax.random.split(key)
    params = fold_params(init_params(k_param))
    x = jax.random.normal(k_x, (1, INPUT_CHANNELS, H, W), jnp.float32)  # NCHW, batch=1

    cls_preds, box_preds = jax.jit(center_head_forward)(x, params)
    jax.block_until_ready((cls_preds, box_preds))

    assert cls_preds.shape == (HW, NUM_CLASS), cls_preds.shape
    assert box_preds.shape == (HW, 7), box_preds.shape
    assert cls_preds.dtype == jnp.float32 and box_preds.dtype == jnp.float32
    assert bool(jnp.all(jnp.isfinite(cls_preds))) and bool(jnp.all(jnp.isfinite(box_preds)))

    print("KERNEL_OK")
</pallas_src>

<mosaic_0001>
module attributes {stable_mosaic.version = 11 : i64} {
  func.func @_center_head_kernel(%arg0: i32, %arg1: memref<4x256xf32, #tpu.memory_space<vmem>>, %arg2: memref<64x36xbf16, #tpu.memory_space<vmem>>, %arg3: memref<64x1xf32, #tpu.memory_space<vmem>>, %arg4: memref<128x576xbf16, #tpu.memory_space<vmem>>, %arg5: memref<128x1xf32, #tpu.memory_space<vmem>>, %arg6: memref<1x128x1152xbf16, #tpu.memory_space<vmem>>, %arg7: memref<1x128x1xf32, #tpu.memory_space<vmem>>, %arg8: memref<1x144x128xbf16, #tpu.memory_space<vmem>>, %arg9: memref<1x16x1xf32, #tpu.memory_space<vmem>>, %arg10: memref<10x256xf32, #tpu.memory_space<vmem>>, %arg11: memref<1152x256xbf16, #tpu.memory_space<vmem>>, %arg12: memref<6x16x256xf32, #tpu.memory_space<vmem>>) attributes {dimension_semantics = [#tpu.dimension_semantics<arbitrary>], iteration_bounds = array<i64: 6>, scalar_prefetch = 0 : i64, scratch_operands = 2 : i64, tpu.core_type = #tpu.core_type<tc>, window_params = [{pipeline_mode = #tpu.pipeline_mode<synchronous>, transform_indices = @transform_0, window_bounds = array<i64: 4, 256>}, {pipeline_mode = #tpu.pipeline_mode<synchronous>, transform_indices = @transform_1, window_bounds = array<i64: 64, 36>}, {pipeline_mode = #tpu.pipeline_mode<synchronous>, transform_indices = @transform_2, window_bounds = array<i64: 64, 1>}, {pipeline_mode = #tpu.pipeline_mode<synchronous>, transform_indices = @transform_3, window_bounds = array<i64: 128, 576>}, {pipeline_mode = #tpu.pipeline_mode<synchronous>, transform_indices = @transform_4, window_bounds = array<i64: 128, 1>}, {transform_indices = @transform_5, window_bounds = array<i64: 1, 128, 1152>}, {transform_indices = @transform_6, window_bounds = array<i64: 1, 128, 1>}, {transform_indices = @transform_7, window_bounds = array<i64: 1, 144, 128>}, {transform_indices = @transform_8, window_bounds = array<i64: 1, 16, 1>}, {pipeline_mode = #tpu.pipeline_mode<synchronous>, transform_indices = @transform_9, window_bounds = array<i64: 10, 256>}]} {
    %0 = tpu.iota {dimensions = array<i32: 1>} : vector<1x256xi32>
    %c4_i32 = arith.constant 4 : i32
    %1 = vector.broadcast %c4_i32 : i32 to vector<1x256xi32>
    %2 = arith.shrsi %0, %1 : vector<1x256xi32>
    %c15_i32 = arith.constant 15 : i32
    %3 = vector.broadcast %c15_i32 : i32 to vector<1x256xi32>
    %4 = arith.andi %0, %3 : vector<1x256xi32>
    %c-1_i32 = arith.constant -1 : i32
    %5 = vector.broadcast %c-1_i32 : i32 to vector<1x256xi32>
    %6 = arith.addi %2, %5 : vector<1x256xi32>
    %c0_i32 = arith.constant 0 : i32
    %7 = vector.broadcast %c0_i32 : i32 to vector<1x256xi32>
    %8 = arith.cmpi sge, %6, %7 : vector<1x256xi32>
    %c-1_i32_0 = arith.constant -1 : i32
    %9 = vector.broadcast %c-1_i32_0 : i32 to vector<1x256xi32>
    %10 = arith.addi %2, %9 : vector<1x256xi32>
    %c16_i32 = arith.constant 16 : i32
    %11 = vector.broadcast %c16_i32 : i32 to vector<1x256xi32>
    %12 = arith.cmpi slt, %10, %11 : vector<1x256xi32>
    %13 = arith.andi %8, %12 : vector<1x256xi1>
    %c-1_i32_1 = arith.constant -1 : i32
    %14 = vector.broadcast %c-1_i32_1 : i32 to vector<1x256xi32>
    %15 = arith.addi %4, %14 : vector<1x256xi32>
    %c0_i32_2 = arith.constant 0 : i32
    %16 = vector.broadcast %c0_i32_2 : i32 to vector<1x256xi32>
    %17 = arith.cmpi sge, %15, %16 : vector<1x256xi32>
    %18 = arith.andi %13, %17 : vector<1x256xi1>
    %c-1_i32_3 = arith.constant -1 : i32
    %19 = vector.broadcast %c-1_i32_3 : i32 to vector<1x256xi32>
    %20 = arith.addi %4, %19 : vector<1x256xi32>
    %c16_i32_4 = arith.constant 16 : i32
    %21 = vector.broadcast %c16_i32_4 : i32 to vector<1x256xi32>
    %22 = arith.cmpi slt, %20, %21 : vector<1x256xi32>
    %23 = arith.andi %18, %22 : vector<1x256xi1>
    %24 = arith.extui %23 : vector<1x256xi1> to vector<1x256xi32>
    %25 = arith.sitofp %24 : vector<1x256xi32> to vector<1x256xf32>
    %c-1_i32_5 = arith.constant -1 : i32
    %26 = vector.broadcast %c-1_i32_5 : i32 to vector<1x256xi32>
    %27 = arith.addi %2, %26 : vector<1x256xi32>
    %c0_i32_6 = arith.constant 0 : i32
    %28 = vector.broadcast %c0_i32_6 : i32 to vector<1x256xi32>
    %29 = arith.cmpi sge, %27, %28 : vector<1x256xi32>
    %c-1_i32_7 = arith.constant -1 : i32
    %30 = vector.broadcast %c-1_i32_7 : i32 to vector<1x256xi32>
    %31 = arith.addi %2, %30 : vector<1x256xi32>
    %c16_i32_8 = arith.constant 16 : i32
    %32 = vector.broadcast %c16_i32_8 : i32 to vector<1x256xi32>
    %33 = arith.cmpi slt, %31, %32 : vector<1x256xi32>
    %34 = arith.andi %29, %33 : vector<1x256xi1>
    %c0_i32_9 = arith.constant 0 : i32
    %35 = vector.broadcast %c0_i32_9 : i32 to vector<1x256xi32>
    %36 = arith.addi %4, %35 : vector<1x256xi32>
    %c0_i32_10 = arith.constant 0 : i32
    %37 = vector.broadcast %c0_i32_10 : i32 to vector<1x256xi32>
    %38 = arith.cmpi sge, %36, %37 : vector<1x256xi32>
    %39 = arith.andi %34, %38 : vector<1x256xi1>
    %c0_i32_11 = arith.constant 0 : i32
    %40 = vector.broadcast %c0_i32_11 : i32 to vector<1x256xi32>
    %41 = arith.addi %4, %40 : vector<1x256xi32>
    %c16_i32_12 = arith.constant 16 : i32
    %42 = vector.broadcast %c16_i32_12 : i32 to vector<1x256xi32>
    %43 = arith.cmpi slt, %41, %42 : vector<1x256xi32>
    %44 = arith.andi %39, %43 : vector<1x256xi1>
    %45 = arith.extui %44 : vector<1x256xi1> to vector<1x256xi32>
    %46 = arith.sitofp %45 : vector<1x256xi32> to vector<1x256xf32>
    %c-1_i32_13 = arith.constant -1 : i32
    %47 = vector.broadcast %c-1_i32_13 : i32 to vector<1x256xi32>
    %48 = arith.addi %2, %47 : vector<1x256xi32>
    %c0_i32_14 = arith.constant 0 : i32
    %49 = vector.broadcast %c0_i32_14 : i32 to vector<1x256xi32>
    %50 = arith.cmpi sge, %48, %49 : vector<1x256xi32>
    %c-1_i32_15 = arith.constant -1 : i32
    %51 = vector.broadcast %c-1_i32_15 : i32 to vector<1x256xi32>
    %52 = arith.addi %2, %51 : vector<1x256xi32>
    %c16_i32_16 = arith.constant 16 : i32
    %53 = vector.broadcast %c16_i32_16 : i32 to vector<1x256xi32>
    %54 = arith.cmpi slt, %52, %53 : vector<1x256xi32>
    %55 = arith.andi %50, %54 : vector<1x256xi1>
    %c1_i32 = arith.constant 1 : i32
    %56 = vector.broadcast %c1_i32 : i32 to vector<1x256xi32>
    %57 = arith.addi %4, %56 : vector<1x256xi32>
    %c0_i32_17 = arith.constant 0 : i32
    %58 = vector.broadcast %c0_i32_17 : i32 to vector<1x256xi32>
    %59 = arith.cmpi sge, %57, %58 : vector<1x256xi32>
    %60 = arith.andi %55, %59 : vector<1x256xi1>
    %c1_i32_18 = arith.constant 1 : i32
    %61 = vector.broadcast %c1_i32_18 : i32 to vector<1x256xi32>
    %62 = arith.addi %4, %61 : vector<1x256xi32>
    %c16_i32_19 = arith.constant 16 : i32
    %63 = vector.broadcast %c16_i32_19 : i32 to vector<1x256xi32>
    %64 = arith.cmpi slt, %62, %63 : vector<1x256xi32>
    %65 = arith.andi %60, %64 : vector<1x256xi1>
    %66 = arith.extui %65 : vector<1x256xi1> to vector<1x256xi32>
    %67 = arith.sitofp %66 : vector<1x256xi32> to vector<1x256xf32>
    %c0_i32_20 = arith.constant 0 : i32
    %68 = vector.broadcast %c0_i32_20 : i32 to vector<1x256xi32>
    %69 = arith.addi %2, %68 : vector<1x256xi32>
    %c0_i32_21 = arith.constant 0 : i32
    %70 = vector.broadcast %c0_i32_21 : i32 to vector<1x256xi32>
    %71 = arith.cmpi sge, %69, %70 : vector<1x256xi32>
    %c0_i32_22 = arith.constant 0 : i32
    %72 = vector.broadcast %c0_i32_22 : i32 to vector<1x256xi32>
    %73 = arith.addi %2, %72 : vector<1x256xi32>
    %c16_i32_23 = arith.constant 16 : i32
    %74 = vector.broadcast %c16_i32_23 : i32 to vector<1x256xi32>
    %75 = arith.cmpi slt, %73, %74 : vector<1x256xi32>
    %76 = arith.andi %71, %75 : vector<1x256xi1>
    %c-1_i32_24 = arith.constant -1 : i32
    %77 = vector.broadcast %c-1_i32_24 : i32 to vector<1x256xi32>
    %78 = arith.addi %4, %77 : vector<1x256xi32>
    %c0_i32_25 = arith.constant 0 : i32
    %79 = vector.broadcast %c0_i32_25 : i32 to vector<1x256xi32>
    %80 = arith.cmpi sge, %78, %79 : vector<1x256xi32>
    %81 = arith.andi %76, %80 : vector<1x256xi1>
    %c-1_i32_26 = arith.constant -1 : i32
    %82 = vector.broadcast %c-1_i32_26 : i32 to vector<1x256xi32>
    %83 = arith.addi %4, %82 : vector<1x256xi32>
    %c16_i32_27 = arith.constant 16 : i32
    %84 = vector.broadcast %c16_i32_27 : i32 to vector<1x256xi32>
    %85 = arith.cmpi slt, %83, %84 : vector<1x256xi32>
    %86 = arith.andi %81, %85 : vector<1x256xi1>
    %87 = arith.extui %86 : vector<1x256xi1> to vector<1x256xi32>
    %88 = arith.sitofp %87 : vector<1x256xi32> to vector<1x256xf32>
    %c0_i32_28 = arith.constant 0 : i32
    %89 = vector.broadcast %c0_i32_28 : i32 to vector<1x256xi32>
    %90 = arith.addi %2, %89 : vector<1x256xi32>
    %c0_i32_29 = arith.constant 0 : i32
    %91 = vector.broadcast %c0_i32_29 : i32 to vector<1x256xi32>
    %92 = arith.cmpi sge, %90, %91 : vector<1x256xi32>
    %c0_i32_30 = arith.constant 0 : i32
    %93 = vector.broadcast %c0_i32_30 : i32 to vector<1x256xi32>
    %94 = arith.addi %2, %93 : vector<1x256xi32>
    %c16_i32_31 = arith.constant 16 : i32
    %95 = vector.broadcast %c16_i32_31 : i32 to vector<1x256xi32>
    %96 = arith.cmpi slt, %94, %95 : vector<1x256xi32>
    %97 = arith.andi %92, %96 : vector<1x256xi1>
    %c1_i32_32 = arith.constant 1 : i32
    %98 = vector.broadcast %c1_i32_32 : i32 to vector<1x256xi32>
    %99 = arith.addi %4, %98 : vector<1x256xi32>
    %c0_i32_33 = arith.constant 0 : i32
    %100 = vector.broadcast %c0_i32_33 : i32 to vector<1x256xi32>
    %101 = arith.cmpi sge, %99, %100 : vector<1x256xi32>
    %102 = arith.andi %97, %101 : vector<1x256xi1>
    %c1_i32_34 = arith.constant 1 : i32
    %103 = vector.broadcast %c1_i32_34 : i32 to vector<1x256xi32>
    %104 = arith.addi %4, %103 : vector<1x256xi32>
    %c16_i32_35 = arith.constant 16 : i32
    %105 = vector.broadcast %c16_i32_35 : i32 to vector<1x256xi32>
    %106 = arith.cmpi slt, %104, %105 : vector<1x256xi32>
    %107 = arith.andi %102, %106 : vector<1x256xi1>
    %108 = arith.extui %107 : vector<1x256xi1> to vector<1x256xi32>
    %109 = arith.sitofp %108 : vector<1x256xi32> to vector<1x256xf32>
    %c1_i32_36 = arith.constant 1 : i32
    %110 = vector.broadcast %c1_i32_36 : i32 to vector<1x256xi32>
    %111 = arith.addi %2, %110 : vector<1x256xi32>
    %c0_i32_37 = arith.constant 0 : i32
    %112 = vector.broadcast %c0_i32_37 : i32 to vector<1x256xi32>
    %113 = arith.cmpi sge, %111, %112 : vector<1x256xi32>
    %c1_i32_38 = arith.constant 1 : i32
    %114 = vector.broadcast %c1_i32_38 : i32 to vector<1x256xi32>
    %115 = arith.addi %2, %114 : vector<1x256xi32>
    %c16_i32_39 = arith.constant 16 : i32
    %116 = vector.broadcast %c16_i32_39 : i32 to vector<1x256xi32>
    %117 = arith.cmpi slt, %115, %116 : vector<1x256xi32>
    %118 = arith.andi %113, %117 : vector<1x256xi1>
    %c-1_i32_40 = arith.constant -1 : i32
    %119 = vector.broadcast %c-1_i32_40 : i32 to vector<1x256xi32>
    %120 = arith.addi %4, %119 : vector<1x256xi32>
    %c0_i32_41 = arith.constant 0 : i32
    %121 = vector.broadcast %c0_i32_41 : i32 to vector<1x256xi32>
    %122 = arith.cmpi sge, %120, %121 : vector<1x256xi32>
    %123 = arith.andi %118, %122 : vector<1x256xi1>
    %c-1_i32_42 = arith.constant -1 : i32
    %124 = vector.broadcast %c-1_i32_42 : i32 to vector<1x256xi32>
    %125 = arith.addi %4, %124 : vector<1x256xi32>
    %c16_i32_43 = arith.constant 16 : i32
    %126 = vector.broadcast %c16_i32_43 : i32 to vector<1x256xi32>
    %127 = arith.cmpi slt, %125, %126 : vector<1x256xi32>
    %128 = arith.andi %123, %127 : vector<1x256xi1>
    %129 = arith.extui %128 : vector<1x256xi1> to vector<1x256xi32>
    %130 = arith.sitofp %129 : vector<1x256xi32> to vector<1x256xf32>
    %c1_i32_44 = arith.constant 1 : i32
    %131 = vector.broadcast %c1_i32_44 : i32 to vector<1x256xi32>
    %132 = arith.addi %2, %131 : vector<1x256xi32>
    %c0_i32_45 = arith.constant 0 : i32
    %133 = vector.broadcast %c0_i32_45 : i32 to vector<1x256xi32>
    %134 = arith.cmpi sge, %132, %133 : vector<1x256xi32>
    %c1_i32_46 = arith.constant 1 : i32
    %135 = vector.broadcast %c1_i32_46 : i32 to vector<1x256xi32>
    %136 = arith.addi %2, %135 : vector<1x256xi32>
    %c16_i32_47 = arith.constant 16 : i32
    %137 = vector.broadcast %c16_i32_47 : i32 to vector<1x256xi32>
    %138 = arith.cmpi slt, %136, %137 : vector<1x256xi32>
    %139 = arith.andi %134, %138 : vector<1x256xi1>
    %c0_i32_48 = arith.constant 0 : i32
    %140 = vector.broadcast %c0_i32_48 : i32 to vector<1x256xi32>
    %141 = arith.addi %4, %140 : vector<1x256xi32>
    %c0_i32_49 = arith.constant 0 : i32
    %142 = vector.broadcast %c0_i32_49 : i32 to vector<1x256xi32>
    %143 = arith.cmpi sge, %141, %142 : vector<1x256xi32>
    %144 = arith.andi %139, %143 : vector<1x256xi1>
    %c0_i32_50 = arith.constant 0 : i32
    %145 = vector.broadcast %c0_i32_50 : i32 to vector<1x256xi32>
    %146 = arith.addi %4, %145 : vector<1x256xi32>
    %c16_i32_51 = arith.constant 16 : i32
    %147 = vector.broadcast %c16_i32_51 : i32 to vector<1x256xi32>
    %148 = arith.cmpi slt, %146, %147 : vector<1x256xi32>
    %149 = arith.andi %144, %148 : vector<1x256xi1>
    %150 = arith.extui %149 : vector<1x256xi1> to vector<1x256xi32>
    %151 = arith.sitofp %150 : vector<1x256xi32> to vector<1x256xf32>
    %c1_i32_52 = arith.constant 1 : i32
    %152 = vector.broadcast %c1_i32_52 : i32 to vector<1x256xi32>
    %153 = arith.addi %2, %152 : vector<1x256xi32>
    %c0_i32_53 = arith.constant 0 : i32
    %154 = vector.broadcast %c0_i32_53 : i32 to vector<1x256xi32>
    %155 = arith.cmpi sge, %153, %154 : vector<1x256xi32>
    %c1_i32_54 = arith.constant 1 : i32
    %156 = vector.broadcast %c1_i32_54 : i32 to vector<1x256xi32>
    %157 = arith.addi %2, %156 : vector<1x256xi32>
    %c16_i32_55 = arith.constant 16 : i32
    %158 = vector.broadcast %c16_i32_55 : i32 to vector<1x256xi32>
    %159 = arith.cmpi slt, %157, %158 : vector<1x256xi32>
    %160 = arith.andi %155, %159 : vector<1x256xi1>
    %c1_i32_56 = arith.constant 1 : i32
    %161 = vector.broadcast %c1_i32_56 : i32 to vector<1x256xi32>
    %162 = arith.addi %4, %161 : vector<1x256xi32>
    %c0_i32_57 = arith.constant 0 : i32
    %163 = vector.broadcast %c0_i32_57 : i32 to vector<1x256xi32>
    %164 = arith.cmpi sge, %162, %163 : vector<1x256xi32>
    %165 = arith.andi %160, %164 : vector<1x256xi1>
    %c1_i32_58 = arith.constant 1 : i32
    %166 = vector.broadcast %c1_i32_58 : i32 to vector<1x256xi32>
    %167 = arith.addi %4, %166 : vector<1x256xi32>
    %c16_i32_59 = arith.constant 16 : i32
    %168 = vector.broadcast %c16_i32_59 : i32 to vector<1x256xi32>
    %169 = arith.cmpi slt, %167, %168 : vector<1x256xi32>
    %170 = arith.andi %165, %169 : vector<1x256xi1>
    %171 = arith.extui %170 : vector<1x256xi1> to vector<1x256xi32>
    %172 = arith.sitofp %171 : vector<1x256xi32> to vector<1x256xf32>
    %c0_i32_60 = arith.constant 0 : i32
    %173 = arith.cmpi eq, %arg0, %c0_i32_60 : i32
    %174 = arith.extui %173 : i1 to i32
    %c0_i32_61 = arith.constant 0 : i32
    %175 = arith.cmpi ne, %174, %c0_i32_61 : i32
    scf.if %175 {
      %c0_80 = arith.constant 0 : index
      %c0_81 = arith.constant 0 : index
      %258 = vector.load %arg1[%c0_80, %c0_81] : memref<4x256xf32, #tpu.memory_space<vmem>>, vector<4x256xf32>
      %259 = vector.extract_strided_slice %258 {offsets = [0, 239], sizes = [4, 17], strides = [1, 1]} : vector<4x256xf32> to vector<4x17xf32>
      %260 = vector.extract_strided_slice %258 {offsets = [0, 0], sizes = [4, 239], strides = [1, 1]} : vector<4x256xf32> to vector<4x239xf32>
      %261 = tpu.concatenate %259, %260 in 1 : vector<4x17xf32>, vector<4x239xf32> -> vector<4x256xf32>
      %262 = vector.broadcast %25 : vector<1x256xf32> to vector<4x256xf32>
      %263 = arith.mulf %261, %262 : vector<4x256xf32>
      %264 = vector.extract_strided_slice %258 {offsets = [0, 240], sizes = [4, 16], strides = [1, 1]} : vector<4x256xf32> to vector<4x16xf32>
      %265 = vector.extract_strided_slice %258 {offsets = [0, 0], sizes = [4, 240], strides = [1, 1]} : vector<4x256xf32> to vector<4x240xf32>
      %266 = tpu.concatenate %264, %265 in 1 : vector<4x16xf32>, vector<4x240xf32> -> vector<4x256xf32>
      %267 = vector.broadcast %46 : vector<1x256xf32> to vector<4x256xf32>
      %268 = arith.mulf %266, %267 : vector<4x256xf32>
      %269 = vector.extract_strided_slice %258 {offsets = [0, 241], sizes = [4, 15], strides = [1, 1]} : vector<4x256xf32> to vector<4x15xf32>
      %270 = vector.extract_strided_slice %258 {offsets = [0, 0], sizes = [4, 241], strides = [1, 1]} : vector<4x256xf32> to vector<4x241xf32>
      %271 = tpu.concatenate %269, %270 in 1 : vector<4x15xf32>, vector<4x241xf32> -> vector<4x256xf32>
      %272 = vector.broadcast %67 : vector<1x256xf32> to vector<4x256xf32>
      %273 = arith.mulf %271, %272 : vector<4x256xf32>
      %274 = vector.extract_strided_slice %258 {offsets = [0, 255], sizes = [4, 1], strides = [1, 1]} : vector<4x256xf32> to vector<4x1xf32>
      %275 = vector.extract_strided_slice %258 {offsets = [0, 0], sizes = [4, 255], strides = [1, 1]} : vector<4x256xf32> to vector<4x255xf32>
      %276 = tpu.concatenate %274, %275 in 1 : vector<4x1xf32>, vector<4x255xf32> -> vector<4x256xf32>
      %277 = vector.broadcast %88 : vector<1x256xf32> to vector<4x256xf32>
      %278 = arith.mulf %276, %277 : vector<4x256xf32>
      %279 = vector.extract_strided_slice %258 {offsets = [0, 1], sizes = [4, 255], strides = [1, 1]} : vector<4x256xf32> to vector<4x255xf32>
      %280 = vector.extract_strided_slice %258 {offsets = [0, 0], sizes = [4, 1], strides = [1, 1]} : vector<4x256xf32> to vector<4x1xf32>
      %281 = tpu.concatenate %279, %280 in 1 : vector<4x255xf32>, vector<4x1xf32> -> vector<4x256xf32>
      %282 = vector.broadcast %109 : vector<1x256xf32> to vector<4x256xf32>
      %283 = arith.mulf %281, %282 : vector<4x256xf32>
      %284 = vector.extract_strided_slice %258 {offsets = [0, 15], sizes = [4, 241], strides = [1, 1]} : vector<4x256xf32> to vector<4x241xf32>
      %285 = vector.extract_strided_slice %258 {offsets = [0, 0], sizes = [4, 15], strides = [1, 1]} : vector<4x256xf32> to vector<4x15xf32>
      %286 = tpu.concatenate %284, %285 in 1 : vector<4x241xf32>, vector<4x15xf32> -> vector<4x256xf32>
      %287 = vector.broadcast %130 : vector<1x256xf32> to vector<4x256xf32>
      %288 = arith.mulf %286, %287 : vector<4x256xf32>
      %289 = vector.extract_strided_slice %258 {offsets = [0, 16], sizes = [4, 240], strides = [1, 1]} : vector<4x256xf32> to vector<4x240xf32>
      %290 = vector.extract_strided_slice %258 {offsets = [0, 0], sizes = [4, 16], strides = [1, 1]} : vector<4x256xf32> to vector<4x16xf32>
      %291 = tpu.concatenate %289, %290 in 1 : vector<4x240xf32>, vector<4x16xf32> -> vector<4x256xf32>
      %292 = vector.broadcast %151 : vector<1x256xf32> to vector<4x256xf32>
      %293 = arith.mulf %291, %292 : vector<4x256xf32>
      %294 = vector.extract_strided_slice %258 {offsets = [0, 17], sizes = [4, 239], strides = [1, 1]} : vector<4x256xf32> to vector<4x239xf32>
      %295 = vector.extract_strided_slice %258 {offsets = [0, 0], sizes = [4, 17], strides = [1, 1]} : vector<4x256xf32> to vector<4x17xf32>
      %296 = tpu.concatenate %294, %295 in 1 : vector<4x239xf32>, vector<4x17xf32> -> vector<4x256xf32>
      %297 = vector.broadcast %172 : vector<1x256xf32> to vector<4x256xf32>
      %298 = arith.mulf %296, %297 : vector<4x256xf32>
      %299 = tpu.concatenate %263, %268, %273, %278, %258, %283, %288, %293, %298 in 0 : vector<4x256xf32>, vector<4x256xf32>, vector<4x256xf32>, vector<4x256xf32>, vector<4x256xf32>, vector<4x256xf32>, vector<4x256xf32>, vector<4x256xf32>, vector<4x256xf32> -> vector<36x256xf32>
      %c0_82 = arith.constant 0 : index
      %c0_83 = arith.constant 0 : index
      %300 = vector.load %arg2[%c0_82, %c0_83] : memref<64x36xbf16, #tpu.memory_space<vmem>>, vector<64x36xbf16>
      %301 = arith.truncf %299 : vector<36x256xf32> to vector<36x256xbf16>
      %cst_84 = arith.constant dense<0.000000e+00> : vector<64x256xf32>
      %302 = tpu.matmul %300, %301, %cst_84 {dimension_numbers = #tpu.dot_dimension_numbers<[1], [0], [0], [1], [0, 0, 1, 1], [], []>} : vector<64x36xbf16>, vector<36x256xbf16>, vector<64x256xf32> -> vector<64x256xf32>
      %c0_85 = arith.constant 0 : index
      %c0_86 = arith.constant 0 : index
      %303 = vector.load %arg3[%c0_85, %c0_86] : memref<64x1xf32, #tpu.memory_space<vmem>>, vector<64x1xf32>
      %304 = vector.broadcast %303 : vector<64x1xf32> to vector<64x256xf32>
      %305 = arith.addf %302, %304 : vector<64x256xf32>
      %cst_87 = arith.constant 0.000000e+00 : f32
      %306 = vector.broadcast %cst_87 : f32 to vector<64x256xf32>
      %307 = arith.maximumf %305, %306 : vector<64x256xf32>
      %308 = vector.extract_strided_slice %307 {offsets = [0, 239], sizes = [64, 17], strides = [1, 1]} : vector<64x256xf32> to vector<64x17xf32>
      %309 = vector.extract_strided_slice %307 {offsets = [0, 0], sizes = [64, 239], strides = [1, 1]} : vector<64x256xf32> to vector<64x239xf32>
      %310 = tpu.concatenate %308, %309 in 1 : vector<64x17xf32>, vector<64x239xf32> -> vector<64x256xf32>
      %311 = vector.broadcast %25 : vector<1x256xf32> to vector<64x256xf32>
      %312 = arith.mulf %310, %311 : vector<64x256xf32>
      %313 = vector.extract_strided_slice %307 {offsets = [0, 240], sizes = [64, 16], strides = [1, 1]} : vector<64x256xf32> to vector<64x16xf32>
      %314 = vector.extract_strided_slice %307 {offsets = [0, 0], sizes = [64, 240], strides = [1, 1]} : vector<64x256xf32> to vector<64x240xf32>
      %315 = tpu.concatenate %313, %314 in 1 : vector<64x16xf32>, vector<64x240xf32> -> vector<64x256xf32>
      %316 = vector.broadcast %46 : vector<1x256xf32> to vector<64x256xf32>
      %317 = arith.mulf %315, %316 : vector<64x256xf32>
      %318 = vector.extract_strided_slice %307 {offsets = [0, 241], sizes = [64, 15], strides = [1, 1]} : vector<64x256xf32> to vector<64x15xf32>
      %319 = vector.extract_strided_slice %307 {offsets = [0, 0], sizes = [64, 241], strides = [1, 1]} : vector<64x256xf32> to vector<64x241xf32>
      %320 = tpu.concatenate %318, %319 in 1 : vector<64x15xf32>, vector<64x241xf32> -> vector<64x256xf32>
      %321 = vector.broadcast %67 : vector<1x256xf32> to vector<64x256xf32>
      %322 = arith.mulf %320, %321 : vector<64x256xf32>
      %323 = vector.extract_strided_slice %307 {offsets = [0, 255], sizes = [64, 1], strides = [1, 1]} : vector<64x256xf32> to vector<64x1xf32>
      %324 = vector.extract_strided_slice %307 {offsets = [0, 0], sizes = [64, 255], strides = [1, 1]} : vector<64x256xf32> to vector<64x255xf32>
      %325 = tpu.concatenate %323, %324 in 1 : vector<64x1xf32>, vector<64x255xf32> -> vector<64x256xf32>
      %326 = vector.broadcast %88 : vector<1x256xf32> to vector<64x256xf32>
      %327 = arith.mulf %325, %326 : vector<64x256xf32>
      %328 = vector.extract_strided_slice %307 {offsets = [0, 1], sizes = [64, 255], strides = [1, 1]} : vector<64x256xf32> to vector<64x255xf32>
      %329 = vector.extract_strided_slice %307 {offsets = [0, 0], sizes = [64, 1], strides = [1, 1]} : vector<64x256xf32> to vector<64x1xf32>
      %330 = tpu.concatenate %328, %329 in 1 : vector<64x255xf32>, vector<64x1xf32> -> vector<64x256xf32>
      %331 = vector.broadcast %109 : vector<1x256xf32> to vector<64x256xf32>
      %332 = arith.mulf %330, %331 : vector<64x256xf32>
      %333 = vector.extract_strided_slice %307 {offsets = [0, 15], sizes = [64, 241], strides = [1, 1]} : vector<64x256xf32> to vector<64x241xf32>
      %334 = vector.extract_strided_slice %307 {offsets = [0, 0], sizes = [64, 15], strides = [1, 1]} : vector<64x256xf32> to vector<64x15xf32>
      %335 = tpu.concatenate %333, %334 in 1 : vector<64x241xf32>, vector<64x15xf32> -> vector<64x256xf32>
      %336 = vector.broadcast %130 : vector<1x256xf32> to vector<64x256xf32>
      %337 = arith.mulf %335, %336 : vector<64x256xf32>
      %338 = vector.extract_strided_slice %307 {offsets = [0, 16], sizes = [64, 240], strides = [1, 1]} : vector<64x256xf32> to vector<64x240xf32>
      %339 = vector.extract_strided_slice %307 {offsets = [0, 0], sizes = [64, 16], strides = [1, 1]} : vector<64x256xf32> to vector<64x16xf32>
      %340 = tpu.concatenate %338, %339 in 1 : vector<64x240xf32>, vector<64x16xf32> -> vector<64x256xf32>
      %341 = vector.broadcast %151 : vector<1x256xf32> to vector<64x256xf32>
      %342 = arith.mulf %340, %341 : vector<64x256xf32>
      %343 = vector.extract_strided_slice %307 {offsets = [0, 17], sizes = [64, 239], strides = [1, 1]} : vector<64x256xf32> to vector<64x239xf32>
      %344 = vector.extract_strided_slice %307 {offsets = [0, 0], sizes = [64, 17], strides = [1, 1]} : vector<64x256xf32> to vector<64x17xf32>
      %345 = tpu.concatenate %343, %344 in 1 : vector<64x239xf32>, vector<64x17xf32> -> vector<64x256xf32>
      %346 = vector.broadcast %172 : vector<1x256xf32> to vector<64x256xf32>
      %347 = arith.mulf %345, %346 : vector<64x256xf32>
      %348 = tpu.concatenate %312, %317, %322, %327, %307, %332, %337, %342, %347 in 0 : vector<64x256xf32>, vector<64x256xf32>, vector<64x256xf32>, vector<64x256xf32>, vector<64x256xf32>, vector<64x256xf32>, vector<64x256xf32>, vector<64x256xf32>, vector<64x256xf32> -> vector<576x256xf32>
      %c0_88 = arith.constant 0 : index
      %c0_89 = arith.constant 0 : index
      %349 = vector.load %arg4[%c0_88, %c0_89] : memref<128x576xbf16, #tpu.memory_space<vmem>>, vector<128x576xbf16>
      %350 = arith.truncf %348 : vector<576x256xf32> to vector<576x256xbf16>
      %cst_90 = arith.constant dense<0.000000e+00> : vector<128x256xf32>
      %351 = tpu.matmul %349, %350, %cst_90 {dimension_numbers = #tpu.dot_dimension_numbers<[1], [0], [0], [1], [0, 0, 1, 1], [], []>} : vector<128x576xbf16>, vector<576x256xbf16>, vector<128x256xf32> -> vector<128x256xf32>
      %c0_91 = arith.constant 0 : index
      %c0_92 = arith.constant 0 : index
      %352 = vector.load %arg5[%c0_91, %c0_92] : memref<128x1xf32, #tpu.memory_space<vmem>>, vector<128x1xf32>
      %353 = vector.broadcast %352 : vector<128x1xf32> to vector<128x256xf32>
      %354 = arith.addf %351, %353 : vector<128x256xf32>
      %cst_93 = arith.constant 0.000000e+00 : f32
      %355 = vector.broadcast %cst_93 : f32 to vector<128x256xf32>
      %356 = arith.maximumf %354, %355 : vector<128x256xf32>
      %357 = vector.extract_strided_slice %356 {offsets = [0, 239], sizes = [128, 17], strides = [1, 1]} : vector<128x256xf32> to vector<128x17xf32>
      %358 = vector.extract_strided_slice %356 {offsets = [0, 0], sizes = [128, 239], strides = [1, 1]} : vector<128x256xf32> to vector<128x239xf32>
      %359 = tpu.concatenate %357, %358 in 1 : vector<128x17xf32>, vector<128x239xf32> -> vector<128x256xf32>
      %360 = vector.broadcast %25 : vector<1x256xf32> to vector<128x256xf32>
      %361 = arith.mulf %359, %360 : vector<128x256xf32>
      %362 = vector.extract_strided_slice %356 {offsets = [0, 240], sizes = [128, 16], strides = [1, 1]} : vector<128x256xf32> to vector<128x16xf32>
      %363 = vector.extract_strided_slice %356 {offsets = [0, 0], sizes = [128, 240], strides = [1, 1]} : vector<128x256xf32> to vector<128x240xf32>
      %364 = tpu.concatenate %362, %363 in 1 : vector<128x16xf32>, vector<128x240xf32> -> vector<128x256xf32>
      %365 = vector.broadcast %46 : vector<1x256xf32> to vector<128x256xf32>
      %366 = arith.mulf %364, %365 : vector<128x256xf32>
      %367 = vector.extract_strided_slice %356 {offsets = [0, 241], sizes = [128, 15], strides = [1, 1]} : vector<128x256xf32> to vector<128x15xf32>
      %368 = vector.extract_strided_slice %356 {offsets = [0, 0], sizes = [128, 241], strides = [1, 1]} : vector<128x256xf32> to vector<128x241xf32>
      %369 = tpu.concatenate %367, %368 in 1 : vector<128x15xf32>, vector<128x241xf32> -> vector<128x256xf32>
      %370 = vector.broadcast %67 : vector<1x256xf32> to vector<128x256xf32>
      %371 = arith.mulf %369, %370 : vector<128x256xf32>
      %372 = vector.extract_strided_slice %356 {offsets = [0, 255], sizes = [128, 1], strides = [1, 1]} : vector<128x256xf32> to vector<128x1xf32>
      %373 = vector.extract_strided_slice %356 {offsets = [0, 0], sizes = [128, 255], strides = [1, 1]} : vector<128x256xf32> to vector<128x255xf32>
      %374 = tpu.concatenate %372, %373 in 1 : vector<128x1xf32>, vector<128x255xf32> -> vector<128x256xf32>
      %375 = vector.broadcast %88 : vector<1x256xf32> to vector<128x256xf32>
      %376 = arith.mulf %374, %375 : vector<128x256xf32>
      %377 = vector.extract_strided_slice %356 {offsets = [0, 1], sizes = [128, 255], strides = [1, 1]} : vector<128x256xf32> to vector<128x255xf32>
      %378 = vector.extract_strided_slice %356 {offsets = [0, 0], sizes = [128, 1], strides = [1, 1]} : vector<128x256xf32> to vector<128x1xf32>
      %379 = tpu.concatenate %377, %378 in 1 : vector<128x255xf32>, vector<128x1xf32> -> vector<128x256xf32>
      %380 = vector.broadcast %109 : vector<1x256xf32> to vector<128x256xf32>
      %381 = arith.mulf %379, %380 : vector<128x256xf32>
      %382 = vector.extract_strided_slice %356 {offsets = [0, 15], sizes = [128, 241], strides = [1, 1]} : vector<128x256xf32> to vector<128x241xf32>
      %383 = vector.extract_strided_slice %356 {offsets = [0, 0], sizes = [128, 15], strides = [1, 1]} : vector<128x256xf32> to vector<128x15xf32>
      %384 = tpu.concatenate %382, %383 in 1 : vector<128x241xf32>, vector<128x15xf32> -> vector<128x256xf32>
      %385 = vector.broadcast %130 : vector<1x256xf32> to vector<128x256xf32>
      %386 = arith.mulf %384, %385 : vector<128x256xf32>
      %387 = vector.extract_strided_slice %356 {offsets = [0, 16], sizes = [128, 240], strides = [1, 1]} : vector<128x256xf32> to vector<128x240xf32>
      %388 = vector.extract_strided_slice %356 {offsets = [0, 0], sizes = [128, 16], strides = [1, 1]} : vector<128x256xf32> to vector<128x16xf32>
      %389 = tpu.concatenate %387, %388 in 1 : vector<128x240xf32>, vector<128x16xf32> -> vector<128x256xf32>
      %390 = vector.broadcast %151 : vector<1x256xf32> to vector<128x256xf32>
      %391 = arith.mulf %389, %390 : vector<128x256xf32>
      %392 = vector.extract_strided_slice %356 {offsets = [0, 17], sizes = [128, 239], strides = [1, 1]} : vector<128x256xf32> to vector<128x239xf32>
      %393 = vector.extract_strided_slice %356 {offsets = [0, 0], sizes = [128, 17], strides = [1, 1]} : vector<128x256xf32> to vector<128x17xf32>
      %394 = tpu.concatenate %392, %393 in 1 : vector<128x239xf32>, vector<128x17xf32> -> vector<128x256xf32>
      %395 = vector.broadcast %172 : vector<1x256xf32> to vector<128x256xf32>
      %396 = arith.mulf %394, %395 : vector<128x256xf32>
      %397 = tpu.concatenate %361, %366, %371, %376, %356, %381, %386, %391, %396 in 0 : vector<128x256xf32>, vector<128x256xf32>, vector<128x256xf32>, vector<128x256xf32>, vector<128x256xf32>, vector<128x256xf32>, vector<128x256xf32>, vector<128x256xf32>, vector<128x256xf32> -> vector<1152x256xf32>
      %398 = arith.truncf %397 : vector<1152x256xf32> to vector<1152x256xbf16>
      %c0_94 = arith.constant 0 : index
      %c0_95 = arith.constant 0 : index
      %399 = vector.load %arg11[%c0_94, %c0_95] : memref<1152x256xbf16, #tpu.memory_space<vmem>>, vector<1152x256xbf16>
      tpu.vector_store %arg11[%c0_94, %c0_95], %398 {strides = array<i32>} : memref<1152x256xbf16, #tpu.memory_space<vmem>>, vector<1152x256xbf16>,
    } else {
    }
    %c0 = arith.constant 0 : index
    %c0_62 = arith.constant 0 : index
    %c0_63 = arith.constant 0 : index
    %176 = vector.load %arg6[%c0, %c0_62, %c0_63] : memref<1x128x1152xbf16, #tpu.memory_space<vmem>>, vector<1x128x1152xbf16>
    %177 = vector.shape_cast %176 : vector<1x128x1152xbf16> to vector<128x1152xbf16>
    %c0_64 = arith.constant 0 : index
    %c0_65 = arith.constant 0 : index
    %178 = vector.load %arg11[%c0_64, %c0_65] : memref<1152x256xbf16, #tpu.memory_space<vmem>>, vector<1152x256xbf16>
    %cst = arith.constant dense<0.000000e+00> : vector<128x256xf32>
    %179 = tpu.matmul %177, %178, %cst {dimension_numbers = #tpu.dot_dimension_numbers<[1], [0], [0], [1], [0, 0, 1, 1], [], []>} : vector<128x1152xbf16>, vector<1152x256xbf16>, vector<128x256xf32> -> vector<128x256xf32>
    %c0_66 = arith.constant 0 : index
    %c0_67 = arith.constant 0 : index
    %c0_68 = arith.constant 0 : index
    %180 = vector.load %arg7[%c0_66, %c0_67, %c0_68] : memref<1x128x1xf32, #tpu.memory_space<vmem>>, vector<1x128x1xf32>
    %181 = vector.shape_cast %180 : vector<1x128x1xf32> to vector<128x1xf32>
    %182 = vector.broadcast %181 : vector<128x1xf32> to vector<128x256xf32>
    %183 = arith.addf %179, %182 : vector<128x256xf32>
    %cst_69 = arith.constant 0.000000e+00 : f32
    %184 = vector.broadcast %cst_69 : f32 to vector<128x256xf32>
    %185 = arith.maximumf %183, %184 : vector<128x256xf32>
    %c0_70 = arith.constant 0 : index
    %c0_71 = arith.constant 0 : index
    %c0_72 = arith.constant 0 : index
    %186 = vector.load %arg8[%c0_70, %c0_71, %c0_72] : memref<1x144x128xbf16, #tpu.memory_space<vmem>>, vector<1x144x128xbf16>
    %187 = vector.shape_cast %186 : vector<1x144x128xbf16> to vector<144x128xbf16>
    %188 = arith.truncf %185 : vector<128x256xf32> to vector<128x256xbf16>
    %cst_73 = arith.constant dense<0.000000e+00> : vector<144x256xf32>
    %189 = tpu.matmul %187, %188, %cst_73 {dimension_numbers = #tpu.dot_dimension_numbers<[1], [0], [0], [1], [0, 0, 1, 1], [], []>} : vector<144x128xbf16>, vector<128x256xbf16>, vector<144x256xf32> -> vector<144x256xf32>
    %190 = vector.extract_strided_slice %189 {offsets = [0, 0], sizes = [16, 256], strides = [1, 1]} : vector<144x256xf32> to vector<16x256xf32>
    %191 = vector.extract_strided_slice %190 {offsets = [0, 239], sizes = [16, 17], strides = [1, 1]} : vector<16x256xf32> to vector<16x17xf32>
    %192 = vector.extract_strided_slice %190 {offsets = [0, 0], sizes = [16, 239], strides = [1, 1]} : vector<16x256xf32> to vector<16x239xf32>
    %193 = tpu.concatenate %191, %192 in 1 : vector<16x17xf32>, vector<16x239xf32> -> vector<16x256xf32>
    %194 = vector.broadcast %25 : vector<1x256xf32> to vector<16x256xf32>
    %195 = arith.mulf %193, %194 : vector<16x256xf32>
    %196 = vector.extract_strided_slice %189 {offsets = [16, 0], sizes = [16, 256], strides = [1, 1]} : vector<144x256xf32> to vector<16x256xf32>
    %197 = vector.extract_strided_slice %196 {offsets = [0, 240], sizes = [16, 16], strides = [1, 1]} : vector<16x256xf32> to vector<16x16xf32>
    %198 = vector.extract_strided_slice %196 {offsets = [0, 0], sizes = [16, 240], strides = [1, 1]} : vector<16x256xf32> to vector<16x240xf32>
    %199 = tpu.concatenate %197, %198 in 1 : vector<16x16xf32>, vector<16x240xf32> -> vector<16x256xf32>
    %200 = vector.broadcast %46 : vector<1x256xf32> to vector<16x256xf32>
    %201 = arith.mulf %199, %200 : vector<16x256xf32>
    %202 = arith.addf %195, %201 : vector<16x256xf32>
    %203 = vector.extract_strided_slice %189 {offsets = [32, 0], sizes = [16, 256], strides = [1, 1]} : vector<144x256xf32> to vector<16x256xf32>
    %204 = vector.extract_strided_slice %203 {offsets = [0, 241], sizes = [16, 15], strides = [1, 1]} : vector<16x256xf32> to vector<16x15xf32>
    %205 = vector.extract_strided_slice %203 {offsets = [0, 0], sizes = [16, 241], strides = [1, 1]} : vector<16x256xf32> to vector<16x241xf32>
    %206 = tpu.concatenate %204, %205 in 1 : vector<16x15xf32>, vector<16x241xf32> -> vector<16x256xf32>
    %207 = vector.broadcast %67 : vector<1x256xf32> to vector<16x256xf32>
    %208 = arith.mulf %206, %207 : vector<16x256xf32>
    %209 = arith.addf %202, %208 : vector<16x256xf32>
    %210 = vector.extract_strided_slice %189 {offsets = [48, 0], sizes = [16, 256], strides = [1, 1]} : vector<144x256xf32> to vector<16x256xf32>
    %211 = vector.extract_strided_slice %210 {offsets = [0, 255], sizes = [16, 1], strides = [1, 1]} : vector<16x256xf32> to vector<16x1xf32>
    %212 = vector.extract_strided_slice %210 {offsets = [0, 0], sizes = [16, 255], strides = [1, 1]} : vector<16x256xf32> to vector<16x255xf32>
    %213 = tpu.concatenate %211, %212 in 1 : vector<16x1xf32>, vector<16x255xf32> -> vector<16x256xf32>
    %214 = vector.broadcast %88 : vector<1x256xf32> to vector<16x256xf32>
    %215 = arith.mulf %213, %214 : vector<16x256xf32>
    %216 = arith.addf %209, %215 : vector<16x256xf32>
    %217 = vector.extract_strided_slice %189 {offsets = [64, 0], sizes = [16, 256], strides = [1, 1]} : vector<144x256xf32> to vector<16x256xf32>
    %218 = arith.addf %216, %217 : vector<16x256xf32>
    %219 = vector.extract_strided_slice %189 {offsets = [80, 0], sizes = [16, 256], strides = [1, 1]} : vector<144x256xf32> to vector<16x256xf32>
    %220 = vector.extract_strided_slice %219 {offsets = [0, 1], sizes = [16, 255], strides = [1, 1]} : vector<16x256xf32> to vector<16x255xf32>
    %221 = vector.extract_strided_slice %219 {offsets = [0, 0], sizes = [16, 1], strides = [1, 1]} : vector<16x256xf32> to vector<16x1xf32>
    %222 = tpu.concatenate %220, %221 in 1 : vector<16x255xf32>, vector<16x1xf32> -> vector<16x256xf32>
    %223 = vector.broadcast %109 : vector<1x256xf32> to vector<16x256xf32>
    %224 = arith.mulf %222, %223 : vector<16x256xf32>
    %225 = arith.addf %218, %224 : vector<16x256xf32>
    %226 = vector.extract_strided_slice %189 {offsets = [96, 0], sizes = [16, 256], strides = [1, 1]} : vector<144x256xf32> to vector<16x256xf32>
    %227 = vector.extract_strided_slice %226 {offsets = [0, 15], sizes = [16, 241], strides = [1, 1]} : vector<16x256xf32> to vector<16x241xf32>
    %228 = vector.extract_strided_slice %226 {offsets = [0, 0], sizes = [16, 15], strides = [1, 1]} : vector<16x256xf32> to vector<16x15xf32>
    %229 = tpu.concatenate %227, %228 in 1 : vector<16x241xf32>, vector<16x15xf32> -> vector<16x256xf32>
    %230 = vector.broadcast %130 : vector<1x256xf32> to vector<16x256xf32>
    %231 = arith.mulf %229, %230 : vector<16x256xf32>
    %232 = arith.addf %225, %231 : vector<16x256xf32>
    %233 = vector.extract_strided_slice %189 {offsets = [112, 0], sizes = [16, 256], strides = [1, 1]} : vector<144x256xf32> to vector<16x256xf32>
    %234 = vector.extract_strided_slice %233 {offsets = [0, 16], sizes = [16, 240], strides = [1, 1]} : vector<16x256xf32> to vector<16x240xf32>
    %235 = vector.extract_strided_slice %233 {offsets = [0, 0], sizes = [16, 16], strides = [1, 1]} : vector<16x256xf32> to vector<16x16xf32>
    %236 = tpu.concatenate %234, %235 in 1 : vector<16x240xf32>, vector<16x16xf32> -> vector<16x256xf32>
    %237 = vector.broadcast %151 : vector<1x256xf32> to vector<16x256xf32>
    %238 = arith.mulf %236, %237 : vector<16x256xf32>
    %239 = arith.addf %232, %238 : vector<16x256xf32>
    %240 = vector.extract_strided_slice %189 {offsets = [128, 0], sizes = [16, 256], strides = [1, 1]} : vector<144x256xf32> to vector<16x256xf32>
    %241 = vector.extract_strided_slice %240 {offsets = [0, 17], sizes = [16, 239], strides = [1, 1]} : vector<16x256xf32> to vector<16x239xf32>
    %242 = vector.extract_strided_slice %240 {offsets = [0, 0], sizes = [16, 17], strides = [1, 1]} : vector<16x256xf32> to vector<16x17xf32>
    %243 = tpu.concatenate %241, %242 in 1 : vector<16x239xf32>, vector<16x17xf32> -> vector<16x256xf32>
    %244 = vector.broadcast %172 : vector<1x256xf32> to vector<16x256xf32>
    %245 = arith.mulf %243, %244 : vector<16x256xf32>
    %246 = arith.addf %239, %245 : vector<16x256xf32>
    %c0_74 = arith.constant 0 : index
    %c0_75 = arith.constant 0 : index
    %c0_76 = arith.constant 0 : index
    %247 = vector.load %arg9[%c0_74, %c0_75, %c0_76] : memref<1x16x1xf32, #tpu.memory_space<vmem>>, vector<1x16x1xf32>
    %248 = vector.shape_cast %247 : vector<1x16x1xf32> to vector<16x1xf32>
    %249 = vector.broadcast %248 : vector<16x1xf32> to vector<16x256xf32>
    %250 = arith.addf %246, %249 : vector<16x256xf32>
    %251 = arith.index_cast %arg0 : i32 to index
    %c0_77 = arith.constant 0 : index
    %c0_78 = arith.constant 0 : index
    %252 = vector.load %arg12[%251, %c0_77, %c0_78] : memref<6x16x256xf32, #tpu.memory_space<vmem>>, vector<1x16x256xf32>
    %253 = vector.shape_cast %252 : vector<1x16x256xf32> to vector<16x256xf32>
    %254 = vector.shape_cast %250 : vector<16x256xf32> to vector<1x16x256xf32>
    tpu.vector_store %arg12[%251, %c0_77, %c0_78], %254 {strides = array<i32>} : memref<6x16x256xf32, #tpu.memory_space<vmem>>, vector<1x16x256xf32>,
    %c5_i32 = arith.constant 5 : i32
    %255 = arith.cmpi eq, %arg0, %c5_i32 : i32
    %256 = arith.extui %255 : i1 to i32
    %c0_i32_79 = arith.constant 0 : i32
    %257 = arith.cmpi ne, %256, %c0_i32_79 : i32
    scf.if %257 {
      %c0_80 = arith.constant 0 : index
      %c0_81 = arith.constant 0 : index
      %c0_82 = arith.constant 0 : index
      %258 = vector.load %arg12[%c0_80, %c0_81, %c0_82] : memref<6x16x256xf32, #tpu.memory_space<vmem>>, vector<1x16x256xf32>
      %259 = vector.shape_cast %258 : vector<1x16x256xf32> to vector<16x256xf32>
      %c1 = arith.constant 1 : index
      %c0_83 = arith.constant 0 : index
      %c0_84 = arith.constant 0 : index
      %260 = vector.load %arg12[%c1, %c0_83, %c0_84] : memref<6x16x256xf32, #tpu.memory_space<vmem>>, vector<1x16x256xf32>
      %261 = vector.shape_cast %260 : vector<1x16x256xf32> to vector<16x256xf32>
      %262 = vector.extract_strided_slice %261 {offsets = [0, 0], sizes = [1, 256], strides = [1, 1]} : vector<16x256xf32> to vector<1x256xf32>
      %c2 = arith.constant 2 : index
      %c0_85 = arith.constant 0 : index
      %c0_86 = arith.constant 0 : index
      %263 = vector.load %arg12[%c2, %c0_85, %c0_86] : memref<6x16x256xf32, #tpu.memory_space<vmem>>, vector<1x16x256xf32>
      %264 = vector.shape_cast %263 : vector<1x16x256xf32> to vector<16x256xf32>
      %265 = vector.extract_strided_slice %264 {offsets = [0, 0], sizes = [3, 256], strides = [1, 1]} : vector<16x256xf32> to vector<3x256xf32>
      %266 = math.exp %265 : vector<3x256xf32>
      %c3 = arith.constant 3 : index
      %c0_87 = arith.constant 0 : index
      %c0_88 = arith.constant 0 : index
      %267 = vector.load %arg12[%c3, %c0_87, %c0_88] : memref<6x16x256xf32, #tpu.memory_space<vmem>>, vector<1x16x256xf32>
      %268 = vector.shape_cast %267 : vector<1x16x256xf32> to vector<16x256xf32>
      %c4 = arith.constant 4 : index
      %c0_89 = arith.constant 0 : index
      %c0_90 = arith.constant 0 : index
      %269 = vector.load %arg12[%c4, %c0_89, %c0_90] : memref<6x16x256xf32, #tpu.memory_space<vmem>>, vector<1x16x256xf32>
      %270 = vector.shape_cast %269 : vector<1x16x256xf32> to vector<16x256xf32>
      %271 = vector.extract_strided_slice %270 {offsets = [0, 0], sizes = [1, 256], strides = [1, 1]} : vector<16x256xf32> to vector<1x256xf32>
      %cst_91 = arith.constant 0.000000e+00 : f32
      %cst_92 = arith.constant 1.000000e+00 : f32
      %272 = vector.broadcast %cst_91 : f32 to vector<1x256xf32>
      %273 = arith.maximumf %272, %271 : vector<1x256xf32>
      %274 = vector.broadcast %cst_92 : f32 to vector<1x256xf32>
      %275 = arith.minimumf %274, %273 : vector<1x256xf32>
      %c5 = arith.constant 5 : index
      %c0_93 = arith.constant 0 : index
      %c0_94 = arith.constant 0 : index
      %276 = vector.load %arg12[%c5, %c0_93, %c0_94] : memref<6x16x256xf32, #tpu.memory_space<vmem>>, vector<1x16x256xf32>
      %277 = vector.shape_cast %276 : vector<1x16x256xf32> to vector<16x256xf32>
      %278 = vector.extract_strided_slice %277 {offsets = [0, 0], sizes = [3, 256], strides = [1, 1]} : vector<16x256xf32> to vector<3x256xf32>
      %cst_95 = arith.constant 0.000000e+00 : f32
      %279 = vector.broadcast %cst_95 : f32 to vector<3x256xf32>
      %280 = arith.subf %279, %278 : vector<3x256xf32>
      %281 = math.exp %280 : vector<3x256xf32>
      %cst_96 = arith.constant 1.000000e+00 : f32
      %282 = vector.broadcast %cst_96 : f32 to vector<3x256xf32>
      %283 = arith.addf %282, %281 : vector<3x256xf32>
      %cst_97 = arith.constant 1.000000e+00 : f32
      %284 = vector.broadcast %cst_97 : f32 to vector<3x256xf32>
      %285 = arith.divf %284, %283 : vector<3x256xf32>
      %286 = vector.broadcast %275 : vector<1x256xf32> to vector<3x256xf32>
      %287 = arith.mulf %285, %286 : vector<3x256xf32>
      %288 = arith.sitofp %4 : vector<1x256xi32> to vector<1x256xf32>
      %289 = vector.extract_strided_slice %259 {offsets = [0, 0], sizes = [1, 256], strides = [1, 1]} : vector<16x256xf32> to vector<1x256xf32>
      %290 = arith.addf %288, %289 : vector<1x256xf32>
      %cst_98 = arith.constant 2.000000e-01 : f32
      %291 = vector.broadcast %cst_98 : f32 to vector<1x256xf32>
      %292 = arith.mulf %290, %291 : vector<1x256xf32>
      %cst_99 = arith.constant -1.600000e+00 : f32
      %293 = vector.broadcast %cst_99 : f32 to vector<1x256xf32>
      %294 = arith.addf %292, %293 : vector<1x256xf32>
      %295 = arith.sitofp %2 : vector<1x256xi32> to vector<1x256xf32>
      %296 = vector.extract_strided_slice %259 {offsets = [1, 0], sizes = [1, 256], strides = [1, 1]} : vector<16x256xf32> to vector<1x256xf32>
      %297 = arith.addf %295, %296 : vector<1x256xf32>
      %cst_100 = arith.constant 2.000000e-01 : f32
      %298 = vector.broadcast %cst_100 : f32 to vector<1x256xf32>
      %299 = arith.mulf %297, %298 : vector<1x256xf32>
      %cst_101 = arith.constant -1.600000e+00 : f32
      %300 = vector.broadcast %cst_101 : f32 to vector<1x256xf32>
      %301 = arith.addf %299, %300 : vector<1x256xf32>
      %302 = vector.extract_strided_slice %268 {offsets = [0, 0], sizes = [1, 256], strides = [1, 1]} : vector<16x256xf32> to vector<1x256xf32>
      %303 = vector.extract_strided_slice %268 {offsets = [1, 0], sizes = [1, 256], strides = [1, 1]} : vector<16x256xf32> to vector<1x256xf32>
      %304 = arith.divf %302, %303 : vector<1x256xf32>
      %305 = math.absf %304 : vector<1x256xf32>
      %cst_102 = arith.constant 2.41421366 : f32
      %306 = vector.broadcast %cst_102 : f32 to vector<1x256xf32>
      %307 = arith.cmpf ogt, %305, %306 : vector<1x256xf32>
      %cst_103 = arith.constant 0.414213568 : f32
      %308 = vector.broadcast %cst_103 : f32 to vector<1x256xf32>
      %309 = arith.cmpf ogt, %305, %308 : vector<1x256xf32>
      %cst_104 = arith.constant 1.000000e+00 : f32
      %310 = vector.broadcast %cst_104 : f32 to vector<1x256xf32>
      %311 = arith.select %307, %305, %310 : vector<1x256xi1>, vector<1x256xf32>
      %cst_105 = arith.constant -1.000000e+00 : f32
      %312 = vector.broadcast %cst_105 : f32 to vector<1x256xf32>
      %313 = arith.divf %312, %311 : vector<1x256xf32>
      %cst_106 = arith.constant 1.000000e+00 : f32
      %314 = vector.broadcast %cst_106 : f32 to vector<1x256xf32>
      %315 = arith.subf %305, %314 : vector<1x256xf32>
      %cst_107 = arith.constant 1.000000e+00 : f32
      %316 = vector.broadcast %cst_107 : f32 to vector<1x256xf32>
      %317 = arith.addf %305, %316 : vector<1x256xf32>
      %318 = arith.divf %315, %317 : vector<1x256xf32>
      %319 = arith.select %309, %318, %305 : vector<1x256xi1>, vector<1x256xf32>
      %320 = arith.select %307, %313, %319 : vector<1x256xi1>, vector<1x256xf32>
      %cst_108 = arith.constant 0.785398185 : f32
      %cst_109 = arith.constant 0.000000e+00 : f32
      %321 = vector.broadcast %cst_108 : f32 to vector<1x256xf32>
      %322 = vector.broadcast %cst_109 : f32 to vector<1x256xf32>
      %323 = arith.select %309, %321, %322 : vector<1x256xi1>, vector<1x256xf32>
      %cst_110 = arith.constant 1.57079637 : f32
      %324 = vector.broadcast %cst_110 : f32 to vector<1x256xf32>
      %325 = arith.select %307, %324, %323 : vector<1x256xi1>, vector<1x256xf32>
      %326 = arith.mulf %320, %320 : vector<1x256xf32>
      %cst_111 = arith.constant 0.0805374458 : f32
      %327 = vector.broadcast %cst_111 : f32 to vector<1x256xf32>
      %328 = arith.mulf %327, %326 : vector<1x256xf32>
      %cst_112 = arith.constant 0.138776854 : f32
      %329 = vector.broadcast %cst_112 : f32 to vector<1x256xf32>
      %330 = arith.subf %328, %329 : vector<1x256xf32>
      %331 = arith.mulf %330, %326 : vector<1x256xf32>
      %cst_113 = arith.constant 0.199777111 : f32
      %332 = vector.broadcast %cst_113 : f32 to vector<1x256xf32>
      %333 = arith.addf %331, %332 : vector<1x256xf32>
      %334 = arith.mulf %333, %326 : vector<1x256xf32>
      %cst_114 = arith.constant 0.333329499 : f32
      %335 = vector.broadcast %cst_114 : f32 to vector<1x256xf32>
      %336 = arith.subf %334, %335 : vector<1x256xf32>
      %337 = arith.addf %325, %320 : vector<1x256xf32>
      %338 = arith.mulf %320, %326 : vector<1x256xf32>
      %339 = arith.mulf %338, %336 : vector<1x256xf32>
      %340 = arith.addf %337, %339 : vector<1x256xf32>
      %cst_115 = arith.constant 0.000000e+00 : f32
      %341 = vector.broadcast %cst_115 : f32 to vector<1x256xf32>
      %342 = arith.cmpf olt, %304, %341 : vector<1x256xf32>
      %cst_116 = arith.constant 0.000000e+00 : f32
      %343 = vector.broadcast %cst_116 : f32 to vector<1x256xf32>
      %344 = arith.subf %343, %340 : vector<1x256xf32>
      %345 = arith.select %342, %344, %340 : vector<1x256xi1>, vector<1x256xf32>
      %cst_117 = arith.constant 0.000000e+00 : f32
      %346 = vector.broadcast %cst_117 : f32 to vector<1x256xf32>
      %347 = arith.cmpf ogt, %302, %346 : vector<1x256xf32>
      %cst_118 = arith.constant 0.000000e+00 : f32
      %348 = vector.broadcast %cst_118 : f32 to vector<1x256xf32>
      %349 = arith.cmpf olt, %303, %348 : vector<1x256xf32>
      %350 = arith.andi %347, %349 : vector<1x256xi1>
      %cst_119 = arith.constant 0.000000e+00 : f32
      %351 = vector.broadcast %cst_119 : f32 to vector<1x256xf32>
      %352 = arith.cmpf olt, %302, %351 : vector<1x256xf32>
      %cst_120 = arith.constant 0.000000e+00 : f32
      %353 = vector.broadcast %cst_120 : f32 to vector<1x256xf32>
      %354 = arith.cmpf olt, %303, %353 : vector<1x256xf32>
      %355 = arith.andi %352, %354 : vector<1x256xi1>
      %356 = arith.ori %350, %355 : vector<1x256xi1>
      %cst_121 = arith.constant 3.14159274 : f32
      %357 = vector.broadcast %cst_121 : f32 to vector<1x256xf32>
      %358 = arith.addf %345, %357 : vector<1x256xf32>
      %359 = arith.select %356, %358, %345 : vector<1x256xi1>, vector<1x256xf32>
      %360 = tpu.concatenate %287, %294, %301, %262, %266, %359 in 0 : vector<3x256xf32>, vector<1x256xf32>, vector<1x256xf32>, vector<1x256xf32>, vector<3x256xf32>, vector<1x256xf32> -> vector<10x256xf32>
      %c0_122 = arith.constant 0 : index
      %c0_123 = arith.constant 0 : index
      %361 = vector.load %arg10[%c0_122, %c0_123] : memref<10x256xf32, #tpu.memory_space<vmem>>, vector<10x256xf32>
      tpu.vector_store %arg10[%c0_122, %c0_123], %360 {strides = array<i32>} : memref<10x256xf32, #tpu.memory_space<vmem>>, vector<10x256xf32>,
    } else {
    }
    return
  }
  func.func @transform_0(%arg0: i32) -> (i32, i32) {
    %c0_i32 = arith.constant 0 : i32
    %c0_i32_0 = arith.constant 0 : i32
    %c0_i32_1 = arith.constant 0 : i32
    return %c0_i32, %c0_i32_0 : i32, i32
  }
  func.func @transform_1(%arg0: i32) -> (i32, i32) {
    %c0_i32 = arith.constant 0 : i32
    %c0_i32_0 = arith.constant 0 : i32
    %c0_i32_1 = arith.constant 0 : i32
    return %c0_i32, %c0_i32_0 : i32, i32
  }
  func.func @transform_2(%arg0: i32) -> (i32, i32) {
    %c0_i32 = arith.constant 0 : i32
    %c0_i32_0 = arith.constant 0 : i32
    %c0_i32_1 = arith.constant 0 : i32
    return %c0_i32, %c0_i32_0 : i32, i32
  }
  func.func @transform_3(%arg0: i32) -> (i32, i32) {
    %c0_i32 = arith.constant 0 : i32
    %c0_i32_0 = arith.constant 0 : i32
    %c0_i32_1 = arith.constant 0 : i32
    return %c0_i32, %c0_i32_0 : i32, i32
  }
  func.func @transform_4(%arg0: i32) -> (i32, i32) {
    %c0_i32 = arith.constant 0 : i32
    %c0_i32_0 = arith.constant 0 : i32
    %c0_i32_1 = arith.constant 0 : i32
    return %c0_i32, %c0_i32_0 : i32, i32
  }
  func.func @transform_5(%arg0: i32) -> (i32, i32, i32) {
    %c0_i32 = arith.constant 0 : i32
    %c0_i32_0 = arith.constant 0 : i32
    %c0_i32_1 = arith.constant 0 : i32
    return %arg0, %c0_i32, %c0_i32_0 : i32, i32, i32
  }
  func.func @transform_6(%arg0: i32) -> (i32, i32, i32) {
    %c0_i32 = arith.constant 0 : i32
    %c0_i32_0 = arith.constant 0 : i32
    %c0_i32_1 = arith.constant 0 : i32
    return %arg0, %c0_i32, %c0_i32_0 : i32, i32, i32
  }
  func.func @transform_7(%arg0: i32) -> (i32, i32, i32) {
    %c0_i32 = arith.constant 0 : i32
    %c0_i32_0 = arith.constant 0 : i32
    %c0_i32_1 = arith.constant 0 : i32
    return %arg0, %c0_i32, %c0_i32_0 : i32, i32, i32
  }
  func.func @transform_8(%arg0: i32) -> (i32, i32, i32) {
    %c0_i32 = arith.constant 0 : i32
    %c0_i32_0 = arith.constant 0 : i32
    %c0_i32_1 = arith.constant 0 : i32
    return %arg0, %c0_i32, %c0_i32_0 : i32, i32, i32
  }
  func.func @transform_9(%arg0: i32) -> (i32, i32) {
    %c0_i32 = arith.constant 0 : i32
    %c0_i32_0 = arith.constant 0 : i32
    %c0_i32_1 = arith.constant 0 : i32
    return %c0_i32, %c0_i32_0 : i32, i32
  }
}

</mosaic_0001>

<llo_original>
// kernel: squeeze.1
$region0: #{squeeze.1}
  %s0 = inlined_call_operand.hbm [shape: f32[1,4,16,16], index: 0, kind: input, shape index: {}]
  %s1 = inlined_call_operand.vmem [shape: f32[4,256], index: 1, kind: output, shape index: {}]
  $region1: #{squeeze.1} parent=0
    #allocation0 [shape = 'u8[32768]{0}', space=vmem, size = 0x8000, scoped, tag = 'operand span for operand 0']
    #allocation1 [shape = 's32[1]{0}', space=sflag, size = 0x4, scoped, tag = 'scoped memory for squeeze.1']
    #allocation2 [shape = 'u8[8192]{0}', space=vmem, size = 0x2000, scoped, tag = 'scoped mem for output reshape']
    %2 = vsyncpa [#allocation1], 0
    %4 = vsyncadd [#allocation1], 0
    %s6 = sshll.u32 %s0, 4
    %s7 = int_to_ptr.hbm [resolvable:$true] %s6
    %s8 = sshll.u32 [#allocation0], 4
    %s9 = int_to_ptr.vmem [resolvable:$true] %s8
    %11 = dma.hbm_to_vmem [thread:$0]  %s7, 1024, %s9, [#allocation1]
    %13 = dma.done [#allocation1], 1024
    %v14 = vld [vmem:[#allocation0] ss:$8 sm:$0xf]
    %v15 = vld [vmem:[#allocation0] ss:$8 sm:$0xf0]
    %vm16 = vcmask 1047556
    %v17 = vsel %vm16, %v15, %v14
    %vm18 = vcmask 130048
    %19 = vst.msk [vmem:[#allocation2] ss:$8 sm:$0x3] %vm18, %v17
    %s20 = scalar_lea.vmem [#allocation2], 4294967281
    %21 = vst.msk [vmem:[%s20] ss:$8 sm:$0xc] %vm18, %v17
    %s22 = scalar_lea.vmem [#allocation2], 4294967266
    %23 = vst.msk [vmem:[%s22] ss:$8 sm:$0x30] %vm18, %v17
    %s24 = scalar_lea.vmem [#allocation2], 4294967251
    %25 = vst.msk [vmem:[%s24] ss:$8 sm:$0xc0] %vm18, %v17
    %s26 = scalar_lea.vmem [#allocation0], 7
    %s27 = smov 3
    %v28 = vld [vmem:[%s26] ss:$16 sm:%s27]
    %s29 = scalar_lea.vmem [#allocation0], 7
    %s30 = smov 12
    %v31 = vld [vmem:[%s29] ss:$16 sm:%s30]
    %vm32 = vcmask 1043458
    %v33 = vsel %vm32, %v31, %v28
    %s34 = scalar_lea.vmem [#allocation0], 4294967247
    %s35 = smov 48
    %v36 = vld [vmem:[%s34] ss:$16 sm:%s35]
    %vm37 = vcmask 1045508
    %v38 = vsel %vm37, %v36, %v33
    %s39 = scalar_lea.vmem [#allocation0], 4294967247
    %s40 = smov 192
    %v41 = vld [vmem:[%s39] ss:$16 sm:%s40]
    %vm42 = vcmask 1047558
    %v43 = vsel %vm42, %v41, %v38
    %44 = vrot.lane.b32.xlu0 %v43, 112
    %v45 = vpop.permute.xlu0 %44
    %vm46 = vcmask 1048448
    %47 = vst.msk [vmem:[#allocation2] sm:$0xf] %vm46, %v45
    %s48 = scalar_lea.vmem [#allocation2], 4
    %49 = vst.msk [vmem:[%s48] sm:$0xf0] %vm46, %v45
    %s50 = scalar_lea.vmem [#allocation0], 6
    %s51 = smov 3
    %v52 = vld [vmem:[%s50] ss:$16 sm:%s51]
    %s53 = scalar_lea.vmem [#allocation0], 6
    %s54 = smov 12
    %v55 = vld [vmem:[%s53] ss:$16 sm:%s54]
    %vm56 = vcmask 1043458
    %v57 = vsel %vm56, %v55, %v52
    %s58 = scalar_lea.vmem [#allocation0], 4294967246
    %s59 = smov 48
    %v60 = vld [vmem:[%s58] ss:$16 sm:%s59]
    %vm61 = vcmask 1045508
    %v62 = vsel %vm61, %v60, %v57
    %s63 = scalar_lea.vmem [#allocation0], 4294967246
    %s64 = smov 192
    %v65 = vld [vmem:[%s63] ss:$16 sm:%s64]
    %vm66 = vcmask 1047558
    %v67 = vsel %vm66, %v65, %v62
    %68 = vrot.lane.b32.xlu0 %v67, 96
    %v69 = vpop.permute.xlu0 %68
    %vm70 = vcmask 917248
    %71 = vst.msk [vmem:[#allocation2] sm:$0xf] %vm70, %v69
    %s72 = scalar_lea.vmem [#allocation2], 4
    %73 = vst.msk [vmem:[%s72] sm:$0xf0] %vm70, %v69
    %s74 = scalar_lea.vmem [#allocation0], 5
    %s75 = smov 3
    %v76 = vld [vmem:[%s74] ss:$16 sm:%s75]
    %s77 = scalar_lea.vmem [#allocation0], 5
    %s78 = smov 12
    %v79 = vld [vmem:[%s77] ss:$16 sm:%s78]
    %vm80 = vcmask 1043458
    %v81 = vsel %vm80, %v79, %v76
    %s82 = scalar_lea.vmem [#allocation0], 4294967245
    %s83 = smov 48
    %v84 = vld [vmem:[%s82] ss:$16 sm:%s83]
    %vm85 = vcmask 1045508
    %v86 = vsel %vm85, %v84, %v81
    %s87 = scalar_lea.vmem [#allocation0], 4294967245
    %s88 = smov 192
    %v89 = vld [vmem:[%s87] ss:$16 sm:%s88]
    %vm90 = vcmask 1047558
    %v91 = vsel %vm90, %v89, %v86
    %92 = vrot.lane.b32.xlu0 %v91, 80
    %v93 = vpop.permute.xlu0 %92
    %vm94 = vcmask 786048
    %95 = vst.msk [vmem:[#allocation2] sm:$0xf] %vm94, %v93
    %s96 = scalar_lea.vmem [#allocation2], 4
    %97 = vst.msk [vmem:[%s96] sm:$0xf0] %vm94, %v93
    %s98 = scalar_lea.vmem [#allocation0], 4
    %s99 = smov 3
    %v100 = vld [vmem:[%s98] ss:$16 sm:%s99]
    %s101 = scalar_lea.vmem [#allocation0], 4
    %s102 = smov 12
    %v103 = vld [vmem:[%s101] ss:$16 sm:%s102]
    %vm104 = vcmask 1043458
    %v105 = vsel %vm104, %v103, %v100
    %s106 = scalar_lea.vmem [#allocation0], 4294967244
    %s107 = smov 48
    %v108 = vld [vmem:[%s106] ss:$16 sm:%s107]
    %vm109 = vcmask 1045508
    %v110 = vsel %vm109, %v108, %v105
    %s111 = scalar_lea.vmem [#allocation0], 4294967244
    %s112 = smov 192
    %v113 = vld [vmem:[%s111] ss:$16 sm:%s112]
    %vm114 = vcmask 1047558
    %v115 = vsel %vm114, %v113, %v110
    %116 = vrot.lane.b32.xlu0 %v115, 64
    %v117 = vpop.permute.xlu0 %116
    %vm118 = vcmask 654848
    %119 = vst.msk [vmem:[#allocation2] sm:$0xf] %vm118, %v117
    %s120 = scalar_lea.vmem [#allocation2], 4
    %121 = vst.msk [vmem:[%s120] sm:$0xf0] %vm118, %v117
    %s122 = scalar_lea.vmem [#allocation0], 3
    %s123 = smov 3
    %v124 = vld [vmem:[%s122] ss:$16 sm:%s123]
    %s125 = scalar_lea.vmem [#allocation0], 3
    %s126 = smov 12
    %v127 = vld [vmem:[%s125] ss:$16 sm:%s126]
    %vm128 = vcmask 1043458
    %v129 = vsel %vm128, %v127, %v124
    %s130 = scalar_lea.vmem [#allocation0], 4294967243
    %s131 = smov 48
    %v132 = vld [vmem:[%s130] ss:$16 sm:%s131]
    %vm133 = vcmask 1045508
    %v134 = vsel %vm133, %v132, %v129
    %s135 = scalar_lea.vmem [#allocation0], 4294967243
    %s136 = smov 192
    %v137 = vld [vmem:[%s135] ss:$16 sm:%s136]
    %vm138 = vcmask 1047558
    %v139 = vsel %vm138, %v137, %v134
    %140 = vrot.lane.b32.xlu0 %v139, 48
    %v141 = vpop.permute.xlu0 %140
    %vm142 = vcmask 523648
    %143 = vst.msk [vmem:[#allocation2] sm:$0xf] %vm142, %v141
    %s144 = scalar_lea.vmem [#allocation2], 4
    %145 = vst.msk [vmem:[%s144] sm:$0xf0] %vm142, %v141
    %s146 = scalar_lea.vmem [#allocation0], 2
    %s147 = smov 3
    %v148 = vld [vmem:[%s146] ss:$16 sm:%s147]
    %s149 = scalar_lea.vmem [#allocation0], 2
    %s150 = smov 12
    %v151 = vld [vmem:[%s149] ss:$16 sm:%s150]
    %vm152 = vcmask 1043458
    %v153 = vsel %vm152, %v151, %v148
    %s154 = scalar_lea.vmem [#allocation0], 4294967242
    %s155 = smov 48
    %v156 = vld [vmem:[%s154] ss:$16 sm:%s155]
    %vm157 = vcmask 1045508
    %v158 = vsel %vm157, %v156, %v153
    %s159 = scalar_lea.vmem [#allocation0], 4294967242
    %s160 = smov 192
    %v161 = vld [vmem:[%s159] ss:$16 sm:%s160]
    %vm162 = vcmask 1047558
    %v163 = vsel %vm162, %v161, %v158
    %164 = vrot.lane.b32.xlu0 %v163, 32
    %v165 = vpop.permute.xlu0 %164
    %vm166 = vcmask 392448
    %167 = vst.msk [vmem:[#allocation2] sm:$0xf] %vm166, %v165
    %s168 = scalar_lea.vmem [#allocation2], 4
    %169 = vst.msk [vmem:[%s168] sm:$0xf0] %vm166, %v165
    %s170 = scalar_lea.vmem [#allocation0], 1
    %s171 = smov 3
    %v172 = vld [vmem:[%s170] ss:$16 sm:%s171]
    %s173 = scalar_lea.vmem [#allocation0], 1
    %s174 = smov 12
    %v175 = vld [vmem:[%s173] ss:$16 sm:%s174]
    %vm176 = vcmask 1043458
    %v177 = vsel %vm176, %v175, %v172
    %s178 = scalar_lea.vmem [#allocation0], 4294967241
    %s179 = smov 48
    %v180 = vld [vmem:[%s178] ss:$16 sm:%s179]
    %vm181 = vcmask 1045508
    %v182 = vsel %vm181, %v180, %v177
    %s183 = scalar_lea.vmem [#allocation0], 4294967241
    %s184 = smov 192
    %v185 = vld [vmem:[%s183] ss:$16 sm:%s184]
    %vm186 = vcmask 1047558
    %v187 = vsel %vm186, %v185, %v182
    %188 = vrot.lane.b32.xlu0 %v187, 16
    %v189 = vpop.permute.xlu0 %188
    %vm190 = vcmask 261248
    %191 = vst.msk [vmem:[#allocation2] sm:$0xf] %vm190, %v189
    %s192 = scalar_lea.vmem [#allocation2], 4
    %193 = vst.msk [vmem:[%s192] sm:$0xf0] %vm190, %v189
    %s195 = ssub.s32 16, 1
    %v196 = vld [vmem:[#allocation2] sm:%s195]
    %s198 = ssub.s32 16, 1
    %199 = vst [vmem:[%s1] sm:%s198] %v196
    %s200 = scalar_lea.vmem [#allocation2], 8
    %v201 = vld [vmem:[%s200] sm:%s195]
    %s203 = ssub.s32 16, 1
    %s204 = scalar_lea.vmem %s1, 4
    %205 = vst [vmem:[%s204] sm:%s203] %v201
    %206 = vsyncpa [#allocation1], 1

// kernel: center_head_forward.1
$region0: #{center_head_forward.1}
  #allocation0 [shape = 'u32[]', space=smem, size = 0x4, offset = 0x4, fixed_abs, tag = 'smem constant byte address 0x4 - core index']
  #allocation1 [shape = 'u32[72,128]{1,0:T(1,128)}', space=vmem, size = 0x9000, scoped, tag = 'internal scratch']
  #allocation2 [shape = 'bf16[1152,256]{1,0:T(8,128)(2,1)}', space=vmem, size = 0x90000, scoped, tag = 'scratch operand']
  #allocation3 [shape = 'f32[6,16,256]{2,1,0:T(8,128)}', space=vmem, size = 0x18000, scoped, tag = 'scratch operand']
  %s0 = inlined_call_operand.vmem [shape: f32[4,256], index: 0, kind: input, shape index: {}]
  %s1 = inlined_call_operand.vmem [shape: bf16[64,36], index: 1, kind: input, shape index: {}]
  %s2 = inlined_call_operand.vmem [shape: f32[64,1], index: 2, kind: input, shape index: {}]
  %s3 = inlined_call_operand.vmem [shape: bf16[128,576], index: 3, kind: input, shape index: {}]
  %s4 = inlined_call_operand.vmem [shape: f32[128,1], index: 4, kind: input, shape index: {}]
  %s5 = inlined_call_operand.hbm [shape: bf16[6,128,1152], index: 5, kind: input, shape index: {}]
  %s6 = inlined_call_operand.vmem [shape: f32[6,128,1], index: 6, kind: input, shape index: {}]
  %s7 = inlined_call_operand.hbm [shape: bf16[6,144,128], index: 7, kind: input, shape index: {}]
  %s8 = inlined_call_operand.vmem [shape: f32[6,16,1], index: 8, kind: input, shape index: {}]
  %s9 = inlined_call_operand.vmem [shape: f32[10,256], index: 9, kind: output, shape index: {}]
  %s10 = sld [smem:[#allocation0]]
  $region85: #{center_head_forward.1} parent=0
    _
  %s12 = ssub.s32 1, %s10
  %s13 = scalar_select 0, %s12, %s10
  $region1: #{center_head_forward.1} parent=0
    #allocation4 [shape = 'u8[589824]{0}', space=vmem, size = 0x90000, scoped, tag = 'input window, operand 5']
    #allocation5 [shape = 's32[2]{0}', space=sflag, size = 0x8, scoped, tag = 'scoped memory for center_head_forward.1']
    #allocation6 [shape = 'u8[73728]{0}', space=vmem, size = 0x12000, scoped, tag = 'input window, operand 7']
    #allocation7 [shape = 's32[2]{0}', space=sflag, size = 0x8, scoped, tag = 'scoped memory for center_head_forward.1']
    %14 = vsyncpa [#allocation5], 0
    %s15 = scalar_lea.sflag [#allocation5], 1
    %16 = vsyncpa %s15, 0
    %17 = vsyncpa [#allocation7], 0
    %s18 = scalar_lea.sflag [#allocation7], 1
    %19 = vsyncpa %s18, 0
    loop: start=0, step=1, limit=8
    $region2: #{center_head_forward.1} parent=1 // loop_pre_header
      _
    $region3: #{center_head_forward.1} parent=1 // loop_header
      %s21 = sphi 0, %s25
      %p22 = scmp.ge.s32.totalorder %s21, 8
      %s29 = sphi 0, %s29
      %s31 = sphi 0, %s29
      %s32 = sphi 0, %s31
      %s46 = sphi 0, %s32
      %s50 = sphi 0, %s50
      %s52 = sphi 0, %s50
      %s53 = sphi 0, %s52
      %s67 = sphi 0, %s53
      %s71 = sphi 0, %s71
      %s73 = sphi 0, %s71
      %s74 = sphi 0, %s73
      %s88 = sphi 0, %s74
      %s92 = sphi 0, %s92
      %s94 = sphi 0, %s92
      %s95 = sphi 0, %s94
      %s109 = sphi 0, %s95
      %s113 = sphi 0, %s113
      %s115 = sphi 0, %s113
      %s116 = sphi 0, %s115
      %s130 = sphi 0, %s116
      %s136 = sphi 0, %s138
      %s139 = sphi 0, %s136
      %s140 = sphi 0, %s139
      %s156 = sphi 0, %s140
      %s162 = sphi 0, %s164
      %s165 = sphi 0, %s162
      %s166 = sphi 0, %s165
      %s182 = sphi 0, %s166
      %s188 = sphi 0, %s190
      %s191 = sphi 0, %s188
      %s192 = sphi 0, %s191
      %s208 = sphi 0, %s192
      %s214 = sphi 0, %s216
      %s217 = sphi 0, %s214
      %s218 = sphi 0, %s217
      %s234 = sphi 0, %s218
      %s238 = sphi 0, %s238
      %s240 = sphi 0, %s238
      %s241 = sphi 0, %s240
      %s255 = sphi 0, %s241
    $region4: #{center_head_forward.1} parent=1 // loop_header_branch
      %24 = sbr.rel (%p22) target = $region8
    $region5: #{center_head_forward.1} parent=1 // loop_body
      %s26 = ssub.s32 %s21, 1
      %s27 = ssub.s32 %s21, 2
      %s28 = sadd.s32 %s21, 1
      %s30 = sadd.s32 %s29, 1
      %p33 = scmp.eq.s32.totalorder %s21, 5
      %p34 = scmp.ne.s32.totalorder %s29, %s31
      %p35 = scmp.eq.s32.totalorder %s21, 0
      %p36 = por %p34, %p35
      %p37 = scmp.ne.s32.totalorder %s29, %s31
      %p38 = scmp.eq.s32.totalorder %s26, 5
      %p39 = por %p37, %p38
      %p40 = scmp.ne.s32.totalorder %s31, %s32
      %p41 = scmp.eq.s32.totalorder %s26, 0
      %p42 = por %p40, %p41
      %p43 = scmp.ne.s32.totalorder %s31, %s32
      %p44 = scmp.eq.s32.totalorder %s27, 5
      %p45 = por %p43, %p44
      %p47 = scmp.ne.s32.totalorder %s32, %s46
      %p48 = scmp.eq.s32.totalorder %s27, 0
      %p49 = por %p47, %p48
      %s51 = sadd.s32 %s50, 1
      %p54 = scmp.eq.s32.totalorder %s21, 5
      %p55 = scmp.ne.s32.totalorder %s50, %s52
      %p56 = scmp.eq.s32.totalorder %s21, 0
      %p57 = por %p55, %p56
      %p58 = scmp.ne.s32.totalorder %s50, %s52
      %p59 = scmp.eq.s32.totalorder %s26, 5
      %p60 = por %p58, %p59
      %p61 = scmp.ne.s32.totalorder %s52, %s53
      %p62 = scmp.eq.s32.totalorder %s26, 0
      %p63 = por %p61, %p62
      %p64 = scmp.ne.s32.totalorder %s52, %s53
      %p65 = scmp.eq.s32.totalorder %s27, 5
      %p66 = por %p64, %p65
      %p68 = scmp.ne.s32.totalorder %s53, %s67
      %p69 = scmp.eq.s32.totalorder %s27, 0
      %p70 = por %p68, %p69
      %s72 = sadd.s32 %s71, 1
      %p75 = scmp.eq.s32.totalorder %s21, 5
      %p76 = scmp.ne.s32.totalorder %s71, %s73
      %p77 = scmp.eq.s32.totalorder %s21, 0
      %p78 = por %p76, %p77
      %p79 = scmp.ne.s32.totalorder %s71, %s73
      %p80 = scmp.eq.s32.totalorder %s26, 5
      %p81 = por %p79, %p80
      %p82 = scmp.ne.s32.totalorder %s73, %s74
      %p83 = scmp.eq.s32.totalorder %s26, 0
      %p84 = por %p82, %p83
      %p85 = scmp.ne.s32.totalorder %s73, %s74
      %p86 = scmp.eq.s32.totalorder %s27, 5
      %p87 = por %p85, %p86
      %p89 = scmp.ne.s32.totalorder %s74, %s88
      %p90 = scmp.eq.s32.totalorder %s27, 0
      %p91 = por %p89, %p90
      %s93 = sadd.s32 %s92, 1
      %p96 = scmp.eq.s32.totalorder %s21, 5
      %p97 = scmp.ne.s32.totalorder %s92, %s94
      %p98 = scmp.eq.s32.totalorder %s21, 0
      %p99 = por %p97, %p98
      %p100 = scmp.ne.s32.totalorder %s92, %s94
      %p101 = scmp.eq.s32.totalorder %s26, 5
      %p102 = por %p100, %p101
      %p103 = scmp.ne.s32.totalorder %s94, %s95
      %p104 = scmp.eq.s32.totalorder %s26, 0
      %p105 = por %p103, %p104
      %p106 = scmp.ne.s32.totalorder %s94, %s95
      %p107 = scmp.eq.s32.totalorder %s27, 5
      %p108 = por %p106, %p107
      %p110 = scmp.ne.s32.totalorder %s95, %s109
      %p111 = scmp.eq.s32.totalorder %s27, 0
      %p112 = por %p110, %p111
      %s114 = sadd.s32 %s113, 1
      %p117 = scmp.eq.s32.totalorder %s21, 5
      %p118 = scmp.ne.s32.totalorder %s113, %s115
      %p119 = scmp.eq.s32.totalorder %s21, 0
      %p120 = por %p118, %p119
      %p121 = scmp.ne.s32.totalorder %s113, %s115
      %p122 = scmp.eq.s32.totalorder %s26, 5
      %p123 = por %p121, %p122
      %p124 = scmp.ne.s32.totalorder %s115, %s116
      %p125 = scmp.eq.s32.totalorder %s26, 0
      %p126 = por %p124, %p125
      %p127 = scmp.ne.s32.totalorder %s115, %s116
      %p128 = scmp.eq.s32.totalorder %s27, 5
      %p129 = por %p127, %p128
      %p131 = scmp.ne.s32.totalorder %s116, %s130
      %p132 = scmp.eq.s32.totalorder %s27, 0
      %p133 = por %p131, %p132
      %s134 = ssub.s32 %s21, %s28
      %p135 = scmp.eq.s32.totalorder %s134, 0
      %s137 = sadd.s32 %s136, 1
      %s138 = scalar_select %p135, %s136, %s137
      %p141 = pneg %p135
      %p142 = scmp.eq.s32.totalorder %s21, 5
      %p143 = por %p141, %p142
      %p144 = scmp.ne.s32.totalorder %s136, %s139
      %p145 = scmp.eq.s32.totalorder %s21, 0
      %p146 = por %p144, %p145
      %p147 = scmp.ne.s32.totalorder %s136, %s139
      %p148 = scmp.eq.s32.totalorder %s26, 5
      %p149 = por %p147, %p148
      %p150 = scmp.ne.s32.totalorder %s139, %s140
      %p151 = scmp.eq.s32.totalorder %s26, 0
      %p152 = por %p150, %p151
      %p153 = scmp.ne.s32.totalorder %s139, %s140
      %p154 = scmp.eq.s32.totalorder %s27, 5
      %p155 = por %p153, %p154
      %p157 = scmp.ne.s32.totalorder %s140, %s156
      %p158 = scmp.eq.s32.totalorder %s27, 0
      %p159 = por %p157, %p158
      %s160 = ssub.s32 %s21, %s28
      %p161 = scmp.eq.s32.totalorder %s160, 0
      %s163 = sadd.s32 %s162, 1
      %s164 = scalar_select %p161, %s162, %s163
      %p167 = pneg %p161
      %p168 = scmp.eq.s32.totalorder %s21, 5
      %p169 = por %p167, %p168
      %p170 = scmp.ne.s32.totalorder %s162, %s165
      %p171 = scmp.eq.s32.totalorder %s21, 0
      %p172 = por %p170, %p171
      %p173 = scmp.ne.s32.totalorder %s162, %s165
      %p174 = scmp.eq.s32.totalorder %s26, 5
      %p175 = por %p173, %p174
      %p176 = scmp.ne.s32.totalorder %s165, %s166
      %p177 = scmp.eq.s32.totalorder %s26, 0
      %p178 = por %p176, %p177
      %p179 = scmp.ne.s32.totalorder %s165, %s166
      %p180 = scmp.eq.s32.totalorder %s27, 5
      %p181 = por %p179, %p180
      %p183 = scmp.ne.s32.totalorder %s166, %s182
      %p184 = scmp.eq.s32.totalorder %s27, 0
      %p185 = por %p183, %p184
      %s186 = ssub.s32 %s21, %s28
      %p187 = scmp.eq.s32.totalorder %s186, 0
      %s189 = sadd.s32 %s188, 1
      %s190 = scalar_select %p187, %s188, %s189
      %p193 = pneg %p187
      %p194 = scmp.eq.s32.totalorder %s21, 5
      %p195 = por %p193, %p194
      %p196 = scmp.ne.s32.totalorder %s188, %s191
      %p197 = scmp.eq.s32.totalorder %s21, 0
      %p198 = por %p196, %p197
      %p199 = scmp.ne.s32.totalorder %s188, %s191
      %p200 = scmp.eq.s32.totalorder %s26, 5
      %p201 = por %p199, %p200
      %p202 = scmp.ne.s32.totalorder %s191, %s192
      %p203 = scmp.eq.s32.totalorder %s26, 0
      %p204 = por %p202, %p203
      %p205 = scmp.ne.s32.totalorder %s191, %s192
      %p206 = scmp.eq.s32.totalorder %s27, 5
      %p207 = por %p205, %p206
      %p209 = scmp.ne.s32.totalorder %s192, %s208
      %p210 = scmp.eq.s32.totalorder %s27, 0
      %p211 = por %p209, %p210
      %s212 = ssub.s32 %s21, %s28
      %p213 = scmp.eq.s32.totalorder %s212, 0
      %s215 = sadd.s32 %s214, 1
      %s216 = scalar_select %p213, %s214, %s215
      %p219 = pneg %p213
      %p220 = scmp.eq.s32.totalorder %s21, 5
      %p221 = por %p219, %p220
      %p222 = scmp.ne.s32.totalorder %s214, %s217
      %p223 = scmp.eq.s32.totalorder %s21, 0
      %p224 = por %p222, %p223
      %p225 = scmp.ne.s32.totalorder %s214, %s217
      %p226 = scmp.eq.s32.totalorder %s26, 5
      %p227 = por %p225, %p226
      %p228 = scmp.ne.s32.totalorder %s217, %s218
      %p229 = scmp.eq.s32.totalorder %s26, 0
      %p230 = por %p228, %p229
      %p231 = scmp.ne.s32.totalorder %s217, %s218
      %p232 = scmp.eq.s32.totalorder %s27, 5
      %p233 = por %p231, %p232
      %p235 = scmp.ne.s32.totalorder %s218, %s234
      %p236 = scmp.eq.s32.totalorder %s27, 0
      %p237 = por %p235, %p236
      %s239 = sadd.s32 %s238, 1
      %p242 = scmp.eq.s32.totalorder %s21, 5
      %p243 = scmp.ne.s32.totalorder %s238, %s240
      %p244 = scmp.eq.s32.totalorder %s21, 0
      %p245 = por %p243, %p244
      %p246 = scmp.ne.s32.totalorder %s238, %s240
      %p247 = scmp.eq.s32.totalorder %s26, 5
      %p248 = por %p246, %p247
      %p249 = scmp.ne.s32.totalorder %s240, %s241
      %p250 = scmp.eq.s32.totalorder %s26, 0
      %p251 = por %p249, %p250
      %p252 = scmp.ne.s32.totalorder %s240, %s241
      %p253 = scmp.eq.s32.totalorder %s27, 5
      %p254 = por %p252, %p253
      %p256 = scmp.ne.s32.totalorder %s241, %s255
      %p257 = scmp.eq.s32.totalorder %s27, 0
      %p258 = por %p256, %p257
      %p259 = scmp.le.s32.totalorder 1, %s21
      %p260 = scmp.lt.s32.totalorder %s21, 7
      %p261 = pnand %p259, %p260
      %p262 = pneg %p261
      // Predicated region
      $region9: #{center_head_forward.1} parent=5 // pred_check
        _
      $region10: #{center_head_forward.1} parent=5 // pred_check_branch
        %264 = sbr.rel (%p261) target = $region12
      $region11: #{center_head_forward.1} parent=5 // pred_region
        %s265 = ssub.s32 %s21, 1
        // Predicated region
        $region13: #{center_head_forward.1} parent=11 // pred_check
          %p266 = pneg %p42
        $region14: #{center_head_forward.1} parent=11 // pred_check_branch
          %268 = sbr.rel (%p266) target = $region16
        $region15: #{center_head_forward.1} parent=11 // pred_region
          _
        $region16: #{center_head_forward.1} parent=11 // pred_fallthru
          _
        // Predicated region
        $region17: #{center_head_forward.1} parent=11 // pred_check
          %p269 = pneg %p63
        $region18: #{center_head_forward.1} parent=11 // pred_check_branch
          %271 = sbr.rel (%p269) target = $region20
        $region19: #{center_head_forward.1} parent=11 // pred_region
          _
        $region20: #{center_head_forward.1} parent=11 // pred_fallthru
          _
        // Predicated region
        $region21: #{center_head_forward.1} parent=11 // pred_check
          %p272 = pneg %p84
        $region22: #{center_head_forward.1} parent=11 // pred_check_branch
          %274 = sbr.rel (%p272) target = $region24
        $region23: #{center_head_forward.1} parent=11 // pred_region
          _
        $region24: #{center_head_forward.1} parent=11 // pred_fallthru
          _
        // Predicated region
        $region25: #{center_head_forward.1} parent=11 // pred_check
          %p275 = pneg %p105
        $region26: #{center_head_forward.1} parent=11 // pred_check_branch
          %277 = sbr.rel (%p275) target = $region28
        $region27: #{center_head_forward.1} parent=11 // pred_region
          _
        $region28: #{center_head_forward.1} parent=11 // pred_fallthru
          _
        // Predicated region
        $region29: #{center_head_forward.1} parent=11 // pred_check
          %p278 = pneg %p126
        $region30: #{center_head_forward.1} parent=11 // pred_check_branch
          %280 = sbr.rel (%p278) target = $region32
        $region31: #{center_head_forward.1} parent=11 // pred_region
          _
        $region32: #{center_head_forward.1} parent=11 // pred_fallthru
          _
      $region12: #{center_head_forward.1} parent=5 // pred_fallthru
        _
      %p281 = scmp.lt.s32.totalorder %s21, 6
      // Predicated region
      $region33: #{center_head_forward.1} parent=5 // pred_check
        %p282 = pneg %p281
      $region34: #{center_head_forward.1} parent=5 // pred_check_branch
        %284 = sbr.rel (%p282) target = $region36
      $region35: #{center_head_forward.1} parent=5 // pred_region
        // Predicated region
        $region37: #{center_head_forward.1} parent=35 // pred_check
          %p285 = pneg %p146
        $region38: #{center_head_forward.1} parent=35 // pred_check_branch
          %287 = sbr.rel (%p285) target = $region40
        $region39: #{center_head_forward.1} parent=35 // pred_region
          %s288 = sand.u32 %s136, 1
          %s289 = scalar_lea.sflag [#allocation5], %s288
          %s290 = sand.u32 %s136, 1
          %s291 = smul.addr %s290, 576
          %s292 = scalar_lea.vmem [#allocation4], %s291
          %294 = vsyncadd %s289, 0
          %s295 = smul.addr %s21, 144
          %s296 = smul.addr %s295, 4
          %s297 = scalar_lea.hbm %s5, %s296
          %s298 = sshll.u32 %s297, 4
          %s299 = int_to_ptr.hbm [resolvable:$true] %s298
          %s300 = sshll.u32 %s292, 4
          %s301 = int_to_ptr.vmem [resolvable:$true] %s300
          %306 = dma.hbm_to_vmem [thread:$0]  %s299, 9216, %s301, %s289, 576, 576, 36
        $region40: #{center_head_forward.1} parent=35 // pred_fallthru
          _
        // Predicated region
        $region41: #{center_head_forward.1} parent=35 // pred_check
          %p307 = pneg %p172
        $region42: #{center_head_forward.1} parent=35 // pred_check_branch
          %309 = sbr.rel (%p307) target = $region44
        $region43: #{center_head_forward.1} parent=35 // pred_region
          %p310 = scmp.lt.s32.totalorder %s21, 5
          %s311 = scalar_select %p310, %s21, 5
          %s312 = smul.addr %s311, 16
          %s313 = smul.addr %s312, 8
          %s314 = scalar_lea.vmem %s6, %s313
        $region44: #{center_head_forward.1} parent=35 // pred_fallthru
          _
        // Predicated region
        $region45: #{center_head_forward.1} parent=35 // pred_check
          %p315 = pneg %p198
        $region46: #{center_head_forward.1} parent=35 // pred_check_branch
          %317 = sbr.rel (%p315) target = $region48
        $region47: #{center_head_forward.1} parent=35 // pred_region
          %s318 = sand.u32 %s188, 1
          %s319 = scalar_lea.sflag [#allocation7], %s318
          %s320 = sand.u32 %s188, 1
          %s321 = smul.addr %s320, 72
          %s322 = scalar_lea.vmem [#allocation6], %s321
          %324 = vsyncadd %s319, 0
          %s325 = smul.addr %s21, 18
          %s326 = smul.addr %s325, 4
          %s327 = scalar_lea.hbm %s7, %s326
          %s328 = sshll.u32 %s327, 4
          %s329 = int_to_ptr.hbm [resolvable:$true] %s328
          %s330 = sshll.u32 %s322, 4
          %s331 = int_to_ptr.vmem [resolvable:$true] %s330
          %336 = dma.hbm_to_vmem [thread:$0]  %s329, 1152, %s331, %s319, 64, 64, 4
        $region48: #{center_head_forward.1} parent=35 // pred_fallthru
          _
        // Predicated region
        $region49: #{center_head_forward.1} parent=35 // pred_check
          %p337 = pneg %p224
        $region50: #{center_head_forward.1} parent=35 // pred_check_branch
          %339 = sbr.rel (%p337) target = $region52
        $region51: #{center_head_forward.1} parent=35 // pred_region
          %p340 = scmp.lt.s32.totalorder %s21, 5
          %s341 = scalar_select %p340, %s21, 5
          %s342 = smul.addr %s341, 2
          %s343 = smul.addr %s342, 8
          %s344 = scalar_lea.vmem %s8, %s343
        $region52: #{center_head_forward.1} parent=35 // pred_fallthru
          _
      $region36: #{center_head_forward.1} parent=5 // pred_fallthru
        _
      %p345 = scmp.le.s32.totalorder 1, %s21
      %p346 = scmp.lt.s32.totalorder %s21, 7
      %p347 = pnand %p345, %p346
      %p348 = pneg %p347
      // Predicated region
      $region53: #{center_head_forward.1} parent=5 // pred_check
        _
      $region54: #{center_head_forward.1} parent=5 // pred_check_branch
        %350 = sbr.rel (%p347) target = $region56
      $region55: #{center_head_forward.1} parent=5 // pred_region
        %s351 = ssub.s32 %s21, 1
        %s352 = sand.u32 %s139, 1
        %s353 = scalar_lea.sflag [#allocation5], %s352
        %s354 = sand.u32 %s139, 1
        %s355 = smul.addr %s354, 576
        %s356 = scalar_lea.vmem [#allocation4], %s355
        // Predicated region
        $region57: #{center_head_forward.1} parent=55 // pred_check
          %p357 = pneg %p152
        $region58: #{center_head_forward.1} parent=55 // pred_check_branch
          %359 = sbr.rel (%p357) target = $region60
        $region59: #{center_head_forward.1} parent=55 // pred_region
          %361 = dma.done %s353, 9216
        $region60: #{center_head_forward.1} parent=55 // pred_fallthru
          _
        %s362 = sand.u32 %s191, 1
        %s363 = scalar_lea.sflag [#allocation7], %s362
        %s364 = sand.u32 %s191, 1
        %s365 = smul.addr %s364, 72
        %s366 = scalar_lea.vmem [#allocation6], %s365
        // Predicated region
        $region61: #{center_head_forward.1} parent=55 // pred_check
          %p367 = pneg %p204
        $region62: #{center_head_forward.1} parent=55 // pred_check_branch
          %369 = sbr.rel (%p367) target = $region64
        $region63: #{center_head_forward.1} parent=55 // pred_region
          %371 = dma.done %s363, 1152
        $region64: #{center_head_forward.1} parent=55 // pred_fallthru
          _
        %p372 = pneg %p42
        %p373 = pneg %p39
        %p374 = pneg %p63
        %p375 = pneg %p60
        %p376 = pneg %p84
        %p377 = pneg %p81
        %p378 = pneg %p105
        %p379 = pneg %p102
        %p380 = pneg %p126
        %p381 = pneg %p123
        %s382 = sand.u32 %s139, 1
        %s383 = scalar_lea.sflag [#allocation5], %s382
        %s384 = sand.u32 %s139, 1
        %s385 = smul.addr %s384, 576
        %s386 = scalar_lea.vmem [#allocation4], %s385
        %p387 = pneg %p152
        %p388 = pneg %p149
        %p389 = scmp.lt.s32.totalorder %s26, 5
        %s390 = scalar_select %p389, %s26, 5
        %s391 = smul.addr %s390, 16
        %s392 = smul.addr %s391, 8
        %s393 = scalar_lea.vmem %s6, %s392
        %p394 = pneg %p178
        %p395 = pneg %p175
        %s396 = sand.u32 %s191, 1
        %s397 = scalar_lea.sflag [#allocation7], %s396
        %s398 = sand.u32 %s191, 1
        %s399 = smul.addr %s398, 72
        %s400 = scalar_lea.vmem [#allocation6], %s399
        %p401 = pneg %p204
        %p402 = pneg %p201
        %p403 = scmp.lt.s32.totalorder %s26, 5
        %s404 = scalar_select %p403, %s26, 5
        %s405 = smul.addr %s404, 2
        %s406 = smul.addr %s405, 8
        %s407 = scalar_lea.vmem %s8, %s406
        %p408 = pneg %p230
        %p409 = pneg %p227
        %p410 = pneg %p251
        %p411 = pneg %p248
        %p412 = scmp.lt.s32.totalorder %s26, 5
        %s413 = scalar_select %p412, %s26, 5
        %s414 = smul.addr %s413, 16
        %s415 = smul.addr %s414, 8
        %s416 = scalar_lea.vmem %s6, %s415
        %p417 = scmp.lt.s32.totalorder %s26, 5
        %s418 = scalar_select %p417, %s26, 5
        %s419 = smul.addr %s418, 2
        %s420 = smul.addr %s419, 8
        %s421 = scalar_lea.vmem %s8, %s420
        %v423 = vlaneseq
        %v424 = vand.u32 %v423, 127
        %v425 = vadd.s32 %v424, 128
        %v426 = vshra.s32 %v424, 4
        %v427 = vshra.s32 %v425, 4
        %v428 = vand.u32 %v424, 15
        %v429 = vand.u32 %v425, 15
        %v430 = vadd.s32 %v426, 4294967295
        %v431 = vadd.s32 %v427, 4294967295
        %vm432 = vcmp.ge.s32.totalorder %v430, 0
        %vm433 = vcmp.ge.s32.totalorder %v431, 0
        %vm434 = vcmp.lt.s32.totalorder %v430, 16
        %vm435 = vcmp.lt.s32.totalorder %v431, 16
        %vm436 = vmand %vm432, %vm434
        %vm437 = vmand %vm433, %vm435
        %v438 = vadd.s32 %v428, 4294967295
        %v439 = vadd.s32 %v429, 4294967295
        %vm440 = vcmp.ge.s32.totalorder %v438, 0
        %vm441 = vcmp.ge.s32.totalorder %v439, 0
        %vm442 = vmand %vm436, %vm440
        %vm443 = vmand %vm437, %vm441
        %vm444 = vcmp.lt.s32.totalorder %v438, 16
        %vm445 = vcmp.lt.s32.totalorder %v439, 16
        %vm446 = vmand %vm442, %vm444
        %vm447 = vmand %vm443, %vm445
        %v448 = vsel %vm446, 1, 0
        %v449 = vsel %vm447, 1, 0
        %v450 = vcvt.s32.f32 %v448
        %v451 = vcvt.s32.f32 %v449
        %vm452 = vcmp.ge.s32.totalorder %v428, 0
        %vm453 = vcmp.ge.s32.totalorder %v429, 0
        %vm454 = vmand %vm436, %vm452
        %vm455 = vmand %vm437, %vm453
        %vm456 = vcmp.lt.s32.totalorder %v428, 16
        %vm457 = vcmp.lt.s32.totalorder %v429, 16
        %vm458 = vmand %vm454, %vm456
        %vm459 = vmand %vm455, %vm457
        %v460 = vsel %vm458, 1, 0
        %v461 = vsel %vm459, 1, 0
        %v462 = vcvt.s32.f32 %v460
        %v463 = vcvt.s32.f32 %v461
        %v464 = vadd.s32 %v428, 1
        %v465 = vadd.s32 %v429, 1
        %vm466 = vcmp.ge.s32.totalorder %v464, 0
        %vm467 = vcmp.ge.s32.totalorder %v465, 0
        %vm468 = vmand %vm436, %vm466
        %vm469 = vmand %vm437, %vm467
        %vm470 = vcmp.lt.s32.totalorder %v464, 16
        %vm471 = vcmp.lt.s32.totalorder %v465, 16
        %vm472 = vmand %vm468, %vm470
        %vm473 = vmand %vm469, %vm471
        %v474 = vsel %vm472, 1, 0
        %v475 = vsel %vm473, 1, 0
        %v476 = vcvt.s32.f32 %v474
        %v477 = vcvt.s32.f32 %v475
        %vm478 = vcmp.ge.s32.totalorder %v426, 0
        %vm479 = vcmp.ge.s32.totalorder %v427, 0
        %vm480 = vcmp.lt.s32.totalorder %v426, 16
        %vm481 = vcmp.lt.s32.totalorder %v427, 16
        %vm482 = vmand %vm478, %vm480
        %vm483 = vmand %vm479, %vm481
        %vm484 = vmand %vm482, %vm440
        %vm485 = vmand %vm483, %vm441
        %vm486 = vmand %vm484, %vm444
        %vm487 = vmand %vm485, %vm445
        %v488 = vsel %vm486, 1, 0
        %v489 = vsel %vm487, 1, 0
        %v490 = vcvt.s32.f32 %v488
        %v491 = vcvt.s32.f32 %v489
        %vm492 = vmand %vm482, %vm466
        %vm493 = vmand %vm483, %vm467
        %vm494 = vmand %vm492, %vm470
        %vm495 = vmand %vm493, %vm471
        %v496 = vsel %vm494, 1, 0
        %v497 = vsel %vm495, 1, 0
        %v498 = vcvt.s32.f32 %v496
        %v499 = vcvt.s32.f32 %v497
        %v500 = vadd.s32 %v426, 1
        %v501 = vadd.s32 %v427, 1
        %vm502 = vcmp.ge.s32.totalorder %v500, 0
        %vm503 = vcmp.ge.s32.totalorder %v501, 0
        %vm504 = vcmp.lt.s32.totalorder %v500, 16
        %vm505 = vcmp.lt.s32.totalorder %v501, 16
        %vm506 = vmand %vm502, %vm504
        %vm507 = vmand %vm503, %vm505
        %vm508 = vmand %vm506, %vm440
        %vm509 = vmand %vm507, %vm441
        %vm510 = vmand %vm508, %vm444
        %vm511 = vmand %vm509, %vm445
        %v512 = vsel %vm510, 1, 0
        %v513 = vsel %vm511, 1, 0
        %v514 = vcvt.s32.f32 %v512
        %v515 = vcvt.s32.f32 %v513
        %vm516 = vmand %vm506, %vm452
        %vm517 = vmand %vm507, %vm453
        %vm518 = vmand %vm516, %vm456
        %vm519 = vmand %vm517, %vm457
        %v520 = vsel %vm518, 1, 0
        %v521 = vsel %vm519, 1, 0
        %v522 = vcvt.s32.f32 %v520
        %v523 = vcvt.s32.f32 %v521
        %vm524 = vmand %vm506, %vm466
        %vm525 = vmand %vm507, %vm467
        %vm526 = vmand %vm524, %vm470
        %vm527 = vmand %vm525, %vm471
        %v528 = vsel %vm526, 1, 0
        %v529 = vsel %vm527, 1, 0
        %v530 = vcvt.s32.f32 %v528
        %v531 = vcvt.s32.f32 %v529
        %p532 = scmp.eq.s32.totalorder %s26, 0
        // Predicated region
        $region65: #{center_head_forward.1} parent=55 // pred_check
          %p533 = pneg %p532
        $region66: #{center_head_forward.1} parent=55 // pred_check_branch
          %535 = sbr.rel (%p533) target = $region68
        $region67: #{center_head_forward.1} parent=55 // pred_region
          %v536 = vld [vmem:[%s0] sm:$0xff]
          %538 = vst [vmem:[#allocation1] ss:$2 sm:$0xff] %v536
          %v539 = vld.sshfl [vmem:[#allocation1 + $0x8] sm:$0xff pattern:$0x75316420]
          %540 = vrot.lane.b32.xlu0 %v539, 17
          %v541 = vpop.permute.xlu0 %540
          %543 = vst [vmem:[#allocation1] ss:$2 sm:$0xff] %v536
          %v544 = vld.sshfl [vmem:[#allocation1] sm:$0xff pattern:$0x75316420]
          %v545 = vld.sshfl [vmem:[#allocation1 + $0x8] sm:$0xff pattern:$0x75316420]
          %546 = vrot.lane.b32.xlu0 %v544, 17
          %v547 = vpop.permute.xlu0 %546
          %548 = vrot.lane.b32.xlu0 %v545, 17
          %v549 = vpop.permute.xlu0 %548
          %vm550 = vcmask 138240
          %v551 = vsel %vm550, %v547, %v549
          %v554 = vsel %vm550, %v541, %v547
          %v555 = vmul.f32 %v554, %v450
          %v556 = vmul.f32 %v551, %v451
          %557 = vst [vmem:[#allocation1] ss:$2 sm:$0xff] %v536
          %v558 = vld.sshfl [vmem:[#allocation1 + $0x8] sm:$0xff pattern:$0x75316420]
          %559 = vrot.lane.b32.xlu0 %v558, 16
          %v560 = vpop.permute.xlu0 %559
          %562 = vst [vmem:[#allocation1] ss:$2 sm:$0xff] %v536
          %v563 = vld.sshfl [vmem:[#allocation1] sm:$0xff pattern:$0x75316420]
          %v564 = vld.sshfl [vmem:[#allocation1 + $0x8] sm:$0xff pattern:$0x75316420]
          %565 = vrot.lane.b32.xlu0 %v563, 16
          %v566 = vpop.permute.xlu0 %565
          %567 = vrot.lane.b32.xlu0 %v564, 16
          %v568 = vpop.permute.xlu0 %567
          %vm569 = vcmask 130048
          %v570 = vsel %vm569, %v566, %v568
          %v573 = vsel %vm569, %v560, %v566
          %v574 = vmul.f32 %v573, %v462
          %v575 = vmul.f32 %v570, %v463
          %576 = vst [vmem:[#allocation1] ss:$2 sm:$0xff] %v536
          %v577 = vld.sshfl [vmem:[#allocation1 + $0x8] sm:$0xff pattern:$0x75316420]
          %578 = vrot.lane.b32.xlu0 %v577, 15
          %v579 = vpop.permute.xlu0 %578
          %581 = vst [vmem:[#allocation1] ss:$2 sm:$0xff] %v536
          %v582 = vld.sshfl [vmem:[#allocation1] sm:$0xff pattern:$0x75316420]
          %v583 = vld.sshfl [vmem:[#allocation1 + $0x8] sm:$0xff pattern:$0x75316420]
          %584 = vrot.lane.b32.xlu0 %v582, 15
          %v585 = vpop.permute.xlu0 %584
          %586 = vrot.lane.b32.xlu0 %v583, 15
          %v587 = vpop.permute.xlu0 %586
          %vm588 = vcmask 121856
          %v589 = vsel %vm588, %v585, %v587
          %v592 = vsel %vm588, %v579, %v585
          %v593 = vmul.f32 %v592, %v476
          %v594 = vmul.f32 %v589, %v477
          %595 = vst [vmem:[#allocation1] ss:$2 sm:$0xff] %v536
          %v596 = vld.sshfl [vmem:[#allocation1 + $0x8] sm:$0xff pattern:$0x75316420]
          %597 = vrot.lane.b32.xlu0 %v596, 1
          %v598 = vpop.permute.xlu0 %597
          %600 = vst [vmem:[#allocation1] ss:$2 sm:$0xff] %v536
          %v601 = vld.sshfl [vmem:[#allocation1] sm:$0xff pattern:$0x75316420]
          %v602 = vld.sshfl [vmem:[#allocation1 + $0x8] sm:$0xff pattern:$0x75316420]
          %603 = vrot.lane.b32.xlu0 %v601, 1
          %v604 = vpop.permute.xlu0 %603
          %605 = vrot.lane.b32.xlu0 %v602, 1
          %v606 = vpop.permute.xlu0 %605
          %vm607 = vcmask 7168
          %v608 = vsel %vm607, %v604, %v606
          %v611 = vsel %vm607, %v598, %v604
          %v612 = vmul.f32 %v611, %v490
          %v613 = vmul.f32 %v608, %v491
          %614 = vst [vmem:[#allocation1] ss:$2 sm:$0xff] %v536
          %v615 = vld.sshfl [vmem:[#allocation1] sm:$0xff pattern:$0x75316420]
          %v616 = vld.sshfl [vmem:[#allocation1 + $0x8] sm:$0xff pattern:$0x75316420]
          %617 = vrot.lane.b32.xlu0 %v615, 127
          %v618 = vpop.permute.xlu0 %617
          %619 = vrot.lane.b32.xlu0 %v616, 127
          %v620 = vpop.permute.xlu0 %619
          %vm621 = vcmask 1039360
          %v622 = vsel %vm621, %v618, %v620
          %625 = vst [vmem:[#allocation1] ss:$2 sm:$0xff] %v536
          %v626 = vld.sshfl [vmem:[#allocation1] sm:$0xff pattern:$0x75316420]
          %627 = vrot.lane.b32.xlu0 %v626, 127
          %v628 = vpop.permute.xlu0 %627
          %v630 = vsel %vm621, %v620, %v628
          %v631 = vmul.f32 %v622, %v498
          %v632 = vmul.f32 %v630, %v499
          %633 = vst [vmem:[#allocation1] ss:$2 sm:$0xff] %v536
          %v634 = vld.sshfl [vmem:[#allocation1] sm:$0xff pattern:$0x75316420]
          %v635 = vld.sshfl [vmem:[#allocation1 + $0x8] sm:$0xff pattern:$0x75316420]
          %636 = vrot.lane.b32.xlu0 %v634, 113
          %v637 = vpop.permute.xlu0 %636
          %638 = vrot.lane.b32.xlu0 %v635, 113
          %v639 = vpop.permute.xlu0 %638
          %vm640 = vcmask 924672
          %v641 = vsel %vm640, %v637, %v639
          %644 = vst [vmem:[#allocation1] ss:$2 sm:$0xff] %v536
          %v645 = vld.sshfl [vmem:[#allocation1] sm:$0xff pattern:$0x75316420]
          %646 = vrot.lane.b32.xlu0 %v645, 113
          %v647 = vpop.permute.xlu0 %646
          %v649 = vsel %vm640, %v639, %v647
          %v650 = vmul.f32 %v641, %v514
          %v651 = vmul.f32 %v649, %v515
          %652 = vst [vmem:[#allocation1] ss:$2 sm:$0xff] %v536
          %v653 = vld.sshfl [vmem:[#allocation1] sm:$0xff pattern:$0x75316420]
          %v654 = vld.sshfl [vmem:[#allocation1 + $0x8] sm:$0xff pattern:$0x75316420]
          %655 = vrot.lane.b32.xlu0 %v653, 112
          %v656 = vpop.permute.xlu0 %655
          %657 = vrot.lane.b32.xlu0 %v654, 112
          %v658 = vpop.permute.xlu0 %657
          %vm659 = vcmask 916480
          %v660 = vsel %vm659, %v656, %v658
          %663 = vst [vmem:[#allocation1] ss:$2 sm:$0xff] %v536
          %v664 = vld.sshfl [vmem:[#allocation1] sm:$0xff pattern:$0x75316420]
          %665 = vrot.lane.b32.xlu0 %v664, 112
          %v666 = vpop.permute.xlu0 %665
          %v668 = vsel %vm659, %v658, %v666
          %v669 = vmul.f32 %v660, %v522
          %v670 = vmul.f32 %v668, %v523
          %671 = vst [vmem:[#allocation1] ss:$2 sm:$0xff] %v536
          %v672 = vld.sshfl [vmem:[#allocation1] sm:$0xff pattern:$0x75316420]
          %v673 = vld.sshfl [vmem:[#allocation1 + $0x8] sm:$0xff pattern:$0x75316420]
          %674 = vrot.lane.b32.xlu0 %v672, 111
          %v675 = vpop.permute.xlu0 %674
          %676 = vrot.lane.b32.xlu0 %v673, 111
          %v677 = vpop.permute.xlu0 %676
          %vm678 = vcmask 908288
          %v679 = vsel %vm678, %v675, %v677
          %682 = vst [vmem:[#allocation1] ss:$2 sm:$0xff] %v536
          %v683 = vld.sshfl [vmem:[#allocation1] sm:$0xff pattern:$0x75316420]
          %684 = vrot.lane.b32.xlu0 %v683, 111
          %v685 = vpop.permute.xlu0 %684
          %v687 = vsel %vm678, %v677, %v685
          %v688 = vmul.f32 %v679, %v530
          %v689 = vmul.f32 %v687, %v531
          %v692 = vrot.slane %v574, 4
          %v693 = vrot.slane %v575, 4
          %v698 = vrot.slane %v612, 4
          %v699 = vrot.slane %v613, 4
          %702 = vst [vmem:[#allocation1] ss:$2 sm:$0xff] %v536
          %v703 = vld.sshfl [vmem:[#allocation1] sm:$0xff pattern:$0x75316420]
          %v704 = vld.sshfl [vmem:[#allocation1 + $0x8] sm:$0xff pattern:$0x75316420]
          %v709 = vrot.slane %v631, 4
          %v710 = vrot.slane %v632, 4
          %v715 = vrot.slane %v669, 4
          %v716 = vrot.slane %v670, 4
          %vm719 = vcmask 1043456
          %v720 = vsel %vm719, %v555, %v692
          %v721 = vsel %vm719, %v556, %v693
          %v722 = vsel %vm719, %v593, %v698
          %v723 = vsel %vm719, %v594, %v699
          %v724 = vsel %vm719, %v703, %v709
          %v725 = vsel %vm719, %v704, %v710
          %v726 = vsel %vm719, %v650, %v715
          %v727 = vsel %vm719, %v651, %v716
          %v728 = vld [vmem:[%s1] sm:$0xf]
          %v729 = vld [vmem:[%s1 + $0x4] sm:$0xf]
          %v730 = vld [vmem:[%s1 + $0x8] sm:$0xf]
          %v731 = vld [vmem:[%s1 + $0xc] sm:$0xf]
          %v732 = vld [vmem:[%s1 + $0x10] sm:$0xf]
          %v733 = vld [vmem:[%s1 + $0x14] sm:$0xf]
          %v734 = vld [vmem:[%s1 + $0x18] sm:$0xf]
          %v735 = vld [vmem:[%s1 + $0x1c] sm:$0xf]
          %v736 = vpack.c.bf16 %v722, %v720
          %v737 = vpack.c.bf16 %v723, %v721
          %v738 = vpack.c.bf16 %v726, %v724
          %v739 = vpack.c.bf16 %v727, %v725
          %v740 = vpack.c.bf16 %v688, %v688
          %v741 = vpack.c.bf16 %v689, %v689
          %v742 = vld [vmem:[%s2] sm:$0xff]
          %v743 = vld [vmem:[%s2 + $0x8] sm:$0xff]
          %v744 = vld [vmem:[%s2 + $0x10] sm:$0xff]
          %v745 = vld [vmem:[%s2 + $0x18] sm:$0xff]
          %v746 = vld [vmem:[%s2 + $0x20] sm:$0xff]
          %v747 = vld [vmem:[%s2 + $0x28] sm:$0xff]
          %v748 = vld [vmem:[%s2 + $0x30] sm:$0xff]
          %v749 = vld [vmem:[%s2 + $0x38] sm:$0xff]
          %751 = vset.pattern.permute.xlu0 0
          %752 = vperm.xlu0 %751, %v742
          %v753 = vpop.permute.xlu0 %752
          %756 = vset.pattern.permute.xlu0 0
          %757 = vperm.xlu0 %756, %v743
          %v758 = vpop.permute.xlu0 %757
          %761 = vset.pattern.permute.xlu0 0
          %762 = vperm.xlu0 %761, %v744
          %v763 = vpop.permute.xlu0 %762
          %766 = vset.pattern.permute.xlu0 0
          %767 = vperm.xlu0 %766, %v745
          %v768 = vpop.permute.xlu0 %767
          %771 = vset.pattern.permute.xlu0 0
          %772 = vperm.xlu0 %771, %v746
          %v773 = vpop.permute.xlu0 %772
          %776 = vset.pattern.permute.xlu0 0
          %777 = vperm.xlu0 %776, %v747
          %v778 = vpop.permute.xlu0 %777
          %781 = vset.pattern.permute.xlu0 0
          %782 = vperm.xlu0 %781, %v748
          %v783 = vpop.permute.xlu0 %782
          %786 = vset.pattern.permute.xlu0 0
          %787 = vperm.xlu0 %786, %v749
          %v788 = vpop.permute.xlu0 %787
          %v798 = vunpack.c.l.b16 %v728
          %v799 = vunpack.c.l.b16 %v729
          %v800 = vunpack.c.l.b16 %v730
          %v801 = vunpack.c.l.b16 %v731
          %v802 = vunpack.c.l.b16 %v732
          %v803 = vunpack.c.l.b16 %v733
          %v804 = vunpack.c.l.b16 %v734
          %v805 = vunpack.c.l.b16 %v735
          %v806 = vpack.c.b16 %v799, %v798
          %v807 = vpack.c.b16 %v801, %v800
          %v808 = vpack.c.b16 %v803, %v802
          %v809 = vpack.c.b16 %v805, %v804
          %vm810 = vcmask 293888
          %v812 = vsel %vm810, %v806, 0
          %v815 = vsel %vm810, %v807, 0
          %v818 = vsel %vm810, %v808, 0
          %v821 = vsel %vm810, %v809, 0
          %vm823 = vcmask 1041408
          %v825 = vsel %vm823, %v740, 0
          %v828 = vsel %vm823, %v741, 0
          %830 = vmatpush.bf16.msra.mxu0 0
          %831 = vmatpush.bf16.msra.mxu0 0
          %832 = vmatpush.bf16.msra.mxu0 0
          %833 = vmatpush.bf16.msra.mxu0 0
          %834 = vmatpush.bf16.msra.mxu0 0
          %835 = vmatpush.bf16.msra.mxu0 %v825
          %836 = vmatpush.bf16.msra.mxu0 %v738
          %837 = vmatpush.bf16.msra.mxu0 %v736
          %838 = vmatmul.bf16.gmra.mxu0 %v812
          %v839 = vpop.f32.mrf.mxu0
          %v840 = vadd.f32 %v753, %v839
          %v841 = vpop.f32.mrf.mxu0
          %v842 = vadd.f32 %v758, %v841
          %843 = vmatmul.bf16.gmra.mxu0 %v815
          %v844 = vpop.f32.mrf.mxu0
          %v845 = vadd.f32 %v763, %v844
          %v846 = vpop.f32.mrf.mxu0
          %v847 = vadd.f32 %v768, %v846
          %848 = vmatmul.bf16.gmra.mxu0 %v818
          %v849 = vpop.f32.mrf.mxu0
          %v850 = vadd.f32 %v773, %v849
          %v851 = vpop.f32.mrf.mxu0
          %v852 = vadd.f32 %v778, %v851
          %853 = vmatmul.bf16.gmra.mxu0 %v821
          %v854 = vpop.f32.mrf.mxu0
          %v855 = vadd.f32 %v783, %v854
          %v856 = vpop.f32.mrf.mxu0
          %v857 = vadd.f32 %v788, %v856
          %858 = vdwg.mxu0
          %859 = vmatpush.bf16.msra.mxu0 0
          %860 = vmatpush.bf16.msra.mxu0 0
          %861 = vmatpush.bf16.msra.mxu0 0
          %862 = vmatpush.bf16.msra.mxu0 0
          %863 = vmatpush.bf16.msra.mxu0 0
          %864 = vmatpush.bf16.msra.mxu0 %v828
          %865 = vmatpush.bf16.msra.mxu0 %v739
          %866 = vmatpush.bf16.msra.mxu0 %v737
          %867 = vmatmul.bf16.gmra.mxu0 %v812
          %v868 = vpop.f32.mrf.mxu0
          %v869 = vadd.f32 %v753, %v868
          %v870 = vpop.f32.mrf.mxu0
          %v871 = vadd.f32 %v758, %v870
          %872 = vmatmul.bf16.gmra.mxu0 %v815
          %v873 = vpop.f32.mrf.mxu0
          %v874 = vadd.f32 %v763, %v873
          %v875 = vpop.f32.mrf.mxu0
          %v876 = vadd.f32 %v768, %v875
          %877 = vmatmul.bf16.gmra.mxu0 %v818
          %v878 = vpop.f32.mrf.mxu0
          %v879 = vadd.f32 %v773, %v878
          %v880 = vpop.f32.mrf.mxu0
          %v881 = vadd.f32 %v778, %v880
          %882 = vmatmul.bf16.gmra.mxu0 %v821
          %v883 = vpop.f32.mrf.mxu0
          %v884 = vadd.f32 %v783, %v883
          %v885 = vpop.f32.mrf.mxu0
          %v886 = vadd.f32 %v788, %v885
          %887 = vdwg.mxu0
          %v888 = vmax.f32 %v840, 0.0
          %v889 = vmax.f32 %v869, 0.0
          %v890 = vmax.f32 %v842, 0.0
          %v891 = vmax.f32 %v871, 0.0
          %v892 = vmax.f32 %v845, 0.0
          %v893 = vmax.f32 %v874, 0.0
          %v894 = vmax.f32 %v847, 0.0
          %v895 = vmax.f32 %v876, 0.0
          %v896 = vmax.f32 %v850, 0.0
          %v897 = vmax.f32 %v879, 0.0
          %v898 = vmax.f32 %v852, 0.0
          %v899 = vmax.f32 %v881, 0.0
          %v900 = vmax.f32 %v855, 0.0
          %v901 = vmax.f32 %v884, 0.0
          %v902 = vmax.f32 %v857, 0.0
          %v903 = vmax.f32 %v886, 0.0
          %912 = vrot.lane.b32.xlu0 %v889, 17
          %v913 = vpop.permute.xlu0 %912
          %914 = vrot.lane.b32.xlu0 %v891, 17
          %v915 = vpop.permute.xlu0 %914
          %916 = vrot.lane.b32.xlu0 %v893, 17
          %v917 = vpop.permute.xlu0 %916
          %918 = vrot.lane.b32.xlu0 %v895, 17
          %v919 = vpop.permute.xlu0 %918
          %920 = vrot.lane.b32.xlu0 %v897, 17
          %v921 = vpop.permute.xlu0 %920
          %922 = vrot.lane.b32.xlu0 %v899, 17
          %v923 = vpop.permute.xlu0 %922
          %924 = vrot.lane.b32.xlu0 %v901, 17
          %v925 = vpop.permute.xlu0 %924
          %926 = vrot.lane.b32.xlu0 %v903, 17
          %v927 = vpop.permute.xlu0 %926
          %944 = vrot.lane.b32.xlu0 %v888, 17
          %v945 = vpop.permute.xlu0 %944
          %946 = vrot.lane.b32.xlu0 %v890, 17
          %v947 = vpop.permute.xlu0 %946
          %948 = vrot.lane.b32.xlu0 %v892, 17
          %v949 = vpop.permute.xlu0 %948
          %950 = vrot.lane.b32.xlu0 %v894, 17
          %v951 = vpop.permute.xlu0 %950
          %952 = vrot.lane.b32.xlu0 %v896, 17
          %v953 = vpop.permute.xlu0 %952
          %954 = vrot.lane.b32.xlu0 %v898, 17
          %v955 = vpop.permute.xlu0 %954
          %956 = vrot.lane.b32.xlu0 %v900, 17
          %v957 = vpop.permute.xlu0 %956
          %958 = vrot.lane.b32.xlu0 %v902, 17
          %v959 = vpop.permute.xlu0 %958
          %v960 = vsel %vm550, %v945, %v913
          %v961 = vsel %vm550, %v947, %v915
          %v962 = vsel %vm550, %v949, %v917
          %v963 = vsel %vm550, %v951, %v919
          %v964 = vsel %vm550, %v953, %v921
          %v965 = vsel %vm550, %v955, %v923
          %v966 = vsel %vm550, %v957, %v925
          %v967 = vsel %vm550, %v959, %v927
          %v984 = vsel %vm550, %v913, %v945
          %v985 = vsel %vm550, %v915, %v947
          %v986 = vsel %vm550, %v917, %v949
          %v987 = vsel %vm550, %v919, %v951
          %v988 = vsel %vm550, %v921, %v953
          %v989 = vsel %vm550, %v923, %v955
          %v990 = vsel %vm550, %v925, %v957
          %v991 = vsel %vm550, %v927, %v959
          %v992 = vmul.f32 %v984, %v450
          %v993 = vmul.f32 %v960, %v451
          %v994 = vmul.f32 %v985, %v450
          %v995 = vmul.f32 %v961, %v451
          %v996 = vmul.f32 %v986, %v450
          %v997 = vmul.f32 %v962, %v451
          %v998 = vmul.f32 %v987, %v450
          %v999 = vmul.f32 %v963, %v451
          %v1000 = vmul.f32 %v988, %v450
          %v1001 = vmul.f32 %v964, %v451
          %v1002 = vmul.f32 %v989, %v450
          %v1003 = vmul.f32 %v965, %v451
          %v1004 = vmul.f32 %v990, %v450
          %v1005 = vmul.f32 %v966, %v451
          %v1006 = vmul.f32 %v991, %v450
          %v1007 = vmul.f32 %v967, %v451
          %1008 = vrot.lane.b32.xlu0 %v889, 16
          %v1009 = vpop.permute.xlu0 %1008
          %1010 = vrot.lane.b32.xlu0 %v891, 16
          %v1011 = vpop.permute.xlu0 %1010
          %1012 = vrot.lane.b32.xlu0 %v893, 16
          %v1013 = vpop.permute.xlu0 %1012
          %1014 = vrot.lane.b32.xlu0 %v895, 16
          %v1015 = vpop.permute.xlu0 %1014
          %1016 = vrot.lane.b32.xlu0 %v897, 16
          %v1017 = vpop.permute.xlu0 %1016
          %1018 = vrot.lane.b32.xlu0 %v899, 16
          %v1019 = vpop.permute.xlu0 %1018
          %1020 = vrot.lane.b32.xlu0 %v901, 16
          %v1021 = vpop.permute.xlu0 %1020
          %1022 = vrot.lane.b32.xlu0 %v903, 16
          %v1023 = vpop.permute.xlu0 %1022
          %1032 = vrot.lane.b32.xlu0 %v888, 16
          %v1033 = vpop.permute.xlu0 %1032
          %1034 = vrot.lane.b32.xlu0 %v890, 16
          %v1035 = vpop.permute.xlu0 %1034
          %1036 = vrot.lane.b32.xlu0 %v892, 16
          %v1037 = vpop.permute.xlu0 %1036
          %1038 = vrot.lane.b32.xlu0 %v894, 16
          %v1039 = vpop.permute.xlu0 %1038
          %1040 = vrot.lane.b32.xlu0 %v896, 16
          %v1041 = vpop.permute.xlu0 %1040
          %1042 = vrot.lane.b32.xlu0 %v898, 16
          %v1043 = vpop.permute.xlu0 %1042
          %1044 = vrot.lane.b32.xlu0 %v900, 16
          %v1045 = vpop.permute.xlu0 %1044
          %1046 = vrot.lane.b32.xlu0 %v902, 16
          %v1047 = vpop.permute.xlu0 %1046
          %v1048 = vsel %vm569, %v1033, %v1009
          %v1049 = vsel %vm569, %v1035, %v1011
          %v1050 = vsel %vm569, %v1037, %v1013
          %v1051 = vsel %vm569, %v1039, %v1015
          %v1052 = vsel %vm569, %v1041, %v1017
          %v1053 = vsel %vm569, %v1043, %v1019
          %v1054 = vsel %vm569, %v1045, %v1021
          %v1055 = vsel %vm569, %v1047, %v1023
          %v1072 = vsel %vm569, %v1009, %v1033
          %v1073 = vsel %vm569, %v1011, %v1035
          %v1074 = vsel %vm569, %v1013, %v1037
          %v1075 = vsel %vm569, %v1015, %v1039
          %v1076 = vsel %vm569, %v1017, %v1041
          %v1077 = vsel %vm569, %v1019, %v1043
          %v1078 = vsel %vm569, %v1021, %v1045
          %v1079 = vsel %vm569, %v1023, %v1047
          %v1080 = vmul.f32 %v1072, %v462
          %v1081 = vmul.f32 %v1048, %v463
          %v1082 = vmul.f32 %v1073, %v462
          %v1083 = vmul.f32 %v1049, %v463
          %v1084 = vmul.f32 %v1074, %v462
          %v1085 = vmul.f32 %v1050, %v463
          %v1086 = vmul.f32 %v1075, %v462
          %v1087 = vmul.f32 %v1051, %v463
          %v1088 = vmul.f32 %v1076, %v462
          %v1089 = vmul.f32 %v1052, %v463
          %v1090 = vmul.f32 %v1077, %v462
          %v1091 = vmul.f32 %v1053, %v463
          %v1092 = vmul.f32 %v1078, %v462
          %v1093 = vmul.f32 %v1054, %v463
          %v1094 = vmul.f32 %v1079, %v462
          %v1095 = vmul.f32 %v1055, %v463
          %1096 = vrot.lane.b32.xlu0 %v889, 15
          %v1097 = vpop.permute.xlu0 %1096
          %1098 = vrot.lane.b32.xlu0 %v891, 15
          %v1099 = vpop.permute.xlu0 %1098
          %1100 = vrot.lane.b32.xlu0 %v893, 15
          %v1101 = vpop.permute.xlu0 %1100
          %1102 = vrot.lane.b32.xlu0 %v895, 15
          %v1103 = vpop.permute.xlu0 %1102
          %1104 = vrot.lane.b32.xlu0 %v897, 15
          %v1105 = vpop.permute.xlu0 %1104
          %1106 = vrot.lane.b32.xlu0 %v899, 15
          %v1107 = vpop.permute.xlu0 %1106
          %1108 = vrot.lane.b32.xlu0 %v901, 15
          %v1109 = vpop.permute.xlu0 %1108
          %1110 = vrot.lane.b32.xlu0 %v903, 15
          %v1111 = vpop.permute.xlu0 %1110
          %1120 = vrot.lane.b32.xlu0 %v888, 15
          %v1121 = vpop.permute.xlu0 %1120
          %1122 = vrot.lane.b32.xlu0 %v890, 15
          %v1123 = vpop.permute.xlu0 %1122
          %1124 = vrot.lane.b32.xlu0 %v892, 15
          %v1125 = vpop.permute.xlu0 %1124
          %1126 = vrot.lane.b32.xlu0 %v894, 15
          %v1127 = vpop.permute.xlu0 %1126
          %1128 = vrot.lane.b32.xlu0 %v896, 15
          %v1129 = vpop.permute.xlu0 %1128
          %1130 = vrot.lane.b32.xlu0 %v898, 15
          %v1131 = vpop.permute.xlu0 %1130
          %1132 = vrot.lane.b32.xlu0 %v900, 15
          %v1133 = vpop.permute.xlu0 %1132
          %1134 = vrot.lane.b32.xlu0 %v902, 15
          %v1135 = vpop.permute.xlu0 %1134
          %v1136 = vsel %vm588, %v1121, %v1097
          %v1137 = vsel %vm588, %v1123, %v1099
          %v1138 = vsel %vm588, %v1125, %v1101
          %v1139 = vsel %vm588, %v1127, %v1103
          %v1140 = vsel %vm588, %v1129, %v1105
          %v1141 = vsel %vm588, %v1131, %v1107
          %v1142 = vsel %vm588, %v1133, %v1109
          %v1143 = vsel %vm588, %v1135, %v1111
          %v1160 = vsel %vm588, %v1097, %v1121
          %v1161 = vsel %vm588, %v1099, %v1123
          %v1162 = vsel %vm588, %v1101, %v1125
          %v1163 = vsel %vm588, %v1103, %v1127
          %v1164 = vsel %vm588, %v1105, %v1129
          %v1165 = vsel %vm588, %v1107, %v1131
          %v1166 = vsel %vm588, %v1109, %v1133
          %v1167 = vsel %vm588, %v1111, %v1135
          %v1168 = vmul.f32 %v1160, %v476
          %v1169 = vmul.f32 %v1136, %v477
          %v1170 = vmul.f32 %v1161, %v476
          %v1171 = vmul.f32 %v1137, %v477
          %v1172 = vmul.f32 %v1162, %v476
          %v1173 = vmul.f32 %v1138, %v477
          %v1174 = vmul.f32 %v1163, %v476
          %v1175 = vmul.f32 %v1139, %v477
          %v1176 = vmul.f32 %v1164, %v476
          %v1177 = vmul.f32 %v1140, %v477
          %v1178 = vmul.f32 %v1165, %v476
          %v1179 = vmul.f32 %v1141, %v477
          %v1180 = vmul.f32 %v1166, %v476
          %v1181 = vmul.f32 %v1142, %v477
          %v1182 = vmul.f32 %v1167, %v476
          %v1183 = vmul.f32 %v1143, %v477
          %1184 = vrot.lane.b32.xlu0 %v889, 1
          %v1185 = vpop.permute.xlu0 %1184
          %1186 = vrot.lane.b32.xlu0 %v891, 1
          %v1187 = vpop.permute.xlu0 %1186
          %1188 = vrot.lane.b32.xlu0 %v893, 1
          %v1189 = vpop.permute.xlu0 %1188
          %1190 = vrot.lane.b32.xlu0 %v895, 1
          %v1191 = vpop.permute.xlu0 %1190
          %1192 = vrot.lane.b32.xlu0 %v897, 1
          %v1193 = vpop.permute.xlu0 %1192
          %1194 = vrot.lane.b32.xlu0 %v899, 1
          %v1195 = vpop.permute.xlu0 %1194
          %1196 = vrot.lane.b32.xlu0 %v901, 1
          %v1197 = vpop.permute.xlu0 %1196
          %1198 = vrot.lane.b32.xlu0 %v903, 1
          %v1199 = vpop.permute.xlu0 %1198
          %1208 = vrot.lane.b32.xlu0 %v888, 1
          %v1209 = vpop.permute.xlu0 %1208
          %1210 = vrot.lane.b32.xlu0 %v890, 1
          %v1211 = vpop.permute.xlu0 %1210
          %1212 = vrot.lane.b32.xlu0 %v892, 1
          %v1213 = vpop.permute.xlu0 %1212
          %1214 = vrot.lane.b32.xlu0 %v894, 1
          %v1215 = vpop.permute.xlu0 %1214
          %1216 = vrot.lane.b32.xlu0 %v896, 1
          %v1217 = vpop.permute.xlu0 %1216
          %1218 = vrot.lane.b32.xlu0 %v898, 1
          %v1219 = vpop.permute.xlu0 %1218
          %1220 = vrot.lane.b32.xlu0 %v900, 1
          %v1221 = vpop.permute.xlu0 %1220
          %1222 = vrot.lane.b32.xlu0 %v902, 1
          %v1223 = vpop.permute.xlu0 %1222
          %v1224 = vsel %vm607, %v1209, %v1185
          %v1225 = vsel %vm607, %v1211, %v1187
          %v1226 = vsel %vm607, %v1213, %v1189
          %v1227 = vsel %vm607, %v1215, %v1191
          %v1228 = vsel %vm607, %v1217, %v1193
          %v1229 = vsel %vm607, %v1219, %v1195
          %v1230 = vsel %vm607, %v1221, %v1197
          %v1231 = vsel %vm607, %v1223, %v1199
          %v1248 = vsel %vm607, %v1185, %v1209
          %v1249 = vsel %vm607, %v1187, %v1211
          %v1250 = vsel %vm607, %v1189, %v1213
          %v1251 = vsel %vm607, %v1191, %v1215
          %v1252 = vsel %vm607, %v1193, %v1217
          %v1253 = vsel %vm607, %v1195, %v1219
          %v1254 = vsel %vm607, %v1197, %v1221
          %v1255 = vsel %vm607, %v1199, %v1223
          %v1256 = vmul.f32 %v1248, %v490
          %v1257 = vmul.f32 %v1224, %v491
          %v1258 = vmul.f32 %v1249, %v490
          %v1259 = vmul.f32 %v1225, %v491
          %v1260 = vmul.f32 %v1250, %v490
          %v1261 = vmul.f32 %v1226, %v491
          %v1262 = vmul.f32 %v1251, %v490
          %v1263 = vmul.f32 %v1227, %v491
          %v1264 = vmul.f32 %v1252, %v490
          %v1265 = vmul.f32 %v1228, %v491
          %v1266 = vmul.f32 %v1253, %v490
          %v1267 = vmul.f32 %v1229, %v491
          %v1268 = vmul.f32 %v1254, %v490
          %v1269 = vmul.f32 %v1230, %v491
          %v1270 = vmul.f32 %v1255, %v490
          %v1271 = vmul.f32 %v1231, %v491
          %1272 = vrot.lane.b32.xlu0 %v888, 127
          %v1273 = vpop.permute.xlu0 %1272
          %1274 = vrot.lane.b32.xlu0 %v889, 127
          %v1275 = vpop.permute.xlu0 %1274
          %1276 = vrot.lane.b32.xlu0 %v890, 127
          %v1277 = vpop.permute.xlu0 %1276
          %1278 = vrot.lane.b32.xlu0 %v891, 127
          %v1279 = vpop.permute.xlu0 %1278
          %1280 = vrot.lane.b32.xlu0 %v892, 127
          %v1281 = vpop.permute.xlu0 %1280
          %1282 = vrot.lane.b32.xlu0 %v893, 127
          %v1283 = vpop.permute.xlu0 %1282
          %1284 = vrot.lane.b32.xlu0 %v894, 127
          %v1285 = vpop.permute.xlu0 %1284
          %1286 = vrot.lane.b32.xlu0 %v895, 127
          %v1287 = vpop.permute.xlu0 %1286
          %1288 = vrot.lane.b32.xlu0 %v896, 127
          %v1289 = vpop.permute.xlu0 %1288
          %1290 = vrot.lane.b32.xlu0 %v897, 127
          %v1291 = vpop.permute.xlu0 %1290
          %1292 = vrot.lane.b32.xlu0 %v898, 127
          %v1293 = vpop.permute.xlu0 %1292
          %1294 = vrot.lane.b32.xlu0 %v899, 127
          %v1295 = vpop.permute.xlu0 %1294
          %1296 = vrot.lane.b32.xlu0 %v900, 127
          %v1297 = vpop.permute.xlu0 %1296
          %1298 = vrot.lane.b32.xlu0 %v901, 127
          %v1299 = vpop.permute.xlu0 %1298
          %1300 = vrot.lane.b32.xlu0 %v902, 127
          %v1301 = vpop.permute.xlu0 %1300
          %1302 = vrot.lane.b32.xlu0 %v903, 127
          %v1303 = vpop.permute.xlu0 %1302
          %v1304 = vsel %vm621, %v1273, %v1275
          %v1305 = vsel %vm621, %v1277, %v1279
          %v1306 = vsel %vm621, %v1281, %v1283
          %v1307 = vsel %vm621, %v1285, %v1287
          %v1308 = vsel %vm621, %v1289, %v1291
          %v1309 = vsel %vm621, %v1293, %v1295
          %v1310 = vsel %vm621, %v1297, %v1299
          %v1311 = vsel %vm621, %v1301, %v1303
          %v1336 = vsel %vm621, %v1275, %v1273
          %v1337 = vsel %vm621, %v1279, %v1277
          %v1338 = vsel %vm621, %v1283, %v1281
          %v1339 = vsel %vm621, %v1287, %v1285
          %v1340 = vsel %vm621, %v1291, %v1289
          %v1341 = vsel %vm621, %v1295, %v1293
          %v1342 = vsel %vm621, %v1299, %v1297
          %v1343 = vsel %vm621, %v1303, %v1301
          %v1344 = vmul.f32 %v1304, %v498
          %v1345 = vmul.f32 %v1336, %v499
          %v1346 = vmul.f32 %v1305, %v498
          %v1347 = vmul.f32 %v1337, %v499
          %v1348 = vmul.f32 %v1306, %v498
          %v1349 = vmul.f32 %v1338, %v499
          %v1350 = vmul.f32 %v1307, %v498
          %v1351 = vmul.f32 %v1339, %v499
          %v1352 = vmul.f32 %v1308, %v498
          %v1353 = vmul.f32 %v1340, %v499
          %v1354 = vmul.f32 %v1309, %v498
          %v1355 = vmul.f32 %v1341, %v499
          %v1356 = vmul.f32 %v1310, %v498
          %v1357 = vmul.f32 %v1342, %v499
          %v1358 = vmul.f32 %v1311, %v498
          %v1359 = vmul.f32 %v1343, %v499
          %1360 = vrot.lane.b32.xlu0 %v888, 113
          %v1361 = vpop.permute.xlu0 %1360
          %1362 = vrot.lane.b32.xlu0 %v889, 113
          %v1363 = vpop.permute.xlu0 %1362
          %1364 = vrot.lane.b32.xlu0 %v890, 113
          %v1365 = vpop.permute.xlu0 %1364
          %1366 = vrot.lane.b32.xlu0 %v891, 113
          %v1367 = vpop.permute.xlu0 %1366
          %1368 = vrot.lane.b32.xlu0 %v892, 113
          %v1369 = vpop.permute.xlu0 %1368
          %1370 = vrot.lane.b32.xlu0 %v893, 113
          %v1371 = vpop.permute.xlu0 %1370
          %1372 = vrot.lane.b32.xlu0 %v894, 113
          %v1373 = vpop.permute.xlu0 %1372
          %1374 = vrot.lane.b32.xlu0 %v895, 113
          %v1375 = vpop.permute.xlu0 %1374
          %1376 = vrot.lane.b32.xlu0 %v896, 113
          %v1377 = vpop.permute.xlu0 %1376
          %1378 = vrot.lane.b32.xlu0 %v897, 113
          %v1379 = vpop.permute.xlu0 %1378
          %1380 = vrot.lane.b32.xlu0 %v898, 113
          %v1381 = vpop.permute.xlu0 %1380
          %1382 = vrot.lane.b32.xlu0 %v899, 113
          %v1383 = vpop.permute.xlu0 %1382
          %1384 = vrot.lane.b32.xlu0 %v900, 113
          %v1385 = vpop.permute.xlu0 %1384
          %1386 = vrot.lane.b32.xlu0 %v901, 113
          %v1387 = vpop.permute.xlu0 %1386
          %1388 = vrot.lane.b32.xlu0 %v902, 113
          %v1389 = vpop.permute.xlu0 %1388
          %1390 = vrot.lane.b32.xlu0 %v903, 113
          %v1391 = vpop.permute.xlu0 %1390
          %v1392 = vsel %vm640, %v1361, %v1363
          %v1393 = vsel %vm640, %v1365, %v1367
          %v1394 = vsel %vm640, %v1369, %v1371
          %v1395 = vsel %vm640, %v1373, %v1375
          %v1396 = vsel %vm640, %v1377, %v1379
          %v1397 = vsel %vm640, %v1381, %v1383
          %v1398 = vsel %vm640, %v1385, %v1387
          %v1399 = vsel %vm640, %v1389, %v1391
          %v1424 = vsel %vm640, %v1363, %v1361
          %v1425 = vsel %vm640, %v1367, %v1365
          %v1426 = vsel %vm640, %v1371, %v1369
          %v1427 = vsel %vm640, %v1375, %v1373
          %v1428 = vsel %vm640, %v1379, %v1377
          %v1429 = vsel %vm640, %v1383, %v1381
          %v1430 = vsel %vm640, %v1387, %v1385
          %v1431 = vsel %vm640, %v1391, %v1389
          %v1432 = vmul.f32 %v1392, %v514
          %v1433 = vmul.f32 %v1424, %v515
          %v1434 = vmul.f32 %v1393, %v514
          %v1435 = vmul.f32 %v1425, %v515
          %v1436 = vmul.f32 %v1394, %v514
          %v1437 = vmul.f32 %v1426, %v515
          %v1438 = vmul.f32 %v1395, %v514
          %v1439 = vmul.f32 %v1427, %v515
          %v1440 = vmul.f32 %v1396, %v514
          %v1441 = vmul.f32 %v1428, %v515
          %v1442 = vmul.f32 %v1397, %v514
          %v1443 = vmul.f32 %v1429, %v515
          %v1444 = vmul.f32 %v1398, %v514
          %v1445 = vmul.f32 %v1430, %v515
          %v1446 = vmul.f32 %v1399, %v514
          %v1447 = vmul.f32 %v1431, %v515
          %1448 = vrot.lane.b32.xlu0 %v888, 112
          %v1449 = vpop.permute.xlu0 %1448
          %1450 = vrot.lane.b32.xlu0 %v889, 112
          %v1451 = vpop.permute.xlu0 %1450
          %1452 = vrot.lane.b32.xlu0 %v890, 112
          %v1453 = vpop.permute.xlu0 %1452
          %1454 = vrot.lane.b32.xlu0 %v891, 112
          %v1455 = vpop.permute.xlu0 %1454
          %1456 = vrot.lane.b32.xlu0 %v892, 112
          %v1457 = vpop.permute.xlu0 %1456
          %1458 = vrot.lane.b32.xlu0 %v893, 112
          %v1459 = vpop.permute.xlu0 %1458
          %1460 = vrot.lane.b32.xlu0 %v894, 112
          %v1461 = vpop.permute.xlu0 %1460
          %1462 = vrot.lane.b32.xlu0 %v895, 112
          %v1463 = vpop.permute.xlu0 %1462
          %1464 = vrot.lane.b32.xlu0 %v896, 112
          %v1465 = vpop.permute.xlu0 %1464
          %1466 = vrot.lane.b32.xlu0 %v897, 112
          %v1467 = vpop.permute.xlu0 %1466
          %1468 = vrot.lane.b32.xlu0 %v898, 112
          %v1469 = vpop.permute.xlu0 %1468
          %1470 = vrot.lane.b32.xlu0 %v899, 112
          %v1471 = vpop.permute.xlu0 %1470
          %1472 = vrot.lane.b32.xlu0 %v900, 112
          %v1473 = vpop.permute.xlu0 %1472
          %1474 = vrot.lane.b32.xlu0 %v901, 112
          %v1475 = vpop.permute.xlu0 %1474
          %1476 = vrot.lane.b32.xlu0 %v902, 112
          %v1477 = vpop.permute.xlu0 %1476
          %1478 = vrot.lane.b32.xlu0 %v903, 112
          %v1479 = vpop.permute.xlu0 %1478
          %v1480 = vsel %vm659, %v1449, %v1451
          %v1481 = vsel %vm659, %v1453, %v1455
          %v1482 = vsel %vm659, %v1457, %v1459
          %v1483 = vsel %vm659, %v1461, %v1463
          %v1484 = vsel %vm659, %v1465, %v1467
          %v1485 = vsel %vm659, %v1469, %v1471
          %v1486 = vsel %vm659, %v1473, %v1475
          %v1487 = vsel %vm659, %v1477, %v1479
          %v1512 = vsel %vm659, %v1451, %v1449
          %v1513 = vsel %vm659, %v1455, %v1453
          %v1514 = vsel %vm659, %v1459, %v1457
          %v1515 = vsel %vm659, %v1463, %v1461
          %v1516 = vsel %vm659, %v1467, %v1465
          %v1517 = vsel %vm659, %v1471, %v1469
          %v1518 = vsel %vm659, %v1475, %v1473
          %v1519 = vsel %vm659, %v1479, %v1477
          %v1520 = vmul.f32 %v1480, %v522
          %v1521 = vmul.f32 %v1512, %v523
          %v1522 = vmul.f32 %v1481, %v522
          %v1523 = vmul.f32 %v1513, %v523
          %v1524 = vmul.f32 %v1482, %v522
          %v1525 = vmul.f32 %v1514, %v523
          %v1526 = vmul.f32 %v1483, %v522
          %v1527 = vmul.f32 %v1515, %v523
          %v1528 = vmul.f32 %v1484, %v522
          %v1529 = vmul.f32 %v1516, %v523
          %v1530 = vmul.f32 %v1485, %v522
          %v1531 = vmul.f32 %v1517, %v523
          %v1532 = vmul.f32 %v1486, %v522
          %v1533 = vmul.f32 %v1518, %v523
          %v1534 = vmul.f32 %v1487, %v522
          %v1535 = vmul.f32 %v1519, %v523
          %1536 = vrot.lane.b32.xlu0 %v888, 111
          %v1537 = vpop.permute.xlu0 %1536
          %1538 = vrot.lane.b32.xlu0 %v889, 111
          %v1539 = vpop.permute.xlu0 %1538
          %1540 = vrot.lane.b32.xlu0 %v890, 111
          %v1541 = vpop.permute.xlu0 %1540
          %1542 = vrot.lane.b32.xlu0 %v891, 111
          %v1543 = vpop.permute.xlu0 %1542
          %1544 = vrot.lane.b32.xlu0 %v892, 111
          %v1545 = vpop.permute.xlu0 %1544
          %1546 = vrot.lane.b32.xlu0 %v893, 111
          %v1547 = vpop.permute.xlu0 %1546
          %1548 = vrot.lane.b32.xlu0 %v894, 111
          %v1549 = vpop.permute.xlu0 %1548
          %1550 = vrot.lane.b32.xlu0 %v895, 111
          %v1551 = vpop.permute.xlu0 %1550
          %1552 = vrot.lane.b32.xlu0 %v896, 111
          %v1553 = vpop.permute.xlu0 %1552
          %1554 = vrot.lane.b32.xlu0 %v897, 111
          %v1555 = vpop.permute.xlu0 %1554
          %1556 = vrot.lane.b32.xlu0 %v898, 111
          %v1557 = vpop.permute.xlu0 %1556
          %1558 = vrot.lane.b32.xlu0 %v899, 111
          %v1559 = vpop.permute.xlu0 %1558
          %1560 = vrot.lane.b32.xlu0 %v900, 111
          %v1561 = vpop.permute.xlu0 %1560
          %1562 = vrot.lane.b32.xlu0 %v901, 111
          %v1563 = vpop.permute.xlu0 %1562
          %1564 = vrot.lane.b32.xlu0 %v902, 111
          %v1565 = vpop.permute.xlu0 %1564
          %1566 = vrot.lane.b32.xlu0 %v903, 111
          %v1567 = vpop.permute.xlu0 %1566
          %v1568 = vsel %vm678, %v1537, %v1539
          %v1569 = vsel %vm678, %v1541, %v1543
          %v1570 = vsel %vm678, %v1545, %v1547
          %v1571 = vsel %vm678, %v1549, %v1551
          %v1572 = vsel %vm678, %v1553, %v1555
          %v1573 = vsel %vm678, %v1557, %v1559
          %v1574 = vsel %vm678, %v1561, %v1563
          %v1575 = vsel %vm678, %v1565, %v1567
          %v1600 = vsel %vm678, %v1539, %v1537
          %v1601 = vsel %vm678, %v1543, %v1541
          %v1602 = vsel %vm678, %v1547, %v1545
          %v1603 = vsel %vm678, %v1551, %v1549
          %v1604 = vsel %vm678, %v1555, %v1553
          %v1605 = vsel %vm678, %v1559, %v1557
          %v1606 = vsel %vm678, %v1563, %v1561
          %v1607 = vsel %vm678, %v1567, %v1565
          %v1608 = vmul.f32 %v1568, %v530
          %v1609 = vmul.f32 %v1600, %v531
          %v1610 = vmul.f32 %v1569, %v530
          %v1611 = vmul.f32 %v1601, %v531
          %v1612 = vmul.f32 %v1570, %v530
          %v1613 = vmul.f32 %v1602, %v531
          %v1614 = vmul.f32 %v1571, %v530
          %v1615 = vmul.f32 %v1603, %v531
          %v1616 = vmul.f32 %v1572, %v530
          %v1617 = vmul.f32 %v1604, %v531
          %v1618 = vmul.f32 %v1573, %v530
          %v1619 = vmul.f32 %v1605, %v531
          %v1620 = vmul.f32 %v1574, %v530
          %v1621 = vmul.f32 %v1606, %v531
          %v1622 = vmul.f32 %v1575, %v530
          %v1623 = vmul.f32 %v1607, %v531
          %v1624 = vld [vmem:[%s3] sm:$0xff]
          %v1625 = vld [vmem:[%s3 + $0x8] sm:$0xff]
          %v1626 = vld [vmem:[%s3 + $0x10] sm:$0xf]
          %v1627 = vld [vmem:[%s3 + $0x14] sm:$0xff]
          %v1628 = vld [vmem:[%s3 + $0x1c] sm:$0xff]
          %v1629 = vld [vmem:[%s3 + $0x24] sm:$0xf]
          %v1630 = vld [vmem:[%s3 + $0x28] sm:$0xff]
          %v1631 = vld [vmem:[%s3 + $0x30] sm:$0xff]
          %v1632 = vld [vmem:[%s3 + $0x38] sm:$0xf]
          %v1633 = vld [vmem:[%s3 + $0x3c] sm:$0xff]
          %v1634 = vld [vmem:[%s3 + $0x44] sm:$0xff]
          %v1635 = vld [vmem:[%s3 + $0x4c] sm:$0xf]
          %v1636 = vld [vmem:[%s3 + $0x50] sm:$0xff]
          %v1637 = vld [vmem:[%s3 + $0x58] sm:$0xff]
          %v1638 = vld [vmem:[%s3 + $0x60] sm:$0xf]
          %v1639 = vld [vmem:[%s3 + $0x64] sm:$0xff]
          %v1640 = vld [vmem:[%s3 + $0x6c] sm:$0xff]
          %v1641 = vld [vmem:[%s3 + $0x74] sm:$0xf]
          %v1642 = vld [vmem:[%s3 + $0x78] sm:$0xff]
          %v1643 = vld [vmem:[%s3 + $0x80] sm:$0xff]
          %v1644 = vld [vmem:[%s3 + $0x88] sm:$0xf]
          %v1645 = vld [vmem:[%s3 + $0x8c] sm:$0xff]
          %v1646 = vld [vmem:[%s3 + $0x94] sm:$0xff]
          %v1647 = vld [vmem:[%s3 + $0x9c] sm:$0xf]
          %v1648 = vld [vmem:[%s3 + $0xa0] sm:$0xff]
          %v1649 = vld [vmem:[%s3 + $0xa8] sm:$0xff]
          %v1650 = vld [vmem:[%s3 + $0xb0] sm:$0xf]
          %v1651 = vld [vmem:[%s3 + $0xb4] sm:$0xff]
          %v1652 = vld [vmem:[%s3 + $0xbc] sm:$0xff]
          %v1653 = vld [vmem:[%s3 + $0xc4] sm:$0xf]
          %v1654 = vld [vmem:[%s3 + $0xc8] sm:$0xff]
          %v1655 = vld [vmem:[%s3 + $0xd0] sm:$0xff]
          %v1656 = vld [vmem:[%s3 + $0xd8] sm:$0xf]
          %v1657 = vld [vmem:[%s3 + $0xdc] sm:$0xff]
          %v1658 = vld [vmem:[%s3 + $0xe4] sm:$0xff]
          %v1659 = vld [vmem:[%s3 + $0xec] sm:$0xf]
          %v1660 = vld [vmem:[%s3 + $0xf0] sm:$0xff]
          %v1661 = vld [vmem:[%s3 + $0xf8] sm:$0xff]
          %v1662 = vld [vmem:[%s3 + $0x100] sm:$0xf]
          %v1663 = vld [vmem:[%s3 + $0x104] sm:$0xff]
          %v1664 = vld [vmem:[%s3 + $0x10c] sm:$0xff]
          %v1665 = vld [vmem:[%s3 + $0x114] sm:$0xf]
          %v1666 = vld [vmem:[%s3 + $0x118] sm:$0xff]
          %v1667 = vld [vmem:[%s3 + $0x120] sm:$0xff]
          %v1668 = vld [vmem:[%s3 + $0x128] sm:$0xf]
          %v1669 = vld [vmem:[%s3 + $0x12c] sm:$0xff]
          %v1670 = vld [vmem:[%s3 + $0x134] sm:$0xff]
          %v1671 = vld [vmem:[%s3 + $0x13c] sm:$0xf]
          %v1672 = vpack.c.bf16 %v994, %v992
          %v1673 = vpack.c.bf16 %v995, %v993
          %v1674 = vpack.c.bf16 %v998, %v996
          %v1675 = vpack.c.bf16 %v999, %v997
          %v1676 = vpack.c.bf16 %v1002, %v1000
          %v1677 = vpack.c.bf16 %v1003, %v1001
          %v1678 = vpack.c.bf16 %v1006, %v1004
          %v1679 = vpack.c.bf16 %v1007, %v1005
          %v1680 = vpack.c.bf16 %v1082, %v1080
          %v1681 = vpack.c.bf16 %v1083, %v1081
          %v1682 = vpack.c.bf16 %v1086, %v1084
          %v1683 = vpack.c.bf16 %v1087, %v1085
          %v1684 = vpack.c.bf16 %v1090, %v1088
          %v1685 = vpack.c.bf16 %v1091, %v1089
          %v1686 = vpack.c.bf16 %v1094, %v1092
          %v1687 = vpack.c.bf16 %v1095, %v1093
          %v1688 = vpack.c.bf16 %v1170, %v1168
          %v1689 = vpack.c.bf16 %v1171, %v1169
          %v1690 = vpack.c.bf16 %v1174, %v1172
          %v1691 = vpack.c.bf16 %v1175, %v1173
          %v1692 = vpack.c.bf16 %v1178, %v1176
          %v1693 = vpack.c.bf16 %v1179, %v1177
          %v1694 = vpack.c.bf16 %v1182, %v1180
          %v1695 = vpack.c.bf16 %v1183, %v1181
          %v1696 = vpack.c.bf16 %v1258, %v1256
          %v1697 = vpack.c.bf16 %v1259, %v1257
          %v1698 = vpack.c.bf16 %v1262, %v1260
          %v1699 = vpack.c.bf16 %v1263, %v1261
          %v1700 = vpack.c.bf16 %v1266, %v1264
          %v1701 = vpack.c.bf16 %v1267, %v1265
          %v1702 = vpack.c.bf16 %v1270, %v1268
          %v1703 = vpack.c.bf16 %v1271, %v1269
          %v1704 = vpack.c.bf16 %v890, %v888
          %v1705 = vpack.c.bf16 %v891, %v889
          %v1706 = vpack.c.bf16 %v894, %v892
          %v1707 = vpack.c.bf16 %v895, %v893
          %v1708 = vpack.c.bf16 %v898, %v896
          %v1709 = vpack.c.bf16 %v899, %v897
          %v1710 = vpack.c.bf16 %v902, %v900
          %v1711 = vpack.c.bf16 %v903, %v901
          %v1712 = vpack.c.bf16 %v1346, %v1344
          %v1713 = vpack.c.bf16 %v1347, %v1345
          %v1714 = vpack.c.bf16 %v1350, %v1348
          %v1715 = vpack.c.bf16 %v1351, %v1349
          %v1716 = vpack.c.bf16 %v1354, %v1352
          %v1717 = vpack.c.bf16 %v1355, %v1353
          %v1718 = vpack.c.bf16 %v1358, %v1356
          %v1719 = vpack.c.bf16 %v1359, %v1357
          %v1720 = vpack.c.bf16 %v1434, %v1432
          %v1721 = vpack.c.bf16 %v1435, %v1433
          %v1722 = vpack.c.bf16 %v1438, %v1436
          %v1723 = vpack.c.bf16 %v1439, %v1437
          %v1724 = vpack.c.bf16 %v1442, %v1440
          %v1725 = vpack.c.bf16 %v1443, %v1441
          %v1726 = vpack.c.bf16 %v1446, %v1444
          %v1727 = vpack.c.bf16 %v1447, %v1445
          %v1728 = vpack.c.bf16 %v1522, %v1520
          %v1729 = vpack.c.bf16 %v1523, %v1521
          %v1730 = vpack.c.bf16 %v1526, %v1524
          %v1731 = vpack.c.bf16 %v1527, %v1525
          %v1732 = vpack.c.bf16 %v1530, %v1528
          %v1733 = vpack.c.bf16 %v1531, %v1529
          %v1734 = vpack.c.bf16 %v1534, %v1532
          %v1735 = vpack.c.bf16 %v1535, %v1533
          %v1736 = vpack.c.bf16 %v1610, %v1608
          %v1737 = vpack.c.bf16 %v1611, %v1609
          %v1738 = vpack.c.bf16 %v1614, %v1612
          %v1739 = vpack.c.bf16 %v1615, %v1613
          %v1740 = vpack.c.bf16 %v1618, %v1616
          %v1741 = vpack.c.bf16 %v1619, %v1617
          %v1742 = vpack.c.bf16 %v1622, %v1620
          %v1743 = vpack.c.bf16 %v1623, %v1621
          %v1744 = vld [vmem:[%s4] sm:$0xff]
          %v1745 = vld [vmem:[%s4 + $0x8] sm:$0xff]
          %v1746 = vld [vmem:[%s4 + $0x10] sm:$0xff]
          %v1747 = vld [vmem:[%s4 + $0x18] sm:$0xff]
          %v1748 = vld [vmem:[%s4 + $0x20] sm:$0xff]
          %v1749 = vld [vmem:[%s4 + $0x28] sm:$0xff]
          %v1750 = vld [vmem:[%s4 + $0x30] sm:$0xff]
          %v1751 = vld [vmem:[%s4 + $0x38] sm:$0xff]
          %v1752 = vld [vmem:[%s4 + $0x40] sm:$0xff]
          %v1753 = vld [vmem:[%s4 + $0x48] sm:$0xff]
          %v1754 = vld [vmem:[%s4 + $0x50] sm:$0xff]
          %v1755 = vld [vmem:[%s4 + $0x58] sm:$0xff]
          %v1756 = vld [vmem:[%s4 + $0x60] sm:$0xff]
          %v1757 = vld [vmem:[%s4 + $0x68] sm:$0xff]
          %v1758 = vld [vmem:[%s4 + $0x70] sm:$0xff]
          %v1759 = vld [vmem:[%s4 + $0x78] sm:$0xff]
          %1761 = vset.pattern.permute.xlu0 0
          %1762 = vperm.xlu0 %1761, %v1744
          %v1763 = vpop.permute.xlu0 %1762
          %1766 = vset.pattern.permute.xlu0 0
          %1767 = vperm.xlu0 %1766, %v1745
          %v1768 = vpop.permute.xlu0 %1767
          %1771 = vset.pattern.permute.xlu0 0
          %1772 = vperm.xlu0 %1771, %v1746
          %v1773 = vpop.permute.xlu0 %1772
          %1776 = vset.pattern.permute.xlu0 0
          %1777 = vperm.xlu0 %1776, %v1747
          %v1778 = vpop.permute.xlu0 %1777
          %1781 = vset.pattern.permute.xlu0 0
          %1782 = vperm.xlu0 %1781, %v1748
          %v1783 = vpop.permute.xlu0 %1782
          %1786 = vset.pattern.permute.xlu0 0
          %1787 = vperm.xlu0 %1786, %v1749
          %v1788 = vpop.permute.xlu0 %1787
          %1791 = vset.pattern.permute.xlu0 0
          %1792 = vperm.xlu0 %1791, %v1750
          %v1793 = vpop.permute.xlu0 %1792
          %1796 = vset.pattern.permute.xlu0 0
          %1797 = vperm.xlu0 %1796, %v1751
          %v1798 = vpop.permute.xlu0 %1797
          %1801 = vset.pattern.permute.xlu0 0
          %1802 = vperm.xlu0 %1801, %v1752
          %v1803 = vpop.permute.xlu0 %1802
          %1806 = vset.pattern.permute.xlu0 0
          %1807 = vperm.xlu0 %1806, %v1753
          %v1808 = vpop.permute.xlu0 %1807
          %1811 = vset.pattern.permute.xlu0 0
          %1812 = vperm.xlu0 %1811, %v1754
          %v1813 = vpop.permute.xlu0 %1812
          %1816 = vset.pattern.permute.xlu0 0
          %1817 = vperm.xlu0 %1816, %v1755
          %v1818 = vpop.permute.xlu0 %1817
          %1821 = vset.pattern.permute.xlu0 0
          %1822 = vperm.xlu0 %1821, %v1756
          %v1823 = vpop.permute.xlu0 %1822
          %1826 = vset.pattern.permute.xlu0 0
          %1827 = vperm.xlu0 %1826, %v1757
          %v1828 = vpop.permute.xlu0 %1827
          %1831 = vset.pattern.permute.xlu0 0
          %1832 = vperm.xlu0 %1831, %v1758
          %v1833 = vpop.permute.xlu0 %1832
          %1836 = vset.pattern.permute.xlu0 0
          %1837 = vperm.xlu0 %1836, %v1759
          %v1838 = vpop.permute.xlu0 %1837
          %v1888 = vunpack.c.l.b16 %v1624
          %v1889 = vunpack.c.h.b16 %v1624
          %v1890 = vunpack.c.l.b16 %v1625
          %v1891 = vunpack.c.h.b16 %v1625
          %v1892 = vunpack.c.l.b16 %v1626
          %v1893 = vunpack.c.l.b16 %v1627
          %v1894 = vunpack.c.h.b16 %v1627
          %v1895 = vunpack.c.l.b16 %v1628
          %v1896 = vunpack.c.h.b16 %v1628
          %v1897 = vunpack.c.l.b16 %v1629
          %v1898 = vunpack.c.l.b16 %v1630
          %v1899 = vunpack.c.h.b16 %v1630
          %v1900 = vunpack.c.l.b16 %v1631
          %v1901 = vunpack.c.h.b16 %v1631
          %v1902 = vunpack.c.l.b16 %v1632
          %v1903 = vunpack.c.l.b16 %v1633
          %v1904 = vunpack.c.h.b16 %v1633
          %v1905 = vunpack.c.l.b16 %v1634
          %v1906 = vunpack.c.h.b16 %v1634
          %v1907 = vunpack.c.l.b16 %v1635
          %v1908 = vunpack.c.l.b16 %v1636
          %v1909 = vunpack.c.h.b16 %v1636
          %v1910 = vunpack.c.l.b16 %v1637
          %v1911 = vunpack.c.h.b16 %v1637
          %v1912 = vunpack.c.l.b16 %v1638
          %v1913 = vunpack.c.l.b16 %v1639
          %v1914 = vunpack.c.h.b16 %v1639
          %v1915 = vunpack.c.l.b16 %v1640
          %v1916 = vunpack.c.h.b16 %v1640
          %v1917 = vunpack.c.l.b16 %v1641
          %v1918 = vunpack.c.l.b16 %v1642
          %v1919 = vunpack.c.h.b16 %v1642
          %v1920 = vunpack.c.l.b16 %v1643
          %v1921 = vunpack.c.h.b16 %v1643
          %v1922 = vunpack.c.l.b16 %v1644
          %v1923 = vunpack.c.l.b16 %v1645
          %v1924 = vunpack.c.h.b16 %v1645
          %v1925 = vunpack.c.l.b16 %v1646
          %v1926 = vunpack.c.h.b16 %v1646
          %v1927 = vunpack.c.l.b16 %v1647
          %v1928 = vunpack.c.l.b16 %v1648
          %v1929 = vunpack.c.h.b16 %v1648
          %v1930 = vunpack.c.l.b16 %v1649
          %v1931 = vunpack.c.h.b16 %v1649
          %v1932 = vunpack.c.l.b16 %v1650
          %v1933 = vunpack.c.l.b16 %v1651
          %v1934 = vunpack.c.h.b16 %v1651
          %v1935 = vunpack.c.l.b16 %v1652
          %v1936 = vunpack.c.h.b16 %v1652
          %v1937 = vunpack.c.l.b16 %v1653
          %v1938 = vunpack.c.l.b16 %v1654
          %v1939 = vunpack.c.h.b16 %v1654
          %v1940 = vunpack.c.l.b16 %v1655
          %v1941 = vunpack.c.h.b16 %v1655
          %v1942 = vunpack.c.l.b16 %v1656
          %v1943 = vunpack.c.l.b16 %v1657
          %v1944 = vunpack.c.h.b16 %v1657
          %v1945 = vunpack.c.l.b16 %v1658
          %v1946 = vunpack.c.h.b16 %v1658
          %v1947 = vunpack.c.l.b16 %v1659
          %v1948 = vunpack.c.l.b16 %v1660
          %v1949 = vunpack.c.h.b16 %v1660
          %v1950 = vunpack.c.l.b16 %v1661
          %v1951 = vunpack.c.h.b16 %v1661
          %v1952 = vunpack.c.l.b16 %v1662
          %v1953 = vunpack.c.l.b16 %v1663
          %v1954 = vunpack.c.h.b16 %v1663
          %v1955 = vunpack.c.l.b16 %v1664
          %v1956 = vunpack.c.h.b16 %v1664
          %v1957 = vunpack.c.l.b16 %v1665
          %v1958 = vunpack.c.l.b16 %v1666
          %v1959 = vunpack.c.h.b16 %v1666
          %v1960 = vunpack.c.l.b16 %v1667
          %v1961 = vunpack.c.h.b16 %v1667
          %v1962 = vunpack.c.l.b16 %v1668
          %v1963 = vunpack.c.l.b16 %v1669
          %v1964 = vunpack.c.h.b16 %v1669
          %v1965 = vunpack.c.l.b16 %v1670
          %v1966 = vunpack.c.h.b16 %v1670
          %v1967 = vunpack.c.l.b16 %v1671
          %v1968 = vpack.c.b16 %v1893, %v1888
          %v1969 = vpack.c.b16 %v1894, %v1889
          %v1970 = vpack.c.b16 %v1895, %v1890
          %v1971 = vpack.c.b16 %v1896, %v1891
          %v1972 = vpack.c.b16 %v1897, %v1892
          %v1973 = vpack.c.b16 %v1903, %v1898
          %v1974 = vpack.c.b16 %v1904, %v1899
          %v1975 = vpack.c.b16 %v1905, %v1900
          %v1976 = vpack.c.b16 %v1906, %v1901
          %v1977 = vpack.c.b16 %v1907, %v1902
          %v1978 = vpack.c.b16 %v1913, %v1908
          %v1979 = vpack.c.b16 %v1914, %v1909
          %v1980 = vpack.c.b16 %v1915, %v1910
          %v1981 = vpack.c.b16 %v1916, %v1911
          %v1982 = vpack.c.b16 %v1917, %v1912
          %v1983 = vpack.c.b16 %v1923, %v1918
          %v1984 = vpack.c.b16 %v1924, %v1919
          %v1985 = vpack.c.b16 %v1925, %v1920
          %v1986 = vpack.c.b16 %v1926, %v1921
          %v1987 = vpack.c.b16 %v1927, %v1922
          %v1988 = vpack.c.b16 %v1933, %v1928
          %v1989 = vpack.c.b16 %v1934, %v1929
          %v1990 = vpack.c.b16 %v1935, %v1930
          %v1991 = vpack.c.b16 %v1936, %v1931
          %v1992 = vpack.c.b16 %v1937, %v1932
          %v1993 = vpack.c.b16 %v1943, %v1938
          %v1994 = vpack.c.b16 %v1944, %v1939
          %v1995 = vpack.c.b16 %v1945, %v1940
          %v1996 = vpack.c.b16 %v1946, %v1941
          %v1997 = vpack.c.b16 %v1947, %v1942
          %v1998 = vpack.c.b16 %v1953, %v1948
          %v1999 = vpack.c.b16 %v1954, %v1949
          %v2000 = vpack.c.b16 %v1955, %v1950
          %v2001 = vpack.c.b16 %v1956, %v1951
          %v2002 = vpack.c.b16 %v1957, %v1952
          %v2003 = vpack.c.b16 %v1963, %v1958
          %v2004 = vpack.c.b16 %v1964, %v1959
          %v2005 = vpack.c.b16 %v1965, %v1960
          %v2006 = vpack.c.b16 %v1966, %v1961
          %v2007 = vpack.c.b16 %v1967, %v1962
          %vm2040 = vcmask 523264
          %v2042 = vsel %vm2040, %v1972, 0
          %v2045 = vsel %vm2040, %v1977, 0
          %v2048 = vsel %vm2040, %v1982, 0
          %v2051 = vsel %vm2040, %v1987, 0
          %v2054 = vsel %vm2040, %v1992, 0
          %v2057 = vsel %vm2040, %v1997, 0
          %v2060 = vsel %vm2040, %v2002, 0
          %v2063 = vsel %vm2040, %v2007, 0
          %2065 = vmatpush.bf16.msra.mxu0 %v1686
          %2066 = vmatpush.bf16.msra.mxu0 %v1684
          %2067 = vmatpush.bf16.msra.mxu0 %v1682
          %2068 = vmatpush.bf16.msra.mxu0 %v1680
          %2069 = vmatpush.bf16.msra.mxu0 %v1678
          %2070 = vmatpush.bf16.msra.mxu0 %v1676
          %2071 = vmatpush.bf16.msra.mxu0 %v1674
          %2072 = vmatpush.bf16.msra.mxu0 %v1672
          %2073 = vmatmul.bf16.gmra.mxu0 %v1968
          %v2074 = vpop.f32.mrf.mxu0
          %v2075 = vadd.f32 %v1763, %v2074
          %v2076 = vpop.f32.mrf.mxu0
          %v2077 = vadd.f32 %v1768, %v2076
          %2078 = vmatmul.bf16.gmra.mxu0 %v1973
          %v2079 = vpop.f32.mrf.mxu0
          %v2080 = vadd.f32 %v1773, %v2079
          %v2081 = vpop.f32.mrf.mxu0
          %v2082 = vadd.f32 %v1778, %v2081
          %2083 = vmatmul.bf16.gmra.mxu0 %v1978
          %v2084 = vpop.f32.mrf.mxu0
          %v2085 = vadd.f32 %v1783, %v2084
          %v2086 = vpop.f32.mrf.mxu0
          %v2087 = vadd.f32 %v1788, %v2086
          %2088 = vmatmul.bf16.gmra.mxu0 %v1983
          %v2089 = vpop.f32.mrf.mxu0
          %v2090 = vadd.f32 %v1793, %v2089
          %v2091 = vpop.f32.mrf.mxu0
          %v2092 = vadd.f32 %v1798, %v2091
          %2093 = vmatmul.bf16.gmra.mxu0 %v1988
          %v2094 = vpop.f32.mrf.mxu0
          %v2095 = vadd.f32 %v1803, %v2094
          %v2096 = vpop.f32.mrf.mxu0
          %v2097 = vadd.f32 %v1808, %v2096
          %2098 = vmatmul.bf16.gmra.mxu0 %v1993
          %v2099 = vpop.f32.mrf.mxu0
          %v2100 = vadd.f32 %v1813, %v2099
          %v2101 = vpop.f32.mrf.mxu0
          %v2102 = vadd.f32 %v1818, %v2101
          %2103 = vmatmul.bf16.gmra.mxu0 %v1998
          %v2104 = vpop.f32.mrf.mxu0
          %v2105 = vadd.f32 %v1823, %v2104
          %v2106 = vpop.f32.mrf.mxu0
          %v2107 = vadd.f32 %v1828, %v2106
          %2108 = vmatmul.bf16.gmra.mxu0 %v2003
          %v2109 = vpop.f32.mrf.mxu0
          %v2110 = vadd.f32 %v1833, %v2109
          %v2111 = vpop.f32.mrf.mxu0
          %v2112 = vadd.f32 %v1838, %v2111
          %2113 = vdwg.mxu0
          %2114 = vmatpush.bf16.msra.mxu0 %v1702
          %2115 = vmatpush.bf16.msra.mxu0 %v1700
          %2116 = vmatpush.bf16.msra.mxu0 %v1698
          %2117 = vmatpush.bf16.msra.mxu0 %v1696
          %2118 = vmatpush.bf16.msra.mxu0 %v1694
          %2119 = vmatpush.bf16.msra.mxu0 %v1692
          %2120 = vmatpush.bf16.msra.mxu0 %v1690
          %2121 = vmatpush.bf16.msra.mxu0 %v1688
          %2122 = vmatmul.bf16.gmra.mxu0 %v1969
          %v2123 = vpop.f32.mrf.mxu0
          %v2124 = vadd.f32 %v2075, %v2123
          %v2125 = vpop.f32.mrf.mxu0
          %v2126 = vadd.f32 %v2077, %v2125
          %2127 = vmatmul.bf16.gmra.mxu0 %v1974
          %v2128 = vpop.f32.mrf.mxu0
          %v2129 = vadd.f32 %v2080, %v2128
          %v2130 = vpop.f32.mrf.mxu0
          %v2131 = vadd.f32 %v2082, %v2130
          %2132 = vmatmul.bf16.gmra.mxu0 %v1979
          %v2133 = vpop.f32.mrf.mxu0
          %v2134 = vadd.f32 %v2085, %v2133
          %v2135 = vpop.f32.mrf.mxu0
          %v2136 = vadd.f32 %v2087, %v2135
          %2137 = vmatmul.bf16.gmra.mxu0 %v1984
          %v2138 = vpop.f32.mrf.mxu0
          %v2139 = vadd.f32 %v2090, %v2138
          %v2140 = vpop.f32.mrf.mxu0
          %v2141 = vadd.f32 %v2092, %v2140
          %2142 = vmatmul.bf16.gmra.mxu0 %v1989
          %v2143 = vpop.f32.mrf.mxu0
          %v2144 = vadd.f32 %v2095, %v2143
          %v2145 = vpop.f32.mrf.mxu0
          %v2146 = vadd.f32 %v2097, %v2145
          %2147 = vmatmul.bf16.gmra.mxu0 %v1994
          %v2148 = vpop.f32.mrf.mxu0
          %v2149 = vadd.f32 %v2100, %v2148
          %v2150 = vpop.f32.mrf.mxu0
          %v2151 = vadd.f32 %v2102, %v2150
          %2152 = vmatmul.bf16.gmra.mxu0 %v1999
          %v2153 = vpop.f32.mrf.mxu0
          %v2154 = vadd.f32 %v2105, %v2153
          %v2155 = vpop.f32.mrf.mxu0
          %v2156 = vadd.f32 %v2107, %v2155
          %2157 = vmatmul.bf16.gmra.mxu0 %v2004
          %v2158 = vpop.f32.mrf.mxu0
          %v2159 = vadd.f32 %v2110, %v2158
          %v2160 = vpop.f32.mrf.mxu0
          %v2161 = vadd.f32 %v2112, %v2160
          %2162 = vdwg.mxu0
          %2163 = vmatpush.bf16.msra.mxu0 %v1718
          %2164 = vmatpush.bf16.msra.mxu0 %v1716
          %2165 = vmatpush.bf16.msra.mxu0 %v1714
          %2166 = vmatpush.bf16.msra.mxu0 %v1712
          %2167 = vmatpush.bf16.msra.mxu0 %v1710
          %2168 = vmatpush.bf16.msra.mxu0 %v1708
          %2169 = vmatpush.bf16.msra.mxu0 %v1706
          %2170 = vmatpush.bf16.msra.mxu0 %v1704
          %2171 = vmatmul.bf16.gmra.mxu0 %v1970
          %v2172 = vpop.f32.mrf.mxu0
          %v2173 = vadd.f32 %v2124, %v2172
          %v2174 = vpop.f32.mrf.mxu0
          %v2175 = vadd.f32 %v2126, %v2174
          %2176 = vmatmul.bf16.gmra.mxu0 %v1975
          %v2177 = vpop.f32.mrf.mxu0
          %v2178 = vadd.f32 %v2129, %v2177
          %v2179 = vpop.f32.mrf.mxu0
          %v2180 = vadd.f32 %v2131, %v2179
          %2181 = vmatmul.bf16.gmra.mxu0 %v1980
          %v2182 = vpop.f32.mrf.mxu0
          %v2183 = vadd.f32 %v2134, %v2182
          %v2184 = vpop.f32.mrf.mxu0
          %v2185 = vadd.f32 %v2136, %v2184
          %2186 = vmatmul.bf16.gmra.mxu0 %v1985
          %v2187 = vpop.f32.mrf.mxu0
          %v2188 = vadd.f32 %v2139, %v2187
          %v2189 = vpop.f32.mrf.mxu0
          %v2190 = vadd.f32 %v2141, %v2189
          %2191 = vmatmul.bf16.gmra.mxu0 %v1990
          %v2192 = vpop.f32.mrf.mxu0
          %v2193 = vadd.f32 %v2144, %v2192
          %v2194 = vpop.f32.mrf.mxu0
          %v2195 = vadd.f32 %v2146, %v2194
          %2196 = vmatmul.bf16.gmra.mxu0 %v1995
          %v2197 = vpop.f32.mrf.mxu0
          %v2198 = vadd.f32 %v2149, %v2197
          %v2199 = vpop.f32.mrf.mxu0
          %v2200 = vadd.f32 %v2151, %v2199
          %2201 = vmatmul.bf16.gmra.mxu0 %v2000
          %v2202 = vpop.f32.mrf.mxu0
          %v2203 = vadd.f32 %v2154, %v2202
          %v2204 = vpop.f32.mrf.mxu0
          %v2205 = vadd.f32 %v2156, %v2204
          %2206 = vmatmul.bf16.gmra.mxu0 %v2005
          %v2207 = vpop.f32.mrf.mxu0
          %v2208 = vadd.f32 %v2159, %v2207
          %v2209 = vpop.f32.mrf.mxu0
          %v2210 = vadd.f32 %v2161, %v2209
          %2211 = vdwg.mxu0
          %2212 = vmatpush.bf16.msra.mxu0 %v1734
          %2213 = vmatpush.bf16.msra.mxu0 %v1732
          %2214 = vmatpush.bf16.msra.mxu0 %v1730
          %2215 = vmatpush.bf16.msra.mxu0 %v1728
          %2216 = vmatpush.bf16.msra.mxu0 %v1726
          %2217 = vmatpush.bf16.msra.mxu0 %v1724
          %2218 = vmatpush.bf16.msra.mxu0 %v1722
          %2219 = vmatpush.bf16.msra.mxu0 %v1720
          %2220 = vmatmul.bf16.gmra.mxu0 %v1971
          %v2221 = vpop.f32.mrf.mxu0
          %v2222 = vadd.f32 %v2173, %v2221
          %v2223 = vpop.f32.mrf.mxu0
          %v2224 = vadd.f32 %v2175, %v2223
          %2225 = vmatmul.bf16.gmra.mxu0 %v1976
          %v2226 = vpop.f32.mrf.mxu0
          %v2227 = vadd.f32 %v2178, %v2226
          %v2228 = vpop.f32.mrf.mxu0
          %v2229 = vadd.f32 %v2180, %v2228
          %2230 = vmatmul.bf16.gmra.mxu0 %v1981
          %v2231 = vpop.f32.mrf.mxu0
          %v2232 = vadd.f32 %v2183, %v2231
          %v2233 = vpop.f32.mrf.mxu0
          %v2234 = vadd.f32 %v2185, %v2233
          %2235 = vmatmul.bf16.gmra.mxu0 %v1986
          %v2236 = vpop.f32.mrf.mxu0
          %v2237 = vadd.f32 %v2188, %v2236
          %v2238 = vpop.f32.mrf.mxu0
          %v2239 = vadd.f32 %v2190, %v2238
          %2240 = vmatmul.bf16.gmra.mxu0 %v1991
          %v2241 = vpop.f32.mrf.mxu0
          %v2242 = vadd.f32 %v2193, %v2241
          %v2243 = vpop.f32.mrf.mxu0
          %v2244 = vadd.f32 %v2195, %v2243
          %2245 = vmatmul.bf16.gmra.mxu0 %v1996
          %v2246 = vpop.f32.mrf.mxu0
          %v2247 = vadd.f32 %v2198, %v2246
          %v2248 = vpop.f32.mrf.mxu0
          %v2249 = vadd.f32 %v2200, %v2248
          %2250 = vmatmul.bf16.gmra.mxu0 %v2001
          %v2251 = vpop.f32.mrf.mxu0
          %v2252 = vadd.f32 %v2203, %v2251
          %v2253 = vpop.f32.mrf.mxu0
          %v2254 = vadd.f32 %v2205, %v2253
          %2255 = vmatmul.bf16.gmra.mxu0 %v2006
          %v2256 = vpop.f32.mrf.mxu0
          %v2257 = vadd.f32 %v2208, %v2256
          %v2258 = vpop.f32.mrf.mxu0
          %v2259 = vadd.f32 %v2210, %v2258
          %2260 = vdwg.mxu0
          %2261 = vmatpush.bf16.msra.mxu0 0
          %2262 = vmatpush.bf16.msra.mxu0 0
          %2263 = vmatpush.bf16.msra.mxu0 0
          %2264 = vmatpush.bf16.msra.mxu0 0
          %2265 = vmatpush.bf16.msra.mxu0 %v1742
          %2266 = vmatpush.bf16.msra.mxu0 %v1740
          %2267 = vmatpush.bf16.msra.mxu0 %v1738
          %2268 = vmatpush.bf16.msra.mxu0 %v1736
          %2269 = vmatmul.bf16.gmra.mxu0 %v2042
          %v2270 = vpop.f32.mrf.mxu0
          %v2271 = vadd.f32 %v2222, %v2270
          %v2272 = vpop.f32.mrf.mxu0
          %v2273 = vadd.f32 %v2224, %v2272
          %2274 = vmatmul.bf16.gmra.mxu0 %v2045
          %v2275 = vpop.f32.mrf.mxu0
          %v2276 = vadd.f32 %v2227, %v2275
          %v2277 = vpop.f32.mrf.mxu0
          %v2278 = vadd.f32 %v2229, %v2277
          %2279 = vmatmul.bf16.gmra.mxu0 %v2048
          %v2280 = vpop.f32.mrf.mxu0
          %v2281 = vadd.f32 %v2232, %v2280
          %v2282 = vpop.f32.mrf.mxu0
          %v2283 = vadd.f32 %v2234, %v2282
          %2284 = vmatmul.bf16.gmra.mxu0 %v2051
          %v2285 = vpop.f32.mrf.mxu0
          %v2286 = vadd.f32 %v2237, %v2285
          %v2287 = vpop.f32.mrf.mxu0
          %v2288 = vadd.f32 %v2239, %v2287
          %2289 = vmatmul.bf16.gmra.mxu0 %v2054
          %v2290 = vpop.f32.mrf.mxu0
          %v2291 = vadd.f32 %v2242, %v2290
          %v2292 = vpop.f32.mrf.mxu0
          %v2293 = vadd.f32 %v2244, %v2292
          %2294 = vmatmul.bf16.gmra.mxu0 %v2057
          %v2295 = vpop.f32.mrf.mxu0
          %v2296 = vadd.f32 %v2247, %v2295
          %v2297 = vpop.f32.mrf.mxu0
          %v2298 = vadd.f32 %v2249, %v2297
          %2299 = vmatmul.bf16.gmra.mxu0 %v2060
          %v2300 = vpop.f32.mrf.mxu0
          %v2301 = vadd.f32 %v2252, %v2300
          %v2302 = vpop.f32.mrf.mxu0
          %v2303 = vadd.f32 %v2254, %v2302
          %2304 = vmatmul.bf16.gmra.mxu0 %v2063
          %v2305 = vpop.f32.mrf.mxu0
          %v2306 = vadd.f32 %v2257, %v2305
          %v2307 = vpop.f32.mrf.mxu0
          %v2308 = vadd.f32 %v2259, %v2307
          %2309 = vdwg.mxu0
          %2310 = vmatpush.bf16.msra.mxu0 %v1687
          %2311 = vmatpush.bf16.msra.mxu0 %v1685
          %2312 = vmatpush.bf16.msra.mxu0 %v1683
          %2313 = vmatpush.bf16.msra.mxu0 %v1681
          %2314 = vmatpush.bf16.msra.mxu0 %v1679
          %2315 = vmatpush.bf16.msra.mxu0 %v1677
          %2316 = vmatpush.bf16.msra.mxu0 %v1675
          %2317 = vmatpush.bf16.msra.mxu0 %v1673
          %2318 = vmatmul.bf16.gmra.mxu0 %v1968
          %v2319 = vpop.f32.mrf.mxu0
          %v2320 = vadd.f32 %v1763, %v2319
          %v2321 = vpop.f32.mrf.mxu0
          %v2322 = vadd.f32 %v1768, %v2321
          %2323 = vmatmul.bf16.gmra.mxu0 %v1973
          %v2324 = vpop.f32.mrf.mxu0
          %v2325 = vadd.f32 %v1773, %v2324
          %v2326 = vpop.f32.mrf.mxu0
          %v2327 = vadd.f32 %v1778, %v2326
          %2328 = vmatmul.bf16.gmra.mxu0 %v1978
          %v2329 = vpop.f32.mrf.mxu0
          %v2330 = vadd.f32 %v1783, %v2329
          %v2331 = vpop.f32.mrf.mxu0
          %v2332 = vadd.f32 %v1788, %v2331
          %2333 = vmatmul.bf16.gmra.mxu0 %v1983
          %v2334 = vpop.f32.mrf.mxu0
          %v2335 = vadd.f32 %v1793, %v2334
          %v2336 = vpop.f32.mrf.mxu0
          %v2337 = vadd.f32 %v1798, %v2336
          %2338 = vmatmul.bf16.gmra.mxu0 %v1988
          %v2339 = vpop.f32.mrf.mxu0
          %v2340 = vadd.f32 %v1803, %v2339
          %v2341 = vpop.f32.mrf.mxu0
          %v2342 = vadd.f32 %v1808, %v2341
          %2343 = vmatmul.bf16.gmra.mxu0 %v1993
          %v2344 = vpop.f32.mrf.mxu0
          %v2345 = vadd.f32 %v1813, %v2344
          %v2346 = vpop.f32.mrf.mxu0
          %v2347 = vadd.f32 %v1818, %v2346
          %2348 = vmatmul.bf16.gmra.mxu0 %v1998
          %v2349 = vpop.f32.mrf.mxu0
          %v2350 = vadd.f32 %v1823, %v2349
          %v2351 = vpop.f32.mrf.mxu0
          %v2352 = vadd.f32 %v1828, %v2351
          %2353 = vmatmul.bf16.gmra.mxu0 %v2003
          %v2354 = vpop.f32.mrf.mxu0
          %v2355 = vadd.f32 %v1833, %v2354
          %v2356 = vpop.f32.mrf.mxu0
          %v2357 = vadd.f32 %v1838, %v2356
          %2358 = vdwg.mxu0
          %2359 = vmatpush.bf16.msra.mxu0 %v1703
          %2360 = vmatpush.bf16.msra.mxu0 %v1701
          %2361 = vmatpush.bf16.msra.mxu0 %v1699
          %2362 = vmatpush.bf16.msra.mxu0 %v1697
          %2363 = vmatpush.bf16.msra.mxu0 %v1695
          %2364 = vmatpush.bf16.msra.mxu0 %v1693
          %2365 = vmatpush.bf16.msra.mxu0 %v1691
          %2366 = vmatpush.bf16.msra.mxu0 %v1689
          %2367 = vmatmul.bf16.gmra.mxu0 %v1969
          %v2368 = vpop.f32.mrf.mxu0
          %v2369 = vadd.f32 %v2320, %v2368
          %v2370 = vpop.f32.mrf.mxu0
          %v2371 = vadd.f32 %v2322, %v2370
          %2372 = vmatmul.bf16.gmra.mxu0 %v1974
          %v2373 = vpop.f32.mrf.mxu0
          %v2374 = vadd.f32 %v2325, %v2373
          %v2375 = vpop.f32.mrf.mxu0
          %v2376 = vadd.f32 %v2327, %v2375
          %2377 = vmatmul.bf16.gmra.mxu0 %v1979
          %v2378 = vpop.f32.mrf.mxu0
          %v2379 = vadd.f32 %v2330, %v2378
          %v2380 = vpop.f32.mrf.mxu0
          %v2381 = vadd.f32 %v2332, %v2380
          %2382 = vmatmul.bf16.gmra.mxu0 %v1984
          %v2383 = vpop.f32.mrf.mxu0
          %v2384 = vadd.f32 %v2335, %v2383
          %v2385 = vpop.f32.mrf.mxu0
          %v2386 = vadd.f32 %v2337, %v2385
          %2387 = vmatmul.bf16.gmra.mxu0 %v1989
          %v2388 = vpop.f32.mrf.mxu0
          %v2389 = vadd.f32 %v2340, %v2388
          %v2390 = vpop.f32.mrf.mxu0
          %v2391 = vadd.f32 %v2342, %v2390
          %2392 = vmatmul.bf16.gmra.mxu0 %v1994
          %v2393 = vpop.f32.mrf.mxu0
          %v2394 = vadd.f32 %v2345, %v2393
          %v2395 = vpop.f32.mrf.mxu0
          %v2396 = vadd.f32 %v2347, %v2395
          %2397 = vmatmul.bf16.gmra.mxu0 %v1999
          %v2398 = vpop.f32.mrf.mxu0
          %v2399 = vadd.f32 %v2350, %v2398
          %v2400 = vpop.f32.mrf.mxu0
          %v2401 = vadd.f32 %v2352, %v2400
          %2402 = vmatmul.bf16.gmra.mxu0 %v2004
          %v2403 = vpop.f32.mrf.mxu0
          %v2404 = vadd.f32 %v2355, %v2403
          %v2405 = vpop.f32.mrf.mxu0
          %v2406 = vadd.f32 %v2357, %v2405
          %2407 = vdwg.mxu0
          %2408 = vmatpush.bf16.msra.mxu0 %v1719
          %2409 = vmatpush.bf16.msra.mxu0 %v1717
          %2410 = vmatpush.bf16.msra.mxu0 %v1715
          %2411 = vmatpush.bf16.msra.mxu0 %v1713
          %2412 = vmatpush.bf16.msra.mxu0 %v1711
          %2413 = vmatpush.bf16.msra.mxu0 %v1709
          %2414 = vmatpush.bf16.msra.mxu0 %v1707
          %2415 = vmatpush.bf16.msra.mxu0 %v1705
          %2416 = vmatmul.bf16.gmra.mxu0 %v1970
          %v2417 = vpop.f32.mrf.mxu0
          %v2418 = vadd.f32 %v2369, %v2417
          %v2419 = vpop.f32.mrf.mxu0
          %v2420 = vadd.f32 %v2371, %v2419
          %2421 = vmatmul.bf16.gmra.mxu0 %v1975
          %v2422 = vpop.f32.mrf.mxu0
          %v2423 = vadd.f32 %v2374, %v2422
          %v2424 = vpop.f32.mrf.mxu0
          %v2425 = vadd.f32 %v2376, %v2424
          %2426 = vmatmul.bf16.gmra.mxu0 %v1980
          %v2427 = vpop.f32.mrf.mxu0
          %v2428 = vadd.f32 %v2379, %v2427
          %v2429 = vpop.f32.mrf.mxu0
          %v2430 = vadd.f32 %v2381, %v2429
          %2431 = vmatmul.bf16.gmra.mxu0 %v1985
          %v2432 = vpop.f32.mrf.mxu0
          %v2433 = vadd.f32 %v2384, %v2432
          %v2434 = vpop.f32.mrf.mxu0
          %v2435 = vadd.f32 %v2386, %v2434
          %2436 = vmatmul.bf16.gmra.mxu0 %v1990
          %v2437 = vpop.f32.mrf.mxu0
          %v2438 = vadd.f32 %v2389, %v2437
          %v2439 = vpop.f32.mrf.mxu0
          %v2440 = vadd.f32 %v2391, %v2439
          %2441 = vmatmul.bf16.gmra.mxu0 %v1995
          %v2442 = vpop.f32.mrf.mxu0
          %v2443 = vadd.f32 %v2394, %v2442
          %v2444 = vpop.f32.mrf.mxu0
          %v2445 = vadd.f32 %v2396, %v2444
          %2446 = vmatmul.bf16.gmra.mxu0 %v2000
          %v2447 = vpop.f32.mrf.mxu0
          %v2448 = vadd.f32 %v2399, %v2447
          %v2449 = vpop.f32.mrf.mxu0
          %v2450 = vadd.f32 %v2401, %v2449
          %2451 = vmatmul.bf16.gmra.mxu0 %v2005
          %v2452 = vpop.f32.mrf.mxu0
          %v2453 = vadd.f32 %v2404, %v2452
          %v2454 = vpop.f32.mrf.mxu0
          %v2455 = vadd.f32 %v2406, %v2454
          %2456 = vdwg.mxu0
          %2457 = vmatpush.bf16.msra.mxu0 %v1735
          %2458 = vmatpush.bf16.msra.mxu0 %v1733
          %2459 = vmatpush.bf16.msra.mxu0 %v1731
          %2460 = vmatpush.bf16.msra.mxu0 %v1729
          %2461 = vmatpush.bf16.msra.mxu0 %v1727
          %2462 = vmatpush.bf16.msra.mxu0 %v1725
          %2463 = vmatpush.bf16.msra.mxu0 %v1723
          %2464 = vmatpush.bf16.msra.mxu0 %v1721
          %2465 = vmatmul.bf16.gmra.mxu0 %v1971
          %v2466 = vpop.f32.mrf.mxu0
          %v2467 = vadd.f32 %v2418, %v2466
          %v2468 = vpop.f32.mrf.mxu0
          %v2469 = vadd.f32 %v2420, %v2468
          %2470 = vmatmul.bf16.gmra.mxu0 %v1976
          %v2471 = vpop.f32.mrf.mxu0
          %v2472 = vadd.f32 %v2423, %v2471
          %v2473 = vpop.f32.mrf.mxu0
          %v2474 = vadd.f32 %v2425, %v2473
          %2475 = vmatmul.bf16.gmra.mxu0 %v1981
          %v2476 = vpop.f32.mrf.mxu0
          %v2477 = vadd.f32 %v2428, %v2476
          %v2478 = vpop.f32.mrf.mxu0
          %v2479 = vadd.f32 %v2430, %v2478
          %2480 = vmatmul.bf16.gmra.mxu0 %v1986
          %v2481 = vpop.f32.mrf.mxu0
          %v2482 = vadd.f32 %v2433, %v2481
          %v2483 = vpop.f32.mrf.mxu0
          %v2484 = vadd.f32 %v2435, %v2483
          %2485 = vmatmul.bf16.gmra.mxu0 %v1991
          %v2486 = vpop.f32.mrf.mxu0
          %v2487 = vadd.f32 %v2438, %v2486
          %v2488 = vpop.f32.mrf.mxu0
          %v2489 = vadd.f32 %v2440, %v2488
          %2490 = vmatmul.bf16.gmra.mxu0 %v1996
          %v2491 = vpop.f32.mrf.mxu0
          %v2492 = vadd.f32 %v2443, %v2491
          %v2493 = vpop.f32.mrf.mxu0
          %v2494 = vadd.f32 %v2445, %v2493
          %2495 = vmatmul.bf16.gmra.mxu0 %v2001
          %v2496 = vpop.f32.mrf.mxu0
          %v2497 = vadd.f32 %v2448, %v2496
          %v2498 = vpop.f32.mrf.mxu0
          %v2499 = vadd.f32 %v2450, %v2498
          %2500 = vmatmul.bf16.gmra.mxu0 %v2006
          %v2501 = vpop.f32.mrf.mxu0
          %v2502 = vadd.f32 %v2453, %v2501
          %v2503 = vpop.f32.mrf.mxu0
          %v2504 = vadd.f32 %v2455, %v2503
          %2505 = vdwg.mxu0
          %2506 = vmatpush.bf16.msra.mxu0 0
          %2507 = vmatpush.bf16.msra.mxu0 0
          %2508 = vmatpush.bf16.msra.mxu0 0
          %2509 = vmatpush.bf16.msra.mxu0 0
          %2510 = vmatpush.bf16.msra.mxu0 %v1743
          %2511 = vmatpush.bf16.msra.mxu0 %v1741
          %2512 = vmatpush.bf16.msra.mxu0 %v1739
          %2513 = vmatpush.bf16.msra.mxu0 %v1737
          %2514 = vmatmul.bf16.gmra.mxu0 %v2042
          %v2515 = vpop.f32.mrf.mxu0
          %v2516 = vadd.f32 %v2467, %v2515
          %v2517 = vpop.f32.mrf.mxu0
          %v2518 = vadd.f32 %v2469, %v2517
          %2519 = vmatmul.bf16.gmra.mxu0 %v2045
          %v2520 = vpop.f32.mrf.mxu0
          %v2521 = vadd.f32 %v2472, %v2520
          %v2522 = vpop.f32.mrf.mxu0
          %v2523 = vadd.f32 %v2474, %v2522
          %2524 = vmatmul.bf16.gmra.mxu0 %v2048
          %v2525 = vpop.f32.mrf.mxu0
          %v2526 = vadd.f32 %v2477, %v2525
          %v2527 = vpop.f32.mrf.mxu0
          %v2528 = vadd.f32 %v2479, %v2527
          %2529 = vmatmul.bf16.gmra.mxu0 %v2051
          %v2530 = vpop.f32.mrf.mxu0
          %v2531 = vadd.f32 %v2482, %v2530
          %v2532 = vpop.f32.mrf.mxu0
          %v2533 = vadd.f32 %v2484, %v2532
          %2534 = vmatmul.bf16.gmra.mxu0 %v2054
          %v2535 = vpop.f32.mrf.mxu0
          %v2536 = vadd.f32 %v2487, %v2535
          %v2537 = vpop.f32.mrf.mxu0
          %v2538 = vadd.f32 %v2489, %v2537
          %2539 = vmatmul.bf16.gmra.mxu0 %v2057
          %v2540 = vpop.f32.mrf.mxu0
          %v2541 = vadd.f32 %v2492, %v2540
          %v2542 = vpop.f32.mrf.mxu0
          %v2543 = vadd.f32 %v2494, %v2542
          %2544 = vmatmul.bf16.gmra.mxu0 %v2060
          %v2545 = vpop.f32.mrf.mxu0
          %v2546 = vadd.f32 %v2497, %v2545
          %v2547 = vpop.f32.mrf.mxu0
          %v2548 = vadd.f32 %v2499, %v2547
          %2549 = vmatmul.bf16.gmra.mxu0 %v2063
          %v2550 = vpop.f32.mrf.mxu0
          %v2551 = vadd.f32 %v2502, %v2550
          %v2552 = vpop.f32.mrf.mxu0
          %v2553 = vadd.f32 %v2504, %v2552
          %2554 = vdwg.mxu0
          %v2555 = vmax.f32 %v2271, 0.0
          %v2556 = vmax.f32 %v2516, 0.0
          %v2557 = vmax.f32 %v2273, 0.0
          %v2558 = vmax.f32 %v2518, 0.0
          %v2559 = vmax.f32 %v2276, 0.0
          %v2560 = vmax.f32 %v2521, 0.0
          %v2561 = vmax.f32 %v2278, 0.0
          %v2562 = vmax.f32 %v2523, 0.0
          %v2563 = vmax.f32 %v2281, 0.0
          %v2564 = vmax.f32 %v2526, 0.0
          %v2565 = vmax.f32 %v2283, 0.0
          %v2566 = vmax.f32 %v2528, 0.0
          %v2567 = vmax.f32 %v2286, 0.0
          %v2568 = vmax.f32 %v2531, 0.0
          %v2569 = vmax.f32 %v2288, 0.0
          %v2570 = vmax.f32 %v2533, 0.0
          %v2571 = vmax.f32 %v2291, 0.0
          %v2572 = vmax.f32 %v2536, 0.0
          %v2573 = vmax.f32 %v2293, 0.0
          %v2574 = vmax.f32 %v2538, 0.0
          %v2575 = vmax.f32 %v2296, 0.0
          %v2576 = vmax.f32 %v2541, 0.0
          %v2577 = vmax.f32 %v2298, 0.0
          %v2578 = vmax.f32 %v2543, 0.0
          %v2579 = vmax.f32 %v2301, 0.0
          %v2580 = vmax.f32 %v2546, 0.0
          %v2581 = vmax.f32 %v2303, 0.0
          %v2582 = vmax.f32 %v2548, 0.0
          %v2583 = vmax.f32 %v2306, 0.0
          %v2584 = vmax.f32 %v2551, 0.0
          %v2585 = vmax.f32 %v2308, 0.0
          %v2586 = vmax.f32 %v2553, 0.0
          %2603 = vrot.lane.b32.xlu0 %v2556, 17
          %v2604 = vpop.permute.xlu0 %2603
          %2605 = vrot.lane.b32.xlu0 %v2558, 17
          %v2606 = vpop.permute.xlu0 %2605
          %2607 = vrot.lane.b32.xlu0 %v2560, 17
          %v2608 = vpop.permute.xlu0 %2607
          %2609 = vrot.lane.b32.xlu0 %v2562, 17
          %v2610 = vpop.permute.xlu0 %2609
          %2611 = vrot.lane.b32.xlu0 %v2564, 17
          %v2612 = vpop.permute.xlu0 %2611
          %2613 = vrot.lane.b32.xlu0 %v2566, 17
          %v2614 = vpop.permute.xlu0 %2613
          %2615 = vrot.lane.b32.xlu0 %v2568, 17
          %v2616 = vpop.permute.xlu0 %2615
          %2617 = vrot.lane.b32.xlu0 %v2570, 17
          %v2618 = vpop.permute.xlu0 %2617
          %2619 = vrot.lane.b32.xlu0 %v2572, 17
          %v2620 = vpop.permute.xlu0 %2619
          %2621 = vrot.lane.b32.xlu0 %v2574, 17
          %v2622 = vpop.permute.xlu0 %2621
          %2623 = vrot.lane.b32.xlu0 %v2576, 17
          %v2624 = vpop.permute.xlu0 %2623
          %2625 = vrot.lane.b32.xlu0 %v2578, 17
          %v2626 = vpop.permute.xlu0 %2625
          %2627 = vrot.lane.b32.xlu0 %v2580, 17
          %v2628 = vpop.permute.xlu0 %2627
          %2629 = vrot.lane.b32.xlu0 %v2582, 17
          %v2630 = vpop.permute.xlu0 %2629
          %2631 = vrot.lane.b32.xlu0 %v2584, 17
          %v2632 = vpop.permute.xlu0 %2631
          %2633 = vrot.lane.b32.xlu0 %v2586, 17
          %v2634 = vpop.permute.xlu0 %2633
          %2667 = vrot.lane.b32.xlu0 %v2555, 17
          %v2668 = vpop.permute.xlu0 %2667
          %2669 = vrot.lane.b32.xlu0 %v2557, 17
          %v2670 = vpop.permute.xlu0 %2669
          %2671 = vrot.lane.b32.xlu0 %v2559, 17
          %v2672 = vpop.permute.xlu0 %2671
          %2673 = vrot.lane.b32.xlu0 %v2561, 17
          %v2674 = vpop.permute.xlu0 %2673
          %2675 = vrot.lane.b32.xlu0 %v2563, 17
          %v2676 = vpop.permute.xlu0 %2675
          %2677 = vrot.lane.b32.xlu0 %v2565, 17
          %v2678 = vpop.permute.xlu0 %2677
          %2679 = vrot.lane.b32.xlu0 %v2567, 17
          %v2680 = vpop.permute.xlu0 %2679
          %2681 = vrot.lane.b32.xlu0 %v2569, 17
          %v2682 = vpop.permute.xlu0 %2681
          %2683 = vrot.lane.b32.xlu0 %v2571, 17
          %v2684 = vpop.permute.xlu0 %2683
          %2685 = vrot.lane.b32.xlu0 %v2573, 17
          %v2686 = vpop.permute.xlu0 %2685
          %2687 = vrot.lane.b32.xlu0 %v2575, 17
          %v2688 = vpop.permute.xlu0 %2687
          %2689 = vrot.lane.b32.xlu0 %v2577, 17
          %v2690 = vpop.permute.xlu0 %2689
          %2691 = vrot.lane.b32.xlu0 %v2579, 17
          %v2692 = vpop.permute.xlu0 %2691
          %2693 = vrot.lane.b32.xlu0 %v2581, 17
          %v2694 = vpop.permute.xlu0 %2693
          %2695 = vrot.lane.b32.xlu0 %v2583, 17
          %v2696 = vpop.permute.xlu0 %2695
          %2697 = vrot.lane.b32.xlu0 %v2585, 17
          %v2698 = vpop.permute.xlu0 %2697
          %v2699 = vsel %vm550, %v2668, %v2604
          %v2700 = vsel %vm550, %v2670, %v2606
          %v2701 = vsel %vm550, %v2672, %v2608
          %v2702 = vsel %vm550, %v2674, %v2610
          %v2703 = vsel %vm550, %v2676, %v2612
          %v2704 = vsel %vm550, %v2678, %v2614
          %v2705 = vsel %vm550, %v2680, %v2616
          %v2706 = vsel %vm550, %v2682, %v2618
          %v2707 = vsel %vm550, %v2684, %v2620
          %v2708 = vsel %vm550, %v2686, %v2622
          %v2709 = vsel %vm550, %v2688, %v2624
          %v2710 = vsel %vm550, %v2690, %v2626
          %v2711 = vsel %vm550, %v2692, %v2628
          %v2712 = vsel %vm550, %v2694, %v2630
          %v2713 = vsel %vm550, %v2696, %v2632
          %v2714 = vsel %vm550, %v2698, %v2634
          %v2747 = vsel %vm550, %v2604, %v2668
          %v2748 = vsel %vm550, %v2606, %v2670
          %v2749 = vsel %vm550, %v2608, %v2672
          %v2750 = vsel %vm550, %v2610, %v2674
          %v2751 = vsel %vm550, %v2612, %v2676
          %v2752 = vsel %vm550, %v2614, %v2678
          %v2753 = vsel %vm550, %v2616, %v2680
          %v2754 = vsel %vm550, %v2618, %v2682
          %v2755 = vsel %vm550, %v2620, %v2684
          %v2756 = vsel %vm550, %v2622, %v2686
          %v2757 = vsel %vm550, %v2624, %v2688
          %v2758 = vsel %vm550, %v2626, %v2690
          %v2759 = vsel %vm550, %v2628, %v2692
          %v2760 = vsel %vm550, %v2630, %v2694
          %v2761 = vsel %vm550, %v2632, %v2696
          %v2762 = vsel %vm550, %v2634, %v2698
          %v2763 = vmul.f32 %v2747, %v450
          %v2764 = vmul.f32 %v2699, %v451
          %v2765 = vmul.f32 %v2748, %v450
          %v2766 = vmul.f32 %v2700, %v451
          %v2767 = vmul.f32 %v2749, %v450
          %v2768 = vmul.f32 %v2701, %v451
          %v2769 = vmul.f32 %v2750, %v450
          %v2770 = vmul.f32 %v2702, %v451
          %v2771 = vmul.f32 %v2751, %v450
          %v2772 = vmul.f32 %v2703, %v451
          %v2773 = vmul.f32 %v2752, %v450
          %v2774 = vmul.f32 %v2704, %v451
          %v2775 = vmul.f32 %v2753, %v450
          %v2776 = vmul.f32 %v2705, %v451
          %v2777 = vmul.f32 %v2754, %v450
          %v2778 = vmul.f32 %v2706, %v451
          %v2779 = vmul.f32 %v2755, %v450
          %v2780 = vmul.f32 %v2707, %v451
          %v2781 = vmul.f32 %v2756, %v450
          %v2782 = vmul.f32 %v2708, %v451
          %v2783 = vmul.f32 %v2757, %v450
          %v2784 = vmul.f32 %v2709, %v451
          %v2785 = vmul.f32 %v2758, %v450
          %v2786 = vmul.f32 %v2710, %v451
          %v2787 = vmul.f32 %v2759, %v450
          %v2788 = vmul.f32 %v2711, %v451
          %v2789 = vmul.f32 %v2760, %v450
          %v2790 = vmul.f32 %v2712, %v451
          %v2791 = vmul.f32 %v2761, %v450
          %v2792 = vmul.f32 %v2713, %v451
          %v2793 = vmul.f32 %v2762, %v450
          %v2794 = vmul.f32 %v2714, %v451
          %2795 = vrot.lane.b32.xlu0 %v2556, 16
          %v2796 = vpop.permute.xlu0 %2795
          %2797 = vrot.lane.b32.xlu0 %v2558, 16
          %v2798 = vpop.permute.xlu0 %2797
          %2799 = vrot.lane.b32.xlu0 %v2560, 16
          %v2800 = vpop.permute.xlu0 %2799
          %2801 = vrot.lane.b32.xlu0 %v2562, 16
          %v2802 = vpop.permute.xlu0 %2801
          %2803 = vrot.lane.b32.xlu0 %v2564, 16
          %v2804 = vpop.permute.xlu0 %2803
          %2805 = vrot.lane.b32.xlu0 %v2566, 16
          %v2806 = vpop.permute.xlu0 %2805
          %2807 = vrot.lane.b32.xlu0 %v2568, 16
          %v2808 = vpop.permute.xlu0 %2807
          %2809 = vrot.lane.b32.xlu0 %v2570, 16
          %v2810 = vpop.permute.xlu0 %2809
          %2811 = vrot.lane.b32.xlu0 %v2572, 16
          %v2812 = vpop.permute.xlu0 %2811
          %2813 = vrot.lane.b32.xlu0 %v2574, 16
          %v2814 = vpop.permute.xlu0 %2813
          %2815 = vrot.lane.b32.xlu0 %v2576, 16
          %v2816 = vpop.permute.xlu0 %2815
          %2817 = vrot.lane.b32.xlu0 %v2578, 16
          %v2818 = vpop.permute.xlu0 %2817
          %2819 = vrot.lane.b32.xlu0 %v2580, 16
          %v2820 = vpop.permute.xlu0 %2819
          %2821 = vrot.lane.b32.xlu0 %v2582, 16
          %v2822 = vpop.permute.xlu0 %2821
          %2823 = vrot.lane.b32.xlu0 %v2584, 16
          %v2824 = vpop.permute.xlu0 %2823
          %2825 = vrot.lane.b32.xlu0 %v2586, 16
          %v2826 = vpop.permute.xlu0 %2825
          %2843 = vrot.lane.b32.xlu0 %v2555, 16
          %v2844 = vpop.permute.xlu0 %2843
          %2845 = vrot.lane.b32.xlu0 %v2557, 16
          %v2846 = vpop.permute.xlu0 %2845
          %2847 = vrot.lane.b32.xlu0 %v2559, 16
          %v2848 = vpop.permute.xlu0 %2847
          %2849 = vrot.lane.b32.xlu0 %v2561, 16
          %v2850 = vpop.permute.xlu0 %2849
          %2851 = vrot.lane.b32.xlu0 %v2563, 16
          %v2852 = vpop.permute.xlu0 %2851
          %2853 = vrot.lane.b32.xlu0 %v2565, 16
          %v2854 = vpop.permute.xlu0 %2853
          %2855 = vrot.lane.b32.xlu0 %v2567, 16
          %v2856 = vpop.permute.xlu0 %2855
          %2857 = vrot.lane.b32.xlu0 %v2569, 16
          %v2858 = vpop.permute.xlu0 %2857
          %2859 = vrot.lane.b32.xlu0 %v2571, 16
          %v2860 = vpop.permute.xlu0 %2859
          %2861 = vrot.lane.b32.xlu0 %v2573, 16
          %v2862 = vpop.permute.xlu0 %2861
          %2863 = vrot.lane.b32.xlu0 %v2575, 16
          %v2864 = vpop.permute.xlu0 %2863
          %2865 = vrot.lane.b32.xlu0 %v2577, 16
          %v2866 = vpop.permute.xlu0 %2865
          %2867 = vrot.lane.b32.xlu0 %v2579, 16
          %v2868 = vpop.permute.xlu0 %2867
          %2869 = vrot.lane.b32.xlu0 %v2581, 16
          %v2870 = vpop.permute.xlu0 %2869
          %2871 = vrot.lane.b32.xlu0 %v2583, 16
          %v2872 = vpop.permute.xlu0 %2871
          %2873 = vrot.lane.b32.xlu0 %v2585, 16
          %v2874 = vpop.permute.xlu0 %2873
          %v2875 = vsel %vm569, %v2844, %v2796
          %v2876 = vsel %vm569, %v2846, %v2798
          %v2877 = vsel %vm569, %v2848, %v2800
          %v2878 = vsel %vm569, %v2850, %v2802
          %v2879 = vsel %vm569, %v2852, %v2804
          %v2880 = vsel %vm569, %v2854, %v2806
          %v2881 = vsel %vm569, %v2856, %v2808
          %v2882 = vsel %vm569, %v2858, %v2810
          %v2883 = vsel %vm569, %v2860, %v2812
          %v2884 = vsel %vm569, %v2862, %v2814
          %v2885 = vsel %vm569, %v2864, %v2816
          %v2886 = vsel %vm569, %v2866, %v2818
          %v2887 = vsel %vm569, %v2868, %v2820
          %v2888 = vsel %vm569, %v2870, %v2822
          %v2889 = vsel %vm569, %v2872, %v2824
          %v2890 = vsel %vm569, %v2874, %v2826
          %v2923 = vsel %vm569, %v2796, %v2844
          %v2924 = vsel %vm569, %v2798, %v2846
          %v2925 = vsel %vm569, %v2800, %v2848
          %v2926 = vsel %vm569, %v2802, %v2850
          %v2927 = vsel %vm569, %v2804, %v2852
          %v2928 = vsel %vm569, %v2806, %v2854
          %v2929 = vsel %vm569, %v2808, %v2856
          %v2930 = vsel %vm569, %v2810, %v2858
          %v2931 = vsel %vm569, %v2812, %v2860
          %v2932 = vsel %vm569, %v2814, %v2862
          %v2933 = vsel %vm569, %v2816, %v2864
          %v2934 = vsel %vm569, %v2818, %v2866
          %v2935 = vsel %vm569, %v2820, %v2868
          %v2936 = vsel %vm569, %v2822, %v2870
          %v2937 = vsel %vm569, %v2824, %v2872
          %v2938 = vsel %vm569, %v2826, %v2874
          %v2939 = vmul.f32 %v2923, %v462
          %v2940 = vmul.f32 %v2875, %v463
          %v2941 = vmul.f32 %v2924, %v462
          %v2942 = vmul.f32 %v2876, %v463
          %v2943 = vmul.f32 %v2925, %v462
          %v2944 = vmul.f32 %v2877, %v463
          %v2945 = vmul.f32 %v2926, %v462
          %v2946 = vmul.f32 %v2878, %v463
          %v2947 = vmul.f32 %v2927, %v462
          %v2948 = vmul.f32 %v2879, %v463
          %v2949 = vmul.f32 %v2928, %v462
          %v2950 = vmul.f32 %v2880, %v463
          %v2951 = vmul.f32 %v2929, %v462
          %v2952 = vmul.f32 %v2881, %v463
          %v2953 = vmul.f32 %v2930, %v462
          %v2954 = vmul.f32 %v2882, %v463
          %v2955 = vmul.f32 %v2931, %v462
          %v2956 = vmul.f32 %v2883, %v463
          %v2957 = vmul.f32 %v2932, %v462
          %v2958 = vmul.f32 %v2884, %v463
          %v2959 = vmul.f32 %v2933, %v462
          %v2960 = vmul.f32 %v2885, %v463
          %v2961 = vmul.f32 %v2934, %v462
          %v2962 = vmul.f32 %v2886, %v463
          %v2963 = vmul.f32 %v2935, %v462
          %v2964 = vmul.f32 %v2887, %v463
          %v2965 = vmul.f32 %v2936, %v462
          %v2966 = vmul.f32 %v2888, %v463
          %v2967 = vmul.f32 %v2937, %v462
          %v2968 = vmul.f32 %v2889, %v463
          %v2969 = vmul.f32 %v2938, %v462
          %v2970 = vmul.f32 %v2890, %v463
          %2971 = vrot.lane.b32.xlu0 %v2556, 15
          %v2972 = vpop.permute.xlu0 %2971
          %2973 = vrot.lane.b32.xlu0 %v2558, 15
          %v2974 = vpop.permute.xlu0 %2973
          %2975 = vrot.lane.b32.xlu0 %v2560, 15
          %v2976 = vpop.permute.xlu0 %2975
          %2977 = vrot.lane.b32.xlu0 %v2562, 15
          %v2978 = vpop.permute.xlu0 %2977
          %2979 = vrot.lane.b32.xlu0 %v2564, 15
          %v2980 = vpop.permute.xlu0 %2979
          %2981 = vrot.lane.b32.xlu0 %v2566, 15
          %v2982 = vpop.permute.xlu0 %2981
          %2983 = vrot.lane.b32.xlu0 %v2568, 15
          %v2984 = vpop.permute.xlu0 %2983
          %2985 = vrot.lane.b32.xlu0 %v2570, 15
          %v2986 = vpop.permute.xlu0 %2985
          %2987 = vrot.lane.b32.xlu0 %v2572, 15
          %v2988 = vpop.permute.xlu0 %2987
          %2989 = vrot.lane.b32.xlu0 %v2574, 15
          %v2990 = vpop.permute.xlu0 %2989
          %2991 = vrot.lane.b32.xlu0 %v2576, 15
          %v2992 = vpop.permute.xlu0 %2991
          %2993 = vrot.lane.b32.xlu0 %v2578, 15
          %v2994 = vpop.permute.xlu0 %2993
          %2995 = vrot.lane.b32.xlu0 %v2580, 15
          %v2996 = vpop.permute.xlu0 %2995
          %2997 = vrot.lane.b32.xlu0 %v2582, 15
          %v2998 = vpop.permute.xlu0 %2997
          %2999 = vrot.lane.b32.xlu0 %v2584, 15
          %v3000 = vpop.permute.xlu0 %2999
          %3001 = vrot.lane.b32.xlu0 %v2586, 15
          %v3002 = vpop.permute.xlu0 %3001
          %3019 = vrot.lane.b32.xlu0 %v2555, 15
          %v3020 = vpop.permute.xlu0 %3019
          %3021 = vrot.lane.b32.xlu0 %v2557, 15
          %v3022 = vpop.permute.xlu0 %3021
          %3023 = vrot.lane.b32.xlu0 %v2559, 15
          %v3024 = vpop.permute.xlu0 %3023
          %3025 = vrot.lane.b32.xlu0 %v2561, 15
          %v3026 = vpop.permute.xlu0 %3025
          %3027 = vrot.lane.b32.xlu0 %v2563, 15
          %v3028 = vpop.permute.xlu0 %3027
          %3029 = vrot.lane.b32.xlu0 %v2565, 15
          %v3030 = vpop.permute.xlu0 %3029
          %3031 = vrot.lane.b32.xlu0 %v2567, 15
          %v3032 = vpop.permute.xlu0 %3031
          %3033 = vrot.lane.b32.xlu0 %v2569, 15
          %v3034 = vpop.permute.xlu0 %3033
          %3035 = vrot.lane.b32.xlu0 %v2571, 15
          %v3036 = vpop.permute.xlu0 %3035
          %3037 = vrot.lane.b32.xlu0 %v2573, 15
          %v3038 = vpop.permute.xlu0 %3037
          %3039 = vrot.lane.b32.xlu0 %v2575, 15
          %v3040 = vpop.permute.xlu0 %3039
          %3041 = vrot.lane.b32.xlu0 %v2577, 15
          %v3042 = vpop.permute.xlu0 %3041
          %3043 = vrot.lane.b32.xlu0 %v2579, 15
          %v3044 = vpop.permute.xlu0 %3043
          %3045 = vrot.lane.b32.xlu0 %v2581, 15
          %v3046 = vpop.permute.xlu0 %3045
          %3047 = vrot.lane.b32.xlu0 %v2583, 15
          %v3048 = vpop.permute.xlu0 %3047
          %3049 = vrot.lane.b32.xlu0 %v2585, 15
          %v3050 = vpop.permute.xlu0 %3049
          %v3051 = vsel %vm588, %v3020, %v2972
          %v3052 = vsel %vm588, %v3022, %v2974
          %v3053 = vsel %vm588, %v3024, %v2976
          %v3054 = vsel %vm588, %v3026, %v2978
          %v3055 = vsel %vm588, %v3028, %v2980
          %v3056 = vsel %vm588, %v3030, %v2982
          %v3057 = vsel %vm588, %v3032, %v2984
          %v3058 = vsel %vm588, %v3034, %v2986
          %v3059 = vsel %vm588, %v3036, %v2988
          %v3060 = vsel %vm588, %v3038, %v2990
          %v3061 = vsel %vm588, %v3040, %v2992
          %v3062 = vsel %vm588, %v3042, %v2994
          %v3063 = vsel %vm588, %v3044, %v2996
          %v3064 = vsel %vm588, %v3046, %v2998
          %v3065 = vsel %vm588, %v3048, %v3000
          %v3066 = vsel %vm588, %v3050, %v3002
          %v3099 = vsel %vm588, %v2972, %v3020
          %v3100 = vsel %vm588, %v2974, %v3022
          %v3101 = vsel %vm588, %v2976, %v3024
          %v3102 = vsel %vm588, %v2978, %v3026
          %v3103 = vsel %vm588, %v2980, %v3028
          %v3104 = vsel %vm588, %v2982, %v3030
          %v3105 = vsel %vm588, %v2984, %v3032
          %v3106 = vsel %vm588, %v2986, %v3034
          %v3107 = vsel %vm588, %v2988, %v3036
          %v3108 = vsel %vm588, %v2990, %v3038
          %v3109 = vsel %vm588, %v2992, %v3040
          %v3110 = vsel %vm588, %v2994, %v3042
          %v3111 = vsel %vm588, %v2996, %v3044
          %v3112 = vsel %vm588, %v2998, %v3046
          %v3113 = vsel %vm588, %v3000, %v3048
          %v3114 = vsel %vm588, %v3002, %v3050
          %v3115 = vmul.f32 %v3099, %v476
          %v3116 = vmul.f32 %v3051, %v477
          %v3117 = vmul.f32 %v3100, %v476
          %v3118 = vmul.f32 %v3052, %v477
          %v3119 = vmul.f32 %v3101, %v476
          %v3120 = vmul.f32 %v3053, %v477
          %v3121 = vmul.f32 %v3102, %v476
          %v3122 = vmul.f32 %v3054, %v477
          %v3123 = vmul.f32 %v3103, %v476
          %v3124 = vmul.f32 %v3055, %v477
          %v3125 = vmul.f32 %v3104, %v476
          %v3126 = vmul.f32 %v3056, %v477
          %v3127 = vmul.f32 %v3105, %v476
          %v3128 = vmul.f32 %v3057, %v477
          %v3129 = vmul.f32 %v3106, %v476
          %v3130 = vmul.f32 %v3058, %v477
          %v3131 = vmul.f32 %v3107, %v476
          %v3132 = vmul.f32 %v3059, %v477
          %v3133 = vmul.f32 %v3108, %v476
          %v3134 = vmul.f32 %v3060, %v477
          %v3135 = vmul.f32 %v3109, %v476
          %v3136 = vmul.f32 %v3061, %v477
          %v3137 = vmul.f32 %v3110, %v476
          %v3138 = vmul.f32 %v3062, %v477
          %v3139 = vmul.f32 %v3111, %v476
          %v3140 = vmul.f32 %v3063, %v477
          %v3141 = vmul.f32 %v3112, %v476
          %v3142 = vmul.f32 %v3064, %v477
          %v3143 = vmul.f32 %v3113, %v476
          %v3144 = vmul.f32 %v3065, %v477
          %v3145 = vmul.f32 %v3114, %v476
          %v3146 = vmul.f32 %v3066, %v477
          %3147 = vrot.lane.b32.xlu0 %v2556, 1
          %v3148 = vpop.permute.xlu0 %3147
          %3149 = vrot.lane.b32.xlu0 %v2558, 1
          %v3150 = vpop.permute.xlu0 %3149
          %3151 = vrot.lane.b32.xlu0 %v2560, 1
          %v3152 = vpop.permute.xlu0 %3151
          %3153 = vrot.lane.b32.xlu0 %v2562, 1
          %v3154 = vpop.permute.xlu0 %3153
          %3155 = vrot.lane.b32.xlu0 %v2564, 1
          %v3156 = vpop.permute.xlu0 %3155
          %3157 = vrot.lane.b32.xlu0 %v2566, 1
          %v3158 = vpop.permute.xlu0 %3157
          %3159 = vrot.lane.b32.xlu0 %v2568, 1
          %v3160 = vpop.permute.xlu0 %3159
          %3161 = vrot.lane.b32.xlu0 %v2570, 1
          %v3162 = vpop.permute.xlu0 %3161
          %3163 = vrot.lane.b32.xlu0 %v2572, 1
          %v3164 = vpop.permute.xlu0 %3163
          %3165 = vrot.lane.b32.xlu0 %v2574, 1
          %v3166 = vpop.permute.xlu0 %3165
          %3167 = vrot.lane.b32.xlu0 %v2576, 1
          %v3168 = vpop.permute.xlu0 %3167
          %3169 = vrot.lane.b32.xlu0 %v2578, 1
          %v3170 = vpop.permute.xlu0 %3169
          %3171 = vrot.lane.b32.xlu0 %v2580, 1
          %v3172 = vpop.permute.xlu0 %3171
          %3173 = vrot.lane.b32.xlu0 %v2582, 1
          %v3174 = vpop.permute.xlu0 %3173
          %3175 = vrot.lane.b32.xlu0 %v2584, 1
          %v3176 = vpop.permute.xlu0 %3175
          %3177 = vrot.lane.b32.xlu0 %v2586, 1
          %v3178 = vpop.permute.xlu0 %3177
          %3195 = vrot.lane.b32.xlu0 %v2555, 1
          %v3196 = vpop.permute.xlu0 %3195
          %3197 = vrot.lane.b32.xlu0 %v2557, 1
          %v3198 = vpop.permute.xlu0 %3197
          %3199 = vrot.lane.b32.xlu0 %v2559, 1
          %v3200 = vpop.permute.xlu0 %3199
          %3201 = vrot.lane.b32.xlu0 %v2561, 1
          %v3202 = vpop.permute.xlu0 %3201
          %3203 = vrot.lane.b32.xlu0 %v2563, 1
          %v3204 = vpop.permute.xlu0 %3203
          %3205 = vrot.lane.b32.xlu0 %v2565, 1
          %v3206 = vpop.permute.xlu0 %3205
          %3207 = vrot.lane.b32.xlu0 %v2567, 1
          %v3208 = vpop.permute.xlu0 %3207
          %3209 = vrot.lane.b32.xlu0 %v2569, 1
          %v3210 = vpop.permute.xlu0 %3209
          %3211 = vrot.lane.b32.xlu0 %v2571, 1
          %v3212 = vpop.permute.xlu0 %3211
          %3213 = vrot.lane.b32.xlu0 %v2573, 1
          %v3214 = vpop.permute.xlu0 %3213
          %3215 = vrot.lane.b32.xlu0 %v2575, 1
          %v3216 = vpop.permute.xlu0 %3215
          %3217 = vrot.lane.b32.xlu0 %v2577, 1
          %v3218 = vpop.permute.xlu0 %3217
          %3219 = vrot.lane.b32.xlu0 %v2579, 1
          %v3220 = vpop.permute.xlu0 %3219
          %3221 = vrot.lane.b32.xlu0 %v2581, 1
          %v3222 = vpop.permute.xlu0 %3221
          %3223 = vrot.lane.b32.xlu0 %v2583, 1
          %v3224 = vpop.permute.xlu0 %3223
          %3225 = vrot.lane.b32.xlu0 %v2585, 1
          %v3226 = vpop.permute.xlu0 %3225
          %v3227 = vsel %vm607, %v3196, %v3148
          %v3228 = vsel %vm607, %v3198, %v3150
          %v3229 = vsel %vm607, %v3200, %v3152
          %v3230 = vsel %vm607, %v3202, %v3154
          %v3231 = vsel %vm607, %v3204, %v3156
          %v3232 = vsel %vm607, %v3206, %v3158
          %v3233 = vsel %vm607, %v3208, %v3160
          %v3234 = vsel %vm607, %v3210, %v3162
          %v3235 = vsel %vm607, %v3212, %v3164
          %v3236 = vsel %vm607, %v3214, %v3166
          %v3237 = vsel %vm607, %v3216, %v3168
          %v3238 = vsel %vm607, %v3218, %v3170
          %v3239 = vsel %vm607, %v3220, %v3172
          %v3240 = vsel %vm607, %v3222, %v3174
          %v3241 = vsel %vm607, %v3224, %v3176
          %v3242 = vsel %vm607, %v3226, %v3178
          %v3275 = vsel %vm607, %v3148, %v3196
          %v3276 = vsel %vm607, %v3150, %v3198
          %v3277 = vsel %vm607, %v3152, %v3200
          %v3278 = vsel %vm607, %v3154, %v3202
          %v3279 = vsel %vm607, %v3156, %v3204
          %v3280 = vsel %vm607, %v3158, %v3206
          %v3281 = vsel %vm607, %v3160, %v3208
          %v3282 = vsel %vm607, %v3162, %v3210
          %v3283 = vsel %vm607, %v3164, %v3212
          %v3284 = vsel %vm607, %v3166, %v3214
          %v3285 = vsel %vm607, %v3168, %v3216
          %v3286 = vsel %vm607, %v3170, %v3218
          %v3287 = vsel %vm607, %v3172, %v3220
          %v3288 = vsel %vm607, %v3174, %v3222
          %v3289 = vsel %vm607, %v3176, %v3224
          %v3290 = vsel %vm607, %v3178, %v3226
          %v3291 = vmul.f32 %v3275, %v490
          %v3292 = vmul.f32 %v3227, %v491
          %v3293 = vmul.f32 %v3276, %v490
          %v3294 = vmul.f32 %v3228, %v491
          %v3295 = vmul.f32 %v3277, %v490
          %v3296 = vmul.f32 %v3229, %v491
          %v3297 = vmul.f32 %v3278, %v490
          %v3298 = vmul.f32 %v3230, %v491
          %v3299 = vmul.f32 %v3279, %v490
          %v3300 = vmul.f32 %v3231, %v491
          %v3301 = vmul.f32 %v3280, %v490
          %v3302 = vmul.f32 %v3232, %v491
          %v3303 = vmul.f32 %v3281, %v490
          %v3304 = vmul.f32 %v3233, %v491
          %v3305 = vmul.f32 %v3282, %v490
          %v3306 = vmul.f32 %v3234, %v491
          %v3307 = vmul.f32 %v3283, %v490
          %v3308 = vmul.f32 %v3235, %v491
          %v3309 = vmul.f32 %v3284, %v490
          %v3310 = vmul.f32 %v3236, %v491
          %v3311 = vmul.f32 %v3285, %v490
          %v3312 = vmul.f32 %v3237, %v491
          %v3313 = vmul.f32 %v3286, %v490
          %v3314 = vmul.f32 %v3238, %v491
          %v3315 = vmul.f32 %v3287, %v490
          %v3316 = vmul.f32 %v3239, %v491
          %v3317 = vmul.f32 %v3288, %v490
          %v3318 = vmul.f32 %v3240, %v491
          %v3319 = vmul.f32 %v3289, %v490
          %v3320 = vmul.f32 %v3241, %v491
          %v3321 = vmul.f32 %v3290, %v490
          %v3322 = vmul.f32 %v3242, %v491
          %3323 = vrot.lane.b32.xlu0 %v2555, 127
          %v3324 = vpop.permute.xlu0 %3323
          %3325 = vrot.lane.b32.xlu0 %v2556, 127
          %v3326 = vpop.permute.xlu0 %3325
          %3327 = vrot.lane.b32.xlu0 %v2557, 127
          %v3328 = vpop.permute.xlu0 %3327
          %3329 = vrot.lane.b32.xlu0 %v2558, 127
          %v3330 = vpop.permute.xlu0 %3329
          %3331 = vrot.lane.b32.xlu0 %v2559, 127
          %v3332 = vpop.permute.xlu0 %3331
          %3333 = vrot.lane.b32.xlu0 %v2560, 127
          %v3334 = vpop.permute.xlu0 %3333
          %3335 = vrot.lane.b32.xlu0 %v2561, 127
          %v3336 = vpop.permute.xlu0 %3335
          %3337 = vrot.lane.b32.xlu0 %v2562, 127
          %v3338 = vpop.permute.xlu0 %3337
          %3339 = vrot.lane.b32.xlu0 %v2563, 127
          %v3340 = vpop.permute.xlu0 %3339
          %3341 = vrot.lane.b32.xlu0 %v2564, 127
          %v3342 = vpop.permute.xlu0 %3341
          %3343 = vrot.lane.b32.xlu0 %v2565, 127
          %v3344 = vpop.permute.xlu0 %3343
          %3345 = vrot.lane.b32.xlu0 %v2566, 127
          %v3346 = vpop.permute.xlu0 %3345
          %3347 = vrot.lane.b32.xlu0 %v2567, 127
          %v3348 = vpop.permute.xlu0 %3347
          %3349 = vrot.lane.b32.xlu0 %v2568, 127
          %v3350 = vpop.permute.xlu0 %3349
          %3351 = vrot.lane.b32.xlu0 %v2569, 127
          %v3352 = vpop.permute.xlu0 %3351
          %3353 = vrot.lane.b32.xlu0 %v2570, 127
          %v3354 = vpop.permute.xlu0 %3353
          %3355 = vrot.lane.b32.xlu0 %v2571, 127
          %v3356 = vpop.permute.xlu0 %3355
          %3357 = vrot.lane.b32.xlu0 %v2572, 127
          %v3358 = vpop.permute.xlu0 %3357
          %3359 = vrot.lane.b32.xlu0 %v2573, 127
          %v3360 = vpop.permute.xlu0 %3359
          %3361 = vrot.lane.b32.xlu0 %v2574, 127
          %v3362 = vpop.permute.xlu0 %3361
          %3363 = vrot.lane.b32.xlu0 %v2575, 127
          %v3364 = vpop.permute.xlu0 %3363
          %3365 = vrot.lane.b32.xlu0 %v2576, 127
          %v3366 = vpop.permute.xlu0 %3365
          %3367 = vrot.lane.b32.xlu0 %v2577, 127
          %v3368 = vpop.permute.xlu0 %3367
          %3369 = vrot.lane.b32.xlu0 %v2578, 127
          %v3370 = vpop.permute.xlu0 %3369
          %3371 = vrot.lane.b32.xlu0 %v2579, 127
          %v3372 = vpop.permute.xlu0 %3371
          %3373 = vrot.lane.b32.xlu0 %v2580, 127
          %v3374 = vpop.permute.xlu0 %3373
          %3375 = vrot.lane.b32.xlu0 %v2581, 127
          %v3376 = vpop.permute.xlu0 %3375
          %3377 = vrot.lane.b32.xlu0 %v2582, 127
          %v3378 = vpop.permute.xlu0 %3377
          %3379 = vrot.lane.b32.xlu0 %v2583, 127
          %v3380 = vpop.permute.xlu0 %3379
          %3381 = vrot.lane.b32.xlu0 %v2584, 127
          %v3382 = vpop.permute.xlu0 %3381
          %3383 = vrot.lane.b32.xlu0 %v2585, 127
          %v3384 = vpop.permute.xlu0 %3383
          %3385 = vrot.lane.b32.xlu0 %v2586, 127
          %v3386 = vpop.permute.xlu0 %3385
          %v3387 = vsel %vm621, %v3324, %v3326
          %v3388 = vsel %vm621, %v3328, %v3330
          %v3389 = vsel %vm621, %v3332, %v3334
          %v3390 = vsel %vm621, %v3336, %v3338
          %v3391 = vsel %vm621, %v3340, %v3342
          %v3392 = vsel %vm621, %v3344, %v3346
          %v3393 = vsel %vm621, %v3348, %v3350
          %v3394 = vsel %vm621, %v3352, %v3354
          %v3395 = vsel %vm621, %v3356, %v3358
          %v3396 = vsel %vm621, %v3360, %v3362
          %v3397 = vsel %vm621, %v3364, %v3366
          %v3398 = vsel %vm621, %v3368, %v3370
          %v3399 = vsel %vm621, %v3372, %v3374
          %v3400 = vsel %vm621, %v3376, %v3378
          %v3401 = vsel %vm621, %v3380, %v3382
          %v3402 = vsel %vm621, %v3384, %v3386
          %v3451 = vsel %vm621, %v3326, %v3324
          %v3452 = vsel %vm621, %v3330, %v3328
          %v3453 = vsel %vm621, %v3334, %v3332
          %v3454 = vsel %vm621, %v3338, %v3336
          %v3455 = vsel %vm621, %v3342, %v3340
          %v3456 = vsel %vm621, %v3346, %v3344
          %v3457 = vsel %vm621, %v3350, %v3348
          %v3458 = vsel %vm621, %v3354, %v3352
          %v3459 = vsel %vm621, %v3358, %v3356
          %v3460 = vsel %vm621, %v3362, %v3360
          %v3461 = vsel %vm621, %v3366, %v3364
          %v3462 = vsel %vm621, %v3370, %v3368
          %v3463 = vsel %vm621, %v3374, %v3372
          %v3464 = vsel %vm621, %v3378, %v3376
          %v3465 = vsel %vm621, %v3382, %v3380
          %v3466 = vsel %vm621, %v3386, %v3384
          %v3467 = vmul.f32 %v3387, %v498
          %v3468 = vmul.f32 %v3451, %v499
          %v3469 = vmul.f32 %v3388, %v498
          %v3470 = vmul.f32 %v3452, %v499
          %v3471 = vmul.f32 %v3389, %v498
          %v3472 = vmul.f32 %v3453, %v499
          %v3473 = vmul.f32 %v3390, %v498
          %v3474 = vmul.f32 %v3454, %v499
          %v3475 = vmul.f32 %v3391, %v498
          %v3476 = vmul.f32 %v3455, %v499
          %v3477 = vmul.f32 %v3392, %v498
          %v3478 = vmul.f32 %v3456, %v499
          %v3479 = vmul.f32 %v3393, %v498
          %v3480 = vmul.f32 %v3457, %v499
          %v3481 = vmul.f32 %v3394, %v498
          %v3482 = vmul.f32 %v3458, %v499
          %v3483 = vmul.f32 %v3395, %v498
          %v3484 = vmul.f32 %v3459, %v499
          %v3485 = vmul.f32 %v3396, %v498
          %v3486 = vmul.f32 %v3460, %v499
          %v3487 = vmul.f32 %v3397, %v498
          %v3488 = vmul.f32 %v3461, %v499
          %v3489 = vmul.f32 %v3398, %v498
          %v3490 = vmul.f32 %v3462, %v499
          %v3491 = vmul.f32 %v3399, %v498
          %v3492 = vmul.f32 %v3463, %v499
          %v3493 = vmul.f32 %v3400, %v498
          %v3494 = vmul.f32 %v3464, %v499
          %v3495 = vmul.f32 %v3401, %v498
          %v3496 = vmul.f32 %v3465, %v499
          %v3497 = vmul.f32 %v3402, %v498
          %v3498 = vmul.f32 %v3466, %v499
          %3499 = vrot.lane.b32.xlu0 %v2555, 113
          %v3500 = vpop.permute.xlu0 %3499
          %3501 = vrot.lane.b32.xlu0 %v2556, 113
          %v3502 = vpop.permute.xlu0 %3501
          %3503 = vrot.lane.b32.xlu0 %v2557, 113
          %v3504 = vpop.permute.xlu0 %3503
          %3505 = vrot.lane.b32.xlu0 %v2558, 113
          %v3506 = vpop.permute.xlu0 %3505
          %3507 = vrot.lane.b32.xlu0 %v2559, 113
          %v3508 = vpop.permute.xlu0 %3507
          %3509 = vrot.lane.b32.xlu0 %v2560, 113
          %v3510 = vpop.permute.xlu0 %3509
          %3511 = vrot.lane.b32.xlu0 %v2561, 113
          %v3512 = vpop.permute.xlu0 %3511
          %3513 = vrot.lane.b32.xlu0 %v2562, 113
          %v3514 = vpop.permute.xlu0 %3513
          %3515 = vrot.lane.b32.xlu0 %v2563, 113
          %v3516 = vpop.permute.xlu0 %3515
          %3517 = vrot.lane.b32.xlu0 %v2564, 113
          %v3518 = vpop.permute.xlu0 %3517
          %3519 = vrot.lane.b32.xlu0 %v2565, 113
          %v3520 = vpop.permute.xlu0 %3519
          %3521 = vrot.lane.b32.xlu0 %v2566, 113
          %v3522 = vpop.permute.xlu0 %3521
          %3523 = vrot.lane.b32.xlu0 %v2567, 113
          %v3524 = vpop.permute.xlu0 %3523
          %3525 = vrot.lane.b32.xlu0 %v2568, 113
          %v3526 = vpop.permute.xlu0 %3525
          %3527 = vrot.lane.b32.xlu0 %v2569, 113
          %v3528 = vpop.permute.xlu0 %3527
          %3529 = vrot.lane.b32.xlu0 %v2570, 113
          %v3530 = vpop.permute.xlu0 %3529
          %3531 = vrot.lane.b32.xlu0 %v2571, 113
          %v3532 = vpop.permute.xlu0 %3531
          %3533 = vrot.lane.b32.xlu0 %v2572, 113
          %v3534 = vpop.permute.xlu0 %3533
          %3535 = vrot.lane.b32.xlu0 %v2573, 113
          %v3536 = vpop.permute.xlu0 %3535
          %3537 = vrot.lane.b32.xlu0 %v2574, 113
          %v3538 = vpop.permute.xlu0 %3537
          %3539 = vrot.lane.b32.xlu0 %v2575, 113
          %v3540 = vpop.permute.xlu0 %3539
          %3541 = vrot.lane.b32.xlu0 %v2576, 113
          %v3542 = vpop.permute.xlu0 %3541
          %3543 = vrot.lane.b32.xlu0 %v2577, 113
          %v3544 = vpop.permute.xlu0 %3543
          %3545 = vrot.lane.b32.xlu0 %v2578, 113
          %v3546 = vpop.permute.xlu0 %3545
          %3547 = vrot.lane.b32.xlu0 %v2579, 113
          %v3548 = vpop.permute.xlu0 %3547
          %3549 = vrot.lane.b32.xlu0 %v2580, 113
          %v3550 = vpop.permute.xlu0 %3549
          %3551 = vrot.lane.b32.xlu0 %v2581, 113
          %v3552 = vpop.permute.xlu0 %3551
          %3553 = vrot.lane.b32.xlu0 %v2582, 113
          %v3554 = vpop.permute.xlu0 %3553
          %3555 = vrot.lane.b32.xlu0 %v2583, 113
          %v3556 = vpop.permute.xlu0 %3555
          %3557 = vrot.lane.b32.xlu0 %v2584, 113
          %v3558 = vpop.permute.xlu0 %3557
          %3559 = vrot.lane.b32.xlu0 %v2585, 113
          %v3560 = vpop.permute.xlu0 %3559
          %3561 = vrot.lane.b32.xlu0 %v2586, 113
          %v3562 = vpop.permute.xlu0 %3561
          %v3563 = vsel %vm640, %v3500, %v3502
          %v3564 = vsel %vm640, %v3504, %v3506
          %v3565 = vsel %vm640, %v3508, %v3510
          %v3566 = vsel %vm640, %v3512, %v3514
          %v3567 = vsel %vm640, %v3516, %v3518
          %v3568 = vsel %vm640, %v3520, %v3522
          %v3569 = vsel %vm640, %v3524, %v3526
          %v3570 = vsel %vm640, %v3528, %v3530
          %v3571 = vsel %vm640, %v3532, %v3534
          %v3572 = vsel %vm640, %v3536, %v3538
          %v3573 = vsel %vm640, %v3540, %v3542
          %v3574 = vsel %vm640, %v3544, %v3546
          %v3575 = vsel %vm640, %v3548, %v3550
          %v3576 = vsel %vm640, %v3552, %v3554
          %v3577 = vsel %vm640, %v3556, %v3558
          %v3578 = vsel %vm640, %v3560, %v3562
          %v3627 = vsel %vm640, %v3502, %v3500
          %v3628 = vsel %vm640, %v3506, %v3504
          %v3629 = vsel %vm640, %v3510, %v3508
          %v3630 = vsel %vm640, %v3514, %v3512
          %v3631 = vsel %vm640, %v3518, %v3516
          %v3632 = vsel %vm640, %v3522, %v3520
          %v3633 = vsel %vm640, %v3526, %v3524
          %v3634 = vsel %vm640, %v3530, %v3528
          %v3635 = vsel %vm640, %v3534, %v3532
          %v3636 = vsel %vm640, %v3538, %v3536
          %v3637 = vsel %vm640, %v3542, %v3540
          %v3638 = vsel %vm640, %v3546, %v3544
          %v3639 = vsel %vm640, %v3550, %v3548
          %v3640 = vsel %vm640, %v3554, %v3552
          %v3641 = vsel %vm640, %v3558, %v3556
          %v3642 = vsel %vm640, %v3562, %v3560
          %v3643 = vmul.f32 %v3563, %v514
          %v3644 = vmul.f32 %v3627, %v515
          %v3645 = vmul.f32 %v3564, %v514
          %v3646 = vmul.f32 %v3628, %v515
          %v3647 = vmul.f32 %v3565, %v514
          %v3648 = vmul.f32 %v3629, %v515
          %v3649 = vmul.f32 %v3566, %v514
          %v3650 = vmul.f32 %v3630, %v515
          %v3651 = vmul.f32 %v3567, %v514
          %v3652 = vmul.f32 %v3631, %v515
          %v3653 = vmul.f32 %v3568, %v514
          %v3654 = vmul.f32 %v3632, %v515
          %v3655 = vmul.f32 %v3569, %v514
          %v3656 = vmul.f32 %v3633, %v515
          %v3657 = vmul.f32 %v3570, %v514
          %v3658 = vmul.f32 %v3634, %v515
          %v3659 = vmul.f32 %v3571, %v514
          %v3660 = vmul.f32 %v3635, %v515
          %v3661 = vmul.f32 %v3572, %v514
          %v3662 = vmul.f32 %v3636, %v515
          %v3663 = vmul.f32 %v3573, %v514
          %v3664 = vmul.f32 %v3637, %v515
          %v3665 = vmul.f32 %v3574, %v514
          %v3666 = vmul.f32 %v3638, %v515
          %v3667 = vmul.f32 %v3575, %v514
          %v3668 = vmul.f32 %v3639, %v515
          %v3669 = vmul.f32 %v3576, %v514
          %v3670 = vmul.f32 %v3640, %v515
          %v3671 = vmul.f32 %v3577, %v514
          %v3672 = vmul.f32 %v3641, %v515
          %v3673 = vmul.f32 %v3578, %v514
          %v3674 = vmul.f32 %v3642, %v515
          %3675 = vrot.lane.b32.xlu0 %v2555, 112
          %v3676 = vpop.permute.xlu0 %3675
          %3677 = vrot.lane.b32.xlu0 %v2556, 112
          %v3678 = vpop.permute.xlu0 %3677
          %3679 = vrot.lane.b32.xlu0 %v2557, 112
          %v3680 = vpop.permute.xlu0 %3679
          %3681 = vrot.lane.b32.xlu0 %v2558, 112
          %v3682 = vpop.permute.xlu0 %3681
          %3683 = vrot.lane.b32.xlu0 %v2559, 112
          %v3684 = vpop.permute.xlu0 %3683
          %3685 = vrot.lane.b32.xlu0 %v2560, 112
          %v3686 = vpop.permute.xlu0 %3685
          %3687 = vrot.lane.b32.xlu0 %v2561, 112
          %v3688 = vpop.permute.xlu0 %3687
          %3689 = vrot.lane.b32.xlu0 %v2562, 112
          %v3690 = vpop.permute.xlu0 %3689
          %3691 = vrot.lane.b32.xlu0 %v2563, 112
          %v3692 = vpop.permute.xlu0 %3691
          %3693 = vrot.lane.b32.xlu0 %v2564, 112
          %v3694 = vpop.permute.xlu0 %3693
          %3695 = vrot.lane.b32.xlu0 %v2565, 112
          %v3696 = vpop.permute.xlu0 %3695
          %3697 = vrot.lane.b32.xlu0 %v2566, 112
          %v3698 = vpop.permute.xlu0 %3697
          %3699 = vrot.lane.b32.xlu0 %v2567, 112
          %v3700 = vpop.permute.xlu0 %3699
          %3701 = vrot.lane.b32.xlu0 %v2568, 112
          %v3702 = vpop.permute.xlu0 %3701
          %3703 = vrot.lane.b32.xlu0 %v2569, 112
          %v3704 = vpop.permute.xlu0 %3703
          %3705 = vrot.lane.b32.xlu0 %v2570, 112
          %v3706 = vpop.permute.xlu0 %3705
          %3707 = vrot.lane.b32.xlu0 %v2571, 112
          %v3708 = vpop.permute.xlu0 %3707
          %3709 = vrot.lane.b32.xlu0 %v2572, 112
          %v3710 = vpop.permute.xlu0 %3709
          %3711 = vrot.lane.b32.xlu0 %v2573, 112
          %v3712 = vpop.permute.xlu0 %3711
          %3713 = vrot.lane.b32.xlu0 %v2574, 112
          %v3714 = vpop.permute.xlu0 %3713
          %3715 = vrot.lane.b32.xlu0 %v2575, 112
          %v3716 = vpop.permute.xlu0 %3715
          %3717 = vrot.lane.b32.xlu0 %v2576, 112
          %v3718 = vpop.permute.xlu0 %3717
          %3719 = vrot.lane.b32.xlu0 %v2577, 112
          %v3720 = vpop.permute.xlu0 %3719
          %3721 = vrot.lane.b32.xlu0 %v2578, 112
          %v3722 = vpop.permute.xlu0 %3721
          %3723 = vrot.lane.b32.xlu0 %v2579, 112
          %v3724 = vpop.permute.xlu0 %3723
          %3725 = vrot.lane.b32.xlu0 %v2580, 112
          %v3726 = vpop.permute.xlu0 %3725
          %3727 = vrot.lane.b32.xlu0 %v2581, 112
          %v3728 = vpop.permute.xlu0 %3727
          %3729 = vrot.lane.b32.xlu0 %v2582, 112
          %v3730 = vpop.permute.xlu0 %3729
          %3731 = vrot.lane.b32.xlu0 %v2583, 112
          %v3732 = vpop.permute.xlu0 %3731
          %3733 = vrot.lane.b32.xlu0 %v2584, 112
          %v3734 = vpop.permute.xlu0 %3733
          %3735 = vrot.lane.b32.xlu0 %v2585, 112
          %v3736 = vpop.permute.xlu0 %3735
          %3737 = vrot.lane.b32.xlu0 %v2586, 112
          %v3738 = vpop.permute.xlu0 %3737
          %v3739 = vsel %vm659, %v3676, %v3678
          %v3740 = vsel %vm659, %v3680, %v3682
          %v3741 = vsel %vm659, %v3684, %v3686
          %v3742 = vsel %vm659, %v3688, %v3690
          %v3743 = vsel %vm659, %v3692, %v3694
          %v3744 = vsel %vm659, %v3696, %v3698
          %v3745 = vsel %vm659, %v3700, %v3702
          %v3746 = vsel %vm659, %v3704, %v3706
          %v3747 = vsel %vm659, %v3708, %v3710
          %v3748 = vsel %vm659, %v3712, %v3714
          %v3749 = vsel %vm659, %v3716, %v3718
          %v3750 = vsel %vm659, %v3720, %v3722
          %v3751 = vsel %vm659, %v3724, %v3726
          %v3752 = vsel %vm659, %v3728, %v3730
          %v3753 = vsel %vm659, %v3732, %v3734
          %v3754 = vsel %vm659, %v3736, %v3738
          %v3803 = vsel %vm659, %v3678, %v3676
          %v3804 = vsel %vm659, %v3682, %v3680
          %v3805 = vsel %vm659, %v3686, %v3684
          %v3806 = vsel %vm659, %v3690, %v3688
          %v3807 = vsel %vm659, %v3694, %v3692
          %v3808 = vsel %vm659, %v3698, %v3696
          %v3809 = vsel %vm659, %v3702, %v3700
          %v3810 = vsel %vm659, %v3706, %v3704
          %v3811 = vsel %vm659, %v3710, %v3708
          %v3812 = vsel %vm659, %v3714, %v3712
          %v3813 = vsel %vm659, %v3718, %v3716
          %v3814 = vsel %vm659, %v3722, %v3720
          %v3815 = vsel %vm659, %v3726, %v3724
          %v3816 = vsel %vm659, %v3730, %v3728
          %v3817 = vsel %vm659, %v3734, %v3732
          %v3818 = vsel %vm659, %v3738, %v3736
          %v3819 = vmul.f32 %v3739, %v522
          %v3820 = vmul.f32 %v3803, %v523
          %v3821 = vmul.f32 %v3740, %v522
          %v3822 = vmul.f32 %v3804, %v523
          %v3823 = vmul.f32 %v3741, %v522
          %v3824 = vmul.f32 %v3805, %v523
          %v3825 = vmul.f32 %v3742, %v522
          %v3826 = vmul.f32 %v3806, %v523
          %v3827 = vmul.f32 %v3743, %v522
          %v3828 = vmul.f32 %v3807, %v523
          %v3829 = vmul.f32 %v3744, %v522
          %v3830 = vmul.f32 %v3808, %v523
          %v3831 = vmul.f32 %v3745, %v522
          %v3832 = vmul.f32 %v3809, %v523
          %v3833 = vmul.f32 %v3746, %v522
          %v3834 = vmul.f32 %v3810, %v523
          %v3835 = vmul.f32 %v3747, %v522
          %v3836 = vmul.f32 %v3811, %v523
          %v3837 = vmul.f32 %v3748, %v522
          %v3838 = vmul.f32 %v3812, %v523
          %v3839 = vmul.f32 %v3749, %v522
          %v3840 = vmul.f32 %v3813, %v523
          %v3841 = vmul.f32 %v3750, %v522
          %v3842 = vmul.f32 %v3814, %v523
          %v3843 = vmul.f32 %v3751, %v522
          %v3844 = vmul.f32 %v3815, %v523
          %v3845 = vmul.f32 %v3752, %v522
          %v3846 = vmul.f32 %v3816, %v523
          %v3847 = vmul.f32 %v3753, %v522
          %v3848 = vmul.f32 %v3817, %v523
          %v3849 = vmul.f32 %v3754, %v522
          %v3850 = vmul.f32 %v3818, %v523
          %3851 = vrot.lane.b32.xlu0 %v2555, 111
          %v3852 = vpop.permute.xlu0 %3851
          %3853 = vrot.lane.b32.xlu0 %v2556, 111
          %v3854 = vpop.permute.xlu0 %3853
          %3855 = vrot.lane.b32.xlu0 %v2557, 111
          %v3856 = vpop.permute.xlu0 %3855
          %3857 = vrot.lane.b32.xlu0 %v2558, 111
          %v3858 = vpop.permute.xlu0 %3857
          %3859 = vrot.lane.b32.xlu0 %v2559, 111
          %v3860 = vpop.permute.xlu0 %3859
          %3861 = vrot.lane.b32.xlu0 %v2560, 111
          %v3862 = vpop.permute.xlu0 %3861
          %3863 = vrot.lane.b32.xlu0 %v2561, 111
          %v3864 = vpop.permute.xlu0 %3863
          %3865 = vrot.lane.b32.xlu0 %v2562, 111
          %v3866 = vpop.permute.xlu0 %3865
          %3867 = vrot.lane.b32.xlu0 %v2563, 111
          %v3868 = vpop.permute.xlu0 %3867
          %3869 = vrot.lane.b32.xlu0 %v2564, 111
          %v3870 = vpop.permute.xlu0 %3869
          %3871 = vrot.lane.b32.xlu0 %v2565, 111
          %v3872 = vpop.permute.xlu0 %3871
          %3873 = vrot.lane.b32.xlu0 %v2566, 111
          %v3874 = vpop.permute.xlu0 %3873
          %3875 = vrot.lane.b32.xlu0 %v2567, 111
          %v3876 = vpop.permute.xlu0 %3875
          %3877 = vrot.lane.b32.xlu0 %v2568, 111
          %v3878 = vpop.permute.xlu0 %3877
          %3879 = vrot.lane.b32.xlu0 %v2569, 111
          %v3880 = vpop.permute.xlu0 %3879
          %3881 = vrot.lane.b32.xlu0 %v2570, 111
          %v3882 = vpop.permute.xlu0 %3881
          %3883 = vrot.lane.b32.xlu0 %v2571, 111
          %v3884 = vpop.permute.xlu0 %3883
          %3885 = vrot.lane.b32.xlu0 %v2572, 111
          %v3886 = vpop.permute.xlu0 %3885
          %3887 = vrot.lane.b32.xlu0 %v2573, 111
          %v3888 = vpop.permute.xlu0 %3887
          %3889 = vrot.lane.b32.xlu0 %v2574, 111
          %v3890 = vpop.permute.xlu0 %3889
          %3891 = vrot.lane.b32.xlu0 %v2575, 111
          %v3892 = vpop.permute.xlu0 %3891
          %3893 = vrot.lane.b32.xlu0 %v2576, 111
          %v3894 = vpop.permute.xlu0 %3893
          %3895 = vrot.lane.b32.xlu0 %v2577, 111
          %v3896 = vpop.permute.xlu0 %3895
          %3897 = vrot.lane.b32.xlu0 %v2578, 111
          %v3898 = vpop.permute.xlu0 %3897
          %3899 = vrot.lane.b32.xlu0 %v2579, 111
          %v3900 = vpop.permute.xlu0 %3899
          %3901 = vrot.lane.b32.xlu0 %v2580, 111
          %v3902 = vpop.permute.xlu0 %3901
          %3903 = vrot.lane.b32.xlu0 %v2581, 111
          %v3904 = vpop.permute.xlu0 %3903
          %3905 = vrot.lane.b32.xlu0 %v2582, 111
          %v3906 = vpop.permute.xlu0 %3905
          %3907 = vrot.lane.b32.xlu0 %v2583, 111
          %v3908 = vpop.permute.xlu0 %3907
          %3909 = vrot.lane.b32.xlu0 %v2584, 111
          %v3910 = vpop.permute.xlu0 %3909
          %3911 = vrot.lane.b32.xlu0 %v2585, 111
          %v3912 = vpop.permute.xlu0 %3911
          %3913 = vrot.lane.b32.xlu0 %v2586, 111
          %v3914 = vpop.permute.xlu0 %3913
          %v3915 = vsel %vm678, %v3852, %v3854
          %v3916 = vsel %vm678, %v3856, %v3858
          %v3917 = vsel %vm678, %v3860, %v3862
          %v3918 = vsel %vm678, %v3864, %v3866
          %v3919 = vsel %vm678, %v3868, %v3870
          %v3920 = vsel %vm678, %v3872, %v3874
          %v3921 = vsel %vm678, %v3876, %v3878
          %v3922 = vsel %vm678, %v3880, %v3882
          %v3923 = vsel %vm678, %v3884, %v3886
          %v3924 = vsel %vm678, %v3888, %v3890
          %v3925 = vsel %vm678, %v3892, %v3894
          %v3926 = vsel %vm678, %v3896, %v3898
          %v3927 = vsel %vm678, %v3900, %v3902
          %v3928 = vsel %vm678, %v3904, %v3906
          %v3929 = vsel %vm678, %v3908, %v3910
          %v3930 = vsel %vm678, %v3912, %v3914
          %v3979 = vsel %vm678, %v3854, %v3852
          %v3980 = vsel %vm678, %v3858, %v3856
          %v3981 = vsel %vm678, %v3862, %v3860
          %v3982 = vsel %vm678, %v3866, %v3864
          %v3983 = vsel %vm678, %v3870, %v3868
          %v3984 = vsel %vm678, %v3874, %v3872
          %v3985 = vsel %vm678, %v3878, %v3876
          %v3986 = vsel %vm678, %v3882, %v3880
          %v3987 = vsel %vm678, %v3886, %v3884
          %v3988 = vsel %vm678, %v3890, %v3888
          %v3989 = vsel %vm678, %v3894, %v3892
          %v3990 = vsel %vm678, %v3898, %v3896
          %v3991 = vsel %vm678, %v3902, %v3900
          %v3992 = vsel %vm678, %v3906, %v3904
          %v3993 = vsel %vm678, %v3910, %v3908
          %v3994 = vsel %vm678, %v3914, %v3912
          %v3995 = vmul.f32 %v3915, %v530
          %v3996 = vmul.f32 %v3979, %v531
          %v3997 = vmul.f32 %v3916, %v530
          %v3998 = vmul.f32 %v3980, %v531
          %v3999 = vmul.f32 %v3917, %v530
          %v4000 = vmul.f32 %v3981, %v531
          %v4001 = vmul.f32 %v3918, %v530
          %v4002 = vmul.f32 %v3982, %v531
          %v4003 = vmul.f32 %v3919, %v530
          %v4004 = vmul.f32 %v3983, %v531
          %v4005 = vmul.f32 %v3920, %v530
          %v4006 = vmul.f32 %v3984, %v531
          %v4007 = vmul.f32 %v3921, %v530
          %v4008 = vmul.f32 %v3985, %v531
          %v4009 = vmul.f32 %v3922, %v530
          %v4010 = vmul.f32 %v3986, %v531
          %v4011 = vmul.f32 %v3923, %v530
          %v4012 = vmul.f32 %v3987, %v531
          %v4013 = vmul.f32 %v3924, %v530
          %v4014 = vmul.f32 %v3988, %v531
          %v4015 = vmul.f32 %v3925, %v530
          %v4016 = vmul.f32 %v3989, %v531
          %v4017 = vmul.f32 %v3926, %v530
          %v4018 = vmul.f32 %v3990, %v531
          %v4019 = vmul.f32 %v3927, %v530
          %v4020 = vmul.f32 %v3991, %v531
          %v4021 = vmul.f32 %v3928, %v530
          %v4022 = vmul.f32 %v3992, %v531
          %v4023 = vmul.f32 %v3929, %v530
          %v4024 = vmul.f32 %v3993, %v531
          %v4025 = vmul.f32 %v3930, %v530
          %v4026 = vmul.f32 %v3994, %v531
          %v4027 = vpack.c.bf16 %v2764, %v2763
          %v4028 = vpack.c.bf16 %v2766, %v2765
          %v4029 = vpack.c.bf16 %v2768, %v2767
          %v4030 = vpack.c.bf16 %v2770, %v2769
          %v4031 = vpack.c.bf16 %v2772, %v2771
          %v4032 = vpack.c.bf16 %v2774, %v2773
          %v4033 = vpack.c.bf16 %v2776, %v2775
          %v4034 = vpack.c.bf16 %v2778, %v2777
          %v4035 = vpack.c.bf16 %v2780, %v2779
          %v4036 = vpack.c.bf16 %v2782, %v2781
          %v4037 = vpack.c.bf16 %v2784, %v2783
          %v4038 = vpack.c.bf16 %v2786, %v2785
          %v4039 = vpack.c.bf16 %v2788, %v2787
          %v4040 = vpack.c.bf16 %v2790, %v2789
          %v4041 = vpack.c.bf16 %v2792, %v2791
          %v4042 = vpack.c.bf16 %v2794, %v2793
          %v4043 = vpack.c.bf16 %v2940, %v2939
          %v4044 = vpack.c.bf16 %v2942, %v2941
          %v4045 = vpack.c.bf16 %v2944, %v2943
          %v4046 = vpack.c.bf16 %v2946, %v2945
          %v4047 = vpack.c.bf16 %v2948, %v2947
          %v4048 = vpack.c.bf16 %v2950, %v2949
          %v4049 = vpack.c.bf16 %v2952, %v2951
          %v4050 = vpack.c.bf16 %v2954, %v2953
          %v4051 = vpack.c.bf16 %v2956, %v2955
          %v4052 = vpack.c.bf16 %v2958, %v2957
          %v4053 = vpack.c.bf16 %v2960, %v2959
          %v4054 = vpack.c.bf16 %v2962, %v2961
          %v4055 = vpack.c.bf16 %v2964, %v2963
          %v4056 = vpack.c.bf16 %v2966, %v2965
          %v4057 = vpack.c.bf16 %v2968, %v2967
          %v4058 = vpack.c.bf16 %v2970, %v2969
          %v4059 = vpack.c.bf16 %v3116, %v3115
          %v4060 = vpack.c.bf16 %v3118, %v3117
          %v4061 = vpack.c.bf16 %v3120, %v3119
          %v4062 = vpack.c.bf16 %v3122, %v3121
          %v4063 = vpack.c.bf16 %v3124, %v3123
          %v4064 = vpack.c.bf16 %v3126, %v3125
          %v4065 = vpack.c.bf16 %v3128, %v3127
          %v4066 = vpack.c.bf16 %v3130, %v3129
          %v4067 = vpack.c.bf16 %v3132, %v3131
          %v4068 = vpack.c.bf16 %v3134, %v3133
          %v4069 = vpack.c.bf16 %v3136, %v3135
          %v4070 = vpack.c.bf16 %v3138, %v3137
          %v4071 = vpack.c.bf16 %v3140, %v3139
          %v4072 = vpack.c.bf16 %v3142, %v3141
          %v4073 = vpack.c.bf16 %v3144, %v3143
          %v4074 = vpack.c.bf16 %v3146, %v3145
          %v4075 = vpack.c.bf16 %v3292, %v3291
          %v4076 = vpack.c.bf16 %v3294, %v3293
          %v4077 = vpack.c.bf16 %v3296, %v3295
          %v4078 = vpack.c.bf16 %v3298, %v3297
          %v4079 = vpack.c.bf16 %v3300, %v3299
          %v4080 = vpack.c.bf16 %v3302, %v3301
          %v4081 = vpack.c.bf16 %v3304, %v3303
          %v4082 = vpack.c.bf16 %v3306, %v3305
          %v4083 = vpack.c.bf16 %v3308, %v3307
          %v4084 = vpack.c.bf16 %v3310, %v3309
          %v4085 = vpack.c.bf16 %v3312, %v3311
          %v4086 = vpack.c.bf16 %v3314, %v3313
          %v4087 = vpack.c.bf16 %v3316, %v3315
          %v4088 = vpack.c.bf16 %v3318, %v3317
          %v4089 = vpack.c.bf16 %v3320, %v3319
          %v4090 = vpack.c.bf16 %v3322, %v3321
          %v4091 = vpack.c.bf16 %v2556, %v2555
          %v4092 = vpack.c.bf16 %v2558, %v2557
          %v4093 = vpack.c.bf16 %v2560, %v2559
          %v4094 = vpack.c.bf16 %v2562, %v2561
          %v4095 = vpack.c.bf16 %v2564, %v2563
          %v4096 = vpack.c.bf16 %v2566, %v2565
          %v4097 = vpack.c.bf16 %v2568, %v2567
          %v4098 = vpack.c.bf16 %v2570, %v2569
          %v4099 = vpack.c.bf16 %v2572, %v2571
          %v4100 = vpack.c.bf16 %v2574, %v2573
          %v4101 = vpack.c.bf16 %v2576, %v2575
          %v4102 = vpack.c.bf16 %v2578, %v2577
          %v4103 = vpack.c.bf16 %v2580, %v2579
          %v4104 = vpack.c.bf16 %v2582, %v2581
          %v4105 = vpack.c.bf16 %v2584, %v2583
          %v4106 = vpack.c.bf16 %v2586, %v2585
          %v4107 = vpack.c.bf16 %v3468, %v3467
          %v4108 = vpack.c.bf16 %v3470, %v3469
          %v4109 = vpack.c.bf16 %v3472, %v3471
          %v4110 = vpack.c.bf16 %v3474, %v3473
          %v4111 = vpack.c.bf16 %v3476, %v3475
          %v4112 = vpack.c.bf16 %v3478, %v3477
          %v4113 = vpack.c.bf16 %v3480, %v3479
          %v4114 = vpack.c.bf16 %v3482, %v3481
          %v4115 = vpack.c.bf16 %v3484, %v3483
          %v4116 = vpack.c.bf16 %v3486, %v3485
          %v4117 = vpack.c.bf16 %v3488, %v3487
          %v4118 = vpack.c.bf16 %v3490, %v3489
          %v4119 = vpack.c.bf16 %v3492, %v3491
          %v4120 = vpack.c.bf16 %v3494, %v3493
          %v4121 = vpack.c.bf16 %v3496, %v3495
          %v4122 = vpack.c.bf16 %v3498, %v3497
          %v4123 = vpack.c.bf16 %v3644, %v3643
          %v4124 = vpack.c.bf16 %v3646, %v3645
          %v4125 = vpack.c.bf16 %v3648, %v3647
          %v4126 = vpack.c.bf16 %v3650, %v3649
          %v4127 = vpack.c.bf16 %v3652, %v3651
          %v4128 = vpack.c.bf16 %v3654, %v3653
          %v4129 = vpack.c.bf16 %v3656, %v3655
          %v4130 = vpack.c.bf16 %v3658, %v3657
          %v4131 = vpack.c.bf16 %v3660, %v3659
          %v4132 = vpack.c.bf16 %v3662, %v3661
          %v4133 = vpack.c.bf16 %v3664, %v3663
          %v4134 = vpack.c.bf16 %v3666, %v3665
          %v4135 = vpack.c.bf16 %v3668, %v3667
          %v4136 = vpack.c.bf16 %v3670, %v3669
          %v4137 = vpack.c.bf16 %v3672, %v3671
          %v4138 = vpack.c.bf16 %v3674, %v3673
          %v4139 = vpack.c.bf16 %v3820, %v3819
          %v4140 = vpack.c.bf16 %v3822, %v3821
          %v4141 = vpack.c.bf16 %v3824, %v3823
          %v4142 = vpack.c.bf16 %v3826, %v3825
          %v4143 = vpack.c.bf16 %v3828, %v3827
          %v4144 = vpack.c.bf16 %v3830, %v3829
          %v4145 = vpack.c.bf16 %v3832, %v3831
          %v4146 = vpack.c.bf16 %v3834, %v3833
          %v4147 = vpack.c.bf16 %v3836, %v3835
          %v4148 = vpack.c.bf16 %v3838, %v3837
          %v4149 = vpack.c.bf16 %v3840, %v3839
          %v4150 = vpack.c.bf16 %v3842, %v3841
          %v4151 = vpack.c.bf16 %v3844, %v3843
          %v4152 = vpack.c.bf16 %v3846, %v3845
          %v4153 = vpack.c.bf16 %v3848, %v3847
          %v4154 = vpack.c.bf16 %v3850, %v3849
          %v4155 = vpack.c.bf16 %v3996, %v3995
          %v4156 = vpack.c.bf16 %v3998, %v3997
          %v4157 = vpack.c.bf16 %v4000, %v3999
          %v4158 = vpack.c.bf16 %v4002, %v4001
          %v4159 = vpack.c.bf16 %v4004, %v4003
          %v4160 = vpack.c.bf16 %v4006, %v4005
          %v4161 = vpack.c.bf16 %v4008, %v4007
          %v4162 = vpack.c.bf16 %v4010, %v4009
          %v4163 = vpack.c.bf16 %v4012, %v4011
          %v4164 = vpack.c.bf16 %v4014, %v4013
          %v4165 = vpack.c.bf16 %v4016, %v4015
          %v4166 = vpack.c.bf16 %v4018, %v4017
          %v4167 = vpack.c.bf16 %v4020, %v4019
          %v4168 = vpack.c.bf16 %v4022, %v4021
          %v4169 = vpack.c.bf16 %v4024, %v4023
          %v4170 = vpack.c.bf16 %v4026, %v4025
          %4171 = vst [vmem:[#allocation2] sm:$0xff] %v4027
          %4172 = vst [vmem:[#allocation2 + $0x8] sm:$0xff] %v4028
          %4173 = vst [vmem:[#allocation2 + $0x10] sm:$0xff] %v4029
          %4174 = vst [vmem:[#allocation2 + $0x18] sm:$0xff] %v4030
          %4175 = vst [vmem:[#allocation2 + $0x20] sm:$0xff] %v4031
          %4176 = vst [vmem:[#allocation2 + $0x28] sm:$0xff] %v4032
          %4177 = vst [vmem:[#allocation2 + $0x30] sm:$0xff] %v4033
          %4178 = vst [vmem:[#allocation2 + $0x38] sm:$0xff] %v4034
          %4179 = vst [vmem:[#allocation2 + $0x40] sm:$0xff] %v4035
          %4180 = vst [vmem:[#allocation2 + $0x48] sm:$0xff] %v4036
          %4181 = vst [vmem:[#allocation2 + $0x50] sm:$0xff] %v4037
          %4182 = vst [vmem:[#allocation2 + $0x58] sm:$0xff] %v4038
          %4183 = vst [vmem:[#allocation2 + $0x60] sm:$0xff] %v4039
          %4184 = vst [vmem:[#allocation2 + $0x68] sm:$0xff] %v4040
          %4185 = vst [vmem:[#allocation2 + $0x70] sm:$0xff] %v4041
          %4186 = vst [vmem:[#allocation2 + $0x78] sm:$0xff] %v4042
          %4187 = vst [vmem:[#allocation2 + $0x80] sm:$0xff] %v4043
          %4188 = vst [vmem:[#allocation2 + $0x88] sm:$0xff] %v4044
          %4189 = vst [vmem:[#allocation2 + $0x90] sm:$0xff] %v4045
          %4190 = vst [vmem:[#allocation2 + $0x98] sm:$0xff] %v4046
          %4191 = vst [vmem:[#allocation2 + $0xa0] sm:$0xff] %v4047
          %4192 = vst [vmem:[#allocation2 + $0xa8] sm:$0xff] %v4048
          %4193 = vst [vmem:[#allocation2 + $0xb0] sm:$0xff] %v4049
          %4194 = vst [vmem:[#allocation2 + $0xb8] sm:$0xff] %v4050
          %4195 = vst [vmem:[#allocation2 + $0xc0] sm:$0xff] %v4051
          %4196 = vst [vmem:[#allocation2 + $0xc8] sm:$0xff] %v4052
          %4197 = vst [vmem:[#allocation2 + $0xd0] sm:$0xff] %v4053
          %4198 = vst [vmem:[#allocation2 + $0xd8] sm:$0xff] %v4054
          %4199 = vst [vmem:[#allocation2 + $0xe0] sm:$0xff] %v4055
          %4200 = vst [vmem:[#allocation2 + $0xe8] sm:$0xff] %v4056
          %4201 = vst [vmem:[#allocation2 + $0xf0] sm:$0xff] %v4057
          %4202 = vst [vmem:[#allocation2 + $0xf8] sm:$0xff] %v4058
          %4203 = vst [vmem:[#allocation2 + $0x100] sm:$0xff] %v4059
          %4204 = vst [vmem:[#allocation2 + $0x108] sm:$0xff] %v4060
          %4205 = vst [vmem:[#allocation2 + $0x110] sm:$0xff] %v4061
          %4206 = vst [vmem:[#allocation2 + $0x118] sm:$0xff] %v4062
          %4207 = vst [vmem:[#allocation2 + $0x120] sm:$0xff] %v4063
          %4208 = vst [vmem:[#allocation2 + $0x128] sm:$0xff] %v4064
          %4209 = vst [vmem:[#allocation2 + $0x130] sm:$0xff] %v4065
          %4210 = vst [vmem:[#allocation2 + $0x138] sm:$0xff] %v4066
          %4211 = vst [vmem:[#allocation2 + $0x140] sm:$0xff] %v4067
          %4212 = vst [vmem:[#allocation2 + $0x148] sm:$0xff] %v4068
          %4213 = vst [vmem:[#allocation2 + $0x150] sm:$0xff] %v4069
          %4214 = vst [vmem:[#allocation2 + $0x158] sm:$0xff] %v4070
          %4215 = vst [vmem:[#allocation2 + $0x160] sm:$0xff] %v4071
          %4216 = vst [vmem:[#allocation2 + $0x168] sm:$0xff] %v4072
          %4217 = vst [vmem:[#allocation2 + $0x170] sm:$0xff] %v4073
          %4218 = vst [vmem:[#allocation2 + $0x178] sm:$0xff] %v4074
          %4219 = vst [vmem:[#allocation2 + $0x180] sm:$0xff] %v4075
          %4220 = vst [vmem:[#allocation2 + $0x188] sm:$0xff] %v4076
          %4221 = vst [vmem:[#allocation2 + $0x190] sm:$0xff] %v4077
          %4222 = vst [vmem:[#allocation2 + $0x198] sm:$0xff] %v4078
          %4223 = vst [vmem:[#allocation2 + $0x1a0] sm:$0xff] %v4079
          %4224 = vst [vmem:[#allocation2 + $0x1a8] sm:$0xff] %v4080
          %4225 = vst [vmem:[#allocation2 + $0x1b0] sm:$0xff] %v4081
          %4226 = vst [vmem:[#allocation2 + $0x1b8] sm:$0xff] %v4082
          %4227 = vst [vmem:[#allocation2 + $0x1c0] sm:$0xff] %v4083
          %4228 = vst [vmem:[#allocation2 + $0x1c8] sm:$0xff] %v4084
          %4229 = vst [vmem:[#allocation2 + $0x1d0] sm:$0xff] %v4085
          %4230 = vst [vmem:[#allocation2 + $0x1d8] sm:$0xff] %v4086
          %4231 = vst [vmem:[#allocation2 + $0x1e0] sm:$0xff] %v4087
          %4232 = vst [vmem:[#allocation2 + $0x1e8] sm:$0xff] %v4088
          %4233 = vst [vmem:[#allocation2 + $0x1f0] sm:$0xff] %v4089
          %4234 = vst [vmem:[#allocation2 + $0x1f8] sm:$0xff] %v4090
          %4235 = vst [vmem:[#allocation2 + $0x200] sm:$0xff] %v4091
          %4236 = vst [vmem:[#allocation2 + $0x208] sm:$0xff] %v4092
          %4237 = vst [vmem:[#allocation2 + $0x210] sm:$0xff] %v4093
          %4238 = vst [vmem:[#allocation2 + $0x218] sm:$0xff] %v4094
          %4239 = vst [vmem:[#allocation2 + $0x220] sm:$0xff] %v4095
          %4240 = vst [vmem:[#allocation2 + $0x228] sm:$0xff] %v4096
          %4241 = vst [vmem:[#allocation2 + $0x230] sm:$0xff] %v4097
          %4242 = vst [vmem:[#allocation2 + $0x238] sm:$0xff] %v4098
          %4243 = vst [vmem:[#allocation2 + $0x240] sm:$0xff] %v4099
          %4244 = vst [vmem:[#allocation2 + $0x248] sm:$0xff] %v4100
          %4245 = vst [vmem:[#allocation2 + $0x250] sm:$0xff] %v4101
          %4246 = vst [vmem:[#allocation2 + $0x258] sm:$0xff] %v4102
          %4247 = vst [vmem:[#allocation2 + $0x260] sm:$0xff] %v4103
          %4248 = vst [vmem:[#allocation2 + $0x268] sm:$0xff] %v4104
          %4249 = vst [vmem:[#allocation2 + $0x270] sm:$0xff] %v4105
          %4250 = vst [vmem:[#allocation2 + $0x278] sm:$0xff] %v4106
          %4251 = vst [vmem:[#allocation2 + $0x280] sm:$0xff] %v4107
          %4252 = vst [vmem:[#allocation2 + $0x288] sm:$0xff] %v4108
          %4253 = vst [vmem:[#allocation2 + $0x290] sm:$0xff] %v4109
          %4254 = vst [vmem:[#allocation2 + $0x298] sm:$0xff] %v4110
          %4255 = vst [vmem:[#allocation2 + $0x2a0] sm:$0xff] %v4111
          %4256 = vst [vmem:[#allocation2 + $0x2a8] sm:$0xff] %v4112
          %4257 = vst [vmem:[#allocation2 + $0x2b0] sm:$0xff] %v4113
          %4258 = vst [vmem:[#allocation2 + $0x2b8] sm:$0xff] %v4114
          %4259 = vst [vmem:[#allocation2 + $0x2c0] sm:$0xff] %v4115
          %4260 = vst [vmem:[#allocation2 + $0x2c8] sm:$0xff] %v4116
          %4261 = vst [vmem:[#allocation2 + $0x2d0] sm:$0xff] %v4117
          %4262 = vst [vmem:[#allocation2 + $0x2d8] sm:$0xff] %v4118
          %4263 = vst [vmem:[#allocation2 + $0x2e0] sm:$0xff] %v4119
          %4264 = vst [vmem:[#allocation2 + $0x2e8] sm:$0xff] %v4120
          %4265 = vst [vmem:[#allocation2 + $0x2f0] sm:$0xff] %v4121
          %4266 = vst [vmem:[#allocation2 + $0x2f8] sm:$0xff] %v4122
          %4267 = vst [vmem:[#allocation2 + $0x300] sm:$0xff] %v4123
          %4268 = vst [vmem:[#allocation2 + $0x308] sm:$0xff] %v4124
          %4269 = vst [vmem:[#allocation2 + $0x310] sm:$0xff] %v4125
          %4270 = vst [vmem:[#allocation2 + $0x318] sm:$0xff] %v4126
          %4271 = vst [vmem:[#allocation2 + $0x320] sm:$0xff] %v4127
          %4272 = vst [vmem:[#allocation2 + $0x328] sm:$0xff] %v4128
          %4273 = vst [vmem:[#allocation2 + $0x330] sm:$0xff] %v4129
          %4274 = vst [vmem:[#allocation2 + $0x338] sm:$0xff] %v4130
          %4275 = vst [vmem:[#allocation2 + $0x340] sm:$0xff] %v4131
          %4276 = vst [vmem:[#allocation2 + $0x348] sm:$0xff] %v4132
          %4277 = vst [vmem:[#allocation2 + $0x350] sm:$0xff] %v4133
          %4278 = vst [vmem:[#allocation2 + $0x358] sm:$0xff] %v4134
          %4279 = vst [vmem:[#allocation2 + $0x360] sm:$0xff] %v4135
          %4280 = vst [vmem:[#allocation2 + $0x368] sm:$0xff] %v4136
          %4281 = vst [vmem:[#allocation2 + $0x370] sm:$0xff] %v4137
          %4282 = vst [vmem:[#allocation2 + $0x378] sm:$0xff] %v4138
          %4283 = vst [vmem:[#allocation2 + $0x380] sm:$0xff] %v4139
          %4284 = vst [vmem:[#allocation2 + $0x388] sm:$0xff] %v4140
          %4285 = vst [vmem:[#allocation2 + $0x390] sm:$0xff] %v4141
          %4286 = vst [vmem:[#allocation2 + $0x398] sm:$0xff] %v4142
          %4287 = vst [vmem:[#allocation2 + $0x3a0] sm:$0xff] %v4143
          %4288 = vst [vmem:[#allocation2 + $0x3a8] sm:$0xff] %v4144
          %4289 = vst [vmem:[#allocation2 + $0x3b0] sm:$0xff] %v4145
          %4290 = vst [vmem:[#allocation2 + $0x3b8] sm:$0xff] %v4146
          %4291 = vst [vmem:[#allocation2 + $0x3c0] sm:$0xff] %v4147
          %4292 = vst [vmem:[#allocation2 + $0x3c8] sm:$0xff] %v4148
          %4293 = vst [vmem:[#allocation2 + $0x3d0] sm:$0xff] %v4149
          %4294 = vst [vmem:[#allocation2 + $0x3d8] sm:$0xff] %v4150
          %4295 = vst [vmem:[#allocation2 + $0x3e0] sm:$0xff] %v4151
          %4296 = vst [vmem:[#allocation2 + $0x3e8] sm:$0xff] %v4152
          %4297 = vst [vmem:[#allocation2 + $0x3f0] sm:$0xff] %v4153
          %4298 = vst [vmem:[#allocation2 + $0x3f8] sm:$0xff] %v4154
          %4299 = vst [vmem:[#allocation2 + $0x400] sm:$0xff] %v4155
          %4300 = vst [vmem:[#allocation2 + $0x408] sm:$0xff] %v4156
          %4301 = vst [vmem:[#allocation2 + $0x410] sm:$0xff] %v4157
          %4302 = vst [vmem:[#allocation2 + $0x418] sm:$0xff] %v4158
          %4303 = vst [vmem:[#allocation2 + $0x420] sm:$0xff] %v4159
          %4304 = vst [vmem:[#allocation2 + $0x428] sm:$0xff] %v4160
          %4305 = vst [vmem:[#allocation2 + $0x430] sm:$0xff] %v4161
          %4306 = vst [vmem:[#allocation2 + $0x438] sm:$0xff] %v4162
          %4307 = vst [vmem:[#allocation2 + $0x440] sm:$0xff] %v4163
          %4308 = vst [vmem:[#allocation2 + $0x448] sm:$0xff] %v4164
          %4309 = vst [vmem:[#allocation2 + $0x450] sm:$0xff] %v4165
          %4310 = vst [vmem:[#allocation2 + $0x458] sm:$0xff] %v4166
          %4311 = vst [vmem:[#allocation2 + $0x460] sm:$0xff] %v4167
          %4312 = vst [vmem:[#allocation2 + $0x468] sm:$0xff] %v4168
          %4313 = vst [vmem:[#allocation2 + $0x470] sm:$0xff] %v4169
          %4314 = vst [vmem:[#allocation2 + $0x478] sm:$0xff] %v4170
        $region68: #{center_head_forward.1} parent=55 // pred_fallthru
          _
        %v4315 = vld [vmem:[%s356] sm:$0xff]
        %v4316 = vld [vmem:[%s356 + $0x8] sm:$0xff]
        %v4317 = vld [vmem:[%s356 + $0x10] sm:$0xff]
        %v4318 = vld [vmem:[%s356 + $0x18] sm:$0xff]
        %v4319 = vld [vmem:[%s356 + $0x20] sm:$0xf]
        %v4320 = vld [vmem:[%s356 + $0x24] sm:$0xff]
        %v4321 = vld [vmem:[%s356 + $0x2c] sm:$0xff]
        %v4322 = vld [vmem:[%s356 + $0x34] sm:$0xff]
        %v4323 = vld [vmem:[%s356 + $0x3c] sm:$0xff]
        %v4324 = vld [vmem:[%s356 + $0x44] sm:$0xf]
        %v4325 = vld [vmem:[%s356 + $0x48] sm:$0xff]
        %v4326 = vld [vmem:[%s356 + $0x50] sm:$0xff]
        %v4327 = vld [vmem:[%s356 + $0x58] sm:$0xff]
        %v4328 = vld [vmem:[%s356 + $0x60] sm:$0xff]
        %v4329 = vld [vmem:[%s356 + $0x68] sm:$0xf]
        %v4330 = vld [vmem:[%s356 + $0x6c] sm:$0xff]
        %v4331 = vld [vmem:[%s356 + $0x74] sm:$0xff]
        %v4332 = vld [vmem:[%s356 + $0x7c] sm:$0xff]
        %v4333 = vld [vmem:[%s356 + $0x84] sm:$0xff]
        %v4334 = vld [vmem:[%s356 + $0x8c] sm:$0xf]
        %v4335 = vld [vmem:[%s356 + $0x90] sm:$0xff]
        %v4336 = vld [vmem:[%s356 + $0x98] sm:$0xff]
        %v4337 = vld [vmem:[%s356 + $0xa0] sm:$0xff]
        %v4338 = vld [vmem:[%s356 + $0xa8] sm:$0xff]
        %v4339 = vld [vmem:[%s356 + $0xb0] sm:$0xf]
        %v4340 = vld [vmem:[%s356 + $0xb4] sm:$0xff]
        %v4341 = vld [vmem:[%s356 + $0xbc] sm:$0xff]
        %v4342 = vld [vmem:[%s356 + $0xc4] sm:$0xff]
        %v4343 = vld [vmem:[%s356 + $0xcc] sm:$0xff]
        %v4344 = vld [vmem:[%s356 + $0xd4] sm:$0xf]
        %v4345 = vld [vmem:[%s356 + $0xd8] sm:$0xff]
        %v4346 = vld [vmem:[%s356 + $0xe0] sm:$0xff]
        %v4347 = vld [vmem:[%s356 + $0xe8] sm:$0xff]
        %v4348 = vld [vmem:[%s356 + $0xf0] sm:$0xff]
        %v4349 = vld [vmem:[%s356 + $0xf8] sm:$0xf]
        %v4350 = vld [vmem:[%s356 + $0xfc] sm:$0xff]
        %v4351 = vld [vmem:[%s356 + $0x104] sm:$0xff]
        %v4352 = vld [vmem:[%s356 + $0x10c] sm:$0xff]
        %v4353 = vld [vmem:[%s356 + $0x114] sm:$0xff]
        %v4354 = vld [vmem:[%s356 + $0x11c] sm:$0xf]
        %v4355 = vld [vmem:[%s356 + $0x120] sm:$0xff]
        %v4356 = vld [vmem:[%s356 + $0x128] sm:$0xff]
        %v4357 = vld [vmem:[%s356 + $0x130] sm:$0xff]
        %v4358 = vld [vmem:[%s356 + $0x138] sm:$0xff]
        %v4359 = vld [vmem:[%s356 + $0x140] sm:$0xf]
        %v4360 = vld [vmem:[%s356 + $0x144] sm:$0xff]
        %v4361 = vld [vmem:[%s356 + $0x14c] sm:$0xff]
        %v4362 = vld [vmem:[%s356 + $0x154] sm:$0xff]
        %v4363 = vld [vmem:[%s356 + $0x15c] sm:$0xff]
        %v4364 = vld [vmem:[%s356 + $0x164] sm:$0xf]
        %v4365 = vld [vmem:[%s356 + $0x168] sm:$0xff]
        %v4366 = vld [vmem:[%s356 + $0x170] sm:$0xff]
        %v4367 = vld [vmem:[%s356 + $0x178] sm:$0xff]
        %v4368 = vld [vmem:[%s356 + $0x180] sm:$0xff]
        %v4369 = vld [vmem:[%s356 + $0x188] sm:$0xf]
        %v4370 = vld [vmem:[%s356 + $0x18c] sm:$0xff]
        %v4371 = vld [vmem:[%s356 + $0x194] sm:$0xff]
        %v4372 = vld [vmem:[%s356 + $0x19c] sm:$0xff]
        %v4373 = vld [vmem:[%s356 + $0x1a4] sm:$0xff]
        %v4374 = vld [vmem:[%s356 + $0x1ac] sm:$0xf]
        %v4375 = vld [vmem:[%s356 + $0x1b0] sm:$0xff]
        %v4376 = vld [vmem:[%s356 + $0x1b8] sm:$0xff]
        %v4377 = vld [vmem:[%s356 + $0x1c0] sm:$0xff]
        %v4378 = vld [vmem:[%s356 + $0x1c8] sm:$0xff]
        %v4379 = vld [vmem:[%s356 + $0x1d0] sm:$0xf]
        %v4380 = vld [vmem:[%s356 + $0x1d4] sm:$0xff]
        %v4381 = vld [vmem:[%s356 + $0x1dc] sm:$0xff]
        %v4382 = vld [vmem:[%s356 + $0x1e4] sm:$0xff]
        %v4383 = vld [vmem:[%s356 + $0x1ec] sm:$0xff]
        %v4384 = vld [vmem:[%s356 + $0x1f4] sm:$0xf]
        %v4385 = vld [vmem:[%s356 + $0x1f8] sm:$0xff]
        %v4386 = vld [vmem:[%s356 + $0x200] sm:$0xff]
        %v4387 = vld [vmem:[%s356 + $0x208] sm:$0xff]
        %v4388 = vld [vmem:[%s356 + $0x210] sm:$0xff]
        %v4389 = vld [vmem:[%s356 + $0x218] sm:$0xf]
        %v4390 = vld [vmem:[%s356 + $0x21c] sm:$0xff]
        %v4391 = vld [vmem:[%s356 + $0x224] sm:$0xff]
        %v4392 = vld [vmem:[%s356 + $0x22c] sm:$0xff]
        %v4393 = vld [vmem:[%s356 + $0x234] sm:$0xff]
        %v4394 = vld [vmem:[%s356 + $0x23c] sm:$0xf]
        %v4395 = vld [vmem:[#allocation2] sm:$0xff]
        %v4396 = vld [vmem:[#allocation2 + $0x8] sm:$0xff]
        %v4397 = vld [vmem:[#allocation2 + $0x10] sm:$0xff]
        %v4398 = vld [vmem:[#allocation2 + $0x18] sm:$0xff]
        %v4399 = vld [vmem:[#allocation2 + $0x20] sm:$0xff]
        %v4400 = vld [vmem:[#allocation2 + $0x28] sm:$0xff]
        %v4401 = vld [vmem:[#allocation2 + $0x30] sm:$0xff]
        %v4402 = vld [vmem:[#allocation2 + $0x38] sm:$0xff]
        %v4403 = vld [vmem:[#allocation2 + $0x40] sm:$0xff]
        %v4404 = vld [vmem:[#allocation2 + $0x48] sm:$0xff]
        %v4405 = vld [vmem:[#allocation2 + $0x50] sm:$0xff]
        %v4406 = vld [vmem:[#allocation2 + $0x58] sm:$0xff]
        %v4407 = vld [vmem:[#allocation2 + $0x60] sm:$0xff]
        %v4408 = vld [vmem:[#allocation2 + $0x68] sm:$0xff]
        %v4409 = vld [vmem:[#allocation2 + $0x70] sm:$0xff]
        %v4410 = vld [vmem:[#allocation2 + $0x78] sm:$0xff]
        %v4411 = vld [vmem:[#allocation2 + $0x80] sm:$0xff]
        %v4412 = vld [vmem:[#allocation2 + $0x88] sm:$0xff]
        %v4413 = vld [vmem:[#allocation2 + $0x90] sm:$0xff]
        %v4414 = vld [vmem:[#allocation2 + $0x98] sm:$0xff]
        %v4415 = vld [vmem:[#allocation2 + $0xa0] sm:$0xff]
        %v4416 = vld [vmem:[#allocation2 + $0xa8] sm:$0xff]
        %v4417 = vld [vmem:[#allocation2 + $0xb0] sm:$0xff]
        %v4418 = vld [vmem:[#allocation2 + $0xb8] sm:$0xff]
        %v4419 = vld [vmem:[#allocation2 + $0xc0] sm:$0xff]
        %v4420 = vld [vmem:[#allocation2 + $0xc8] sm:$0xff]
        %v4421 = vld [vmem:[#allocation2 + $0xd0] sm:$0xff]
        %v4422 = vld [vmem:[#allocation2 + $0xd8] sm:$0xff]
        %v4423 = vld [vmem:[#allocation2 + $0xe0] sm:$0xff]
        %v4424 = vld [vmem:[#allocation2 + $0xe8] sm:$0xff]
        %v4425 = vld [vmem:[#allocation2 + $0xf0] sm:$0xff]
        %v4426 = vld [vmem:[#allocation2 + $0xf8] sm:$0xff]
        %v4427 = vld [vmem:[#allocation2 + $0x100] sm:$0xff]
        %v4428 = vld [vmem:[#allocation2 + $0x108] sm:$0xff]
        %v4429 = vld [vmem:[#allocation2 + $0x110] sm:$0xff]
        %v4430 = vld [vmem:[#allocation2 + $0x118] sm:$0xff]
        %v4431 = vld [vmem:[#allocation2 + $0x120] sm:$0xff]
        %v4432 = vld [vmem:[#allocation2 + $0x128] sm:$0xff]
        %v4433 = vld [vmem:[#allocation2 + $0x130] sm:$0xff]
        %v4434 = vld [vmem:[#allocation2 + $0x138] sm:$0xff]
        %v4435 = vld [vmem:[#allocation2 + $0x140] sm:$0xff]
        %v4436 = vld [vmem:[#allocation2 + $0x148] sm:$0xff]
        %v4437 = vld [vmem:[#allocation2 + $0x150] sm:$0xff]
        %v4438 = vld [vmem:[#allocation2 + $0x158] sm:$0xff]
        %v4439 = vld [vmem:[#allocation2 + $0x160] sm:$0xff]
        %v4440 = vld [vmem:[#allocation2 + $0x168] sm:$0xff]
        %v4441 = vld [vmem:[#allocation2 + $0x170] sm:$0xff]
        %v4442 = vld [vmem:[#allocation2 + $0x178] sm:$0xff]
        %v4443 = vld [vmem:[#allocation2 + $0x180] sm:$0xff]
        %v4444 = vld [vmem:[#allocation2 + $0x188] sm:$0xff]
        %v4445 = vld [vmem:[#allocation2 + $0x190] sm:$0xff]
        %v4446 = vld [vmem:[#allocation2 + $0x198] sm:$0xff]
        %v4447 = vld [vmem:[#allocation2 + $0x1a0] sm:$0xff]
        %v4448 = vld [vmem:[#allocation2 + $0x1a8] sm:$0xff]
        %v4449 = vld [vmem:[#allocation2 + $0x1b0] sm:$0xff]
        %v4450 = vld [vmem:[#allocation2 + $0x1b8] sm:$0xff]
        %v4451 = vld [vmem:[#allocation2 + $0x1c0] sm:$0xff]
        %v4452 = vld [vmem:[#allocation2 + $0x1c8] sm:$0xff]
        %v4453 = vld [vmem:[#allocation2 + $0x1d0] sm:$0xff]
        %v4454 = vld [vmem:[#allocation2 + $0x1d8] sm:$0xff]
        %v4455 = vld [vmem:[#allocation2 + $0x1e0] sm:$0xff]
        %v4456 = vld [vmem:[#allocation2 + $0x1e8] sm:$0xff]
        %v4457 = vld [vmem:[#allocation2 + $0x1f0] sm:$0xff]
        %v4458 = vld [vmem:[#allocation2 + $0x1f8] sm:$0xff]
        %v4459 = vld [vmem:[#allocation2 + $0x200] sm:$0xff]
        %v4460 = vld [vmem:[#allocation2 + $0x208] sm:$0xff]
        %v4461 = vld [vmem:[#allocation2 + $0x210] sm:$0xff]
        %v4462 = vld [vmem:[#allocation2 + $0x218] sm:$0xff]
        %v4463 = vld [vmem:[#allocation2 + $0x220] sm:$0xff]
        %v4464 = vld [vmem:[#allocation2 + $0x228] sm:$0xff]
        %v4465 = vld [vmem:[#allocation2 + $0x230] sm:$0xff]
        %v4466 = vld [vmem:[#allocation2 + $0x238] sm:$0xff]
        %v4467 = vld [vmem:[#allocation2 + $0x240] sm:$0xff]
        %v4468 = vld [vmem:[#allocation2 + $0x248] sm:$0xff]
        %v4469 = vld [vmem:[#allocation2 + $0x250] sm:$0xff]
        %v4470 = vld [vmem:[#allocation2 + $0x258] sm:$0xff]
        %v4471 = vld [vmem:[#allocation2 + $0x260] sm:$0xff]
        %v4472 = vld [vmem:[#allocation2 + $0x268] sm:$0xff]
        %v4473 = vld [vmem:[#allocation2 + $0x270] sm:$0xff]
        %v4474 = vld [vmem:[#allocation2 + $0x278] sm:$0xff]
        %v4475 = vld [vmem:[#allocation2 + $0x280] sm:$0xff]
        %v4476 = vld [vmem:[#allocation2 + $0x288] sm:$0xff]
        %v4477 = vld [vmem:[#allocation2 + $0x290] sm:$0xff]
        %v4478 = vld [vmem:[#allocation2 + $0x298] sm:$0xff]
        %v4479 = vld [vmem:[#allocation2 + $0x2a0] sm:$0xff]
        %v4480 = vld [vmem:[#allocation2 + $0x2a8] sm:$0xff]
        %v4481 = vld [vmem:[#allocation2 + $0x2b0] sm:$0xff]
        %v4482 = vld [vmem:[#allocation2 + $0x2b8] sm:$0xff]
        %v4483 = vld [vmem:[#allocation2 + $0x2c0] sm:$0xff]
        %v4484 = vld [vmem:[#allocation2 + $0x2c8] sm:$0xff]
        %v4485 = vld [vmem:[#allocation2 + $0x2d0] sm:$0xff]
        %v4486 = vld [vmem:[#allocation2 + $0x2d8] sm:$0xff]
        %v4487 = vld [vmem:[#allocation2 + $0x2e0] sm:$0xff]
        %v4488 = vld [vmem:[#allocation2 + $0x2e8] sm:$0xff]
        %v4489 = vld [vmem:[#allocation2 + $0x2f0] sm:$0xff]
        %v4490 = vld [vmem:[#allocation2 + $0x2f8] sm:$0xff]
        %v4491 = vld [vmem:[#allocation2 + $0x300] sm:$0xff]
        %v4492 = vld [vmem:[#allocation2 + $0x308] sm:$0xff]
        %v4493 = vld [vmem:[#allocation2 + $0x310] sm:$0xff]
        %v4494 = vld [vmem:[#allocation2 + $0x318] sm:$0xff]
        %v4495 = vld [vmem:[#allocation2 + $0x320] sm:$0xff]
        %v4496 = vld [vmem:[#allocation2 + $0x328] sm:$0xff]
        %v4497 = vld [vmem:[#allocation2 + $0x330] sm:$0xff]
        %v4498 = vld [vmem:[#allocation2 + $0x338] sm:$0xff]
        %v4499 = vld [vmem:[#allocation2 + $0x340] sm:$0xff]
        %v4500 = vld [vmem:[#allocation2 + $0x348] sm:$0xff]
        %v4501 = vld [vmem:[#allocation2 + $0x350] sm:$0xff]
        %v4502 = vld [vmem:[#allocation2 + $0x358] sm:$0xff]
        %v4503 = vld [vmem:[#allocation2 + $0x360] sm:$0xff]
        %v4504 = vld [vmem:[#allocation2 + $0x368] sm:$0xff]
        %v4505 = vld [vmem:[#allocation2 + $0x370] sm:$0xff]
        %v4506 = vld [vmem:[#allocation2 + $0x378] sm:$0xff]
        %v4507 = vld [vmem:[#allocation2 + $0x380] sm:$0xff]
        %v4508 = vld [vmem:[#allocation2 + $0x388] sm:$0xff]
        %v4509 = vld [vmem:[#allocation2 + $0x390] sm:$0xff]
        %v4510 = vld [vmem:[#allocation2 + $0x398] sm:$0xff]
        %v4511 = vld [vmem:[#allocation2 + $0x3a0] sm:$0xff]
        %v4512 = vld [vmem:[#allocation2 + $0x3a8] sm:$0xff]
        %v4513 = vld [vmem:[#allocation2 + $0x3b0] sm:$0xff]
        %v4514 = vld [vmem:[#allocation2 + $0x3b8] sm:$0xff]
        %v4515 = vld [vmem:[#allocation2 + $0x3c0] sm:$0xff]
        %v4516 = vld [vmem:[#allocation2 + $0x3c8] sm:$0xff]
        %v4517 = vld [vmem:[#allocation2 + $0x3d0] sm:$0xff]
        %v4518 = vld [vmem:[#allocation2 + $0x3d8] sm:$0xff]
        %v4519 = vld [vmem:[#allocation2 + $0x3e0] sm:$0xff]
        %v4520 = vld [vmem:[#allocation2 + $0x3e8] sm:$0xff]
        %v4521 = vld [vmem:[#allocation2 + $0x3f0] sm:$0xff]
        %v4522 = vld [vmem:[#allocation2 + $0x3f8] sm:$0xff]
        %v4523 = vld [vmem:[#allocation2 + $0x400] sm:$0xff]
        %v4524 = vld [vmem:[#allocation2 + $0x408] sm:$0xff]
        %v4525 = vld [vmem:[#allocation2 + $0x410] sm:$0xff]
        %v4526 = vld [vmem:[#allocation2 + $0x418] sm:$0xff]
        %v4527 = vld [vmem:[#allocation2 + $0x420] sm:$0xff]
        %v4528 = vld [vmem:[#allocation2 + $0x428] sm:$0xff]
        %v4529 = vld [vmem:[#allocation2 + $0x430] sm:$0xff]
        %v4530 = vld [vmem:[#allocation2 + $0x438] sm:$0xff]
        %v4531 = vld [vmem:[#allocation2 + $0x440] sm:$0xff]
        %v4532 = vld [vmem:[#allocation2 + $0x448] sm:$0xff]
        %v4533 = vld [vmem:[#allocation2 + $0x450] sm:$0xff]
        %v4534 = vld [vmem:[#allocation2 + $0x458] sm:$0xff]
        %v4535 = vld [vmem:[#allocation2 + $0x460] sm:$0xff]
        %v4536 = vld [vmem:[#allocation2 + $0x468] sm:$0xff]
        %v4537 = vld [vmem:[#allocation2 + $0x470] sm:$0xff]
        %v4538 = vld [vmem:[#allocation2 + $0x478] sm:$0xff]
        %v4539 = vld [vmem:[%s416] sm:$0xff]
        %v4540 = vld [vmem:[%s416 + $0x8] sm:$0xff]
        %v4541 = vld [vmem:[%s416 + $0x10] sm:$0xff]
        %v4542 = vld [vmem:[%s416 + $0x18] sm:$0xff]
        %v4543 = vld [vmem:[%s416 + $0x20] sm:$0xff]
        %v4544 = vld [vmem:[%s416 + $0x28] sm:$0xff]
        %v4545 = vld [vmem:[%s416 + $0x30] sm:$0xff]
        %v4546 = vld [vmem:[%s416 + $0x38] sm:$0xff]
        %v4547 = vld [vmem:[%s416 + $0x40] sm:$0xff]
        %v4548 = vld [vmem:[%s416 + $0x48] sm:$0xff]
        %v4549 = vld [vmem:[%s416 + $0x50] sm:$0xff]
        %v4550 = vld [vmem:[%s416 + $0x58] sm:$0xff]
        %v4551 = vld [vmem:[%s416 + $0x60] sm:$0xff]
        %v4552 = vld [vmem:[%s416 + $0x68] sm:$0xff]
        %v4553 = vld [vmem:[%s416 + $0x70] sm:$0xff]
        %v4554 = vld [vmem:[%s416 + $0x78] sm:$0xff]
        %4556 = vset.pattern.permute.xlu0 0
        %4557 = vperm.xlu0 %4556, %v4539
        %v4558 = vpop.permute.xlu0 %4557
        %4561 = vset.pattern.permute.xlu0 0
        %4562 = vperm.xlu0 %4561, %v4540
        %v4563 = vpop.permute.xlu0 %4562
        %4566 = vset.pattern.permute.xlu0 0
        %4567 = vperm.xlu0 %4566, %v4541
        %v4568 = vpop.permute.xlu0 %4567
        %4571 = vset.pattern.permute.xlu0 0
        %4572 = vperm.xlu0 %4571, %v4542
        %v4573 = vpop.permute.xlu0 %4572
        %4576 = vset.pattern.permute.xlu0 0
        %4577 = vperm.xlu0 %4576, %v4543
        %v4578 = vpop.permute.xlu0 %4577
        %4581 = vset.pattern.permute.xlu0 0
        %4582 = vperm.xlu0 %4581, %v4544
        %v4583 = vpop.permute.xlu0 %4582
        %4586 = vset.pattern.permute.xlu0 0
        %4587 = vperm.xlu0 %4586, %v4545
        %v4588 = vpop.permute.xlu0 %4587
        %4591 = vset.pattern.permute.xlu0 0
        %4592 = vperm.xlu0 %4591, %v4546
        %v4593 = vpop.permute.xlu0 %4592
        %4596 = vset.pattern.permute.xlu0 0
        %4597 = vperm.xlu0 %4596, %v4547
        %v4598 = vpop.permute.xlu0 %4597
        %4601 = vset.pattern.permute.xlu0 0
        %4602 = vperm.xlu0 %4601, %v4548
        %v4603 = vpop.permute.xlu0 %4602
        %4606 = vset.pattern.permute.xlu0 0
        %4607 = vperm.xlu0 %4606, %v4549
        %v4608 = vpop.permute.xlu0 %4607
        %4611 = vset.pattern.permute.xlu0 0
        %4612 = vperm.xlu0 %4611, %v4550
        %v4613 = vpop.permute.xlu0 %4612
        %4616 = vset.pattern.permute.xlu0 0
        %4617 = vperm.xlu0 %4616, %v4551
        %v4618 = vpop.permute.xlu0 %4617
        %4621 = vset.pattern.permute.xlu0 0
        %4622 = vperm.xlu0 %4621, %v4552
        %v4623 = vpop.permute.xlu0 %4622
        %4626 = vset.pattern.permute.xlu0 0
        %4627 = vperm.xlu0 %4626, %v4553
        %v4628 = vpop.permute.xlu0 %4627
        %4631 = vset.pattern.permute.xlu0 0
        %4632 = vperm.xlu0 %4631, %v4554
        %v4633 = vpop.permute.xlu0 %4632
        %v4715 = vunpack.c.l.b16 %v4315
        %v4716 = vunpack.c.h.b16 %v4315
        %v4717 = vunpack.c.l.b16 %v4316
        %v4718 = vunpack.c.h.b16 %v4316
        %v4719 = vunpack.c.l.b16 %v4317
        %v4720 = vunpack.c.h.b16 %v4317
        %v4721 = vunpack.c.l.b16 %v4318
        %v4722 = vunpack.c.h.b16 %v4318
        %v4723 = vunpack.c.l.b16 %v4319
        %v4724 = vunpack.c.l.b16 %v4320
        %v4725 = vunpack.c.h.b16 %v4320
        %v4726 = vunpack.c.l.b16 %v4321
        %v4727 = vunpack.c.h.b16 %v4321
        %v4728 = vunpack.c.l.b16 %v4322
        %v4729 = vunpack.c.h.b16 %v4322
        %v4730 = vunpack.c.l.b16 %v4323
        %v4731 = vunpack.c.h.b16 %v4323
        %v4732 = vunpack.c.l.b16 %v4324
        %v4733 = vunpack.c.l.b16 %v4325
        %v4734 = vunpack.c.h.b16 %v4325
        %v4735 = vunpack.c.l.b16 %v4326
        %v4736 = vunpack.c.h.b16 %v4326
        %v4737 = vunpack.c.l.b16 %v4327
        %v4738 = vunpack.c.h.b16 %v4327
        %v4739 = vunpack.c.l.b16 %v4328
        %v4740 = vunpack.c.h.b16 %v4328
        %v4741 = vunpack.c.l.b16 %v4329
        %v4742 = vunpack.c.l.b16 %v4330
        %v4743 = vunpack.c.h.b16 %v4330
        %v4744 = vunpack.c.l.b16 %v4331
        %v4745 = vunpack.c.h.b16 %v4331
        %v4746 = vunpack.c.l.b16 %v4332
        %v4747 = vunpack.c.h.b16 %v4332
        %v4748 = vunpack.c.l.b16 %v4333
        %v4749 = vunpack.c.h.b16 %v4333
        %v4750 = vunpack.c.l.b16 %v4334
        %v4751 = vunpack.c.l.b16 %v4335
        %v4752 = vunpack.c.h.b16 %v4335
        %v4753 = vunpack.c.l.b16 %v4336
        %v4754 = vunpack.c.h.b16 %v4336
        %v4755 = vunpack.c.l.b16 %v4337
        %v4756 = vunpack.c.h.b16 %v4337
        %v4757 = vunpack.c.l.b16 %v4338
        %v4758 = vunpack.c.h.b16 %v4338
        %v4759 = vunpack.c.l.b16 %v4339
        %v4760 = vunpack.c.l.b16 %v4340
        %v4761 = vunpack.c.h.b16 %v4340
        %v4762 = vunpack.c.l.b16 %v4341
        %v4763 = vunpack.c.h.b16 %v4341
        %v4764 = vunpack.c.l.b16 %v4342
        %v4765 = vunpack.c.h.b16 %v4342
        %v4766 = vunpack.c.l.b16 %v4343
        %v4767 = vunpack.c.h.b16 %v4343
        %v4768 = vunpack.c.l.b16 %v4344
        %v4769 = vunpack.c.l.b16 %v4345
        %v4770 = vunpack.c.h.b16 %v4345
        %v4771 = vunpack.c.l.b16 %v4346
        %v4772 = vunpack.c.h.b16 %v4346
        %v4773 = vunpack.c.l.b16 %v4347
        %v4774 = vunpack.c.h.b16 %v4347
        %v4775 = vunpack.c.l.b16 %v4348
        %v4776 = vunpack.c.h.b16 %v4348
        %v4777 = vunpack.c.l.b16 %v4349
        %v4778 = vunpack.c.l.b16 %v4350
        %v4779 = vunpack.c.h.b16 %v4350
        %v4780 = vunpack.c.l.b16 %v4351
        %v4781 = vunpack.c.h.b16 %v4351
        %v4782 = vunpack.c.l.b16 %v4352
        %v4783 = vunpack.c.h.b16 %v4352
        %v4784 = vunpack.c.l.b16 %v4353
        %v4785 = vunpack.c.h.b16 %v4353
        %v4786 = vunpack.c.l.b16 %v4354
        %v4787 = vunpack.c.l.b16 %v4355
        %v4788 = vunpack.c.h.b16 %v4355
        %v4789 = vunpack.c.l.b16 %v4356
        %v4790 = vunpack.c.h.b16 %v4356
        %v4791 = vunpack.c.l.b16 %v4357
        %v4792 = vunpack.c.h.b16 %v4357
        %v4793 = vunpack.c.l.b16 %v4358
        %v4794 = vunpack.c.h.b16 %v4358
        %v4795 = vunpack.c.l.b16 %v4359
        %v4796 = vunpack.c.l.b16 %v4360
        %v4797 = vunpack.c.h.b16 %v4360
        %v4798 = vunpack.c.l.b16 %v4361
        %v4799 = vunpack.c.h.b16 %v4361
        %v4800 = vunpack.c.l.b16 %v4362
        %v4801 = vunpack.c.h.b16 %v4362
        %v4802 = vunpack.c.l.b16 %v4363
        %v4803 = vunpack.c.h.b16 %v4363
        %v4804 = vunpack.c.l.b16 %v4364
        %v4805 = vunpack.c.l.b16 %v4365
        %v4806 = vunpack.c.h.b16 %v4365
        %v4807 = vunpack.c.l.b16 %v4366
        %v4808 = vunpack.c.h.b16 %v4366
        %v4809 = vunpack.c.l.b16 %v4367
        %v4810 = vunpack.c.h.b16 %v4367
        %v4811 = vunpack.c.l.b16 %v4368
        %v4812 = vunpack.c.h.b16 %v4368
        %v4813 = vunpack.c.l.b16 %v4369
        %v4814 = vunpack.c.l.b16 %v4370
        %v4815 = vunpack.c.h.b16 %v4370
        %v4816 = vunpack.c.l.b16 %v4371
        %v4817 = vunpack.c.h.b16 %v4371
        %v4818 = vunpack.c.l.b16 %v4372
        %v4819 = vunpack.c.h.b16 %v4372
        %v4820 = vunpack.c.l.b16 %v4373
        %v4821 = vunpack.c.h.b16 %v4373
        %v4822 = vunpack.c.l.b16 %v4374
        %v4823 = vunpack.c.l.b16 %v4375
        %v4824 = vunpack.c.h.b16 %v4375
        %v4825 = vunpack.c.l.b16 %v4376
        %v4826 = vunpack.c.h.b16 %v4376
        %v4827 = vunpack.c.l.b16 %v4377
        %v4828 = vunpack.c.h.b16 %v4377
        %v4829 = vunpack.c.l.b16 %v4378
        %v4830 = vunpack.c.h.b16 %v4378
        %v4831 = vunpack.c.l.b16 %v4379
        %v4832 = vunpack.c.l.b16 %v4380
        %v4833 = vunpack.c.h.b16 %v4380
        %v4834 = vunpack.c.l.b16 %v4381
        %v4835 = vunpack.c.h.b16 %v4381
        %v4836 = vunpack.c.l.b16 %v4382
        %v4837 = vunpack.c.h.b16 %v4382
        %v4838 = vunpack.c.l.b16 %v4383
        %v4839 = vunpack.c.h.b16 %v4383
        %v4840 = vunpack.c.l.b16 %v4384
        %v4841 = vunpack.c.l.b16 %v4385
        %v4842 = vunpack.c.h.b16 %v4385
        %v4843 = vunpack.c.l.b16 %v4386
        %v4844 = vunpack.c.h.b16 %v4386
        %v4845 = vunpack.c.l.b16 %v4387
        %v4846 = vunpack.c.h.b16 %v4387
        %v4847 = vunpack.c.l.b16 %v4388
        %v4848 = vunpack.c.h.b16 %v4388
        %v4849 = vunpack.c.l.b16 %v4389
        %v4850 = vunpack.c.l.b16 %v4390
        %v4851 = vunpack.c.h.b16 %v4390
        %v4852 = vunpack.c.l.b16 %v4391
        %v4853 = vunpack.c.h.b16 %v4391
        %v4854 = vunpack.c.l.b16 %v4392
        %v4855 = vunpack.c.h.b16 %v4392
        %v4856 = vunpack.c.l.b16 %v4393
        %v4857 = vunpack.c.h.b16 %v4393
        %v4858 = vunpack.c.l.b16 %v4394
        %v4859 = vpack.c.b16 %v4724, %v4715
        %v4860 = vpack.c.b16 %v4725, %v4716
        %v4861 = vpack.c.b16 %v4726, %v4717
        %v4862 = vpack.c.b16 %v4727, %v4718
        %v4863 = vpack.c.b16 %v4728, %v4719
        %v4864 = vpack.c.b16 %v4729, %v4720
        %v4865 = vpack.c.b16 %v4730, %v4721
        %v4866 = vpack.c.b16 %v4731, %v4722
        %v4867 = vpack.c.b16 %v4732, %v4723
        %v4868 = vpack.c.b16 %v4742, %v4733
        %v4869 = vpack.c.b16 %v4743, %v4734
        %v4870 = vpack.c.b16 %v4744, %v4735
        %v4871 = vpack.c.b16 %v4745, %v4736
        %v4872 = vpack.c.b16 %v4746, %v4737
        %v4873 = vpack.c.b16 %v4747, %v4738
        %v4874 = vpack.c.b16 %v4748, %v4739
        %v4875 = vpack.c.b16 %v4749, %v4740
        %v4876 = vpack.c.b16 %v4750, %v4741
        %v4877 = vpack.c.b16 %v4760, %v4751
        %v4878 = vpack.c.b16 %v4761, %v4752
        %v4879 = vpack.c.b16 %v4762, %v4753
        %v4880 = vpack.c.b16 %v4763, %v4754
        %v4881 = vpack.c.b16 %v4764, %v4755
        %v4882 = vpack.c.b16 %v4765, %v4756
        %v4883 = vpack.c.b16 %v4766, %v4757
        %v4884 = vpack.c.b16 %v4767, %v4758
        %v4885 = vpack.c.b16 %v4768, %v4759
        %v4886 = vpack.c.b16 %v4778, %v4769
        %v4887 = vpack.c.b16 %v4779, %v4770
        %v4888 = vpack.c.b16 %v4780, %v4771
        %v4889 = vpack.c.b16 %v4781, %v4772
        %v4890 = vpack.c.b16 %v4782, %v4773
        %v4891 = vpack.c.b16 %v4783, %v4774
        %v4892 = vpack.c.b16 %v4784, %v4775
        %v4893 = vpack.c.b16 %v4785, %v4776
        %v4894 = vpack.c.b16 %v4786, %v4777
        %v4895 = vpack.c.b16 %v4796, %v4787
        %v4896 = vpack.c.b16 %v4797, %v4788
        %v4897 = vpack.c.b16 %v4798, %v4789
        %v4898 = vpack.c.b16 %v4799, %v4790
        %v4899 = vpack.c.b16 %v4800, %v4791
        %v4900 = vpack.c.b16 %v4801, %v4792
        %v4901 = vpack.c.b16 %v4802, %v4793
        %v4902 = vpack.c.b16 %v4803, %v4794
        %v4903 = vpack.c.b16 %v4804, %v4795
        %v4904 = vpack.c.b16 %v4814, %v4805
        %v4905 = vpack.c.b16 %v4815, %v4806
        %v4906 = vpack.c.b16 %v4816, %v4807
        %v4907 = vpack.c.b16 %v4817, %v4808
        %v4908 = vpack.c.b16 %v4818, %v4809
        %v4909 = vpack.c.b16 %v4819, %v4810
        %v4910 = vpack.c.b16 %v4820, %v4811
        %v4911 = vpack.c.b16 %v4821, %v4812
        %v4912 = vpack.c.b16 %v4822, %v4813
        %v4913 = vpack.c.b16 %v4832, %v4823
        %v4914 = vpack.c.b16 %v4833, %v4824
        %v4915 = vpack.c.b16 %v4834, %v4825
        %v4916 = vpack.c.b16 %v4835, %v4826
        %v4917 = vpack.c.b16 %v4836, %v4827
        %v4918 = vpack.c.b16 %v4837, %v4828
        %v4919 = vpack.c.b16 %v4838, %v4829
        %v4920 = vpack.c.b16 %v4839, %v4830
        %v4921 = vpack.c.b16 %v4840, %v4831
        %v4922 = vpack.c.b16 %v4850, %v4841
        %v4923 = vpack.c.b16 %v4851, %v4842
        %v4924 = vpack.c.b16 %v4852, %v4843
        %v4925 = vpack.c.b16 %v4853, %v4844
        %v4926 = vpack.c.b16 %v4854, %v4845
        %v4927 = vpack.c.b16 %v4855, %v4846
        %v4928 = vpack.c.b16 %v4856, %v4847
        %v4929 = vpack.c.b16 %v4857, %v4848
        %v4930 = vpack.c.b16 %v4858, %v4849
        %v5147 = vunpack.c.l.b16 %v4395
        %v5148 = vunpack.c.h.b16 %v4395
        %v5149 = vunpack.c.l.b16 %v4396
        %v5150 = vunpack.c.h.b16 %v4396
        %v5151 = vunpack.c.l.b16 %v4397
        %v5152 = vunpack.c.h.b16 %v4397
        %v5153 = vunpack.c.l.b16 %v4398
        %v5154 = vunpack.c.h.b16 %v4398
        %v5155 = vunpack.c.l.b16 %v4399
        %v5156 = vunpack.c.h.b16 %v4399
        %v5157 = vunpack.c.l.b16 %v4400
        %v5158 = vunpack.c.h.b16 %v4400
        %v5159 = vunpack.c.l.b16 %v4401
        %v5160 = vunpack.c.h.b16 %v4401
        %v5161 = vunpack.c.l.b16 %v4402
        %v5162 = vunpack.c.h.b16 %v4402
        %v5163 = vunpack.c.l.b16 %v4403
        %v5164 = vunpack.c.h.b16 %v4403
        %v5165 = vunpack.c.l.b16 %v4404
        %v5166 = vunpack.c.h.b16 %v4404
        %v5167 = vunpack.c.l.b16 %v4405
        %v5168 = vunpack.c.h.b16 %v4405
        %v5169 = vunpack.c.l.b16 %v4406
        %v5170 = vunpack.c.h.b16 %v4406
        %v5171 = vunpack.c.l.b16 %v4407
        %v5172 = vunpack.c.h.b16 %v4407
        %v5173 = vunpack.c.l.b16 %v4408
        %v5174 = vunpack.c.h.b16 %v4408
        %v5175 = vunpack.c.l.b16 %v4409
        %v5176 = vunpack.c.h.b16 %v4409
        %v5177 = vunpack.c.l.b16 %v4410
        %v5178 = vunpack.c.h.b16 %v4410
        %v5179 = vunpack.c.l.b16 %v4411
        %v5180 = vunpack.c.h.b16 %v4411
        %v5181 = vunpack.c.l.b16 %v4412
        %v5182 = vunpack.c.h.b16 %v4412
        %v5183 = vunpack.c.l.b16 %v4413
        %v5184 = vunpack.c.h.b16 %v4413
        %v5185 = vunpack.c.l.b16 %v4414
        %v5186 = vunpack.c.h.b16 %v4414
        %v5187 = vunpack.c.l.b16 %v4415
        %v5188 = vunpack.c.h.b16 %v4415
        %v5189 = vunpack.c.l.b16 %v4416
        %v5190 = vunpack.c.h.b16 %v4416
        %v5191 = vunpack.c.l.b16 %v4417
        %v5192 = vunpack.c.h.b16 %v4417
        %v5193 = vunpack.c.l.b16 %v4418
        %v5194 = vunpack.c.h.b16 %v4418
        %v5195 = vunpack.c.l.b16 %v4419
        %v5196 = vunpack.c.h.b16 %v4419
        %v5197 = vunpack.c.l.b16 %v4420
        %v5198 = vunpack.c.h.b16 %v4420
        %v5199 = vunpack.c.l.b16 %v4421
        %v5200 = vunpack.c.h.b16 %v4421
        %v5201 = vunpack.c.l.b16 %v4422
        %v5202 = vunpack.c.h.b16 %v4422
        %v5203 = vunpack.c.l.b16 %v4423
        %v5204 = vunpack.c.h.b16 %v4423
        %v5205 = vunpack.c.l.b16 %v4424
        %v5206 = vunpack.c.h.b16 %v4424
        %v5207 = vunpack.c.l.b16 %v4425
        %v5208 = vunpack.c.h.b16 %v4425
        %v5209 = vunpack.c.l.b16 %v4426
        %v5210 = vunpack.c.h.b16 %v4426
        %v5211 = vunpack.c.l.b16 %v4427
        %v5212 = vunpack.c.h.b16 %v4427
        %v5213 = vunpack.c.l.b16 %v4428
        %v5214 = vunpack.c.h.b16 %v4428
        %v5215 = vunpack.c.l.b16 %v4429
        %v5216 = vunpack.c.h.b16 %v4429
        %v5217 = vunpack.c.l.b16 %v4430
        %v5218 = vunpack.c.h.b16 %v4430
        %v5219 = vunpack.c.l.b16 %v4431
        %v5220 = vunpack.c.h.b16 %v4431
        %v5221 = vunpack.c.l.b16 %v4432
        %v5222 = vunpack.c.h.b16 %v4432
        %v5223 = vunpack.c.l.b16 %v4433
        %v5224 = vunpack.c.h.b16 %v4433
        %v5225 = vunpack.c.l.b16 %v4434
        %v5226 = vunpack.c.h.b16 %v4434
        %v5227 = vunpack.c.l.b16 %v4435
        %v5228 = vunpack.c.h.b16 %v4435
        %v5229 = vunpack.c.l.b16 %v4436
        %v5230 = vunpack.c.h.b16 %v4436
        %v5231 = vunpack.c.l.b16 %v4437
        %v5232 = vunpack.c.h.b16 %v4437
        %v5233 = vunpack.c.l.b16 %v4438
        %v5234 = vunpack.c.h.b16 %v4438
        %v5235 = vunpack.c.l.b16 %v4439
        %v5236 = vunpack.c.h.b16 %v4439
        %v5237 = vunpack.c.l.b16 %v4440
        %v5238 = vunpack.c.h.b16 %v4440
        %v5239 = vunpack.c.l.b16 %v4441
        %v5240 = vunpack.c.h.b16 %v4441
        %v5241 = vunpack.c.l.b16 %v4442
        %v5242 = vunpack.c.h.b16 %v4442
        %v5243 = vunpack.c.l.b16 %v4443
        %v5244 = vunpack.c.h.b16 %v4443
        %v5245 = vunpack.c.l.b16 %v4444
        %v5246 = vunpack.c.h.b16 %v4444
        %v5247 = vunpack.c.l.b16 %v4445
        %v5248 = vunpack.c.h.b16 %v4445
        %v5249 = vunpack.c.l.b16 %v4446
        %v5250 = vunpack.c.h.b16 %v4446
        %v5251 = vunpack.c.l.b16 %v4447
        %v5252 = vunpack.c.h.b16 %v4447
        %v5253 = vunpack.c.l.b16 %v4448
        %v5254 = vunpack.c.h.b16 %v4448
        %v5255 = vunpack.c.l.b16 %v4449
        %v5256 = vunpack.c.h.b16 %v4449
        %v5257 = vunpack.c.l.b16 %v4450
        %v5258 = vunpack.c.h.b16 %v4450
        %v5259 = vunpack.c.l.b16 %v4451
        %v5260 = vunpack.c.h.b16 %v4451
        %v5261 = vunpack.c.l.b16 %v4452
        %v5262 = vunpack.c.h.b16 %v4452
        %v5263 = vunpack.c.l.b16 %v4453
        %v5264 = vunpack.c.h.b16 %v4453
        %v5265 = vunpack.c.l.b16 %v4454
        %v5266 = vunpack.c.h.b16 %v4454
        %v5267 = vunpack.c.l.b16 %v4455
        %v5268 = vunpack.c.h.b16 %v4455
        %v5269 = vunpack.c.l.b16 %v4456
        %v5270 = vunpack.c.h.b16 %v4456
        %v5271 = vunpack.c.l.b16 %v4457
        %v5272 = vunpack.c.h.b16 %v4457
        %v5273 = vunpack.c.l.b16 %v4458
        %v5274 = vunpack.c.h.b16 %v4458
        %v5275 = vunpack.c.l.b16 %v4459
        %v5276 = vunpack.c.h.b16 %v4459
        %v5277 = vunpack.c.l.b16 %v4460
        %v5278 = vunpack.c.h.b16 %v4460
        %v5279 = vunpack.c.l.b16 %v4461
        %v5280 = vunpack.c.h.b16 %v4461
        %v5281 = vunpack.c.l.b16 %v4462
        %v5282 = vunpack.c.h.b16 %v4462
        %v5283 = vunpack.c.l.b16 %v4463
        %v5284 = vunpack.c.h.b16 %v4463
        %v5285 = vunpack.c.l.b16 %v4464
        %v5286 = vunpack.c.h.b16 %v4464
        %v5287 = vunpack.c.l.b16 %v4465
        %v5288 = vunpack.c.h.b16 %v4465
        %v5289 = vunpack.c.l.b16 %v4466
        %v5290 = vunpack.c.h.b16 %v4466
        %v5291 = vunpack.c.l.b16 %v4467
        %v5292 = vunpack.c.h.b16 %v4467
        %v5293 = vunpack.c.l.b16 %v4468
        %v5294 = vunpack.c.h.b16 %v4468
        %v5295 = vunpack.c.l.b16 %v4469
        %v5296 = vunpack.c.h.b16 %v4469
        %v5297 = vunpack.c.l.b16 %v4470
        %v5298 = vunpack.c.h.b16 %v4470
        %v5299 = vunpack.c.l.b16 %v4471
        %v5300 = vunpack.c.h.b16 %v4471
        %v5301 = vunpack.c.l.b16 %v4472
        %v5302 = vunpack.c.h.b16 %v4472
        %v5303 = vunpack.c.l.b16 %v4473
        %v5304 = vunpack.c.h.b16 %v4473
        %v5305 = vunpack.c.l.b16 %v4474
        %v5306 = vunpack.c.h.b16 %v4474
        %v5307 = vunpack.c.l.b16 %v4475
        %v5308 = vunpack.c.h.b16 %v4475
        %v5309 = vunpack.c.l.b16 %v4476
        %v5310 = vunpack.c.h.b16 %v4476
        %v5311 = vunpack.c.l.b16 %v4477
        %v5312 = vunpack.c.h.b16 %v4477
        %v5313 = vunpack.c.l.b16 %v4478
        %v5314 = vunpack.c.h.b16 %v4478
        %v5315 = vunpack.c.l.b16 %v4479
        %v5316 = vunpack.c.h.b16 %v4479
        %v5317 = vunpack.c.l.b16 %v4480
        %v5318 = vunpack.c.h.b16 %v4480
        %v5319 = vunpack.c.l.b16 %v4481
        %v5320 = vunpack.c.h.b16 %v4481
        %v5321 = vunpack.c.l.b16 %v4482
        %v5322 = vunpack.c.h.b16 %v4482
        %v5323 = vunpack.c.l.b16 %v4483
        %v5324 = vunpack.c.h.b16 %v4483
        %v5325 = vunpack.c.l.b16 %v4484
        %v5326 = vunpack.c.h.b16 %v4484
        %v5327 = vunpack.c.l.b16 %v4485
        %v5328 = vunpack.c.h.b16 %v4485
        %v5329 = vunpack.c.l.b16 %v4486
        %v5330 = vunpack.c.h.b16 %v4486
        %v5331 = vunpack.c.l.b16 %v4487
        %v5332 = vunpack.c.h.b16 %v4487
        %v5333 = vunpack.c.l.b16 %v4488
        %v5334 = vunpack.c.h.b16 %v4488
        %v5335 = vunpack.c.l.b16 %v4489
        %v5336 = vunpack.c.h.b16 %v4489
        %v5337 = vunpack.c.l.b16 %v4490
        %v5338 = vunpack.c.h.b16 %v4490
        %v5339 = vunpack.c.l.b16 %v4491
        %v5340 = vunpack.c.h.b16 %v4491
        %v5341 = vunpack.c.l.b16 %v4492
        %v5342 = vunpack.c.h.b16 %v4492
        %v5343 = vunpack.c.l.b16 %v4493
        %v5344 = vunpack.c.h.b16 %v4493
        %v5345 = vunpack.c.l.b16 %v4494
        %v5346 = vunpack.c.h.b16 %v4494
        %v5347 = vunpack.c.l.b16 %v4495
        %v5348 = vunpack.c.h.b16 %v4495
        %v5349 = vunpack.c.l.b16 %v4496
        %v5350 = vunpack.c.h.b16 %v4496
        %v5351 = vunpack.c.l.b16 %v4497
        %v5352 = vunpack.c.h.b16 %v4497
        %v5353 = vunpack.c.l.b16 %v4498
        %v5354 = vunpack.c.h.b16 %v4498
        %v5355 = vunpack.c.l.b16 %v4499
        %v5356 = vunpack.c.h.b16 %v4499
        %v5357 = vunpack.c.l.b16 %v4500
        %v5358 = vunpack.c.h.b16 %v4500
        %v5359 = vunpack.c.l.b16 %v4501
        %v5360 = vunpack.c.h.b16 %v4501
        %v5361 = vunpack.c.l.b16 %v4502
        %v5362 = vunpack.c.h.b16 %v4502
        %v5363 = vunpack.c.l.b16 %v4503
        %v5364 = vunpack.c.h.b16 %v4503
        %v5365 = vunpack.c.l.b16 %v4504
        %v5366 = vunpack.c.h.b16 %v4504
        %v5367 = vunpack.c.l.b16 %v4505
        %v5368 = vunpack.c.h.b16 %v4505
        %v5369 = vunpack.c.l.b16 %v4506
        %v5370 = vunpack.c.h.b16 %v4506
        %v5371 = vunpack.c.l.b16 %v4507
        %v5372 = vunpack.c.h.b16 %v4507
        %v5373 = vunpack.c.l.b16 %v4508
        %v5374 = vunpack.c.h.b16 %v4508
        %v5375 = vunpack.c.l.b16 %v4509
        %v5376 = vunpack.c.h.b16 %v4509
        %v5377 = vunpack.c.l.b16 %v4510
        %v5378 = vunpack.c.h.b16 %v4510
        %v5379 = vunpack.c.l.b16 %v4511
        %v5380 = vunpack.c.h.b16 %v4511
        %v5381 = vunpack.c.l.b16 %v4512
        %v5382 = vunpack.c.h.b16 %v4512
        %v5383 = vunpack.c.l.b16 %v4513
        %v5384 = vunpack.c.h.b16 %v4513
        %v5385 = vunpack.c.l.b16 %v4514
        %v5386 = vunpack.c.h.b16 %v4514
        %v5387 = vunpack.c.l.b16 %v4515
        %v5388 = vunpack.c.h.b16 %v4515
        %v5389 = vunpack.c.l.b16 %v4516
        %v5390 = vunpack.c.h.b16 %v4516
        %v5391 = vunpack.c.l.b16 %v4517
        %v5392 = vunpack.c.h.b16 %v4517
        %v5393 = vunpack.c.l.b16 %v4518
        %v5394 = vunpack.c.h.b16 %v4518
        %v5395 = vunpack.c.l.b16 %v4519
        %v5396 = vunpack.c.h.b16 %v4519
        %v5397 = vunpack.c.l.b16 %v4520
        %v5398 = vunpack.c.h.b16 %v4520
        %v5399 = vunpack.c.l.b16 %v4521
        %v5400 = vunpack.c.h.b16 %v4521
        %v5401 = vunpack.c.l.b16 %v4522
        %v5402 = vunpack.c.h.b16 %v4522
        %v5403 = vunpack.c.l.b16 %v4523
        %v5404 = vunpack.c.h.b16 %v4523
        %v5405 = vunpack.c.l.b16 %v4524
        %v5406 = vunpack.c.h.b16 %v4524
        %v5407 = vunpack.c.l.b16 %v4525
        %v5408 = vunpack.c.h.b16 %v4525
        %v5409 = vunpack.c.l.b16 %v4526
        %v5410 = vunpack.c.h.b16 %v4526
        %v5411 = vunpack.c.l.b16 %v4527
        %v5412 = vunpack.c.h.b16 %v4527
        %v5413 = vunpack.c.l.b16 %v4528
        %v5414 = vunpack.c.h.b16 %v4528
        %v5415 = vunpack.c.l.b16 %v4529
        %v5416 = vunpack.c.h.b16 %v4529
        %v5417 = vunpack.c.l.b16 %v4530
        %v5418 = vunpack.c.h.b16 %v4530
        %v5419 = vunpack.c.l.b16 %v4531
        %v5420 = vunpack.c.h.b16 %v4531
        %v5421 = vunpack.c.l.b16 %v4532
        %v5422 = vunpack.c.h.b16 %v4532
        %v5423 = vunpack.c.l.b16 %v4533
        %v5424 = vunpack.c.h.b16 %v4533
        %v5425 = vunpack.c.l.b16 %v4534
        %v5426 = vunpack.c.h.b16 %v4534
        %v5427 = vunpack.c.l.b16 %v4535
        %v5428 = vunpack.c.h.b16 %v4535
        %v5429 = vunpack.c.l.b16 %v4536
        %v5430 = vunpack.c.h.b16 %v4536
        %v5431 = vunpack.c.l.b16 %v4537
        %v5432 = vunpack.c.h.b16 %v4537
        %v5433 = vunpack.c.l.b16 %v4538
        %v5434 = vunpack.c.h.b16 %v4538
        %v5435 = vpack.c.b16 %v5149, %v5147
        %v5436 = vpack.c.b16 %v5150, %v5148
        %v5437 = vpack.c.b16 %v5153, %v5151
        %v5438 = vpack.c.b16 %v5154, %v5152
        %v5439 = vpack.c.b16 %v5157, %v5155
        %v5440 = vpack.c.b16 %v5158, %v5156
        %v5441 = vpack.c.b16 %v5161, %v5159
        %v5442 = vpack.c.b16 %v5162, %v5160
        %v5443 = vpack.c.b16 %v5165, %v5163
        %v5444 = vpack.c.b16 %v5166, %v5164
        %v5445 = vpack.c.b16 %v5169, %v5167
        %v5446 = vpack.c.b16 %v5170, %v5168
        %v5447 = vpack.c.b16 %v5173, %v5171
        %v5448 = vpack.c.b16 %v5174, %v5172
        %v5449 = vpack.c.b16 %v5177, %v5175
        %v5450 = vpack.c.b16 %v5178, %v5176
        %v5451 = vpack.c.b16 %v5181, %v5179
        %v5452 = vpack.c.b16 %v5182, %v5180
        %v5453 = vpack.c.b16 %v5185, %v5183
        %v5454 = vpack.c.b16 %v5186, %v5184
        %v5455 = vpack.c.b16 %v5189, %v5187
        %v5456 = vpack.c.b16 %v5190, %v5188
        %v5457 = vpack.c.b16 %v5193, %v5191
        %v5458 = vpack.c.b16 %v5194, %v5192
        %v5459 = vpack.c.b16 %v5197, %v5195
        %v5460 = vpack.c.b16 %v5198, %v5196
        %v5461 = vpack.c.b16 %v5201, %v5199
        %v5462 = vpack.c.b16 %v5202, %v5200
        %v5463 = vpack.c.b16 %v5205, %v5203
        %v5464 = vpack.c.b16 %v5206, %v5204
        %v5465 = vpack.c.b16 %v5209, %v5207
        %v5466 = vpack.c.b16 %v5210, %v5208
        %v5467 = vpack.c.b16 %v5213, %v5211
        %v5468 = vpack.c.b16 %v5214, %v5212
        %v5469 = vpack.c.b16 %v5217, %v5215
        %v5470 = vpack.c.b16 %v5218, %v5216
        %v5471 = vpack.c.b16 %v5221, %v5219
        %v5472 = vpack.c.b16 %v5222, %v5220
        %v5473 = vpack.c.b16 %v5225, %v5223
        %v5474 = vpack.c.b16 %v5226, %v5224
        %v5475 = vpack.c.b16 %v5229, %v5227
        %v5476 = vpack.c.b16 %v5230, %v5228
        %v5477 = vpack.c.b16 %v5233, %v5231
        %v5478 = vpack.c.b16 %v5234, %v5232
        %v5479 = vpack.c.b16 %v5237, %v5235
        %v5480 = vpack.c.b16 %v5238, %v5236
        %v5481 = vpack.c.b16 %v5241, %v5239
        %v5482 = vpack.c.b16 %v5242, %v5240
        %v5483 = vpack.c.b16 %v5245, %v5243
        %v5484 = vpack.c.b16 %v5246, %v5244
        %v5485 = vpack.c.b16 %v5249, %v5247
        %v5486 = vpack.c.b16 %v5250, %v5248
        %v5487 = vpack.c.b16 %v5253, %v5251
        %v5488 = vpack.c.b16 %v5254, %v5252
        %v5489 = vpack.c.b16 %v5257, %v5255
        %v5490 = vpack.c.b16 %v5258, %v5256
        %v5491 = vpack.c.b16 %v5261, %v5259
        %v5492 = vpack.c.b16 %v5262, %v5260
        %v5493 = vpack.c.b16 %v5265, %v5263
        %v5494 = vpack.c.b16 %v5266, %v5264
        %v5495 = vpack.c.b16 %v5269, %v5267
        %v5496 = vpack.c.b16 %v5270, %v5268
        %v5497 = vpack.c.b16 %v5273, %v5271
        %v5498 = vpack.c.b16 %v5274, %v5272
        %v5499 = vpack.c.b16 %v5277, %v5275
        %v5500 = vpack.c.b16 %v5278, %v5276
        %v5501 = vpack.c.b16 %v5281, %v5279
        %v5502 = vpack.c.b16 %v5282, %v5280
        %v5503 = vpack.c.b16 %v5285, %v5283
        %v5504 = vpack.c.b16 %v5286, %v5284
        %v5505 = vpack.c.b16 %v5289, %v5287
        %v5506 = vpack.c.b16 %v5290, %v5288
        %v5507 = vpack.c.b16 %v5293, %v5291
        %v5508 = vpack.c.b16 %v5294, %v5292
        %v5509 = vpack.c.b16 %v5297, %v5295
        %v5510 = vpack.c.b16 %v5298, %v5296
        %v5511 = vpack.c.b16 %v5301, %v5299
        %v5512 = vpack.c.b16 %v5302, %v5300
        %v5513 = vpack.c.b16 %v5305, %v5303
        %v5514 = vpack.c.b16 %v5306, %v5304
        %v5515 = vpack.c.b16 %v5309, %v5307
        %v5516 = vpack.c.b16 %v5310, %v5308
        %v5517 = vpack.c.b16 %v5313, %v5311
        %v5518 = vpack.c.b16 %v5314, %v5312
        %v5519 = vpack.c.b16 %v5317, %v5315
        %v5520 = vpack.c.b16 %v5318, %v5316
        %v5521 = vpack.c.b16 %v5321, %v5319
        %v5522 = vpack.c.b16 %v5322, %v5320
        %v5523 = vpack.c.b16 %v5325, %v5323
        %v5524 = vpack.c.b16 %v5326, %v5324
        %v5525 = vpack.c.b16 %v5329, %v5327
        %v5526 = vpack.c.b16 %v5330, %v5328
        %v5527 = vpack.c.b16 %v5333, %v5331
        %v5528 = vpack.c.b16 %v5334, %v5332
        %v5529 = vpack.c.b16 %v5337, %v5335
        %v5530 = vpack.c.b16 %v5338, %v5336
        %v5531 = vpack.c.b16 %v5341, %v5339
        %v5532 = vpack.c.b16 %v5342, %v5340
        %v5533 = vpack.c.b16 %v5345, %v5343
        %v5534 = vpack.c.b16 %v5346, %v5344
        %v5535 = vpack.c.b16 %v5349, %v5347
        %v5536 = vpack.c.b16 %v5350, %v5348
        %v5537 = vpack.c.b16 %v5353, %v5351
        %v5538 = vpack.c.b16 %v5354, %v5352
        %v5539 = vpack.c.b16 %v5357, %v5355
        %v5540 = vpack.c.b16 %v5358, %v5356
        %v5541 = vpack.c.b16 %v5361, %v5359
        %v5542 = vpack.c.b16 %v5362, %v5360
        %v5543 = vpack.c.b16 %v5365, %v5363
        %v5544 = vpack.c.b16 %v5366, %v5364
        %v5545 = vpack.c.b16 %v5369, %v5367
        %v5546 = vpack.c.b16 %v5370, %v5368
        %v5547 = vpack.c.b16 %v5373, %v5371
        %v5548 = vpack.c.b16 %v5374, %v5372
        %v5549 = vpack.c.b16 %v5377, %v5375
        %v5550 = vpack.c.b16 %v5378, %v5376
        %v5551 = vpack.c.b16 %v5381, %v5379
        %v5552 = vpack.c.b16 %v5382, %v5380
        %v5553 = vpack.c.b16 %v5385, %v5383
        %v5554 = vpack.c.b16 %v5386, %v5384
        %v5555 = vpack.c.b16 %v5389, %v5387
        %v5556 = vpack.c.b16 %v5390, %v5388
        %v5557 = vpack.c.b16 %v5393, %v5391
        %v5558 = vpack.c.b16 %v5394, %v5392
        %v5559 = vpack.c.b16 %v5397, %v5395
        %v5560 = vpack.c.b16 %v5398, %v5396
        %v5561 = vpack.c.b16 %v5401, %v5399
        %v5562 = vpack.c.b16 %v5402, %v5400
        %v5563 = vpack.c.b16 %v5405, %v5403
        %v5564 = vpack.c.b16 %v5406, %v5404
        %v5565 = vpack.c.b16 %v5409, %v5407
        %v5566 = vpack.c.b16 %v5410, %v5408
        %v5567 = vpack.c.b16 %v5413, %v5411
        %v5568 = vpack.c.b16 %v5414, %v5412
        %v5569 = vpack.c.b16 %v5417, %v5415
        %v5570 = vpack.c.b16 %v5418, %v5416
        %v5571 = vpack.c.b16 %v5421, %v5419
        %v5572 = vpack.c.b16 %v5422, %v5420
        %v5573 = vpack.c.b16 %v5425, %v5423
        %v5574 = vpack.c.b16 %v5426, %v5424
        %v5575 = vpack.c.b16 %v5429, %v5427
        %v5576 = vpack.c.b16 %v5430, %v5428
        %v5577 = vpack.c.b16 %v5433, %v5431
        %v5578 = vpack.c.b16 %v5434, %v5432
        %5723 = vmatpush.bf16.msra.mxu0 %v5449
        %5724 = vmatpush.bf16.msra.mxu0 %v5447
        %5725 = vmatpush.bf16.msra.mxu0 %v5445
        %5726 = vmatpush.bf16.msra.mxu0 %v5443
        %5727 = vmatpush.bf16.msra.mxu0 %v5441
        %5728 = vmatpush.bf16.msra.mxu0 %v5439
        %5729 = vmatpush.bf16.msra.mxu0 %v5437
        %5730 = vmatpush.bf16.msra.mxu0 %v5435
        %5731 = vmatmul.bf16.gmra.mxu0 %v4859
        %v5732 = vpop.f32.mrf.mxu0
        %v5733 = vadd.f32 %v4558, %v5732
        %v5734 = vpop.f32.mrf.mxu0
        %v5735 = vadd.f32 %v4563, %v5734
        %5736 = vmatmul.bf16.gmra.mxu0 %v4868
        %v5737 = vpop.f32.mrf.mxu0
        %v5738 = vadd.f32 %v4568, %v5737
        %v5739 = vpop.f32.mrf.mxu0
        %v5740 = vadd.f32 %v4573, %v5739
        %5741 = vmatmul.bf16.gmra.mxu0 %v4877
        %v5742 = vpop.f32.mrf.mxu0
        %v5743 = vadd.f32 %v4578, %v5742
        %v5744 = vpop.f32.mrf.mxu0
        %v5745 = vadd.f32 %v4583, %v5744
        %5746 = vmatmul.bf16.gmra.mxu0 %v4886
        %v5747 = vpop.f32.mrf.mxu0
        %v5748 = vadd.f32 %v4588, %v5747
        %v5749 = vpop.f32.mrf.mxu0
        %v5750 = vadd.f32 %v4593, %v5749
        %5751 = vmatmul.bf16.gmra.mxu0 %v4895
        %v5752 = vpop.f32.mrf.mxu0
        %v5753 = vadd.f32 %v4598, %v5752
        %v5754 = vpop.f32.mrf.mxu0
        %v5755 = vadd.f32 %v4603, %v5754
        %5756 = vmatmul.bf16.gmra.mxu0 %v4904
        %v5757 = vpop.f32.mrf.mxu0
        %v5758 = vadd.f32 %v4608, %v5757
        %v5759 = vpop.f32.mrf.mxu0
        %v5760 = vadd.f32 %v4613, %v5759
        %5761 = vmatmul.bf16.gmra.mxu0 %v4913
        %v5762 = vpop.f32.mrf.mxu0
        %v5763 = vadd.f32 %v4618, %v5762
        %v5764 = vpop.f32.mrf.mxu0
        %v5765 = vadd.f32 %v4623, %v5764
        %5766 = vmatmul.bf16.gmra.mxu0 %v4922
        %v5767 = vpop.f32.mrf.mxu0
        %v5768 = vadd.f32 %v4628, %v5767
        %v5769 = vpop.f32.mrf.mxu0
        %v5770 = vadd.f32 %v4633, %v5769
        %5771 = vdwg.mxu0
        %5772 = vmatpush.bf16.msra.mxu0 %v5465
        %5773 = vmatpush.bf16.msra.mxu0 %v5463
        %5774 = vmatpush.bf16.msra.mxu0 %v5461
        %5775 = vmatpush.bf16.msra.mxu0 %v5459
        %5776 = vmatpush.bf16.msra.mxu0 %v5457
        %5777 = vmatpush.bf16.msra.mxu0 %v5455
        %5778 = vmatpush.bf16.msra.mxu0 %v5453
        %5779 = vmatpush.bf16.msra.mxu0 %v5451
        %5780 = vmatmul.bf16.gmra.mxu0 %v4860
        %v5781 = vpop.f32.mrf.mxu0
        %v5782 = vadd.f32 %v5733, %v5781
        %v5783 = vpop.f32.mrf.mxu0
        %v5784 = vadd.f32 %v5735, %v5783
        %5785 = vmatmul.bf16.gmra.mxu0 %v4869
        %v5786 = vpop.f32.mrf.mxu0
        %v5787 = vadd.f32 %v5738, %v5786
        %v5788 = vpop.f32.mrf.mxu0
        %v5789 = vadd.f32 %v5740, %v5788
        %5790 = vmatmul.bf16.gmra.mxu0 %v4878
        %v5791 = vpop.f32.mrf.mxu0
        %v5792 = vadd.f32 %v5743, %v5791
        %v5793 = vpop.f32.mrf.mxu0
        %v5794 = vadd.f32 %v5745, %v5793
        %5795 = vmatmul.bf16.gmra.mxu0 %v4887
        %v5796 = vpop.f32.mrf.mxu0
        %v5797 = vadd.f32 %v5748, %v5796
        %v5798 = vpop.f32.mrf.mxu0
        %v5799 = vadd.f32 %v5750, %v5798
        %5800 = vmatmul.bf16.gmra.mxu0 %v4896
        %v5801 = vpop.f32.mrf.mxu0
        %v5802 = vadd.f32 %v5753, %v5801
        %v5803 = vpop.f32.mrf.mxu0
        %v5804 = vadd.f32 %v5755, %v5803
        %5805 = vmatmul.bf16.gmra.mxu0 %v4905
        %v5806 = vpop.f32.mrf.mxu0
        %v5807 = vadd.f32 %v5758, %v5806
        %v5808 = vpop.f32.mrf.mxu0
        %v5809 = vadd.f32 %v5760, %v5808
        %5810 = vmatmul.bf16.gmra.mxu0 %v4914
        %v5811 = vpop.f32.mrf.mxu0
        %v5812 = vadd.f32 %v5763, %v5811
        %v5813 = vpop.f32.mrf.mxu0
        %v5814 = vadd.f32 %v5765, %v5813
        %5815 = vmatmul.bf16.gmra.mxu0 %v4923
        %v5816 = vpop.f32.mrf.mxu0
        %v5817 = vadd.f32 %v5768, %v5816
        %v5818 = vpop.f32.mrf.mxu0
        %v5819 = vadd.f32 %v5770, %v5818
        %5820 = vdwg.mxu0
        %5821 = vmatpush.bf16.msra.mxu0 %v5481
        %5822 = vmatpush.bf16.msra.mxu0 %v5479
        %5823 = vmatpush.bf16.msra.mxu0 %v5477
        %5824 = vmatpush.bf16.msra.mxu0 %v5475
        %5825 = vmatpush.bf16.msra.mxu0 %v5473
        %5826 = vmatpush.bf16.msra.mxu0 %v5471
        %5827 = vmatpush.bf16.msra.mxu0 %v5469
        %5828 = vmatpush.bf16.msra.mxu0 %v5467
        %5829 = vmatmul.bf16.gmra.mxu0 %v4861
        %v5830 = vpop.f32.mrf.mxu0
        %v5831 = vadd.f32 %v5782, %v5830
        %v5832 = vpop.f32.mrf.mxu0
        %v5833 = vadd.f32 %v5784, %v5832
        %5834 = vmatmul.bf16.gmra.mxu0 %v4870
        %v5835 = vpop.f32.mrf.mxu0
        %v5836 = vadd.f32 %v5787, %v5835
        %v5837 = vpop.f32.mrf.mxu0
        %v5838 = vadd.f32 %v5789, %v5837
        %5839 = vmatmul.bf16.gmra.mxu0 %v4879
        %v5840 = vpop.f32.mrf.mxu0
        %v5841 = vadd.f32 %v5792, %v5840
        %v5842 = vpop.f32.mrf.mxu0
        %v5843 = vadd.f32 %v5794, %v5842
        %5844 = vmatmul.bf16.gmra.mxu0 %v4888
        %v5845 = vpop.f32.mrf.mxu0
        %v5846 = vadd.f32 %v5797, %v5845
        %v5847 = vpop.f32.mrf.mxu0
        %v5848 = vadd.f32 %v5799, %v5847
        %5849 = vmatmul.bf16.gmra.mxu0 %v4897
        %v5850 = vpop.f32.mrf.mxu0
        %v5851 = vadd.f32 %v5802, %v5850
        %v5852 = vpop.f32.mrf.mxu0
        %v5853 = vadd.f32 %v5804, %v5852
        %5854 = vmatmul.bf16.gmra.mxu0 %v4906
        %v5855 = vpop.f32.mrf.mxu0
        %v5856 = vadd.f32 %v5807, %v5855
        %v5857 = vpop.f32.mrf.mxu0
        %v5858 = vadd.f32 %v5809, %v5857
        %5859 = vmatmul.bf16.gmra.mxu0 %v4915
        %v5860 = vpop.f32.mrf.mxu0
        %v5861 = vadd.f32 %v5812, %v5860
        %v5862 = vpop.f32.mrf.mxu0
        %v5863 = vadd.f32 %v5814, %v5862
        %5864 = vmatmul.bf16.gmra.mxu0 %v4924
        %v5865 = vpop.f32.mrf.mxu0
        %v5866 = vadd.f32 %v5817, %v5865
        %v5867 = vpop.f32.mrf.mxu0
        %v5868 = vadd.f32 %v5819, %v5867
        %5869 = vdwg.mxu0
        %5870 = vmatpush.bf16.msra.mxu0 %v5497
        %5871 = vmatpush.bf16.msra.mxu0 %v5495
        %5872 = vmatpush.bf16.msra.mxu0 %v5493
        %5873 = vmatpush.bf16.msra.mxu0 %v5491
        %5874 = vmatpush.bf16.msra.mxu0 %v5489
        %5875 = vmatpush.bf16.msra.mxu0 %v5487
        %5876 = vmatpush.bf16.msra.mxu0 %v5485
        %5877 = vmatpush.bf16.msra.mxu0 %v5483
        %5878 = vmatmul.bf16.gmra.mxu0 %v4862
        %v5879 = vpop.f32.mrf.mxu0
        %v5880 = vadd.f32 %v5831, %v5879
        %v5881 = vpop.f32.mrf.mxu0
        %v5882 = vadd.f32 %v5833, %v5881
        %5883 = vmatmul.bf16.gmra.mxu0 %v4871
        %v5884 = vpop.f32.mrf.mxu0
        %v5885 = vadd.f32 %v5836, %v5884
        %v5886 = vpop.f32.mrf.mxu0
        %v5887 = vadd.f32 %v5838, %v5886
        %5888 = vmatmul.bf16.gmra.mxu0 %v4880
        %v5889 = vpop.f32.mrf.mxu0
        %v5890 = vadd.f32 %v5841, %v5889
        %v5891 = vpop.f32.mrf.mxu0
        %v5892 = vadd.f32 %v5843, %v5891
        %5893 = vmatmul.bf16.gmra.mxu0 %v4889
        %v5894 = vpop.f32.mrf.mxu0
        %v5895 = vadd.f32 %v5846, %v5894
        %v5896 = vpop.f32.mrf.mxu0
        %v5897 = vadd.f32 %v5848, %v5896
        %5898 = vmatmul.bf16.gmra.mxu0 %v4898
        %v5899 = vpop.f32.mrf.mxu0
        %v5900 = vadd.f32 %v5851, %v5899
        %v5901 = vpop.f32.mrf.mxu0
        %v5902 = vadd.f32 %v5853, %v5901
        %5903 = vmatmul.bf16.gmra.mxu0 %v4907
        %v5904 = vpop.f32.mrf.mxu0
        %v5905 = vadd.f32 %v5856, %v5904
        %v5906 = vpop.f32.mrf.mxu0
        %v5907 = vadd.f32 %v5858, %v5906
        %5908 = vmatmul.bf16.gmra.mxu0 %v4916
        %v5909 = vpop.f32.mrf.mxu0
        %v5910 = vadd.f32 %v5861, %v5909
        %v5911 = vpop.f32.mrf.mxu0
        %v5912 = vadd.f32 %v5863, %v5911
        %5913 = vmatmul.bf16.gmra.mxu0 %v4925
        %v5914 = vpop.f32.mrf.mxu0
        %v5915 = vadd.f32 %v5866, %v5914
        %v5916 = vpop.f32.mrf.mxu0
        %v5917 = vadd.f32 %v5868, %v5916
        %5918 = vdwg.mxu0
        %5919 = vmatpush.bf16.msra.mxu0 %v5513
        %5920 = vmatpush.bf16.msra.mxu0 %v5511
        %5921 = vmatpush.bf16.msra.mxu0 %v5509
        %5922 = vmatpush.bf16.msra.mxu0 %v5507
        %5923 = vmatpush.bf16.msra.mxu0 %v5505
        %5924 = vmatpush.bf16.msra.mxu0 %v5503
        %5925 = vmatpush.bf16.msra.mxu0 %v5501
        %5926 = vmatpush.bf16.msra.mxu0 %v5499
        %5927 = vmatmul.bf16.gmra.mxu0 %v4863
        %v5928 = vpop.f32.mrf.mxu0
        %v5929 = vadd.f32 %v5880, %v5928
        %v5930 = vpop.f32.mrf.mxu0
        %v5931 = vadd.f32 %v5882, %v5930
        %5932 = vmatmul.bf16.gmra.mxu0 %v4872
        %v5933 = vpop.f32.mrf.mxu0
        %v5934 = vadd.f32 %v5885, %v5933
        %v5935 = vpop.f32.mrf.mxu0
        %v5936 = vadd.f32 %v5887, %v5935
        %5937 = vmatmul.bf16.gmra.mxu0 %v4881
        %v5938 = vpop.f32.mrf.mxu0
        %v5939 = vadd.f32 %v5890, %v5938
        %v5940 = vpop.f32.mrf.mxu0
        %v5941 = vadd.f32 %v5892, %v5940
        %5942 = vmatmul.bf16.gmra.mxu0 %v4890
        %v5943 = vpop.f32.mrf.mxu0
        %v5944 = vadd.f32 %v5895, %v5943
        %v5945 = vpop.f32.mrf.mxu0
        %v5946 = vadd.f32 %v5897, %v5945
        %5947 = vmatmul.bf16.gmra.mxu0 %v4899
        %v5948 = vpop.f32.mrf.mxu0
        %v5949 = vadd.f32 %v5900, %v5948
        %v5950 = vpop.f32.mrf.mxu0
        %v5951 = vadd.f32 %v5902, %v5950
        %5952 = vmatmul.bf16.gmra.mxu0 %v4908
        %v5953 = vpop.f32.mrf.mxu0
        %v5954 = vadd.f32 %v5905, %v5953
        %v5955 = vpop.f32.mrf.mxu0
        %v5956 = vadd.f32 %v5907, %v5955
        %5957 = vmatmul.bf16.gmra.mxu0 %v4917
        %v5958 = vpop.f32.mrf.mxu0
        %v5959 = vadd.f32 %v5910, %v5958
        %v5960 = vpop.f32.mrf.mxu0
        %v5961 = vadd.f32 %v5912, %v5960
        %5962 = vmatmul.bf16.gmra.mxu0 %v4926
        %v5963 = vpop.f32.mrf.mxu0
        %v5964 = vadd.f32 %v5915, %v5963
        %v5965 = vpop.f32.mrf.mxu0
        %v5966 = vadd.f32 %v5917, %v5965
        %5967 = vdwg.mxu0
        %5968 = vmatpush.bf16.msra.mxu0 %v5529
        %5969 = vmatpush.bf16.msra.mxu0 %v5527
        %5970 = vmatpush.bf16.msra.mxu0 %v5525
        %5971 = vmatpush.bf16.msra.mxu0 %v5523
        %5972 = vmatpush.bf16.msra.mxu0 %v5521
        %5973 = vmatpush.bf16.msra.mxu0 %v5519
        %5974 = vmatpush.bf16.msra.mxu0 %v5517
        %5975 = vmatpush.bf16.msra.mxu0 %v5515
        %5976 = vmatmul.bf16.gmra.mxu0 %v4864
        %v5977 = vpop.f32.mrf.mxu0
        %v5978 = vadd.f32 %v5929, %v5977
        %v5979 = vpop.f32.mrf.mxu0
        %v5980 = vadd.f32 %v5931, %v5979
        %5981 = vmatmul.bf16.gmra.mxu0 %v4873
        %v5982 = vpop.f32.mrf.mxu0
        %v5983 = vadd.f32 %v5934, %v5982
        %v5984 = vpop.f32.mrf.mxu0
        %v5985 = vadd.f32 %v5936, %v5984
        %5986 = vmatmul.bf16.gmra.mxu0 %v4882
        %v5987 = vpop.f32.mrf.mxu0
        %v5988 = vadd.f32 %v5939, %v5987
        %v5989 = vpop.f32.mrf.mxu0
        %v5990 = vadd.f32 %v5941, %v5989
        %5991 = vmatmul.bf16.gmra.mxu0 %v4891
        %v5992 = vpop.f32.mrf.mxu0
        %v5993 = vadd.f32 %v5944, %v5992
        %v5994 = vpop.f32.mrf.mxu0
        %v5995 = vadd.f32 %v5946, %v5994
        %5996 = vmatmul.bf16.gmra.mxu0 %v4900
        %v5997 = vpop.f32.mrf.mxu0
        %v5998 = vadd.f32 %v5949, %v5997
        %v5999 = vpop.f32.mrf.mxu0
        %v6000 = vadd.f32 %v5951, %v5999
        %6001 = vmatmul.bf16.gmra.mxu0 %v4909
        %v6002 = vpop.f32.mrf.mxu0
        %v6003 = vadd.f32 %v5954, %v6002
        %v6004 = vpop.f32.mrf.mxu0
        %v6005 = vadd.f32 %v5956, %v6004
        %6006 = vmatmul.bf16.gmra.mxu0 %v4918
        %v6007 = vpop.f32.mrf.mxu0
        %v6008 = vadd.f32 %v5959, %v6007
        %v6009 = vpop.f32.mrf.mxu0
        %v6010 = vadd.f32 %v5961, %v6009
        %6011 = vmatmul.bf16.gmra.mxu0 %v4927
        %v6012 = vpop.f32.mrf.mxu0
        %v6013 = vadd.f32 %v5964, %v6012
        %v6014 = vpop.f32.mrf.mxu0
        %v6015 = vadd.f32 %v5966, %v6014
        %6016 = vdwg.mxu0
        %6017 = vmatpush.bf16.msra.mxu0 %v5545
        %6018 = vmatpush.bf16.msra.mxu0 %v5543
        %6019 = vmatpush.bf16.msra.mxu0 %v5541
        %6020 = vmatpush.bf16.msra.mxu0 %v5539
        %6021 = vmatpush.bf16.msra.mxu0 %v5537
        %6022 = vmatpush.bf16.msra.mxu0 %v5535
        %6023 = vmatpush.bf16.msra.mxu0 %v5533
        %6024 = vmatpush.bf16.msra.mxu0 %v5531
        %6025 = vmatmul.bf16.gmra.mxu0 %v4865
        %v6026 = vpop.f32.mrf.mxu0
        %v6027 = vadd.f32 %v5978, %v6026
        %v6028 = vpop.f32.mrf.mxu0
        %v6029 = vadd.f32 %v5980, %v6028
        %6030 = vmatmul.bf16.gmra.mxu0 %v4874
        %v6031 = vpop.f32.mrf.mxu0
        %v6032 = vadd.f32 %v5983, %v6031
        %v6033 = vpop.f32.mrf.mxu0
        %v6034 = vadd.f32 %v5985, %v6033
        %6035 = vmatmul.bf16.gmra.mxu0 %v4883
        %v6036 = vpop.f32.mrf.mxu0
        %v6037 = vadd.f32 %v5988, %v6036
        %v6038 = vpop.f32.mrf.mxu0
        %v6039 = vadd.f32 %v5990, %v6038
        %6040 = vmatmul.bf16.gmra.mxu0 %v4892
        %v6041 = vpop.f32.mrf.mxu0
        %v6042 = vadd.f32 %v5993, %v6041
        %v6043 = vpop.f32.mrf.mxu0
        %v6044 = vadd.f32 %v5995, %v6043
        %6045 = vmatmul.bf16.gmra.mxu0 %v4901
        %v6046 = vpop.f32.mrf.mxu0
        %v6047 = vadd.f32 %v5998, %v6046
        %v6048 = vpop.f32.mrf.mxu0
        %v6049 = vadd.f32 %v6000, %v6048
        %6050 = vmatmul.bf16.gmra.mxu0 %v4910
        %v6051 = vpop.f32.mrf.mxu0
        %v6052 = vadd.f32 %v6003, %v6051
        %v6053 = vpop.f32.mrf.mxu0
        %v6054 = vadd.f32 %v6005, %v6053
        %6055 = vmatmul.bf16.gmra.mxu0 %v4919
        %v6056 = vpop.f32.mrf.mxu0
        %v6057 = vadd.f32 %v6008, %v6056
        %v6058 = vpop.f32.mrf.mxu0
        %v6059 = vadd.f32 %v6010, %v6058
        %6060 = vmatmul.bf16.gmra.mxu0 %v4928
        %v6061 = vpop.f32.mrf.mxu0
        %v6062 = vadd.f32 %v6013, %v6061
        %v6063 = vpop.f32.mrf.mxu0
        %v6064 = vadd.f32 %v6015, %v6063
        %6065 = vdwg.mxu0
        %6066 = vmatpush.bf16.msra.mxu0 %v5561
        %6067 = vmatpush.bf16.msra.mxu0 %v5559
        %6068 = vmatpush.bf16.msra.mxu0 %v5557
        %6069 = vmatpush.bf16.msra.mxu0 %v5555
        %6070 = vmatpush.bf16.msra.mxu0 %v5553
        %6071 = vmatpush.bf16.msra.mxu0 %v5551
        %6072 = vmatpush.bf16.msra.mxu0 %v5549
        %6073 = vmatpush.bf16.msra.mxu0 %v5547
        %6074 = vmatmul.bf16.gmra.mxu0 %v4866
        %v6075 = vpop.f32.mrf.mxu0
        %v6076 = vadd.f32 %v6027, %v6075
        %v6077 = vpop.f32.mrf.mxu0
        %v6078 = vadd.f32 %v6029, %v6077
        %6079 = vmatmul.bf16.gmra.mxu0 %v4875
        %v6080 = vpop.f32.mrf.mxu0
        %v6081 = vadd.f32 %v6032, %v6080
        %v6082 = vpop.f32.mrf.mxu0
        %v6083 = vadd.f32 %v6034, %v6082
        %6084 = vmatmul.bf16.gmra.mxu0 %v4884
        %v6085 = vpop.f32.mrf.mxu0
        %v6086 = vadd.f32 %v6037, %v6085
        %v6087 = vpop.f32.mrf.mxu0
        %v6088 = vadd.f32 %v6039, %v6087
        %6089 = vmatmul.bf16.gmra.mxu0 %v4893
        %v6090 = vpop.f32.mrf.mxu0
        %v6091 = vadd.f32 %v6042, %v6090
        %v6092 = vpop.f32.mrf.mxu0
        %v6093 = vadd.f32 %v6044, %v6092
        %6094 = vmatmul.bf16.gmra.mxu0 %v4902
        %v6095 = vpop.f32.mrf.mxu0
        %v6096 = vadd.f32 %v6047, %v6095
        %v6097 = vpop.f32.mrf.mxu0
        %v6098 = vadd.f32 %v6049, %v6097
        %6099 = vmatmul.bf16.gmra.mxu0 %v4911
        %v6100 = vpop.f32.mrf.mxu0
        %v6101 = vadd.f32 %v6052, %v6100
        %v6102 = vpop.f32.mrf.mxu0
        %v6103 = vadd.f32 %v6054, %v6102
        %6104 = vmatmul.bf16.gmra.mxu0 %v4920
        %v6105 = vpop.f32.mrf.mxu0
        %v6106 = vadd.f32 %v6057, %v6105
        %v6107 = vpop.f32.mrf.mxu0
        %v6108 = vadd.f32 %v6059, %v6107
        %6109 = vmatmul.bf16.gmra.mxu0 %v4929
        %v6110 = vpop.f32.mrf.mxu0
        %v6111 = vadd.f32 %v6062, %v6110
        %v6112 = vpop.f32.mrf.mxu0
        %v6113 = vadd.f32 %v6064, %v6112
        %6114 = vdwg.mxu0
        %6115 = vmatpush.bf16.msra.mxu0 %v5577
        %6116 = vmatpush.bf16.msra.mxu0 %v5575
        %6117 = vmatpush.bf16.msra.mxu0 %v5573
        %6118 = vmatpush.bf16.msra.mxu0 %v5571
        %6119 = vmatpush.bf16.msra.mxu0 %v5569
        %6120 = vmatpush.bf16.msra.mxu0 %v5567
        %6121 = vmatpush.bf16.msra.mxu0 %v5565
        %6122 = vmatpush.bf16.msra.mxu0 %v5563
        %6123 = vmatmul.bf16.gmra.mxu0 %v4867
        %v6124 = vpop.f32.mrf.mxu0
        %v6125 = vadd.f32 %v6076, %v6124
        %v6126 = vpop.f32.mrf.mxu0
        %v6127 = vadd.f32 %v6078, %v6126
        %6128 = vmatmul.bf16.gmra.mxu0 %v4876
        %v6129 = vpop.f32.mrf.mxu0
        %v6130 = vadd.f32 %v6081, %v6129
        %v6131 = vpop.f32.mrf.mxu0
        %v6132 = vadd.f32 %v6083, %v6131
        %6133 = vmatmul.bf16.gmra.mxu0 %v4885
        %v6134 = vpop.f32.mrf.mxu0
        %v6135 = vadd.f32 %v6086, %v6134
        %v6136 = vpop.f32.mrf.mxu0
        %v6137 = vadd.f32 %v6088, %v6136
        %6138 = vmatmul.bf16.gmra.mxu0 %v4894
        %v6139 = vpop.f32.mrf.mxu0
        %v6140 = vadd.f32 %v6091, %v6139
        %v6141 = vpop.f32.mrf.mxu0
        %v6142 = vadd.f32 %v6093, %v6141
        %6143 = vmatmul.bf16.gmra.mxu0 %v4903
        %v6144 = vpop.f32.mrf.mxu0
        %v6145 = vadd.f32 %v6096, %v6144
        %v6146 = vpop.f32.mrf.mxu0
        %v6147 = vadd.f32 %v6098, %v6146
        %6148 = vmatmul.bf16.gmra.mxu0 %v4912
        %v6149 = vpop.f32.mrf.mxu0
        %v6150 = vadd.f32 %v6101, %v6149
        %v6151 = vpop.f32.mrf.mxu0
        %v6152 = vadd.f32 %v6103, %v6151
        %6153 = vmatmul.bf16.gmra.mxu0 %v4921
        %v6154 = vpop.f32.mrf.mxu0
        %v6155 = vadd.f32 %v6106, %v6154
        %v6156 = vpop.f32.mrf.mxu0
        %v6157 = vadd.f32 %v6108, %v6156
        %6158 = vmatmul.bf16.gmra.mxu0 %v4930
        %v6159 = vpop.f32.mrf.mxu0
        %v6160 = vadd.f32 %v6111, %v6159
        %v6161 = vpop.f32.mrf.mxu0
        %v6162 = vadd.f32 %v6113, %v6161
        %6163 = vdwg.mxu0
        %6164 = vmatpush.bf16.msra.mxu0 %v5450
        %6165 = vmatpush.bf16.msra.mxu0 %v5448
        %6166 = vmatpush.bf16.msra.mxu0 %v5446
        %6167 = vmatpush.bf16.msra.mxu0 %v5444
        %6168 = vmatpush.bf16.msra.mxu0 %v5442
        %6169 = vmatpush.bf16.msra.mxu0 %v5440
        %6170 = vmatpush.bf16.msra.mxu0 %v5438
        %6171 = vmatpush.bf16.msra.mxu0 %v5436
        %6172 = vmatmul.bf16.gmra.mxu0 %v4859
        %v6173 = vpop.f32.mrf.mxu0
        %v6174 = vadd.f32 %v4558, %v6173
        %v6175 = vpop.f32.mrf.mxu0
        %v6176 = vadd.f32 %v4563, %v6175
        %6177 = vmatmul.bf16.gmra.mxu0 %v4868
        %v6178 = vpop.f32.mrf.mxu0
        %v6179 = vadd.f32 %v4568, %v6178
        %v6180 = vpop.f32.mrf.mxu0
        %v6181 = vadd.f32 %v4573, %v6180
        %6182 = vmatmul.bf16.gmra.mxu0 %v4877
        %v6183 = vpop.f32.mrf.mxu0
        %v6184 = vadd.f32 %v4578, %v6183
        %v6185 = vpop.f32.mrf.mxu0
        %v6186 = vadd.f32 %v4583, %v6185
        %6187 = vmatmul.bf16.gmra.mxu0 %v4886
        %v6188 = vpop.f32.mrf.mxu0
        %v6189 = vadd.f32 %v4588, %v6188
        %v6190 = vpop.f32.mrf.mxu0
        %v6191 = vadd.f32 %v4593, %v6190
        %6192 = vmatmul.bf16.gmra.mxu0 %v4895
        %v6193 = vpop.f32.mrf.mxu0
        %v6194 = vadd.f32 %v4598, %v6193
        %v6195 = vpop.f32.mrf.mxu0
        %v6196 = vadd.f32 %v4603, %v6195
        %6197 = vmatmul.bf16.gmra.mxu0 %v4904
        %v6198 = vpop.f32.mrf.mxu0
        %v6199 = vadd.f32 %v4608, %v6198
        %v6200 = vpop.f32.mrf.mxu0
        %v6201 = vadd.f32 %v4613, %v6200
        %6202 = vmatmul.bf16.gmra.mxu0 %v4913
        %v6203 = vpop.f32.mrf.mxu0
        %v6204 = vadd.f32 %v4618, %v6203
        %v6205 = vpop.f32.mrf.mxu0
        %v6206 = vadd.f32 %v4623, %v6205
        %6207 = vmatmul.bf16.gmra.mxu0 %v4922
        %v6208 = vpop.f32.mrf.mxu0
        %v6209 = vadd.f32 %v4628, %v6208
        %v6210 = vpop.f32.mrf.mxu0
        %v6211 = vadd.f32 %v4633, %v6210
        %6212 = vdwg.mxu0
        %6213 = vmatpush.bf16.msra.mxu0 %v5466
        %6214 = vmatpush.bf16.msra.mxu0 %v5464
        %6215 = vmatpush.bf16.msra.mxu0 %v5462
        %6216 = vmatpush.bf16.msra.mxu0 %v5460
        %6217 = vmatpush.bf16.msra.mxu0 %v5458
        %6218 = vmatpush.bf16.msra.mxu0 %v5456
        %6219 = vmatpush.bf16.msra.mxu0 %v5454
        %6220 = vmatpush.bf16.msra.mxu0 %v5452
        %6221 = vmatmul.bf16.gmra.mxu0 %v4860
        %v6222 = vpop.f32.mrf.mxu0
        %v6223 = vadd.f32 %v6174, %v6222
        %v6224 = vpop.f32.mrf.mxu0
        %v6225 = vadd.f32 %v6176, %v6224
        %6226 = vmatmul.bf16.gmra.mxu0 %v4869
        %v6227 = vpop.f32.mrf.mxu0
        %v6228 = vadd.f32 %v6179, %v6227
        %v6229 = vpop.f32.mrf.mxu0
        %v6230 = vadd.f32 %v6181, %v6229
        %6231 = vmatmul.bf16.gmra.mxu0 %v4878
        %v6232 = vpop.f32.mrf.mxu0
        %v6233 = vadd.f32 %v6184, %v6232
        %v6234 = vpop.f32.mrf.mxu0
        %v6235 = vadd.f32 %v6186, %v6234
        %6236 = vmatmul.bf16.gmra.mxu0 %v4887
        %v6237 = vpop.f32.mrf.mxu0
        %v6238 = vadd.f32 %v6189, %v6237
        %v6239 = vpop.f32.mrf.mxu0
        %v6240 = vadd.f32 %v6191, %v6239
        %6241 = vmatmul.bf16.gmra.mxu0 %v4896
        %v6242 = vpop.f32.mrf.mxu0
        %v6243 = vadd.f32 %v6194, %v6242
        %v6244 = vpop.f32.mrf.mxu0
        %v6245 = vadd.f32 %v6196, %v6244
        %6246 = vmatmul.bf16.gmra.mxu0 %v4905
        %v6247 = vpop.f32.mrf.mxu0
        %v6248 = vadd.f32 %v6199, %v6247
        %v6249 = vpop.f32.mrf.mxu0
        %v6250 = vadd.f32 %v6201, %v6249
        %6251 = vmatmul.bf16.gmra.mxu0 %v4914
        %v6252 = vpop.f32.mrf.mxu0
        %v6253 = vadd.f32 %v6204, %v6252
        %v6254 = vpop.f32.mrf.mxu0
        %v6255 = vadd.f32 %v6206, %v6254
        %6256 = vmatmul.bf16.gmra.mxu0 %v4923
        %v6257 = vpop.f32.mrf.mxu0
        %v6258 = vadd.f32 %v6209, %v6257
        %v6259 = vpop.f32.mrf.mxu0
        %v6260 = vadd.f32 %v6211, %v6259
        %6261 = vdwg.mxu0
        %6262 = vmatpush.bf16.msra.mxu0 %v5482
        %6263 = vmatpush.bf16.msra.mxu0 %v5480
        %6264 = vmatpush.bf16.msra.mxu0 %v5478
        %6265 = vmatpush.bf16.msra.mxu0 %v5476
        %6266 = vmatpush.bf16.msra.mxu0 %v5474
        %6267 = vmatpush.bf16.msra.mxu0 %v5472
        %6268 = vmatpush.bf16.msra.mxu0 %v5470
        %6269 = vmatpush.bf16.msra.mxu0 %v5468
        %6270 = vmatmul.bf16.gmra.mxu0 %v4861
        %v6271 = vpop.f32.mrf.mxu0
        %v6272 = vadd.f32 %v6223, %v6271
        %v6273 = vpop.f32.mrf.mxu0
        %v6274 = vadd.f32 %v6225, %v6273
        %6275 = vmatmul.bf16.gmra.mxu0 %v4870
        %v6276 = vpop.f32.mrf.mxu0
        %v6277 = vadd.f32 %v6228, %v6276
        %v6278 = vpop.f32.mrf.mxu0
        %v6279 = vadd.f32 %v6230, %v6278
        %6280 = vmatmul.bf16.gmra.mxu0 %v4879
        %v6281 = vpop.f32.mrf.mxu0
        %v6282 = vadd.f32 %v6233, %v6281
        %v6283 = vpop.f32.mrf.mxu0
        %v6284 = vadd.f32 %v6235, %v6283
        %6285 = vmatmul.bf16.gmra.mxu0 %v4888
        %v6286 = vpop.f32.mrf.mxu0
        %v6287 = vadd.f32 %v6238, %v6286
        %v6288 = vpop.f32.mrf.mxu0
        %v6289 = vadd.f32 %v6240, %v6288
        %6290 = vmatmul.bf16.gmra.mxu0 %v4897
        %v6291 = vpop.f32.mrf.mxu0
        %v6292 = vadd.f32 %v6243, %v6291
        %v6293 = vpop.f32.mrf.mxu0
        %v6294 = vadd.f32 %v6245, %v6293
        %6295 = vmatmul.bf16.gmra.mxu0 %v4906
        %v6296 = vpop.f32.mrf.mxu0
        %v6297 = vadd.f32 %v6248, %v6296
        %v6298 = vpop.f32.mrf.mxu0
        %v6299 = vadd.f32 %v6250, %v6298
        %6300 = vmatmul.bf16.gmra.mxu0 %v4915
        %v6301 = vpop.f32.mrf.mxu0
        %v6302 = vadd.f32 %v6253, %v6301
        %v6303 = vpop.f32.mrf.mxu0
        %v6304 = vadd.f32 %v6255, %v6303
        %6305 = vmatmul.bf16.gmra.mxu0 %v4924
        %v6306 = vpop.f32.mrf.mxu0
        %v6307 = vadd.f32 %v6258, %v6306
        %v6308 = vpop.f32.mrf.mxu0
        %v6309 = vadd.f32 %v6260, %v6308
        %6310 = vdwg.mxu0
        %6311 = vmatpush.bf16.msra.mxu0 %v5498
        %6312 = vmatpush.bf16.msra.mxu0 %v5496
        %6313 = vmatpush.bf16.msra.mxu0 %v5494
        %6314 = vmatpush.bf16.msra.mxu0 %v5492
        %6315 = vmatpush.bf16.msra.mxu0 %v5490
        %6316 = vmatpush.bf16.msra.mxu0 %v5488
        %6317 = vmatpush.bf16.msra.mxu0 %v5486
        %6318 = vmatpush.bf16.msra.mxu0 %v5484
        %6319 = vmatmul.bf16.gmra.mxu0 %v4862
        %v6320 = vpop.f32.mrf.mxu0
        %v6321 = vadd.f32 %v6272, %v6320
        %v6322 = vpop.f32.mrf.mxu0
        %v6323 = vadd.f32 %v6274, %v6322
        %6324 = vmatmul.bf16.gmra.mxu0 %v4871
        %v6325 = vpop.f32.mrf.mxu0
        %v6326 = vadd.f32 %v6277, %v6325
        %v6327 = vpop.f32.mrf.mxu0
        %v6328 = vadd.f32 %v6279, %v6327
        %6329 = vmatmul.bf16.gmra.mxu0 %v4880
        %v6330 = vpop.f32.mrf.mxu0
        %v6331 = vadd.f32 %v6282, %v6330
        %v6332 = vpop.f32.mrf.mxu0
        %v6333 = vadd.f32 %v6284, %v6332
        %6334 = vmatmul.bf16.gmra.mxu0 %v4889
        %v6335 = vpop.f32.mrf.mxu0
        %v6336 = vadd.f32 %v6287, %v6335
        %v6337 = vpop.f32.mrf.mxu0
        %v6338 = vadd.f32 %v6289, %v6337
        %6339 = vmatmul.bf16.gmra.mxu0 %v4898
        %v6340 = vpop.f32.mrf.mxu0
        %v6341 = vadd.f32 %v6292, %v6340
        %v6342 = vpop.f32.mrf.mxu0
        %v6343 = vadd.f32 %v6294, %v6342
        %6344 = vmatmul.bf16.gmra.mxu0 %v4907
        %v6345 = vpop.f32.mrf.mxu0
        %v6346 = vadd.f32 %v6297, %v6345
        %v6347 = vpop.f32.mrf.mxu0
        %v6348 = vadd.f32 %v6299, %v6347
        %6349 = vmatmul.bf16.gmra.mxu0 %v4916
        %v6350 = vpop.f32.mrf.mxu0
        %v6351 = vadd.f32 %v6302, %v6350
        %v6352 = vpop.f32.mrf.mxu0
        %v6353 = vadd.f32 %v6304, %v6352
        %6354 = vmatmul.bf16.gmra.mxu0 %v4925
        %v6355 = vpop.f32.mrf.mxu0
        %v6356 = vadd.f32 %v6307, %v6355
        %v6357 = vpop.f32.mrf.mxu0
        %v6358 = vadd.f32 %v6309, %v6357
        %6359 = vdwg.mxu0
        %6360 = vmatpush.bf16.msra.mxu0 %v5514
        %6361 = vmatpush.bf16.msra.mxu0 %v5512
        %6362 = vmatpush.bf16.msra.mxu0 %v5510
        %6363 = vmatpush.bf16.msra.mxu0 %v5508
        %6364 = vmatpush.bf16.msra.mxu0 %v5506
        %6365 = vmatpush.bf16.msra.mxu0 %v5504
        %6366 = vmatpush.bf16.msra.mxu0 %v5502
        %6367 = vmatpush.bf16.msra.mxu0 %v5500
        %6368 = vmatmul.bf16.gmra.mxu0 %v4863
        %v6369 = vpop.f32.mrf.mxu0
        %v6370 = vadd.f32 %v6321, %v6369
        %v6371 = vpop.f32.mrf.mxu0
        %v6372 = vadd.f32 %v6323, %v6371
        %6373 = vmatmul.bf16.gmra.mxu0 %v4872
        %v6374 = vpop.f32.mrf.mxu0
        %v6375 = vadd.f32 %v6326, %v6374
        %v6376 = vpop.f32.mrf.mxu0
        %v6377 = vadd.f32 %v6328, %v6376
        %6378 = vmatmul.bf16.gmra.mxu0 %v4881
        %v6379 = vpop.f32.mrf.mxu0
        %v6380 = vadd.f32 %v6331, %v6379
        %v6381 = vpop.f32.mrf.mxu0
        %v6382 = vadd.f32 %v6333, %v6381
        %6383 = vmatmul.bf16.gmra.mxu0 %v4890
        %v6384 = vpop.f32.mrf.mxu0
        %v6385 = vadd.f32 %v6336, %v6384
        %v6386 = vpop.f32.mrf.mxu0
        %v6387 = vadd.f32 %v6338, %v6386
        %6388 = vmatmul.bf16.gmra.mxu0 %v4899
        %v6389 = vpop.f32.mrf.mxu0
        %v6390 = vadd.f32 %v6341, %v6389
        %v6391 = vpop.f32.mrf.mxu0
        %v6392 = vadd.f32 %v6343, %v6391
        %6393 = vmatmul.bf16.gmra.mxu0 %v4908
        %v6394 = vpop.f32.mrf.mxu0
        %v6395 = vadd.f32 %v6346, %v6394
        %v6396 = vpop.f32.mrf.mxu0
        %v6397 = vadd.f32 %v6348, %v6396
        %6398 = vmatmul.bf16.gmra.mxu0 %v4917
        %v6399 = vpop.f32.mrf.mxu0
        %v6400 = vadd.f32 %v6351, %v6399
        %v6401 = vpop.f32.mrf.mxu0
        %v6402 = vadd.f32 %v6353, %v6401
        %6403 = vmatmul.bf16.gmra.mxu0 %v4926
        %v6404 = vpop.f32.mrf.mxu0
        %v6405 = vadd.f32 %v6356, %v6404
        %v6406 = vpop.f32.mrf.mxu0
        %v6407 = vadd.f32 %v6358, %v6406
        %6408 = vdwg.mxu0
        %6409 = vmatpush.bf16.msra.mxu0 %v5530
        %6410 = vmatpush.bf16.msra.mxu0 %v5528
        %6411 = vmatpush.bf16.msra.mxu0 %v5526
        %6412 = vmatpush.bf16.msra.mxu0 %v5524
        %6413 = vmatpush.bf16.msra.mxu0 %v5522
        %6414 = vmatpush.bf16.msra.mxu0 %v5520
        %6415 = vmatpush.bf16.msra.mxu0 %v5518
        %6416 = vmatpush.bf16.msra.mxu0 %v5516
        %6417 = vmatmul.bf16.gmra.mxu0 %v4864
        %v6418 = vpop.f32.mrf.mxu0
        %v6419 = vadd.f32 %v6370, %v6418
        %v6420 = vpop.f32.mrf.mxu0
        %v6421 = vadd.f32 %v6372, %v6420
        %6422 = vmatmul.bf16.gmra.mxu0 %v4873
        %v6423 = vpop.f32.mrf.mxu0
        %v6424 = vadd.f32 %v6375, %v6423
        %v6425 = vpop.f32.mrf.mxu0
        %v6426 = vadd.f32 %v6377, %v6425
        %6427 = vmatmul.bf16.gmra.mxu0 %v4882
        %v6428 = vpop.f32.mrf.mxu0
        %v6429 = vadd.f32 %v6380, %v6428
        %v6430 = vpop.f32.mrf.mxu0
        %v6431 = vadd.f32 %v6382, %v6430
        %6432 = vmatmul.bf16.gmra.mxu0 %v4891
        %v6433 = vpop.f32.mrf.mxu0
        %v6434 = vadd.f32 %v6385, %v6433
        %v6435 = vpop.f32.mrf.mxu0
        %v6436 = vadd.f32 %v6387, %v6435
        %6437 = vmatmul.bf16.gmra.mxu0 %v4900
        %v6438 = vpop.f32.mrf.mxu0
        %v6439 = vadd.f32 %v6390, %v6438
        %v6440 = vpop.f32.mrf.mxu0
        %v6441 = vadd.f32 %v6392, %v6440
        %6442 = vmatmul.bf16.gmra.mxu0 %v4909
        %v6443 = vpop.f32.mrf.mxu0
        %v6444 = vadd.f32 %v6395, %v6443
        %v6445 = vpop.f32.mrf.mxu0
        %v6446 = vadd.f32 %v6397, %v6445
        %6447 = vmatmul.bf16.gmra.mxu0 %v4918
        %v6448 = vpop.f32.mrf.mxu0
        %v6449 = vadd.f32 %v6400, %v6448
        %v6450 = vpop.f32.mrf.mxu0
        %v6451 = vadd.f32 %v6402, %v6450
        %6452 = vmatmul.bf16.gmra.mxu0 %v4927
        %v6453 = vpop.f32.mrf.mxu0
        %v6454 = vadd.f32 %v6405, %v6453
        %v6455 = vpop.f32.mrf.mxu0
        %v6456 = vadd.f32 %v6407, %v6455
        %6457 = vdwg.mxu0
        %6458 = vmatpush.bf16.msra.mxu0 %v5546
        %6459 = vmatpush.bf16.msra.mxu0 %v5544
        %6460 = vmatpush.bf16.msra.mxu0 %v5542
        %6461 = vmatpush.bf16.msra.mxu0 %v5540
        %6462 = vmatpush.bf16.msra.mxu0 %v5538
        %6463 = vmatpush.bf16.msra.mxu0 %v5536
        %6464 = vmatpush.bf16.msra.mxu0 %v5534
        %6465 = vmatpush.bf16.msra.mxu0 %v5532
        %6466 = vmatmul.bf16.gmra.mxu0 %v4865
        %v6467 = vpop.f32.mrf.mxu0
        %v6468 = vadd.f32 %v6419, %v6467
        %v6469 = vpop.f32.mrf.mxu0
        %v6470 = vadd.f32 %v6421, %v6469
        %6471 = vmatmul.bf16.gmra.mxu0 %v4874
        %v6472 = vpop.f32.mrf.mxu0
        %v6473 = vadd.f32 %v6424, %v6472
        %v6474 = vpop.f32.mrf.mxu0
        %v6475 = vadd.f32 %v6426, %v6474
        %6476 = vmatmul.bf16.gmra.mxu0 %v4883
        %v6477 = vpop.f32.mrf.mxu0
        %v6478 = vadd.f32 %v6429, %v6477
        %v6479 = vpop.f32.mrf.mxu0
        %v6480 = vadd.f32 %v6431, %v6479
        %6481 = vmatmul.bf16.gmra.mxu0 %v4892
        %v6482 = vpop.f32.mrf.mxu0
        %v6483 = vadd.f32 %v6434, %v6482
        %v6484 = vpop.f32.mrf.mxu0
        %v6485 = vadd.f32 %v6436, %v6484
        %6486 = vmatmul.bf16.gmra.mxu0 %v4901
        %v6487 = vpop.f32.mrf.mxu0
        %v6488 = vadd.f32 %v6439, %v6487
        %v6489 = vpop.f32.mrf.mxu0
        %v6490 = vadd.f32 %v6441, %v6489
        %6491 = vmatmul.bf16.gmra.mxu0 %v4910
        %v6492 = vpop.f32.mrf.mxu0
        %v6493 = vadd.f32 %v6444, %v6492
        %v6494 = vpop.f32.mrf.mxu0
        %v6495 = vadd.f32 %v6446, %v6494
        %6496 = vmatmul.bf16.gmra.mxu0 %v4919
        %v6497 = vpop.f32.mrf.mxu0
        %v6498 = vadd.f32 %v6449, %v6497
        %v6499 = vpop.f32.mrf.mxu0
        %v6500 = vadd.f32 %v6451, %v6499
        %6501 = vmatmul.bf16.gmra.mxu0 %v4928
        %v6502 = vpop.f32.mrf.mxu0
        %v6503 = vadd.f32 %v6454, %v6502
        %v6504 = vpop.f32.mrf.mxu0
        %v6505 = vadd.f32 %v6456, %v6504
        %6506 = vdwg.mxu0
        %6507 = vmatpush.bf16.msra.mxu0 %v5562
        %6508 = vmatpush.bf16.msra.mxu0 %v5560
        %6509 = vmatpush.bf16.msra.mxu0 %v5558
        %6510 = vmatpush.bf16.msra.mxu0 %v5556
        %6511 = vmatpush.bf16.msra.mxu0 %v5554
        %6512 = vmatpush.bf16.msra.mxu0 %v5552
        %6513 = vmatpush.bf16.msra.mxu0 %v5550
        %6514 = vmatpush.bf16.msra.mxu0 %v5548
        %6515 = vmatmul.bf16.gmra.mxu0 %v4866
        %v6516 = vpop.f32.mrf.mxu0
        %v6517 = vadd.f32 %v6468, %v6516
        %v6518 = vpop.f32.mrf.mxu0
        %v6519 = vadd.f32 %v6470, %v6518
        %6520 = vmatmul.bf16.gmra.mxu0 %v4875
        %v6521 = vpop.f32.mrf.mxu0
        %v6522 = vadd.f32 %v6473, %v6521
        %v6523 = vpop.f32.mrf.mxu0
        %v6524 = vadd.f32 %v6475, %v6523
        %6525 = vmatmul.bf16.gmra.mxu0 %v4884
        %v6526 = vpop.f32.mrf.mxu0
        %v6527 = vadd.f32 %v6478, %v6526
        %v6528 = vpop.f32.mrf.mxu0
        %v6529 = vadd.f32 %v6480, %v6528
        %6530 = vmatmul.bf16.gmra.mxu0 %v4893
        %v6531 = vpop.f32.mrf.mxu0
        %v6532 = vadd.f32 %v6483, %v6531
        %v6533 = vpop.f32.mrf.mxu0
        %v6534 = vadd.f32 %v6485, %v6533
        %6535 = vmatmul.bf16.gmra.mxu0 %v4902
        %v6536 = vpop.f32.mrf.mxu0
        %v6537 = vadd.f32 %v6488, %v6536
        %v6538 = vpop.f32.mrf.mxu0
        %v6539 = vadd.f32 %v6490, %v6538
        %6540 = vmatmul.bf16.gmra.mxu0 %v4911
        %v6541 = vpop.f32.mrf.mxu0
        %v6542 = vadd.f32 %v6493, %v6541
        %v6543 = vpop.f32.mrf.mxu0
        %v6544 = vadd.f32 %v6495, %v6543
        %6545 = vmatmul.bf16.gmra.mxu0 %v4920
        %v6546 = vpop.f32.mrf.mxu0
        %v6547 = vadd.f32 %v6498, %v6546
        %v6548 = vpop.f32.mrf.mxu0
        %v6549 = vadd.f32 %v6500, %v6548
        %6550 = vmatmul.bf16.gmra.mxu0 %v4929
        %v6551 = vpop.f32.mrf.mxu0
        %v6552 = vadd.f32 %v6503, %v6551
        %v6553 = vpop.f32.mrf.mxu0
        %v6554 = vadd.f32 %v6505, %v6553
        %6555 = vdwg.mxu0
        %6556 = vmatpush.bf16.msra.mxu0 %v5578
        %6557 = vmatpush.bf16.msra.mxu0 %v5576
        %6558 = vmatpush.bf16.msra.mxu0 %v5574
        %6559 = vmatpush.bf16.msra.mxu0 %v5572
        %6560 = vmatpush.bf16.msra.mxu0 %v5570
        %6561 = vmatpush.bf16.msra.mxu0 %v5568
        %6562 = vmatpush.bf16.msra.mxu0 %v5566
        %6563 = vmatpush.bf16.msra.mxu0 %v5564
        %6564 = vmatmul.bf16.gmra.mxu0 %v4867
        %v6565 = vpop.f32.mrf.mxu0
        %v6566 = vadd.f32 %v6517, %v6565
        %v6567 = vpop.f32.mrf.mxu0
        %v6568 = vadd.f32 %v6519, %v6567
        %6569 = vmatmul.bf16.gmra.mxu0 %v4876
        %v6570 = vpop.f32.mrf.mxu0
        %v6571 = vadd.f32 %v6522, %v6570
        %v6572 = vpop.f32.mrf.mxu0
        %v6573 = vadd.f32 %v6524, %v6572
        %6574 = vmatmul.bf16.gmra.mxu0 %v4885
        %v6575 = vpop.f32.mrf.mxu0
        %v6576 = vadd.f32 %v6527, %v6575
        %v6577 = vpop.f32.mrf.mxu0
        %v6578 = vadd.f32 %v6529, %v6577
        %6579 = vmatmul.bf16.gmra.mxu0 %v4894
        %v6580 = vpop.f32.mrf.mxu0
        %v6581 = vadd.f32 %v6532, %v6580
        %v6582 = vpop.f32.mrf.mxu0
        %v6583 = vadd.f32 %v6534, %v6582
        %6584 = vmatmul.bf16.gmra.mxu0 %v4903
        %v6585 = vpop.f32.mrf.mxu0
        %v6586 = vadd.f32 %v6537, %v6585
        %v6587 = vpop.f32.mrf.mxu0
        %v6588 = vadd.f32 %v6539, %v6587
        %6589 = vmatmul.bf16.gmra.mxu0 %v4912
        %v6590 = vpop.f32.mrf.mxu0
        %v6591 = vadd.f32 %v6542, %v6590
        %v6592 = vpop.f32.mrf.mxu0
        %v6593 = vadd.f32 %v6544, %v6592
        %6594 = vmatmul.bf16.gmra.mxu0 %v4921
        %v6595 = vpop.f32.mrf.mxu0
        %v6596 = vadd.f32 %v6547, %v6595
        %v6597 = vpop.f32.mrf.mxu0
        %v6598 = vadd.f32 %v6549, %v6597
        %6599 = vmatmul.bf16.gmra.mxu0 %v4930
        %v6600 = vpop.f32.mrf.mxu0
        %v6601 = vadd.f32 %v6552, %v6600
        %v6602 = vpop.f32.mrf.mxu0
        %v6603 = vadd.f32 %v6554, %v6602
        %6604 = vdwg.mxu0
        %v6605 = vmax.f32 %v6125, 0.0
        %v6606 = vmax.f32 %v6566, 0.0
        %v6607 = vmax.f32 %v6127, 0.0
        %v6608 = vmax.f32 %v6568, 0.0
        %v6609 = vmax.f32 %v6130, 0.0
        %v6610 = vmax.f32 %v6571, 0.0
        %v6611 = vmax.f32 %v6132, 0.0
        %v6612 = vmax.f32 %v6573, 0.0
        %v6613 = vmax.f32 %v6135, 0.0
        %v6614 = vmax.f32 %v6576, 0.0
        %v6615 = vmax.f32 %v6137, 0.0
        %v6616 = vmax.f32 %v6578, 0.0
        %v6617 = vmax.f32 %v6140, 0.0
        %v6618 = vmax.f32 %v6581, 0.0
        %v6619 = vmax.f32 %v6142, 0.0
        %v6620 = vmax.f32 %v6583, 0.0
        %v6621 = vmax.f32 %v6145, 0.0
        %v6622 = vmax.f32 %v6586, 0.0
        %v6623 = vmax.f32 %v6147, 0.0
        %v6624 = vmax.f32 %v6588, 0.0
        %v6625 = vmax.f32 %v6150, 0.0
        %v6626 = vmax.f32 %v6591, 0.0
        %v6627 = vmax.f32 %v6152, 0.0
        %v6628 = vmax.f32 %v6593, 0.0
        %v6629 = vmax.f32 %v6155, 0.0
        %v6630 = vmax.f32 %v6596, 0.0
        %v6631 = vmax.f32 %v6157, 0.0
        %v6632 = vmax.f32 %v6598, 0.0
        %v6633 = vmax.f32 %v6160, 0.0
        %v6634 = vmax.f32 %v6601, 0.0
        %v6635 = vmax.f32 %v6162, 0.0
        %v6636 = vmax.f32 %v6603, 0.0
        %v6637 = vld [vmem:[%s366] sm:$0xf]
        %v6638 = vld [vmem:[%s366 + $0x4] sm:$0xf]
        %v6639 = vld [vmem:[%s366 + $0x8] sm:$0xf]
        %v6640 = vld [vmem:[%s366 + $0xc] sm:$0xf]
        %v6641 = vld [vmem:[%s366 + $0x10] sm:$0xf]
        %v6642 = vld [vmem:[%s366 + $0x14] sm:$0xf]
        %v6643 = vld [vmem:[%s366 + $0x18] sm:$0xf]
        %v6644 = vld [vmem:[%s366 + $0x1c] sm:$0xf]
        %v6645 = vld [vmem:[%s366 + $0x20] sm:$0xf]
        %v6646 = vld [vmem:[%s366 + $0x24] sm:$0xf]
        %v6647 = vld [vmem:[%s366 + $0x28] sm:$0xf]
        %v6648 = vld [vmem:[%s366 + $0x2c] sm:$0xf]
        %v6649 = vld [vmem:[%s366 + $0x30] sm:$0xf]
        %v6650 = vld [vmem:[%s366 + $0x34] sm:$0xf]
        %v6651 = vld [vmem:[%s366 + $0x38] sm:$0xf]
        %v6652 = vld [vmem:[%s366 + $0x3c] sm:$0xf]
        %v6653 = vld [vmem:[%s366 + $0x40] sm:$0xf]
        %v6654 = vld [vmem:[%s366 + $0x44] sm:$0xf]
        %v6655 = vpack.c.bf16 %v6607, %v6605
        %v6656 = vpack.c.bf16 %v6608, %v6606
        %v6657 = vpack.c.bf16 %v6611, %v6609
        %v6658 = vpack.c.bf16 %v6612, %v6610
        %v6659 = vpack.c.bf16 %v6615, %v6613
        %v6660 = vpack.c.bf16 %v6616, %v6614
        %v6661 = vpack.c.bf16 %v6619, %v6617
        %v6662 = vpack.c.bf16 %v6620, %v6618
        %v6663 = vpack.c.bf16 %v6623, %v6621
        %v6664 = vpack.c.bf16 %v6624, %v6622
        %v6665 = vpack.c.bf16 %v6627, %v6625
        %v6666 = vpack.c.bf16 %v6628, %v6626
        %v6667 = vpack.c.bf16 %v6631, %v6629
        %v6668 = vpack.c.bf16 %v6632, %v6630
        %v6669 = vpack.c.bf16 %v6635, %v6633
        %v6670 = vpack.c.bf16 %v6636, %v6634
        %v6689 = vunpack.c.l.b16 %v6637
        %v6690 = vunpack.c.l.b16 %v6638
        %v6691 = vunpack.c.l.b16 %v6639
        %v6692 = vunpack.c.l.b16 %v6640
        %v6693 = vunpack.c.l.b16 %v6641
        %v6694 = vunpack.c.l.b16 %v6642
        %v6695 = vunpack.c.l.b16 %v6643
        %v6696 = vunpack.c.l.b16 %v6644
        %v6697 = vunpack.c.l.b16 %v6645
        %v6698 = vunpack.c.l.b16 %v6646
        %v6699 = vunpack.c.l.b16 %v6647
        %v6700 = vunpack.c.l.b16 %v6648
        %v6701 = vunpack.c.l.b16 %v6649
        %v6702 = vunpack.c.l.b16 %v6650
        %v6703 = vunpack.c.l.b16 %v6651
        %v6704 = vunpack.c.l.b16 %v6652
        %v6705 = vunpack.c.l.b16 %v6653
        %v6706 = vunpack.c.l.b16 %v6654
        %v6707 = vpack.c.b16 %v6690, %v6689
        %v6708 = vpack.c.b16 %v6692, %v6691
        %v6709 = vpack.c.b16 %v6694, %v6693
        %v6710 = vpack.c.b16 %v6696, %v6695
        %v6711 = vpack.c.b16 %v6698, %v6697
        %v6712 = vpack.c.b16 %v6700, %v6699
        %v6713 = vpack.c.b16 %v6702, %v6701
        %v6714 = vpack.c.b16 %v6704, %v6703
        %v6715 = vpack.c.b16 %v6706, %v6705
        %6725 = vmatpush.bf16.msra.mxu0 %v6669
        %6726 = vmatpush.bf16.msra.mxu0 %v6667
        %6727 = vmatpush.bf16.msra.mxu0 %v6665
        %6728 = vmatpush.bf16.msra.mxu0 %v6663
        %6729 = vmatpush.bf16.msra.mxu0 %v6661
        %6730 = vmatpush.bf16.msra.mxu0 %v6659
        %6731 = vmatpush.bf16.msra.mxu0 %v6657
        %6732 = vmatpush.bf16.msra.mxu0 %v6655
        %6733 = vmatmul.bf16.gmra.mxu0 %v6707
        %v6734 = vpop.f32.mrf.mxu0
        %v6735 = vadd.f32 0.0, %v6734
        %v6736 = vpop.f32.mrf.mxu0
        %v6737 = vadd.f32 0.0, %v6736
        %6738 = vmatmul.bf16.gmra.mxu0 %v6708
        %v6739 = vpop.f32.mrf.mxu0
        %v6740 = vadd.f32 0.0, %v6739
        %v6741 = vpop.f32.mrf.mxu0
        %v6742 = vadd.f32 0.0, %v6741
        %6743 = vmatmul.bf16.gmra.mxu0 %v6709
        %v6744 = vpop.f32.mrf.mxu0
        %v6745 = vadd.f32 0.0, %v6744
        %v6746 = vpop.f32.mrf.mxu0
        %v6747 = vadd.f32 0.0, %v6746
        %6748 = vmatmul.bf16.gmra.mxu0 %v6710
        %v6749 = vpop.f32.mrf.mxu0
        %v6750 = vadd.f32 0.0, %v6749
        %v6751 = vpop.f32.mrf.mxu0
        %v6752 = vadd.f32 0.0, %v6751
        %6753 = vmatmul.bf16.gmra.mxu0 %v6711
        %v6754 = vpop.f32.mrf.mxu0
        %v6755 = vadd.f32 0.0, %v6754
        %v6756 = vpop.f32.mrf.mxu0
        %v6757 = vadd.f32 0.0, %v6756
        %6758 = vmatmul.bf16.gmra.mxu0 %v6712
        %v6759 = vpop.f32.mrf.mxu0
        %v6760 = vadd.f32 0.0, %v6759
        %v6761 = vpop.f32.mrf.mxu0
        %v6762 = vadd.f32 0.0, %v6761
        %6763 = vmatmul.bf16.gmra.mxu0 %v6713
        %v6764 = vpop.f32.mrf.mxu0
        %v6765 = vadd.f32 0.0, %v6764
        %v6766 = vpop.f32.mrf.mxu0
        %v6767 = vadd.f32 0.0, %v6766
        %6768 = vmatmul.bf16.gmra.mxu0 %v6714
        %v6769 = vpop.f32.mrf.mxu0
        %v6770 = vadd.f32 0.0, %v6769
        %v6771 = vpop.f32.mrf.mxu0
        %v6772 = vadd.f32 0.0, %v6771
        %6773 = vmatmul.bf16.gmra.mxu0 %v6715
        %v6774 = vpop.f32.mrf.mxu0
        %v6775 = vadd.f32 0.0, %v6774
        %v6776 = vpop.f32.mrf.mxu0
        %v6777 = vadd.f32 0.0, %v6776
        %6778 = vdwg.mxu0
        %6779 = vmatpush.bf16.msra.mxu0 %v6670
        %6780 = vmatpush.bf16.msra.mxu0 %v6668
        %6781 = vmatpush.bf16.msra.mxu0 %v6666
        %6782 = vmatpush.bf16.msra.mxu0 %v6664
        %6783 = vmatpush.bf16.msra.mxu0 %v6662
        %6784 = vmatpush.bf16.msra.mxu0 %v6660
        %6785 = vmatpush.bf16.msra.mxu0 %v6658
        %6786 = vmatpush.bf16.msra.mxu0 %v6656
        %6787 = vmatmul.bf16.gmra.mxu0 %v6707
        %v6788 = vpop.f32.mrf.mxu0
        %v6789 = vadd.f32 0.0, %v6788
        %v6790 = vpop.f32.mrf.mxu0
        %v6791 = vadd.f32 0.0, %v6790
        %6792 = vmatmul.bf16.gmra.mxu0 %v6708
        %v6793 = vpop.f32.mrf.mxu0
        %v6794 = vadd.f32 0.0, %v6793
        %v6795 = vpop.f32.mrf.mxu0
        %v6796 = vadd.f32 0.0, %v6795
        %6797 = vmatmul.bf16.gmra.mxu0 %v6709
        %v6798 = vpop.f32.mrf.mxu0
        %v6799 = vadd.f32 0.0, %v6798
        %v6800 = vpop.f32.mrf.mxu0
        %v6801 = vadd.f32 0.0, %v6800
        %6802 = vmatmul.bf16.gmra.mxu0 %v6710
        %v6803 = vpop.f32.mrf.mxu0
        %v6804 = vadd.f32 0.0, %v6803
        %v6805 = vpop.f32.mrf.mxu0
        %v6806 = vadd.f32 0.0, %v6805
        %6807 = vmatmul.bf16.gmra.mxu0 %v6711
        %v6808 = vpop.f32.mrf.mxu0
        %v6809 = vadd.f32 0.0, %v6808
        %v6810 = vpop.f32.mrf.mxu0
        %v6811 = vadd.f32 0.0, %v6810
        %6812 = vmatmul.bf16.gmra.mxu0 %v6712
        %v6813 = vpop.f32.mrf.mxu0
        %v6814 = vadd.f32 0.0, %v6813
        %v6815 = vpop.f32.mrf.mxu0
        %v6816 = vadd.f32 0.0, %v6815
        %6817 = vmatmul.bf16.gmra.mxu0 %v6713
        %v6818 = vpop.f32.mrf.mxu0
        %v6819 = vadd.f32 0.0, %v6818
        %v6820 = vpop.f32.mrf.mxu0
        %v6821 = vadd.f32 0.0, %v6820
        %6822 = vmatmul.bf16.gmra.mxu0 %v6714
        %v6823 = vpop.f32.mrf.mxu0
        %v6824 = vadd.f32 0.0, %v6823
        %v6825 = vpop.f32.mrf.mxu0
        %v6826 = vadd.f32 0.0, %v6825
        %6827 = vmatmul.bf16.gmra.mxu0 %v6715
        %v6828 = vpop.f32.mrf.mxu0
        %v6829 = vadd.f32 0.0, %v6828
        %v6830 = vpop.f32.mrf.mxu0
        %v6831 = vadd.f32 0.0, %v6830
        %6832 = vdwg.mxu0
        %6835 = vrot.lane.b32.xlu0 %v6789, 17
        %v6836 = vpop.permute.xlu0 %6835
        %6837 = vrot.lane.b32.xlu0 %v6791, 17
        %v6838 = vpop.permute.xlu0 %6837
        %6843 = vrot.lane.b32.xlu0 %v6735, 17
        %v6844 = vpop.permute.xlu0 %6843
        %6845 = vrot.lane.b32.xlu0 %v6737, 17
        %v6846 = vpop.permute.xlu0 %6845
        %vm6847 = vcmask 138240
        %v6848 = vsel %vm6847, %v6844, %v6836
        %v6849 = vsel %vm6847, %v6846, %v6838
        %v6854 = vsel %vm6847, %v6836, %v6844
        %v6855 = vsel %vm6847, %v6838, %v6846
        %v6856 = vmul.f32 %v6854, %v450
        %v6857 = vmul.f32 %v6848, %v451
        %v6858 = vmul.f32 %v6855, %v450
        %v6859 = vmul.f32 %v6849, %v451
        %6862 = vrot.lane.b32.xlu0 %v6794, 16
        %v6863 = vpop.permute.xlu0 %6862
        %6864 = vrot.lane.b32.xlu0 %v6796, 16
        %v6865 = vpop.permute.xlu0 %6864
        %6870 = vrot.lane.b32.xlu0 %v6740, 16
        %v6871 = vpop.permute.xlu0 %6870
        %6872 = vrot.lane.b32.xlu0 %v6742, 16
        %v6873 = vpop.permute.xlu0 %6872
        %vm6874 = vcmask 130048
        %v6875 = vsel %vm6874, %v6871, %v6863
        %v6876 = vsel %vm6874, %v6873, %v6865
        %v6881 = vsel %vm6874, %v6863, %v6871
        %v6882 = vsel %vm6874, %v6865, %v6873
        %v6883 = vmul.f32 %v6881, %v462
        %v6884 = vmul.f32 %v6875, %v463
        %v6885 = vmul.f32 %v6882, %v462
        %v6886 = vmul.f32 %v6876, %v463
        %v6887 = vadd.f32 %v6856, %v6883
        %v6888 = vadd.f32 %v6857, %v6884
        %v6889 = vadd.f32 %v6858, %v6885
        %v6890 = vadd.f32 %v6859, %v6886
        %6893 = vrot.lane.b32.xlu0 %v6799, 15
        %v6894 = vpop.permute.xlu0 %6893
        %6895 = vrot.lane.b32.xlu0 %v6801, 15
        %v6896 = vpop.permute.xlu0 %6895
        %6901 = vrot.lane.b32.xlu0 %v6745, 15
        %v6902 = vpop.permute.xlu0 %6901
        %6903 = vrot.lane.b32.xlu0 %v6747, 15
        %v6904 = vpop.permute.xlu0 %6903
        %vm6905 = vcmask 121856
        %v6906 = vsel %vm6905, %v6902, %v6894
        %v6907 = vsel %vm6905, %v6904, %v6896
        %v6912 = vsel %vm6905, %v6894, %v6902
        %v6913 = vsel %vm6905, %v6896, %v6904
        %v6914 = vmul.f32 %v6912, %v476
        %v6915 = vmul.f32 %v6906, %v477
        %v6916 = vmul.f32 %v6913, %v476
        %v6917 = vmul.f32 %v6907, %v477
        %v6918 = vadd.f32 %v6887, %v6914
        %v6919 = vadd.f32 %v6888, %v6915
        %v6920 = vadd.f32 %v6889, %v6916
        %v6921 = vadd.f32 %v6890, %v6917
        %6924 = vrot.lane.b32.xlu0 %v6804, 1
        %v6925 = vpop.permute.xlu0 %6924
        %6926 = vrot.lane.b32.xlu0 %v6806, 1
        %v6927 = vpop.permute.xlu0 %6926
        %6932 = vrot.lane.b32.xlu0 %v6750, 1
        %v6933 = vpop.permute.xlu0 %6932
        %6934 = vrot.lane.b32.xlu0 %v6752, 1
        %v6935 = vpop.permute.xlu0 %6934
        %vm6936 = vcmask 7168
        %v6937 = vsel %vm6936, %v6933, %v6925
        %v6938 = vsel %vm6936, %v6935, %v6927
        %v6943 = vsel %vm6936, %v6925, %v6933
        %v6944 = vsel %vm6936, %v6927, %v6935
        %v6945 = vmul.f32 %v6943, %v490
        %v6946 = vmul.f32 %v6937, %v491
        %v6947 = vmul.f32 %v6944, %v490
        %v6948 = vmul.f32 %v6938, %v491
        %v6949 = vadd.f32 %v6918, %v6945
        %v6950 = vadd.f32 %v6919, %v6946
        %v6951 = vadd.f32 %v6920, %v6947
        %v6952 = vadd.f32 %v6921, %v6948
        %v6953 = vadd.f32 %v6949, %v6755
        %v6954 = vadd.f32 %v6950, %v6809
        %v6955 = vadd.f32 %v6951, %v6757
        %v6956 = vadd.f32 %v6952, %v6811
        %6961 = vrot.lane.b32.xlu0 %v6760, 127
        %v6962 = vpop.permute.xlu0 %6961
        %6963 = vrot.lane.b32.xlu0 %v6814, 127
        %v6964 = vpop.permute.xlu0 %6963
        %6965 = vrot.lane.b32.xlu0 %v6762, 127
        %v6966 = vpop.permute.xlu0 %6965
        %6967 = vrot.lane.b32.xlu0 %v6816, 127
        %v6968 = vpop.permute.xlu0 %6967
        %vm6969 = vcmask 1039360
        %v6970 = vsel %vm6969, %v6962, %v6964
        %v6971 = vsel %vm6969, %v6966, %v6968
        %v6978 = vsel %vm6969, %v6964, %v6962
        %v6979 = vsel %vm6969, %v6968, %v6966
        %v6980 = vmul.f32 %v6970, %v498
        %v6981 = vmul.f32 %v6978, %v499
        %v6982 = vmul.f32 %v6971, %v498
        %v6983 = vmul.f32 %v6979, %v499
        %v6984 = vadd.f32 %v6953, %v6980
        %v6985 = vadd.f32 %v6954, %v6981
        %v6986 = vadd.f32 %v6955, %v6982
        %v6987 = vadd.f32 %v6956, %v6983
        %6992 = vrot.lane.b32.xlu0 %v6765, 113
        %v6993 = vpop.permute.xlu0 %6992
        %6994 = vrot.lane.b32.xlu0 %v6819, 113
        %v6995 = vpop.permute.xlu0 %6994
        %6996 = vrot.lane.b32.xlu0 %v6767, 113
        %v6997 = vpop.permute.xlu0 %6996
        %6998 = vrot.lane.b32.xlu0 %v6821, 113
        %v6999 = vpop.permute.xlu0 %6998
        %vm7000 = vcmask 924672
        %v7001 = vsel %vm7000, %v6993, %v6995
        %v7002 = vsel %vm7000, %v6997, %v6999
        %v7009 = vsel %vm7000, %v6995, %v6993
        %v7010 = vsel %vm7000, %v6999, %v6997
        %v7011 = vmul.f32 %v7001, %v514
        %v7012 = vmul.f32 %v7009, %v515
        %v7013 = vmul.f32 %v7002, %v514
        %v7014 = vmul.f32 %v7010, %v515
        %v7015 = vadd.f32 %v6984, %v7011
        %v7016 = vadd.f32 %v6985, %v7012
        %v7017 = vadd.f32 %v6986, %v7013
        %v7018 = vadd.f32 %v6987, %v7014
        %7023 = vrot.lane.b32.xlu0 %v6770, 112
        %v7024 = vpop.permute.xlu0 %7023
        %7025 = vrot.lane.b32.xlu0 %v6824, 112
        %v7026 = vpop.permute.xlu0 %7025
        %7027 = vrot.lane.b32.xlu0 %v6772, 112
        %v7028 = vpop.permute.xlu0 %7027
        %7029 = vrot.lane.b32.xlu0 %v6826, 112
        %v7030 = vpop.permute.xlu0 %7029
        %vm7031 = vcmask 916480
        %v7032 = vsel %vm7031, %v7024, %v7026
        %v7033 = vsel %vm7031, %v7028, %v7030
        %v7040 = vsel %vm7031, %v7026, %v7024
        %v7041 = vsel %vm7031, %v7030, %v7028
        %v7042 = vmul.f32 %v7032, %v522
        %v7043 = vmul.f32 %v7040, %v523
        %v7044 = vmul.f32 %v7033, %v522
        %v7045 = vmul.f32 %v7041, %v523
        %v7046 = vadd.f32 %v7015, %v7042
        %v7047 = vadd.f32 %v7016, %v7043
        %v7048 = vadd.f32 %v7017, %v7044
        %v7049 = vadd.f32 %v7018, %v7045
        %7054 = vrot.lane.b32.xlu0 %v6775, 111
        %v7055 = vpop.permute.xlu0 %7054
        %7056 = vrot.lane.b32.xlu0 %v6829, 111
        %v7057 = vpop.permute.xlu0 %7056
        %7058 = vrot.lane.b32.xlu0 %v6777, 111
        %v7059 = vpop.permute.xlu0 %7058
        %7060 = vrot.lane.b32.xlu0 %v6831, 111
        %v7061 = vpop.permute.xlu0 %7060
        %vm7062 = vcmask 908288
        %v7063 = vsel %vm7062, %v7055, %v7057
        %v7064 = vsel %vm7062, %v7059, %v7061
        %v7071 = vsel %vm7062, %v7057, %v7055
        %v7072 = vsel %vm7062, %v7061, %v7059
        %v7073 = vmul.f32 %v7063, %v530
        %v7074 = vmul.f32 %v7071, %v531
        %v7075 = vmul.f32 %v7064, %v530
        %v7076 = vmul.f32 %v7072, %v531
        %v7077 = vadd.f32 %v7046, %v7073
        %v7078 = vadd.f32 %v7047, %v7074
        %v7079 = vadd.f32 %v7048, %v7075
        %v7080 = vadd.f32 %v7049, %v7076
        %v7081 = vld [vmem:[%s421] sm:$0xff]
        %v7082 = vld [vmem:[%s421 + $0x8] sm:$0xff]
        %7084 = vset.pattern.permute.xlu0 0
        %7085 = vperm.xlu0 %7084, %v7081
        %v7086 = vpop.permute.xlu0 %7085
        %7089 = vset.pattern.permute.xlu0 0
        %7090 = vperm.xlu0 %7089, %v7082
        %v7091 = vpop.permute.xlu0 %7090
        %v7093 = vadd.f32 %v7077, %v7086
        %v7094 = vadd.f32 %v7078, %v7086
        %v7095 = vadd.f32 %v7079, %v7091
        %v7096 = vadd.f32 %v7080, %v7091
        %s7097 = smul.u32 %s26, 4
        %s7098 = smul.addr %s7097, 8
        %s7099 = scalar_lea.vmem [#allocation3], %s7098
        %7100 = vst [vmem:[%s7099] sm:$0xff] %v7093
        %7101 = vst [vmem:[%s7099 + $0x8] sm:$0xff] %v7094
        %7102 = vst [vmem:[%s7099 + $0x10] sm:$0xff] %v7095
        %7103 = vst [vmem:[%s7099 + $0x18] sm:$0xff] %v7096
        %p7104 = scmp.eq.s32.totalorder %s26, 5
        // Predicated region
        $region69: #{center_head_forward.1} parent=55 // pred_check
          %p7105 = pneg %p7104
        $region70: #{center_head_forward.1} parent=55 // pred_check_branch
          %7107 = sbr.rel (%p7105) target = $region72
        $region71: #{center_head_forward.1} parent=55 // pred_region
          %v7108 = vld [vmem:[#allocation3] sm:$0xff]
          %v7109 = vld [vmem:[#allocation3 + $0x8] sm:$0xff]
          %s7110 = scalar_lea.vmem [#allocation3], 32
          %v7111 = vld [vmem:[%s7110] sm:$0xff]
          %v7112 = vld [vmem:[%s7110 + $0x8] sm:$0xff]
          %s7113 = scalar_lea.vmem [#allocation3], 64
          %v7114 = vld [vmem:[%s7113] sm:$0xff]
          %v7115 = vld [vmem:[%s7113 + $0x8] sm:$0xff]
          %v7116 = vmul.f32 %v7114, 1.442695
          %v7117 = vpow.pop %v7116
          %v7118 = vmul.f32 %v7115, 1.442695
          %v7119 = vpow.pop %v7118
          %s7120 = scalar_lea.vmem [#allocation3], 96
          %v7121 = vld [vmem:[%s7120] sm:$0xff]
          %v7122 = vld [vmem:[%s7120 + $0x8] sm:$0xff]
          %s7123 = scalar_lea.vmem [#allocation3], 128
          %v7124 = vld [vmem:[%s7123] sm:$0xff]
          %v7125 = vld [vmem:[%s7123 + $0x8] sm:$0xff]
          %v7126 = vmax.f32 %v7124, 0.0
          %v7127 = vmax.f32 %v7125, 0.0
          %v7128 = vmin.f32 %v7126, 1.0
          %v7129 = vmin.f32 %v7127, 1.0
          %s7130 = scalar_lea.vmem [#allocation3], 160
          %v7131 = vld [vmem:[%s7130] sm:$0xff]
          %v7132 = vld [vmem:[%s7130 + $0x8] sm:$0xff]
          %v7133 = vsub.f32 0.0, %v7131
          %v7134 = vsub.f32 0.0, %v7132
          %v7135 = vmul.f32 %v7133, 1.442695
          %v7136 = vpow.pop %v7135
          %v7137 = vmul.f32 %v7134, 1.442695
          %v7138 = vpow.pop %v7137
          %v7139 = vadd.f32 %v7136, 1.0
          %v7140 = vadd.f32 %v7138, 1.0
          %v7141 = vrcp.pop %v7139
          %v7142 = vmul.f32 %v7139, %v7141
          %v7143 = vsub.f32 1.0, %v7142
          %v7144 = vmul.f32 %v7141, %v7143
          %v7145 = vadd.f32 %v7141, %v7144
          %vm7146 = vweird.f32 %v7139
          %vm7147 = vweird.f32 %v7141
          %vm7148 = vmor %vm7146, %vm7147
          %v7149 = vsel %vm7148, %v7141, %v7145
          %v7150 = vand.u32 2147483647, %v7139
          %vm7151 = vcmp.eq.f32.partialorder %v7150, 8.507059e+37
          %v7152 = vand.u32 %v7139, 2147483648
          %v7153 = vor.u32 1.1754944e-38, %v7152
          %v7154 = vsel %vm7151, %v7153, %v7149
          %v7155 = vmul.f32 1.0, %v7154
          %v7156 = vrcp.pop %v7140
          %v7157 = vmul.f32 %v7140, %v7156
          %v7158 = vsub.f32 1.0, %v7157
          %v7159 = vmul.f32 %v7156, %v7158
          %v7160 = vadd.f32 %v7156, %v7159
          %vm7161 = vweird.f32 %v7140
          %vm7162 = vweird.f32 %v7156
          %vm7163 = vmor %vm7161, %vm7162
          %v7164 = vsel %vm7163, %v7156, %v7160
          %v7165 = vand.u32 2147483647, %v7140
          %vm7166 = vcmp.eq.f32.partialorder %v7165, 8.507059e+37
          %v7167 = vand.u32 %v7140, 2147483648
          %v7168 = vor.u32 1.1754944e-38, %v7167
          %v7169 = vsel %vm7166, %v7168, %v7164
          %v7170 = vmul.f32 1.0, %v7169
          %v7171 = vperm.slane %v7128, 0
          %v7172 = vperm.slane %v7129, 0
          %v7173 = vmul.f32 %v7155, %v7171
          %v7174 = vmul.f32 %v7170, %v7172
          %v7175 = vcvt.s32.f32 %v428
          %v7176 = vcvt.s32.f32 %v429
          %v7177 = vadd.f32 %v7175, %v7108
          %v7178 = vadd.f32 %v7176, %v7109
          %v7179 = vmul.f32 %v7177, 0.2
          %v7180 = vmul.f32 %v7178, 0.2
          %v7181 = vadd.f32 %v7179, -1.6
          %v7182 = vadd.f32 %v7180, -1.6
          %v7183 = vcvt.s32.f32 %v426
          %v7184 = vcvt.s32.f32 %v427
          %v7185 = vadd.f32 %v7183, %v7108
          %v7186 = vadd.f32 %v7184, %v7109
          %v7187 = vmul.f32 %v7185, 0.2
          %v7188 = vmul.f32 %v7186, 0.2
          %v7189 = vadd.f32 %v7187, -1.6
          %v7190 = vadd.f32 %v7188, -1.6
          %v7193 = vrot.slane %v7121, 1
          %v7194 = vrot.slane %v7122, 1
          %v7197 = vrcp.pop %v7193
          %v7198 = vmul.f32 %v7193, %v7197
          %v7199 = vsub.f32 1.0, %v7198
          %v7200 = vmul.f32 %v7197, %v7199
          %v7201 = vadd.f32 %v7197, %v7200
          %vm7202 = vweird.f32 %v7193
          %vm7203 = vweird.f32 %v7197
          %vm7204 = vmor %vm7202, %vm7203
          %v7205 = vsel %vm7204, %v7197, %v7201
          %v7206 = vand.u32 2147483647, %v7193
          %vm7207 = vcmp.eq.f32.partialorder %v7206, 8.507059e+37
          %v7208 = vand.u32 %v7193, 2147483648
          %v7209 = vor.u32 1.1754944e-38, %v7208
          %v7210 = vsel %vm7207, %v7209, %v7205
          %v7211 = vmul.f32 %v7121, %v7210
          %v7212 = vrcp.pop %v7194
          %v7213 = vmul.f32 %v7194, %v7212
          %v7214 = vsub.f32 1.0, %v7213
          %v7215 = vmul.f32 %v7212, %v7214
          %v7216 = vadd.f32 %v7212, %v7215
          %vm7217 = vweird.f32 %v7194
          %vm7218 = vweird.f32 %v7212
          %vm7219 = vmor %vm7217, %vm7218
          %v7220 = vsel %vm7219, %v7212, %v7216
          %v7221 = vand.u32 2147483647, %v7194
          %vm7222 = vcmp.eq.f32.partialorder %v7221, 8.507059e+37
          %v7223 = vand.u32 %v7194, 2147483648
          %v7224 = vor.u32 1.1754944e-38, %v7223
          %v7225 = vsel %vm7222, %v7224, %v7220
          %v7226 = vmul.f32 %v7122, %v7225
          %v7227 = vand.u32 2147483647, %v7211
          %v7228 = vand.u32 2147483647, %v7226
          %vm7229 = vcmp.gt.f32.partialorder %v7227, 2.4142137
          %vm7230 = vcmp.gt.f32.partialorder %v7228, 2.4142137
          %vm7231 = vcmp.gt.f32.partialorder %v7227, 0.41421357
          %vm7232 = vcmp.gt.f32.partialorder %v7228, 0.41421357
          %v7233 = vsel %vm7229, %v7227, 1.0
          %v7234 = vsel %vm7230, %v7228, 1.0
          %v7235 = vrcp.pop %v7233
          %v7236 = vmul.f32 %v7233, %v7235
          %v7237 = vsub.f32 1.0, %v7236
          %v7238 = vmul.f32 %v7235, %v7237
          %v7239 = vadd.f32 %v7235, %v7238
          %vm7240 = vweird.f32 %v7233
          %vm7241 = vweird.f32 %v7235
          %vm7242 = vmor %vm7240, %vm7241
          %v7243 = vsel %vm7242, %v7235, %v7239
          %v7244 = vand.u32 2147483647, %v7233
          %vm7245 = vcmp.eq.f32.partialorder %v7244, 8.507059e+37
          %v7246 = vand.u32 %v7233, 2147483648
          %v7247 = vor.u32 1.1754944e-38, %v7246
          %v7248 = vsel %vm7245, %v7247, %v7243
          %v7249 = vmul.f32 -1.0, %v7248
          %v7250 = vrcp.pop %v7234
          %v7251 = vmul.f32 %v7234, %v7250
          %v7252 = vsub.f32 1.0, %v7251
          %v7253 = vmul.f32 %v7250, %v7252
          %v7254 = vadd.f32 %v7250, %v7253
          %vm7255 = vweird.f32 %v7234
          %vm7256 = vweird.f32 %v7250
          %vm7257 = vmor %vm7255, %vm7256
          %v7258 = vsel %vm7257, %v7250, %v7254
          %v7259 = vand.u32 2147483647, %v7234
          %vm7260 = vcmp.eq.f32.partialorder %v7259, 8.507059e+37
          %v7261 = vand.u32 %v7234, 2147483648
          %v7262 = vor.u32 1.1754944e-38, %v7261
          %v7263 = vsel %vm7260, %v7262, %v7258
          %v7264 = vmul.f32 -1.0, %v7263
          %v7265 = vsub.f32 %v7227, 1.0
          %v7266 = vsub.f32 %v7228, 1.0
          %v7267 = vadd.f32 %v7227, 1.0
          %v7268 = vadd.f32 %v7228, 1.0
          %v7269 = vrcp.pop %v7267
          %v7270 = vmul.f32 %v7267, %v7269
          %v7271 = vsub.f32 1.0, %v7270
          %v7272 = vmul.f32 %v7269, %v7271
          %v7273 = vadd.f32 %v7269, %v7272
          %vm7274 = vweird.f32 %v7267
          %vm7275 = vweird.f32 %v7269
          %vm7276 = vmor %vm7274, %vm7275
          %v7277 = vsel %vm7276, %v7269, %v7273
          %v7278 = vand.u32 2147483647, %v7267
          %vm7279 = vcmp.eq.f32.partialorder %v7278, 8.507059e+37
          %v7280 = vand.u32 %v7267, 2147483648
          %v7281 = vor.u32 1.1754944e-38, %v7280
          %v7282 = vsel %vm7279, %v7281, %v7277
          %v7283 = vmul.f32 %v7265, %v7282
          %v7284 = vrcp.pop %v7268
          %v7285 = vmul.f32 %v7268, %v7284
          %v7286 = vsub.f32 1.0, %v7285
          %v7287 = vmul.f32 %v7284, %v7286
          %v7288 = vadd.f32 %v7284, %v7287
          %vm7289 = vweird.f32 %v7268
          %vm7290 = vweird.f32 %v7284
          %vm7291 = vmor %vm7289, %vm7290
          %v7292 = vsel %vm7291, %v7284, %v7288
          %v7293 = vand.u32 2147483647, %v7268
          %vm7294 = vcmp.eq.f32.partialorder %v7293, 8.507059e+37
          %v7295 = vand.u32 %v7268, 2147483648
          %v7296 = vor.u32 1.1754944e-38, %v7295
          %v7297 = vsel %vm7294, %v7296, %v7292
          %v7298 = vmul.f32 %v7266, %v7297
          %v7299 = vsel %vm7231, %v7283, %v7227
          %v7300 = vsel %vm7232, %v7298, %v7228
          %v7301 = vsel %vm7229, %v7249, %v7299
          %v7302 = vsel %vm7230, %v7264, %v7300
          %v7303 = vsel %vm7231, 0.7853982, 0.0
          %v7304 = vsel %vm7232, 0.7853982, 0.0
          %v7305 = vsel %vm7229, 1.5707964, %v7303
          %v7306 = vsel %vm7230, 1.5707964, %v7304
          %v7307 = vmul.f32 %v7301, %v7301
          %v7308 = vmul.f32 %v7302, %v7302
          %v7309 = vmul.f32 %v7307, 0.080537446
          %v7310 = vmul.f32 %v7308, 0.080537446
          %v7311 = vsub.f32 %v7309, 0.13877685
          %v7312 = vsub.f32 %v7310, 0.13877685
          %v7313 = vmul.f32 %v7311, %v7307
          %v7314 = vmul.f32 %v7312, %v7308
          %v7315 = vadd.f32 %v7313, 0.19977711
          %v7316 = vadd.f32 %v7314, 0.19977711
          %v7317 = vmul.f32 %v7315, %v7307
          %v7318 = vmul.f32 %v7316, %v7308
          %v7319 = vsub.f32 %v7317, 0.3333295
          %v7320 = vsub.f32 %v7318, 0.3333295
          %v7321 = vadd.f32 %v7305, %v7301
          %v7322 = vadd.f32 %v7306, %v7302
          %v7323 = vmul.f32 %v7301, %v7307
          %v7324 = vmul.f32 %v7302, %v7308
          %v7325 = vmul.f32 %v7323, %v7319
          %v7326 = vmul.f32 %v7324, %v7320
          %v7327 = vadd.f32 %v7321, %v7325
          %v7328 = vadd.f32 %v7322, %v7326
          %vm7329 = vcmp.lt.f32.partialorder %v7211, 0.0
          %vm7330 = vcmp.lt.f32.partialorder %v7226, 0.0
          %v7331 = vsub.f32 0.0, %v7327
          %v7332 = vsub.f32 0.0, %v7328
          %v7333 = vsel %vm7329, %v7331, %v7327
          %v7334 = vsel %vm7330, %v7332, %v7328
          %vm7335 = vcmp.gt.f32.partialorder %v7121, 0.0
          %vm7336 = vcmp.gt.f32.partialorder %v7122, 0.0
          %vm7337 = vcmp.lt.f32.partialorder %v7121, 0.0
          %vm7338 = vcmp.lt.f32.partialorder %v7122, 0.0
          %v7339 = vsel %vm7337, 1, 0
          %v7340 = vsel %vm7338, 1, 0
          %v7341 = vrot.slane %v7339, 1
          %v7342 = vrot.slane %v7340, 1
          %vm7343 = vcmp.ne.s32.totalorder %v7341, 0
          %vm7344 = vcmp.ne.s32.totalorder %v7342, 0
          %vm7345 = vmand %vm7335, %vm7343
          %vm7346 = vmand %vm7336, %vm7344
          %vm7347 = vmand %vm7337, %vm7343
          %vm7348 = vmand %vm7338, %vm7344
          %vm7349 = vmor %vm7345, %vm7347
          %vm7350 = vmor %vm7346, %vm7348
          %v7351 = vadd.f32 %v7333, 3.1415927
          %v7352 = vadd.f32 %v7334, 3.1415927
          %v7353 = vsel %vm7349, %v7351, %v7333
          %v7354 = vsel %vm7350, %v7352, %v7334
          %v7357 = vrot.slane %v7181, 5
          %v7358 = vrot.slane %v7182, 5
          %v7363 = vrot.slane %v7189, 5
          %v7364 = vrot.slane %v7190, 5
          %v7369 = vrot.slane %v7111, 3
          %v7370 = vrot.slane %v7112, 3
          %v7375 = vrot.slane %v7117, 2
          %v7376 = vrot.slane %v7119, 2
          %v7381 = vrot.slane %v7353, 7
          %v7382 = vrot.slane %v7354, 7
          %vm7385 = vcmask 1042432
          %v7386 = vsel %vm7385, %v7173, %v7357
          %v7387 = vsel %vm7385, %v7174, %v7358
          %vm7388 = vcmask 1043456
          %v7389 = vsel %vm7388, %v7386, %v7363
          %v7390 = vsel %vm7388, %v7387, %v7364
          %vm7391 = vcmask 1044480
          %v7392 = vsel %vm7391, %v7389, %v7369
          %v7393 = vsel %vm7391, %v7390, %v7370
          %vm7394 = vcmask 1045504
          %v7395 = vsel %vm7394, %v7392, %v7375
          %v7396 = vsel %vm7394, %v7393, %v7376
          %vm7397 = vcmask 1040384
          %v7398 = vsel %vm7397, %v7375, %v7381
          %v7399 = vsel %vm7397, %v7376, %v7382
          %7400 = vst [vmem:[%s9] sm:$0xff] %v7395
          %7401 = vst [vmem:[%s9 + $0x8] sm:$0xff] %v7396
          %7402 = vst [vmem:[%s9 + $0x10] sm:$0x3] %v7398
          %7403 = vst [vmem:[%s9 + $0x18] sm:$0x3] %v7399
        $region72: #{center_head_forward.1} parent=55 // pred_fallthru
          _
        // Predicated region
        $region73: #{center_head_forward.1} parent=55 // pred_check
          %p7404 = pneg %p248
        $region74: #{center_head_forward.1} parent=55 // pred_check_branch
          %7406 = sbr.rel (%p7404) target = $region76
        $region75: #{center_head_forward.1} parent=55 // pred_region
          _
        $region76: #{center_head_forward.1} parent=55 // pred_fallthru
          _
        // Predicated region
        $region77: #{center_head_forward.1} parent=55 // pred_check
          %p7407 = pneg %p248
        $region78: #{center_head_forward.1} parent=55 // pred_check_branch
          %7409 = sbr.rel (%p7407) target = $region80
        $region79: #{center_head_forward.1} parent=55 // pred_region
          _
        $region80: #{center_head_forward.1} parent=55 // pred_fallthru
          _
      $region56: #{center_head_forward.1} parent=5 // pred_fallthru
        _
      %p7410 = scmp.le.s32.totalorder 2, %s21
      // Predicated region
      $region81: #{center_head_forward.1} parent=5 // pred_check
        %p7411 = pneg %p7410
      $region82: #{center_head_forward.1} parent=5 // pred_check_branch
        %7413 = sbr.rel (%p7411) target = $region84
      $region83: #{center_head_forward.1} parent=5 // pred_region
        %s7414 = ssub.s32 %s21, 2
      $region84: #{center_head_forward.1} parent=5 // pred_fallthru
        _
    $region6: #{center_head_forward.1} parent=1 // loop_footer
      %s25 = sadd.s32 1, %s21
    $region7: #{center_head_forward.1} parent=1 // loop_footer_branch
      %20 = sbr.rel target = $region3
    $region8: #{center_head_forward.1} parent=1 // loop_exit
      _
    %7415 = vsyncpa [#allocation5], 1
    %s7416 = scalar_lea.sflag [#allocation5], 1
    %7417 = vsyncpa %s7416, 1
    %7418 = vsyncpa [#allocation7], 1
    %s7419 = scalar_lea.sflag [#allocation7], 1
    %7420 = vsyncpa %s7419, 1

</llo_original>
